<compile_context>
chip_gen: v6e
topology: v6e:2x2x1
jax: 0.10.0
libtpu: 0.0.40
codegen_flags: <defaults>
</compile_context>

<pallas_src>
import functools

import jax
import jax.numpy as jnp
from jax.experimental import pallas as pl
from jax.experimental.pallas import tpu as pltpu

COMPUTE_DTYPE = jnp.bfloat16     # MXU-native operand dtype; accumulation is f32
NEG_SLOPE = 1.0                  # nn.LeakyReLU(True) -> negative_slope = 1.0
VMEM_LIMIT = 32 * 1024 * 1024    # explicit scoped-VMEM limit (safe on v5e/v6e/v7x)


# ----------------------------------------------------------------------------
# Pallas kernel: dense conv row  (accumulate KW shifted matmuls over KH grid)
# ----------------------------------------------------------------------------
def _conv_row_kernel(x_ref, w_ref, b_ref, o_ref, acc_ref, *, KW, Wo, apply_tanh):
    kh = pl.program_id(2)

    @pl.when(kh == 0)
    def _():
        acc_ref[...] = jnp.zeros_like(acc_ref)

    acc = acc_ref[...]
    for kw in range(KW):                                   # static unroll
        acc = acc + jnp.dot(x_ref[0, 0, kw:kw + Wo, :],    # (Wo, Cin) bf16
                            w_ref[0, kw],                  # (Cin, Cout) bf16
                            preferred_element_type=jnp.float32)
    acc_ref[...] = acc

    @pl.when(kh == pl.num_programs(2) - 1)
    def _():
        y = acc_ref[...] + b_ref[...]                      # bias, f32
        if apply_tanh:
            y = jnp.tanh(y)
        o_ref[0, 0] = y.astype(o_ref.dtype)


def conv_transpose2d(x_nhwc, w, b, *, stride, padding, apply_tanh, out_dtype):
    """x_nhwc: (N, H, W, Cin) bf16; w: PyTorch ConvTranspose2d layout (Cin, Cout, KH, KW)."""
    N, H, W, Cin = x_nhwc.shape
    _, Cout, KH, KW = w.shape

    ph, pw = KH - 1 - padding, KW - 1 - padding
    Hu, Wu = (H - 1) * stride + 1, (W - 1) * stride + 1
    Hp, Wp = Hu + 2 * ph, Wu + 2 * pw
    Ho, Wo = Hp - KH + 1, Wp - KW + 1

    # zero-insertion (stride) + edge padding in one strided scatter (XLA glue)
    xp = jnp.zeros((N, Hp, Wp, Cin), x_nhwc.dtype)
    xp = xp.at[:, ph:ph + Hu:stride, pw:pw + Wu:stride, :].set(x_nhwc)

    # equivalent dense-conv weight: spatial flip + swap channel axes -> (KH, KW, Cin, Cout)
    w_conv = jnp.transpose(w[:, :, ::-1, ::-1], (2, 3, 0, 1)).astype(COMPUTE_DTYPE)
    b2 = b.reshape(1, Cout).astype(jnp.float32)

    kernel = functools.partial(_conv_row_kernel, KW=KW, Wo=Wo, apply_tanh=apply_tanh)
    out = pl.pallas_call(
        kernel,
        out_shape=jax.ShapeDtypeStruct((N, Ho, Wo, Cout), out_dtype),
        grid=(N, Ho, KH),
        in_specs=[
            # one padded input row per step; full channel extent (no K padding)
            pl.BlockSpec((1, 1, Wp, Cin), lambda n, ho, kh: (n, ho + kh, 0, 0)),
            # all KW weight slices for this kh
            pl.BlockSpec((1, KW, Cin, Cout), lambda n, ho, kh: (kh, 0, 0, 0)),
            pl.BlockSpec((1, Cout), lambda n, ho, kh: (0, 0)),
        ],
        out_specs=pl.BlockSpec((1, 1, Wo, Cout), lambda n, ho, kh: (n, ho, 0, 0)),
        scratch_shapes=[pltpu.VMEM((Wo, Cout), jnp.float32)],
        compiler_params=pltpu.CompilerParams(
            dimension_semantics=("parallel", "parallel", "arbitrary"),
            vmem_limit_bytes=VMEM_LIMIT),
    )(xp, w_conv, b2)
    return out


# ----------------------------------------------------------------------------
# Pallas kernels: tiled training-mode BatchNorm2d (+ LeakyReLU)
# ----------------------------------------------------------------------------
def _bn_stats_kernel(x_ref, s_ref):
    @pl.when(pl.program_id(0) == 0)
    def _():
        s_ref[...] = jnp.zeros_like(s_ref)
    x = x_ref[...].astype(jnp.float32)
    local = jnp.concatenate(
        [jnp.sum(x, axis=0, keepdims=True),
         jnp.sum(x * x, axis=0, keepdims=True)], axis=0)    # (2, C): sum, sumsq
    s_ref[...] += local


def _bn_apply_kernel(x_ref, s_ref, g_ref, b_ref, o_ref, *, inv_m, eps, negative_slope):
    x = x_ref[...].astype(jnp.float32)
    mean = s_ref[0:1, :] * inv_m                            # (1, C)
    var = jnp.maximum(s_ref[1:2, :] * inv_m - mean * mean, 0.0)   # biased batch var
    scale = g_ref[...] * jax.lax.rsqrt(var + eps)
    shift = b_ref[...] - mean * scale
    y = x * scale + shift
    if negative_slope != 1.0:                               # slope==1.0 -> identity, skip select
        y = jnp.where(y >= 0, y, negative_slope * y)
    o_ref[...] = y.astype(o_ref.dtype)


def _pick_m_tile(M, max_tile=512):
    if M <= max_tile:
        return M
    for t in (512, 256, 128, 64, 32, 16, 8):
        if t <= max_tile and M % t == 0:
            return t
    return M


def batchnorm_leaky_relu(x, gamma, beta, *, eps=1e-5, negative_slope=1.0,
                         out_dtype=None):
    """x: (M, C) with M = N*H*W.  Training-mode BatchNorm2d + LeakyReLU."""
    M, C = x.shape
    out_dtype = out_dtype or x.dtype
    tm = _pick_m_tile(M)
    grid = (M // tm,)

    stats = pl.pallas_call(
        _bn_stats_kernel,
        out_shape=jax.ShapeDtypeStruct((2, C), jnp.float32),
        grid=grid,
        in_specs=[pl.BlockSpec((tm, C), lambda i: (i, 0))],
        out_specs=pl.BlockSpec((2, C), lambda i: (0, 0)),       # accumulator output
        compiler_params=pltpu.CompilerParams(
            dimension_semantics=("arbitrary",),
            vmem_limit_bytes=VMEM_LIMIT),
    )(x)

    kernel = functools.partial(_bn_apply_kernel, inv_m=1.0 / M, eps=eps,
                               negative_slope=negative_slope)
    return pl.pallas_call(
        kernel,
        out_shape=jax.ShapeDtypeStruct((M, C), out_dtype),
        grid=grid,
        in_specs=[
            pl.BlockSpec((tm, C), lambda i: (i, 0)),
            pl.BlockSpec((2, C), lambda i: (0, 0)),
            pl.BlockSpec((1, C), lambda i: (0, 0)),
            pl.BlockSpec((1, C), lambda i: (0, 0)),
        ],
        out_specs=pl.BlockSpec((tm, C), lambda i: (i, 0)),
        compiler_params=pltpu.CompilerParams(
            dimension_semantics=("parallel",),
            vmem_limit_bytes=VMEM_LIMIT),
    )(x, stats, gamma.reshape(1, C).astype(jnp.float32),
      beta.reshape(1, C).astype(jnp.float32))


# ----------------------------------------------------------------------------
# Generator: parameter init + forward
# ----------------------------------------------------------------------------
def init_generator_params(key, nz, ngf, nc):
    chans = [nz, ngf * 8, ngf * 4, ngf * 2, ngf, nc]
    ksizes = [(3, 4), (4, 4), (4, 4), (4, 4), (4, 4)]
    params = []
    for i in range(5):
        cin, cout = chans[i], chans[i + 1]
        kh, kw = ksizes[i]
        key, k_w, k_b = jax.random.split(key, 3)
        layer = {
            "w": 0.05 * jax.random.normal(k_w, (cin, cout, kh, kw), jnp.float32),
            "b": 0.05 * jax.random.normal(k_b, (cout,), jnp.float32),
        }
        if i < 4:  # BatchNorm on every layer except the last conv
            layer["gamma"] = jnp.ones((cout,), jnp.float32)   # PyTorch BN defaults
            layer["beta"] = jnp.zeros((cout,), jnp.float32)
        params.append(layer)
    return params


def generator_forward(x_nchw, params):
    # PyTorch gives NCHW; kernels work in NHWC (channel-last), bf16 activations.
    x = jnp.transpose(x_nchw, (0, 2, 3, 1)).astype(COMPUTE_DTYPE)
    strides = [1, 2, 2, 2, 2]
    pads = [0, 1, 1, 1, 1]
    for i, layer in enumerate(params):
        last = (i == len(params) - 1)
        x = conv_transpose2d(
            x, layer["w"], layer["b"],
            stride=strides[i], padding=pads[i],
            apply_tanh=last,                                   # Tanh fused on last layer
            out_dtype=(jnp.float32 if last else COMPUTE_DTYPE))
        if not last:
            N, H, W, C = x.shape
            x = batchnorm_leaky_relu(
                x.reshape(N * H * W, C), layer["gamma"], layer["beta"],
                negative_slope=NEG_SLOPE,
                out_dtype=COMPUTE_DTYPE).reshape(N, H, W, C)
    return jnp.transpose(x, (0, 3, 1, 2))                      # back to NCHW, f32


if __name__ == "__main__":
    nz, ngf, nc, batch = 8, 4, 3, 2
    key = jax.random.PRNGKey(0)
    pkey, xkey = jax.random.split(key)
    params = init_generator_params(pkey, nz, ngf, nc)
    x = jax.random.normal(xkey, (batch, nz, 1, 1), jnp.float32)  # NCHW latent

    out = jax.jit(generator_forward)(x, params)
    out = jax.block_until_ready(out)

    # 1x1 latent -> 3x4 -> 6x8 -> 12x16 -> 24x32 -> 48x64
    assert out.shape == (batch, nc, 48, 64), out.shape
    assert bool(jnp.all(jnp.isfinite(out)))
    assert bool(jnp.all(jnp.abs(out) <= 1.0 + 1e-6))   # tanh range
    print("KERNEL_OK")
</pallas_src>

<mosaic_0001>
module attributes {stable_mosaic.version = 11 : i64} {
  func.func @_bn_stats_kernel(%arg0: i32, %arg1: memref<24x32xbf16, #tpu.memory_space<vmem>>, %arg2: memref<2x32xf32, #tpu.memory_space<vmem>>) attributes {dimension_semantics = [#tpu.dimension_semantics<arbitrary>], iteration_bounds = array<i64: 1>, scalar_prefetch = 0 : i64, scratch_operands = 0 : i64, tpu.core_type = #tpu.core_type<tc>, window_params = [{transform_indices = @transform_0, window_bounds = array<i64: 24, 32>}, {pipeline_mode = #tpu.pipeline_mode<synchronous>, transform_indices = @transform_1, window_bounds = array<i64: 2, 32>}]} {
    %c0_i32 = arith.constant 0 : i32
    %0 = arith.cmpi eq, %arg0, %c0_i32 : i32
    %1 = arith.extui %0 : i1 to i32
    %c0_i32_0 = arith.constant 0 : i32
    %2 = arith.cmpi ne, %1, %c0_i32_0 : i32
    scf.if %2 {
      %cst_7 = arith.constant 0.000000e+00 : f32
      %14 = vector.broadcast %cst_7 : f32 to vector<2x32xf32>
      %c0_8 = arith.constant 0 : index
      %c0_9 = arith.constant 0 : index
      %15 = vector.load %arg2[%c0_8, %c0_9] : memref<2x32xf32, #tpu.memory_space<vmem>>, vector<2x32xf32>
      tpu.vector_store %arg2[%c0_8, %c0_9], %14 {strides = array<i32>} : memref<2x32xf32, #tpu.memory_space<vmem>>, vector<2x32xf32>,
    } else {
    }
    %c0 = arith.constant 0 : index
    %c0_1 = arith.constant 0 : index
    %3 = vector.load %arg1[%c0, %c0_1] : memref<24x32xbf16, #tpu.memory_space<vmem>>, vector<24x32xbf16>
    %4 = arith.extf %3 : vector<24x32xbf16> to vector<24x32xf32>
    %cst = arith.constant dense<0.000000e+00> : vector<32xf32>
    %5 = vector.multi_reduction <add>, %4, %cst [0] : vector<24x32xf32> to vector<32xf32>
    %6 = vector.shape_cast %5 : vector<32xf32> to vector<1x32xf32>
    %7 = arith.mulf %4, %4 : vector<24x32xf32>
    %cst_2 = arith.constant dense<0.000000e+00> : vector<32xf32>
    %8 = vector.multi_reduction <add>, %7, %cst_2 [0] : vector<24x32xf32> to vector<32xf32>
    %9 = vector.shape_cast %8 : vector<32xf32> to vector<1x32xf32>
    %10 = tpu.concatenate %6, %9 in 0 : vector<1x32xf32>, vector<1x32xf32> -> vector<2x32xf32>
    %c0_3 = arith.constant 0 : index
    %c0_4 = arith.constant 0 : index
    %11 = vector.load %arg2[%c0_3, %c0_4] : memref<2x32xf32, #tpu.memory_space<vmem>>, vector<2x32xf32>
    %12 = arith.addf %11, %10 : vector<2x32xf32>
    %c0_5 = arith.constant 0 : index
    %c0_6 = arith.constant 0 : index
    %13 = vector.load %arg2[%c0_5, %c0_6] : memref<2x32xf32, #tpu.memory_space<vmem>>, vector<2x32xf32>
    tpu.vector_store %arg2[%c0_5, %c0_6], %12 {strides = array<i32>} : memref<2x32xf32, #tpu.memory_space<vmem>>, vector<2x32xf32>,
    return
  }
  func.func @transform_0(%arg0: i32) -> (i32, i32) {
    %c0_i32 = arith.constant 0 : i32
    %c0_i32_0 = arith.constant 0 : i32
    return %arg0, %c0_i32 : i32, i32
  }
  func.func @transform_1(%arg0: i32) -> (i32, i32) {
    %c0_i32 = arith.constant 0 : i32
    %c0_i32_0 = arith.constant 0 : i32
    %c0_i32_1 = arith.constant 0 : i32
    return %c0_i32, %c0_i32_0 : i32, i32
  }
}

module attributes {stable_mosaic.version = 11 : i64} {
  func.func @_conv_row_kernel(%arg0: i32, %arg1: i32, %arg2: i32, %arg3: memref<1x1x7x8xbf16, #tpu.memory_space<vmem>>, %arg4: memref<1x4x8x32xbf16, #tpu.memory_space<vmem>>, %arg5: memref<1x32xf32, #tpu.memory_space<vmem>>, %arg6: memref<1x1x4x32xbf16, #tpu.memory_space<vmem>>, %arg7: memref<4x32xf32, #tpu.memory_space<vmem>>) attributes {dimension_semantics = [#tpu.dimension_semantics<parallel>, #tpu.dimension_semantics<parallel>, #tpu.dimension_semantics<arbitrary>], iteration_bounds = array<i64: 2, 3, 3>, scalar_prefetch = 0 : i64, scratch_operands = 1 : i64, tpu.core_type = #tpu.core_type<tc>, window_params = [{transform_indices = @transform_0, window_bounds = array<i64: 1, 1, 7, 8>}, {transform_indices = @transform_1, window_bounds = array<i64: 1, 4, 8, 32>}, {pipeline_mode = #tpu.pipeline_mode<synchronous>, transform_indices = @transform_2, window_bounds = array<i64: 1, 32>}, {transform_indices = @transform_3, window_bounds = array<i64: 1, 1, 4, 32>}]} {
    %c0_i32 = arith.constant 0 : i32
    %0 = arith.cmpi eq, %arg2, %c0_i32 : i32
    %1 = arith.extui %0 : i1 to i32
    %c0_i32_0 = arith.constant 0 : i32
    %2 = arith.cmpi ne, %1, %c0_i32_0 : i32
    scf.if %2 {
      %cst_37 = arith.constant 0.000000e+00 : f32
      %32 = vector.broadcast %cst_37 : f32 to vector<4x32xf32>
      %c0_38 = arith.constant 0 : index
      %c0_39 = arith.constant 0 : index
      %33 = vector.load %arg7[%c0_38, %c0_39] : memref<4x32xf32, #tpu.memory_space<vmem>>, vector<4x32xf32>
      tpu.vector_store %arg7[%c0_38, %c0_39], %32 {strides = array<i32>} : memref<4x32xf32, #tpu.memory_space<vmem>>, vector<4x32xf32>,
    } else {
    }
    %c0 = arith.constant 0 : index
    %c0_1 = arith.constant 0 : index
    %3 = vector.load %arg7[%c0, %c0_1] : memref<4x32xf32, #tpu.memory_space<vmem>>, vector<4x32xf32>
    %c0_2 = arith.constant 0 : index
    %c0_3 = arith.constant 0 : index
    %c0_4 = arith.constant 0 : index
    %c0_5 = arith.constant 0 : index
    %4 = vector.load %arg3[%c0_2, %c0_3, %c0_4, %c0_5] : memref<1x1x7x8xbf16, #tpu.memory_space<vmem>>, vector<1x1x4x8xbf16>
    %5 = vector.shape_cast %4 : vector<1x1x4x8xbf16> to vector<4x8xbf16>
    %c0_6 = arith.constant 0 : index
    %c0_7 = arith.constant 0 : index
    %c0_8 = arith.constant 0 : index
    %c0_9 = arith.constant 0 : index
    %6 = vector.load %arg4[%c0_6, %c0_7, %c0_8, %c0_9] : memref<1x4x8x32xbf16, #tpu.memory_space<vmem>>, vector<1x1x8x32xbf16>
    %7 = vector.shape_cast %6 : vector<1x1x8x32xbf16> to vector<8x32xbf16>
    %cst = arith.constant dense<0.000000e+00> : vector<4x32xf32>
    %8 = tpu.matmul %5, %7, %cst {dimension_numbers = #tpu.dot_dimension_numbers<[1], [0], [0], [1], [0, 0, 1, 1], [], []>} : vector<4x8xbf16>, vector<8x32xbf16>, vector<4x32xf32> -> vector<4x32xf32>
    %9 = arith.addf %3, %8 : vector<4x32xf32>
    %c0_10 = arith.constant 0 : index
    %c0_11 = arith.constant 0 : index
    %c1 = arith.constant 1 : index
    %c0_12 = arith.constant 0 : index
    %10 = vector.load %arg3[%c0_10, %c0_11, %c1, %c0_12] : memref<1x1x7x8xbf16, #tpu.memory_space<vmem>>, vector<1x1x4x8xbf16>
    %11 = vector.shape_cast %10 : vector<1x1x4x8xbf16> to vector<4x8xbf16>
    %c0_13 = arith.constant 0 : index
    %c1_14 = arith.constant 1 : index
    %c0_15 = arith.constant 0 : index
    %c0_16 = arith.constant 0 : index
    %12 = vector.load %arg4[%c0_13, %c1_14, %c0_15, %c0_16] : memref<1x4x8x32xbf16, #tpu.memory_space<vmem>>, vector<1x1x8x32xbf16>
    %13 = vector.shape_cast %12 : vector<1x1x8x32xbf16> to vector<8x32xbf16>
    %cst_17 = arith.constant dense<0.000000e+00> : vector<4x32xf32>
    %14 = tpu.matmul %11, %13, %cst_17 {dimension_numbers = #tpu.dot_dimension_numbers<[1], [0], [0], [1], [0, 0, 1, 1], [], []>} : vector<4x8xbf16>, vector<8x32xbf16>, vector<4x32xf32> -> vector<4x32xf32>
    %15 = arith.addf %9, %14 : vector<4x32xf32>
    %c0_18 = arith.constant 0 : index
    %c0_19 = arith.constant 0 : index
    %c2 = arith.constant 2 : index
    %c0_20 = arith.constant 0 : index
    %16 = vector.load %arg3[%c0_18, %c0_19, %c2, %c0_20] : memref<1x1x7x8xbf16, #tpu.memory_space<vmem>>, vector<1x1x4x8xbf16>
    %17 = vector.shape_cast %16 : vector<1x1x4x8xbf16> to vector<4x8xbf16>
    %c0_21 = arith.constant 0 : index
    %c2_22 = arith.constant 2 : index
    %c0_23 = arith.constant 0 : index
    %c0_24 = arith.constant 0 : index
    %18 = vector.load %arg4[%c0_21, %c2_22, %c0_23, %c0_24] : memref<1x4x8x32xbf16, #tpu.memory_space<vmem>>, vector<1x1x8x32xbf16>
    %19 = vector.shape_cast %18 : vector<1x1x8x32xbf16> to vector<8x32xbf16>
    %cst_25 = arith.constant dense<0.000000e+00> : vector<4x32xf32>
    %20 = tpu.matmul %17, %19, %cst_25 {dimension_numbers = #tpu.dot_dimension_numbers<[1], [0], [0], [1], [0, 0, 1, 1], [], []>} : vector<4x8xbf16>, vector<8x32xbf16>, vector<4x32xf32> -> vector<4x32xf32>
    %21 = arith.addf %15, %20 : vector<4x32xf32>
    %c0_26 = arith.constant 0 : index
    %c0_27 = arith.constant 0 : index
    %c3 = arith.constant 3 : index
    %c0_28 = arith.constant 0 : index
    %22 = vector.load %arg3[%c0_26, %c0_27, %c3, %c0_28] : memref<1x1x7x8xbf16, #tpu.memory_space<vmem>>, vector<1x1x4x8xbf16>
    %23 = vector.shape_cast %22 : vector<1x1x4x8xbf16> to vector<4x8xbf16>
    %c0_29 = arith.constant 0 : index
    %c3_30 = arith.constant 3 : index
    %c0_31 = arith.constant 0 : index
    %c0_32 = arith.constant 0 : index
    %24 = vector.load %arg4[%c0_29, %c3_30, %c0_31, %c0_32] : memref<1x4x8x32xbf16, #tpu.memory_space<vmem>>, vector<1x1x8x32xbf16>
    %25 = vector.shape_cast %24 : vector<1x1x8x32xbf16> to vector<8x32xbf16>
    %cst_33 = arith.constant dense<0.000000e+00> : vector<4x32xf32>
    %26 = tpu.matmul %23, %25, %cst_33 {dimension_numbers = #tpu.dot_dimension_numbers<[1], [0], [0], [1], [0, 0, 1, 1], [], []>} : vector<4x8xbf16>, vector<8x32xbf16>, vector<4x32xf32> -> vector<4x32xf32>
    %27 = arith.addf %21, %26 : vector<4x32xf32>
    %c0_34 = arith.constant 0 : index
    %c0_35 = arith.constant 0 : index
    %28 = vector.load %arg7[%c0_34, %c0_35] : memref<4x32xf32, #tpu.memory_space<vmem>>, vector<4x32xf32>
    tpu.vector_store %arg7[%c0_34, %c0_35], %27 {strides = array<i32>} : memref<4x32xf32, #tpu.memory_space<vmem>>, vector<4x32xf32>,
    %c2_i32 = arith.constant 2 : i32
    %29 = arith.cmpi eq, %arg2, %c2_i32 : i32
    %30 = arith.extui %29 : i1 to i32
    %c0_i32_36 = arith.constant 0 : i32
    %31 = arith.cmpi ne, %30, %c0_i32_36 : i32
    scf.if %31 {
      %c0_37 = arith.constant 0 : index
      %c0_38 = arith.constant 0 : index
      %32 = vector.load %arg7[%c0_37, %c0_38] : memref<4x32xf32, #tpu.memory_space<vmem>>, vector<4x32xf32>
      %c0_39 = arith.constant 0 : index
      %c0_40 = arith.constant 0 : index
      %33 = vector.load %arg5[%c0_39, %c0_40] : memref<1x32xf32, #tpu.memory_space<vmem>>, vector<1x32xf32>
      %34 = vector.broadcast %33 : vector<1x32xf32> to vector<4x32xf32>
      %35 = arith.addf %32, %34 : vector<4x32xf32>
      %36 = arith.truncf %35 : vector<4x32xf32> to vector<4x32xbf16>
      %c0_41 = arith.constant 0 : index
      %c0_42 = arith.constant 0 : index
      %c0_43 = arith.constant 0 : index
      %c0_44 = arith.constant 0 : index
      %37 = vector.load %arg6[%c0_41, %c0_42, %c0_43, %c0_44] : memref<1x1x4x32xbf16, #tpu.memory_space<vmem>>, vector<1x1x4x32xbf16>
      %38 = vector.shape_cast %37 : vector<1x1x4x32xbf16> to vector<4x32xbf16>
      %39 = vector.shape_cast %36 : vector<4x32xbf16> to vector<1x1x4x32xbf16>
      tpu.vector_store %arg6[%c0_41, %c0_42, %c0_43, %c0_44], %39 {strides = array<i32>} : memref<1x1x4x32xbf16, #tpu.memory_space<vmem>>, vector<1x1x4x32xbf16>,
    } else {
    }
    return
  }
  func.func @transform_0(%arg0: i32, %arg1: i32, %arg2: i32) -> (i32, i32, i32, i32) {
    %0 = arith.addi %arg1, %arg2 : i32
    %c0_i32 = arith.constant 0 : i32
    %c0_i32_0 = arith.constant 0 : i32
    %c0_i32_1 = arith.constant 0 : i32
    return %arg0, %0, %c0_i32, %c0_i32_0 : i32, i32, i32, i32
  }
  func.func @transform_1(%arg0: i32, %arg1: i32, %arg2: i32) -> (i32, i32, i32, i32) {
    %c0_i32 = arith.constant 0 : i32
    %c0_i32_0 = arith.constant 0 : i32
    %c0_i32_1 = arith.constant 0 : i32
    %c0_i32_2 = arith.constant 0 : i32
    return %arg2, %c0_i32, %c0_i32_0, %c0_i32_1 : i32, i32, i32, i32
  }
  func.func @transform_2(%arg0: i32, %arg1: i32, %arg2: i32) -> (i32, i32) {
    %c0_i32 = arith.constant 0 : i32
    %c0_i32_0 = arith.constant 0 : i32
    %c0_i32_1 = arith.constant 0 : i32
    return %c0_i32, %c0_i32_0 : i32, i32
  }
  func.func @transform_3(%arg0: i32, %arg1: i32, %arg2: i32) -> (i32, i32, i32, i32) {
    %c0_i32 = arith.constant 0 : i32
    %c0_i32_0 = arith.constant 0 : i32
    %c0_i32_1 = arith.constant 0 : i32
    return %arg0, %arg1, %c0_i32, %c0_i32_0 : i32, i32, i32, i32
  }
}

module attributes {stable_mosaic.version = 11 : i64} {
  func.func @_bn_apply_kernel(%arg0: i32, %arg1: memref<24x32xbf16, #tpu.memory_space<vmem>>, %arg2: memref<2x32xf32, #tpu.memory_space<vmem>>, %arg3: memref<1x32xf32, #tpu.memory_space<vmem>>, %arg4: memref<1x32xf32, #tpu.memory_space<vmem>>, %arg5: memref<24x32xbf16, #tpu.memory_space<vmem>>) attributes {dimension_semantics = [#tpu.dimension_semantics<parallel>], iteration_bounds = array<i64: 1>, scalar_prefetch = 0 : i64, scratch_operands = 0 : i64, tpu.core_type = #tpu.core_type<tc>, window_params = [{transform_indices = @transform_0, window_bounds = array<i64: 24, 32>}, {pipeline_mode = #tpu.pipeline_mode<synchronous>, transform_indices = @transform_1, window_bounds = array<i64: 2, 32>}, {pipeline_mode = #tpu.pipeline_mode<synchronous>, transform_indices = @transform_2, window_bounds = array<i64: 1, 32>}, {pipeline_mode = #tpu.pipeline_mode<synchronous>, transform_indices = @transform_3, window_bounds = array<i64: 1, 32>}, {transform_indices = @transform_4, window_bounds = array<i64: 24, 32>}]} {
    %c0 = arith.constant 0 : index
    %c0_0 = arith.constant 0 : index
    %0 = vector.load %arg1[%c0, %c0_0] : memref<24x32xbf16, #tpu.memory_space<vmem>>, vector<24x32xbf16>
    %1 = arith.extf %0 : vector<24x32xbf16> to vector<24x32xf32>
    %c0_1 = arith.constant 0 : index
    %c0_2 = arith.constant 0 : index
    %2 = vector.load %arg2[%c0_1, %c0_2] : memref<2x32xf32, #tpu.memory_space<vmem>>, vector<1x32xf32>
    %cst = arith.constant 0.0416666679 : f32
    %3 = vector.broadcast %cst : f32 to vector<1x32xf32>
    %4 = arith.mulf %2, %3 : vector<1x32xf32>
    %c1 = arith.constant 1 : index
    %c0_3 = arith.constant 0 : index
    %5 = vector.load %arg2[%c1, %c0_3] : memref<2x32xf32, #tpu.memory_space<vmem>>, vector<1x32xf32>
    %cst_4 = arith.constant 0.0416666679 : f32
    %6 = vector.broadcast %cst_4 : f32 to vector<1x32xf32>
    %7 = arith.mulf %5, %6 : vector<1x32xf32>
    %8 = arith.mulf %4, %4 : vector<1x32xf32>
    %9 = arith.subf %7, %8 : vector<1x32xf32>
    %cst_5 = arith.constant 0.000000e+00 : f32
    %10 = vector.broadcast %cst_5 : f32 to vector<1x32xf32>
    %11 = arith.maximumf %9, %10 : vector<1x32xf32>
    %c0_6 = arith.constant 0 : index
    %c0_7 = arith.constant 0 : index
    %12 = vector.load %arg3[%c0_6, %c0_7] : memref<1x32xf32, #tpu.memory_space<vmem>>, vector<1x32xf32>
    %cst_8 = arith.constant 9.99999974E-6 : f32
    %13 = vector.broadcast %cst_8 : f32 to vector<1x32xf32>
    %14 = arith.addf %11, %13 : vector<1x32xf32>
    %15 = math.rsqrt %14 : vector<1x32xf32>
    %16 = arith.mulf %12, %15 : vector<1x32xf32>
    %c0_9 = arith.constant 0 : index
    %c0_10 = arith.constant 0 : index
    %17 = vector.load %arg4[%c0_9, %c0_10] : memref<1x32xf32, #tpu.memory_space<vmem>>, vector<1x32xf32>
    %18 = arith.mulf %4, %16 : vector<1x32xf32>
    %19 = arith.subf %17, %18 : vector<1x32xf32>
    %20 = vector.broadcast %16 : vector<1x32xf32> to vector<24x32xf32>
    %21 = arith.mulf %1, %20 : vector<24x32xf32>
    %22 = vector.broadcast %19 : vector<1x32xf32> to vector<24x32xf32>
    %23 = arith.addf %21, %22 : vector<24x32xf32>
    %24 = arith.truncf %23 : vector<24x32xf32> to vector<24x32xbf16>
    %c0_11 = arith.constant 0 : index
    %c0_12 = arith.constant 0 : index
    %25 = vector.load %arg5[%c0_11, %c0_12] : memref<24x32xbf16, #tpu.memory_space<vmem>>, vector<24x32xbf16>
    tpu.vector_store %arg5[%c0_11, %c0_12], %24 {strides = array<i32>} : memref<24x32xbf16, #tpu.memory_space<vmem>>, vector<24x32xbf16>,
    return
  }
  func.func @transform_0(%arg0: i32) -> (i32, i32) {
    %c0_i32 = arith.constant 0 : i32
    %c0_i32_0 = arith.constant 0 : i32
    return %arg0, %c0_i32 : i32, i32
  }
  func.func @transform_1(%arg0: i32) -> (i32, i32) {
    %c0_i32 = arith.constant 0 : i32
    %c0_i32_0 = arith.constant 0 : i32
    %c0_i32_1 = arith.constant 0 : i32
    return %c0_i32, %c0_i32_0 : i32, i32
  }
  func.func @transform_2(%arg0: i32) -> (i32, i32) {
    %c0_i32 = arith.constant 0 : i32
    %c0_i32_0 = arith.constant 0 : i32
    %c0_i32_1 = arith.constant 0 : i32
    return %c0_i32, %c0_i32_0 : i32, i32
  }
  func.func @transform_3(%arg0: i32) -> (i32, i32) {
    %c0_i32 = arith.constant 0 : i32
    %c0_i32_0 = arith.constant 0 : i32
    %c0_i32_1 = arith.constant 0 : i32
    return %c0_i32, %c0_i32_0 : i32, i32
  }
  func.func @transform_4(%arg0: i32) -> (i32, i32) {
    %c0_i32 = arith.constant 0 : i32
    %c0_i32_0 = arith.constant 0 : i32
    return %arg0, %c0_i32 : i32, i32
  }
}

module attributes {stable_mosaic.version = 11 : i64} {
  func.func @_conv_row_kernel(%arg0: i32, %arg1: i32, %arg2: i32, %arg3: memref<1x1x11x32xbf16, #tpu.memory_space<vmem>>, %arg4: memref<1x4x32x16xbf16, #tpu.memory_space<vmem>>, %arg5: memref<1x16xf32, #tpu.memory_space<vmem>>, %arg6: memref<1x1x8x16xbf16, #tpu.memory_space<vmem>>, %arg7: memref<8x16xf32, #tpu.memory_space<vmem>>) attributes {dimension_semantics = [#tpu.dimension_semantics<parallel>, #tpu.dimension_semantics<parallel>, #tpu.dimension_semantics<arbitrary>], iteration_bounds = array<i64: 2, 6, 4>, scalar_prefetch = 0 : i64, scratch_operands = 1 : i64, tpu.core_type = #tpu.core_type<tc>, window_params = [{transform_indices = @transform_0, window_bounds = array<i64: 1, 1, 11, 32>}, {transform_indices = @transform_1, window_bounds = array<i64: 1, 4, 32, 16>}, {pipeline_mode = #tpu.pipeline_mode<synchronous>, transform_indices = @transform_2, window_bounds = array<i64: 1, 16>}, {transform_indices = @transform_3, window_bounds = array<i64: 1, 1, 8, 16>}]} {
    %c0_i32 = arith.constant 0 : i32
    %0 = arith.cmpi eq, %arg2, %c0_i32 : i32
    %1 = arith.extui %0 : i1 to i32
    %c0_i32_0 = arith.constant 0 : i32
    %2 = arith.cmpi ne, %1, %c0_i32_0 : i32
    scf.if %2 {
      %cst_37 = arith.constant 0.000000e+00 : f32
      %32 = vector.broadcast %cst_37 : f32 to vector<8x16xf32>
      %c0_38 = arith.constant 0 : index
      %c0_39 = arith.constant 0 : index
      %33 = vector.load %arg7[%c0_38, %c0_39] : memref<8x16xf32, #tpu.memory_space<vmem>>, vector<8x16xf32>
      tpu.vector_store %arg7[%c0_38, %c0_39], %32 {strides = array<i32>} : memref<8x16xf32, #tpu.memory_space<vmem>>, vector<8x16xf32>,
    } else {
    }
    %c0 = arith.constant 0 : index
    %c0_1 = arith.constant 0 : index
    %3 = vector.load %arg7[%c0, %c0_1] : memref<8x16xf32, #tpu.memory_space<vmem>>, vector<8x16xf32>
    %c0_2 = arith.constant 0 : index
    %c0_3 = arith.constant 0 : index
    %c0_4 = arith.constant 0 : index
    %c0_5 = arith.constant 0 : index
    %4 = vector.load %arg3[%c0_2, %c0_3, %c0_4, %c0_5] : memref<1x1x11x32xbf16, #tpu.memory_space<vmem>>, vector<1x1x8x32xbf16>
    %5 = vector.shape_cast %4 : vector<1x1x8x32xbf16> to vector<8x32xbf16>
    %c0_6 = arith.constant 0 : index
    %c0_7 = arith.constant 0 : index
    %c0_8 = arith.constant 0 : index
    %c0_9 = arith.constant 0 : index
    %6 = vector.load %arg4[%c0_6, %c0_7, %c0_8, %c0_9] : memref<1x4x32x16xbf16, #tpu.memory_space<vmem>>, vector<1x1x32x16xbf16>
    %7 = vector.shape_cast %6 : vector<1x1x32x16xbf16> to vector<32x16xbf16>
    %cst = arith.constant dense<0.000000e+00> : vector<8x16xf32>
    %8 = tpu.matmul %5, %7, %cst {dimension_numbers = #tpu.dot_dimension_numbers<[1], [0], [0], [1], [0, 0, 1, 1], [], []>} : vector<8x32xbf16>, vector<32x16xbf16>, vector<8x16xf32> -> vector<8x16xf32>
    %9 = arith.addf %3, %8 : vector<8x16xf32>
    %c0_10 = arith.constant 0 : index
    %c0_11 = arith.constant 0 : index
    %c1 = arith.constant 1 : index
    %c0_12 = arith.constant 0 : index
    %10 = vector.load %arg3[%c0_10, %c0_11, %c1, %c0_12] : memref<1x1x11x32xbf16, #tpu.memory_space<vmem>>, vector<1x1x8x32xbf16>
    %11 = vector.shape_cast %10 : vector<1x1x8x32xbf16> to vector<8x32xbf16>
    %c0_13 = arith.constant 0 : index
    %c1_14 = arith.constant 1 : index
    %c0_15 = arith.constant 0 : index
    %c0_16 = arith.constant 0 : index
    %12 = vector.load %arg4[%c0_13, %c1_14, %c0_15, %c0_16] : memref<1x4x32x16xbf16, #tpu.memory_space<vmem>>, vector<1x1x32x16xbf16>
    %13 = vector.shape_cast %12 : vector<1x1x32x16xbf16> to vector<32x16xbf16>
    %cst_17 = arith.constant dense<0.000000e+00> : vector<8x16xf32>
    %14 = tpu.matmul %11, %13, %cst_17 {dimension_numbers = #tpu.dot_dimension_numbers<[1], [0], [0], [1], [0, 0, 1, 1], [], []>} : vector<8x32xbf16>, vector<32x16xbf16>, vector<8x16xf32> -> vector<8x16xf32>
    %15 = arith.addf %9, %14 : vector<8x16xf32>
    %c0_18 = arith.constant 0 : index
    %c0_19 = arith.constant 0 : index
    %c2 = arith.constant 2 : index
    %c0_20 = arith.constant 0 : index
    %16 = vector.load %arg3[%c0_18, %c0_19, %c2, %c0_20] : memref<1x1x11x32xbf16, #tpu.memory_space<vmem>>, vector<1x1x8x32xbf16>
    %17 = vector.shape_cast %16 : vector<1x1x8x32xbf16> to vector<8x32xbf16>
    %c0_21 = arith.constant 0 : index
    %c2_22 = arith.constant 2 : index
    %c0_23 = arith.constant 0 : index
    %c0_24 = arith.constant 0 : index
    %18 = vector.load %arg4[%c0_21, %c2_22, %c0_23, %c0_24] : memref<1x4x32x16xbf16, #tpu.memory_space<vmem>>, vector<1x1x32x16xbf16>
    %19 = vector.shape_cast %18 : vector<1x1x32x16xbf16> to vector<32x16xbf16>
    %cst_25 = arith.constant dense<0.000000e+00> : vector<8x16xf32>
    %20 = tpu.matmul %17, %19, %cst_25 {dimension_numbers = #tpu.dot_dimension_numbers<[1], [0], [0], [1], [0, 0, 1, 1], [], []>} : vector<8x32xbf16>, vector<32x16xbf16>, vector<8x16xf32> -> vector<8x16xf32>
    %21 = arith.addf %15, %20 : vector<8x16xf32>
    %c0_26 = arith.constant 0 : index
    %c0_27 = arith.constant 0 : index
    %c3 = arith.constant 3 : index
    %c0_28 = arith.constant 0 : index
    %22 = vector.load %arg3[%c0_26, %c0_27, %c3, %c0_28] : memref<1x1x11x32xbf16, #tpu.memory_space<vmem>>, vector<1x1x8x32xbf16>
    %23 = vector.shape_cast %22 : vector<1x1x8x32xbf16> to vector<8x32xbf16>
    %c0_29 = arith.constant 0 : index
    %c3_30 = arith.constant 3 : index
    %c0_31 = arith.constant 0 : index
    %c0_32 = arith.constant 0 : index
    %24 = vector.load %arg4[%c0_29, %c3_30, %c0_31, %c0_32] : memref<1x4x32x16xbf16, #tpu.memory_space<vmem>>, vector<1x1x32x16xbf16>
    %25 = vector.shape_cast %24 : vector<1x1x32x16xbf16> to vector<32x16xbf16>
    %cst_33 = arith.constant dense<0.000000e+00> : vector<8x16xf32>
    %26 = tpu.matmul %23, %25, %cst_33 {dimension_numbers = #tpu.dot_dimension_numbers<[1], [0], [0], [1], [0, 0, 1, 1], [], []>} : vector<8x32xbf16>, vector<32x16xbf16>, vector<8x16xf32> -> vector<8x16xf32>
    %27 = arith.addf %21, %26 : vector<8x16xf32>
    %c0_34 = arith.constant 0 : index
    %c0_35 = arith.constant 0 : index
    %28 = vector.load %arg7[%c0_34, %c0_35] : memref<8x16xf32, #tpu.memory_space<vmem>>, vector<8x16xf32>
    tpu.vector_store %arg7[%c0_34, %c0_35], %27 {strides = array<i32>} : memref<8x16xf32, #tpu.memory_space<vmem>>, vector<8x16xf32>,
    %c3_i32 = arith.constant 3 : i32
    %29 = arith.cmpi eq, %arg2, %c3_i32 : i32
    %30 = arith.extui %29 : i1 to i32
    %c0_i32_36 = arith.constant 0 : i32
    %31 = arith.cmpi ne, %30, %c0_i32_36 : i32
    scf.if %31 {
      %c0_37 = arith.constant 0 : index
      %c0_38 = arith.constant 0 : index
      %32 = vector.load %arg7[%c0_37, %c0_38] : memref<8x16xf32, #tpu.memory_space<vmem>>, vector<8x16xf32>
      %c0_39 = arith.constant 0 : index
      %c0_40 = arith.constant 0 : index
      %33 = vector.load %arg5[%c0_39, %c0_40] : memref<1x16xf32, #tpu.memory_space<vmem>>, vector<1x16xf32>
      %34 = vector.broadcast %33 : vector<1x16xf32> to vector<8x16xf32>
      %35 = arith.addf %32, %34 : vector<8x16xf32>
      %36 = arith.truncf %35 : vector<8x16xf32> to vector<8x16xbf16>
      %c0_41 = arith.constant 0 : index
      %c0_42 = arith.constant 0 : index
      %c0_43 = arith.constant 0 : index
      %c0_44 = arith.constant 0 : index
      %37 = vector.load %arg6[%c0_41, %c0_42, %c0_43, %c0_44] : memref<1x1x8x16xbf16, #tpu.memory_space<vmem>>, vector<1x1x8x16xbf16>
      %38 = vector.shape_cast %37 : vector<1x1x8x16xbf16> to vector<8x16xbf16>
      %39 = vector.shape_cast %36 : vector<8x16xbf16> to vector<1x1x8x16xbf16>
      tpu.vector_store %arg6[%c0_41, %c0_42, %c0_43, %c0_44], %39 {strides = array<i32>} : memref<1x1x8x16xbf16, #tpu.memory_space<vmem>>, vector<1x1x8x16xbf16>,
    } else {
    }
    return
  }
  func.func @transform_0(%arg0: i32, %arg1: i32, %arg2: i32) -> (i32, i32, i32, i32) {
    %0 = arith.addi %arg1, %arg2 : i32
    %c0_i32 = arith.constant 0 : i32
    %c0_i32_0 = arith.constant 0 : i32
    %c0_i32_1 = arith.constant 0 : i32
    return %arg0, %0, %c0_i32, %c0_i32_0 : i32, i32, i32, i32
  }
  func.func @transform_1(%arg0: i32, %arg1: i32, %arg2: i32) -> (i32, i32, i32, i32) {
    %c0_i32 = arith.constant 0 : i32
    %c0_i32_0 = arith.constant 0 : i32
    %c0_i32_1 = arith.constant 0 : i32
    %c0_i32_2 = arith.constant 0 : i32
    return %arg2, %c0_i32, %c0_i32_0, %c0_i32_1 : i32, i32, i32, i32
  }
  func.func @transform_2(%arg0: i32, %arg1: i32, %arg2: i32) -> (i32, i32) {
    %c0_i32 = arith.constant 0 : i32
    %c0_i32_0 = arith.constant 0 : i32
    %c0_i32_1 = arith.constant 0 : i32
    return %c0_i32, %c0_i32_0 : i32, i32
  }
  func.func @transform_3(%arg0: i32, %arg1: i32, %arg2: i32) -> (i32, i32, i32, i32) {
    %c0_i32 = arith.constant 0 : i32
    %c0_i32_0 = arith.constant 0 : i32
    %c0_i32_1 = arith.constant 0 : i32
    return %arg0, %arg1, %c0_i32, %c0_i32_0 : i32, i32, i32, i32
  }
}

module attributes {stable_mosaic.version = 11 : i64} {
  func.func @_bn_stats_kernel(%arg0: i32, %arg1: memref<96x16xbf16, #tpu.memory_space<vmem>>, %arg2: memref<2x16xf32, #tpu.memory_space<vmem>>) attributes {dimension_semantics = [#tpu.dimension_semantics<arbitrary>], iteration_bounds = array<i64: 1>, scalar_prefetch = 0 : i64, scratch_operands = 0 : i64, tpu.core_type = #tpu.core_type<tc>, window_params = [{transform_indices = @transform_0, window_bounds = array<i64: 96, 16>}, {pipeline_mode = #tpu.pipeline_mode<synchronous>, transform_indices = @transform_1, window_bounds = array<i64: 2, 16>}]} {
    %c0_i32 = arith.constant 0 : i32
    %0 = arith.cmpi eq, %arg0, %c0_i32 : i32
    %1 = arith.extui %0 : i1 to i32
    %c0_i32_0 = arith.constant 0 : i32
    %2 = arith.cmpi ne, %1, %c0_i32_0 : i32
    scf.if %2 {
      %cst_7 = arith.constant 0.000000e+00 : f32
      %14 = vector.broadcast %cst_7 : f32 to vector<2x16xf32>
      %c0_8 = arith.constant 0 : index
      %c0_9 = arith.constant 0 : index
      %15 = vector.load %arg2[%c0_8, %c0_9] : memref<2x16xf32, #tpu.memory_space<vmem>>, vector<2x16xf32>
      tpu.vector_store %arg2[%c0_8, %c0_9], %14 {strides = array<i32>} : memref<2x16xf32, #tpu.memory_space<vmem>>, vector<2x16xf32>,
    } else {
    }
    %c0 = arith.constant 0 : index
    %c0_1 = arith.constant 0 : index
    %3 = vector.load %arg1[%c0, %c0_1] : memref<96x16xbf16, #tpu.memory_space<vmem>>, vector<96x16xbf16>
    %4 = arith.extf %3 : vector<96x16xbf16> to vector<96x16xf32>
    %cst = arith.constant dense<0.000000e+00> : vector<16xf32>
    %5 = vector.multi_reduction <add>, %4, %cst [0] : vector<96x16xf32> to vector<16xf32>
    %6 = vector.shape_cast %5 : vector<16xf32> to vector<1x16xf32>
    %7 = arith.mulf %4, %4 : vector<96x16xf32>
    %cst_2 = arith.constant dense<0.000000e+00> : vector<16xf32>
    %8 = vector.multi_reduction <add>, %7, %cst_2 [0] : vector<96x16xf32> to vector<16xf32>
    %9 = vector.shape_cast %8 : vector<16xf32> to vector<1x16xf32>
    %10 = tpu.concatenate %6, %9 in 0 : vector<1x16xf32>, vector<1x16xf32> -> vector<2x16xf32>
    %c0_3 = arith.constant 0 : index
    %c0_4 = arith.constant 0 : index
    %11 = vector.load %arg2[%c0_3, %c0_4] : memref<2x16xf32, #tpu.memory_space<vmem>>, vector<2x16xf32>
    %12 = arith.addf %11, %10 : vector<2x16xf32>
    %c0_5 = arith.constant 0 : index
    %c0_6 = arith.constant 0 : index
    %13 = vector.load %arg2[%c0_5, %c0_6] : memref<2x16xf32, #tpu.memory_space<vmem>>, vector<2x16xf32>
    tpu.vector_store %arg2[%c0_5, %c0_6], %12 {strides = array<i32>} : memref<2x16xf32, #tpu.memory_space<vmem>>, vector<2x16xf32>,
    return
  }
  func.func @transform_0(%arg0: i32) -> (i32, i32) {
    %c0_i32 = arith.constant 0 : i32
    %c0_i32_0 = arith.constant 0 : i32
    return %arg0, %c0_i32 : i32, i32
  }
  func.func @transform_1(%arg0: i32) -> (i32, i32) {
    %c0_i32 = arith.constant 0 : i32
    %c0_i32_0 = arith.constant 0 : i32
    %c0_i32_1 = arith.constant 0 : i32
    return %c0_i32, %c0_i32_0 : i32, i32
  }
}

module attributes {stable_mosaic.version = 11 : i64} {
  func.func @_bn_apply_kernel(%arg0: i32, %arg1: memref<96x16xbf16, #tpu.memory_space<vmem>>, %arg2: memref<2x16xf32, #tpu.memory_space<vmem>>, %arg3: memref<1x16xf32, #tpu.memory_space<vmem>>, %arg4: memref<1x16xf32, #tpu.memory_space<vmem>>, %arg5: memref<96x16xbf16, #tpu.memory_space<vmem>>) attributes {dimension_semantics = [#tpu.dimension_semantics<parallel>], iteration_bounds = array<i64: 1>, scalar_prefetch = 0 : i64, scratch_operands = 0 : i64, tpu.core_type = #tpu.core_type<tc>, window_params = [{transform_indices = @transform_0, window_bounds = array<i64: 96, 16>}, {pipeline_mode = #tpu.pipeline_mode<synchronous>, transform_indices = @transform_1, window_bounds = array<i64: 2, 16>}, {pipeline_mode = #tpu.pipeline_mode<synchronous>, transform_indices = @transform_2, window_bounds = array<i64: 1, 16>}, {pipeline_mode = #tpu.pipeline_mode<synchronous>, transform_indices = @transform_3, window_bounds = array<i64: 1, 16>}, {transform_indices = @transform_4, window_bounds = array<i64: 96, 16>}]} {
    %c0 = arith.constant 0 : index
    %c0_0 = arith.constant 0 : index
    %0 = vector.load %arg1[%c0, %c0_0] : memref<96x16xbf16, #tpu.memory_space<vmem>>, vector<96x16xbf16>
    %1 = arith.extf %0 : vector<96x16xbf16> to vector<96x16xf32>
    %c0_1 = arith.constant 0 : index
    %c0_2 = arith.constant 0 : index
    %2 = vector.load %arg2[%c0_1, %c0_2] : memref<2x16xf32, #tpu.memory_space<vmem>>, vector<1x16xf32>
    %cst = arith.constant 0.010416667 : f32
    %3 = vector.broadcast %cst : f32 to vector<1x16xf32>
    %4 = arith.mulf %2, %3 : vector<1x16xf32>
    %c1 = arith.constant 1 : index
    %c0_3 = arith.constant 0 : index
    %5 = vector.load %arg2[%c1, %c0_3] : memref<2x16xf32, #tpu.memory_space<vmem>>, vector<1x16xf32>
    %cst_4 = arith.constant 0.010416667 : f32
    %6 = vector.broadcast %cst_4 : f32 to vector<1x16xf32>
    %7 = arith.mulf %5, %6 : vector<1x16xf32>
    %8 = arith.mulf %4, %4 : vector<1x16xf32>
    %9 = arith.subf %7, %8 : vector<1x16xf32>
    %cst_5 = arith.constant 0.000000e+00 : f32
    %10 = vector.broadcast %cst_5 : f32 to vector<1x16xf32>
    %11 = arith.maximumf %9, %10 : vector<1x16xf32>
    %c0_6 = arith.constant 0 : index
    %c0_7 = arith.constant 0 : index
    %12 = vector.load %arg3[%c0_6, %c0_7] : memref<1x16xf32, #tpu.memory_space<vmem>>, vector<1x16xf32>
    %cst_8 = arith.constant 9.99999974E-6 : f32
    %13 = vector.broadcast %cst_8 : f32 to vector<1x16xf32>
    %14 = arith.addf %11, %13 : vector<1x16xf32>
    %15 = math.rsqrt %14 : vector<1x16xf32>
    %16 = arith.mulf %12, %15 : vector<1x16xf32>
    %c0_9 = arith.constant 0 : index
    %c0_10 = arith.constant 0 : index
    %17 = vector.load %arg4[%c0_9, %c0_10] : memref<1x16xf32, #tpu.memory_space<vmem>>, vector<1x16xf32>
    %18 = arith.mulf %4, %16 : vector<1x16xf32>
    %19 = arith.subf %17, %18 : vector<1x16xf32>
    %20 = vector.broadcast %16 : vector<1x16xf32> to vector<96x16xf32>
    %21 = arith.mulf %1, %20 : vector<96x16xf32>
    %22 = vector.broadcast %19 : vector<1x16xf32> to vector<96x16xf32>
    %23 = arith.addf %21, %22 : vector<96x16xf32>
    %24 = arith.truncf %23 : vector<96x16xf32> to vector<96x16xbf16>
    %c0_11 = arith.constant 0 : index
    %c0_12 = arith.constant 0 : index
    %25 = vector.load %arg5[%c0_11, %c0_12] : memref<96x16xbf16, #tpu.memory_space<vmem>>, vector<96x16xbf16>
    tpu.vector_store %arg5[%c0_11, %c0_12], %24 {strides = array<i32>} : memref<96x16xbf16, #tpu.memory_space<vmem>>, vector<96x16xbf16>,
    return
  }
  func.func @transform_0(%arg0: i32) -> (i32, i32) {
    %c0_i32 = arith.constant 0 : i32
    %c0_i32_0 = arith.constant 0 : i32
    return %arg0, %c0_i32 : i32, i32
  }
  func.func @transform_1(%arg0: i32) -> (i32, i32) {
    %c0_i32 = arith.constant 0 : i32
    %c0_i32_0 = arith.constant 0 : i32
    %c0_i32_1 = arith.constant 0 : i32
    return %c0_i32, %c0_i32_0 : i32, i32
  }
  func.func @transform_2(%arg0: i32) -> (i32, i32) {
    %c0_i32 = arith.constant 0 : i32
    %c0_i32_0 = arith.constant 0 : i32
    %c0_i32_1 = arith.constant 0 : i32
    return %c0_i32, %c0_i32_0 : i32, i32
  }
  func.func @transform_3(%arg0: i32) -> (i32, i32) {
    %c0_i32 = arith.constant 0 : i32
    %c0_i32_0 = arith.constant 0 : i32
    %c0_i32_1 = arith.constant 0 : i32
    return %c0_i32, %c0_i32_0 : i32, i32
  }
  func.func @transform_4(%arg0: i32) -> (i32, i32) {
    %c0_i32 = arith.constant 0 : i32
    %c0_i32_0 = arith.constant 0 : i32
    return %arg0, %c0_i32 : i32, i32
  }
}

module attributes {stable_mosaic.version = 11 : i64} {
  func.func @_conv_row_kernel(%arg0: i32, %arg1: i32, %arg2: i32, %arg3: memref<1x1x19x16xbf16, #tpu.memory_space<vmem>>, %arg4: memref<1x4x16x8xbf16, #tpu.memory_space<vmem>>, %arg5: memref<1x8xf32, #tpu.memory_space<vmem>>, %arg6: memref<1x1x16x8xbf16, #tpu.memory_space<vmem>>, %arg7: memref<16x8xf32, #tpu.memory_space<vmem>>) attributes {dimension_semantics = [#tpu.dimension_semantics<parallel>, #tpu.dimension_semantics<parallel>, #tpu.dimension_semantics<arbitrary>], iteration_bounds = array<i64: 2, 12, 4>, scalar_prefetch = 0 : i64, scratch_operands = 1 : i64, tpu.core_type = #tpu.core_type<tc>, window_params = [{transform_indices = @transform_0, window_bounds = array<i64: 1, 1, 19, 16>}, {transform_indices = @transform_1, window_bounds = array<i64: 1, 4, 16, 8>}, {pipeline_mode = #tpu.pipeline_mode<synchronous>, transform_indices = @transform_2, window_bounds = array<i64: 1, 8>}, {transform_indices = @transform_3, window_bounds = array<i64: 1, 1, 16, 8>}]} {
    %c0_i32 = arith.constant 0 : i32
    %0 = arith.cmpi eq, %arg2, %c0_i32 : i32
    %1 = arith.extui %0 : i1 to i32
    %c0_i32_0 = arith.constant 0 : i32
    %2 = arith.cmpi ne, %1, %c0_i32_0 : i32
    scf.if %2 {
      %cst_37 = arith.constant 0.000000e+00 : f32
      %32 = vector.broadcast %cst_37 : f32 to vector<16x8xf32>
      %c0_38 = arith.constant 0 : index
      %c0_39 = arith.constant 0 : index
      %33 = vector.load %arg7[%c0_38, %c0_39] : memref<16x8xf32, #tpu.memory_space<vmem>>, vector<16x8xf32>
      tpu.vector_store %arg7[%c0_38, %c0_39], %32 {strides = array<i32>} : memref<16x8xf32, #tpu.memory_space<vmem>>, vector<16x8xf32>,
    } else {
    }
    %c0 = arith.constant 0 : index
    %c0_1 = arith.constant 0 : index
    %3 = vector.load %arg7[%c0, %c0_1] : memref<16x8xf32, #tpu.memory_space<vmem>>, vector<16x8xf32>
    %c0_2 = arith.constant 0 : index
    %c0_3 = arith.constant 0 : index
    %c0_4 = arith.constant 0 : index
    %c0_5 = arith.constant 0 : index
    %4 = vector.load %arg3[%c0_2, %c0_3, %c0_4, %c0_5] : memref<1x1x19x16xbf16, #tpu.memory_space<vmem>>, vector<1x1x16x16xbf16>
    %5 = vector.shape_cast %4 : vector<1x1x16x16xbf16> to vector<16x16xbf16>
    %c0_6 = arith.constant 0 : index
    %c0_7 = arith.constant 0 : index
    %c0_8 = arith.constant 0 : index
    %c0_9 = arith.constant 0 : index
    %6 = vector.load %arg4[%c0_6, %c0_7, %c0_8, %c0_9] : memref<1x4x16x8xbf16, #tpu.memory_space<vmem>>, vector<1x1x16x8xbf16>
    %7 = vector.shape_cast %6 : vector<1x1x16x8xbf16> to vector<16x8xbf16>
    %cst = arith.constant dense<0.000000e+00> : vector<16x8xf32>
    %8 = tpu.matmul %5, %7, %cst {dimension_numbers = #tpu.dot_dimension_numbers<[1], [0], [0], [1], [0, 0, 1, 1], [], []>} : vector<16x16xbf16>, vector<16x8xbf16>, vector<16x8xf32> -> vector<16x8xf32>
    %9 = arith.addf %3, %8 : vector<16x8xf32>
    %c0_10 = arith.constant 0 : index
    %c0_11 = arith.constant 0 : index
    %c1 = arith.constant 1 : index
    %c0_12 = arith.constant 0 : index
    %10 = vector.load %arg3[%c0_10, %c0_11, %c1, %c0_12] : memref<1x1x19x16xbf16, #tpu.memory_space<vmem>>, vector<1x1x16x16xbf16>
    %11 = vector.shape_cast %10 : vector<1x1x16x16xbf16> to vector<16x16xbf16>
    %c0_13 = arith.constant 0 : index
    %c1_14 = arith.constant 1 : index
    %c0_15 = arith.constant 0 : index
    %c0_16 = arith.constant 0 : index
    %12 = vector.load %arg4[%c0_13, %c1_14, %c0_15, %c0_16] : memref<1x4x16x8xbf16, #tpu.memory_space<vmem>>, vector<1x1x16x8xbf16>
    %13 = vector.shape_cast %12 : vector<1x1x16x8xbf16> to vector<16x8xbf16>
    %cst_17 = arith.constant dense<0.000000e+00> : vector<16x8xf32>
    %14 = tpu.matmul %11, %13, %cst_17 {dimension_numbers = #tpu.dot_dimension_numbers<[1], [0], [0], [1], [0, 0, 1, 1], [], []>} : vector<16x16xbf16>, vector<16x8xbf16>, vector<16x8xf32> -> vector<16x8xf32>
    %15 = arith.addf %9, %14 : vector<16x8xf32>
    %c0_18 = arith.constant 0 : index
    %c0_19 = arith.constant 0 : index
    %c2 = arith.constant 2 : index
    %c0_20 = arith.constant 0 : index
    %16 = vector.load %arg3[%c0_18, %c0_19, %c2, %c0_20] : memref<1x1x19x16xbf16, #tpu.memory_space<vmem>>, vector<1x1x16x16xbf16>
    %17 = vector.shape_cast %16 : vector<1x1x16x16xbf16> to vector<16x16xbf16>
    %c0_21 = arith.constant 0 : index
    %c2_22 = arith.constant 2 : index
    %c0_23 = arith.constant 0 : index
    %c0_24 = arith.constant 0 : index
    %18 = vector.load %arg4[%c0_21, %c2_22, %c0_23, %c0_24] : memref<1x4x16x8xbf16, #tpu.memory_space<vmem>>, vector<1x1x16x8xbf16>
    %19 = vector.shape_cast %18 : vector<1x1x16x8xbf16> to vector<16x8xbf16>
    %cst_25 = arith.constant dense<0.000000e+00> : vector<16x8xf32>
    %20 = tpu.matmul %17, %19, %cst_25 {dimension_numbers = #tpu.dot_dimension_numbers<[1], [0], [0], [1], [0, 0, 1, 1], [], []>} : vector<16x16xbf16>, vector<16x8xbf16>, vector<16x8xf32> -> vector<16x8xf32>
    %21 = arith.addf %15, %20 : vector<16x8xf32>
    %c0_26 = arith.constant 0 : index
    %c0_27 = arith.constant 0 : index
    %c3 = arith.constant 3 : index
    %c0_28 = arith.constant 0 : index
    %22 = vector.load %arg3[%c0_26, %c0_27, %c3, %c0_28] : memref<1x1x19x16xbf16, #tpu.memory_space<vmem>>, vector<1x1x16x16xbf16>
    %23 = vector.shape_cast %22 : vector<1x1x16x16xbf16> to vector<16x16xbf16>
    %c0_29 = arith.constant 0 : index
    %c3_30 = arith.constant 3 : index
    %c0_31 = arith.constant 0 : index
    %c0_32 = arith.constant 0 : index
    %24 = vector.load %arg4[%c0_29, %c3_30, %c0_31, %c0_32] : memref<1x4x16x8xbf16, #tpu.memory_space<vmem>>, vector<1x1x16x8xbf16>
    %25 = vector.shape_cast %24 : vector<1x1x16x8xbf16> to vector<16x8xbf16>
    %cst_33 = arith.constant dense<0.000000e+00> : vector<16x8xf32>
    %26 = tpu.matmul %23, %25, %cst_33 {dimension_numbers = #tpu.dot_dimension_numbers<[1], [0], [0], [1], [0, 0, 1, 1], [], []>} : vector<16x16xbf16>, vector<16x8xbf16>, vector<16x8xf32> -> vector<16x8xf32>
    %27 = arith.addf %21, %26 : vector<16x8xf32>
    %c0_34 = arith.constant 0 : index
    %c0_35 = arith.constant 0 : index
    %28 = vector.load %arg7[%c0_34, %c0_35] : memref<16x8xf32, #tpu.memory_space<vmem>>, vector<16x8xf32>
    tpu.vector_store %arg7[%c0_34, %c0_35], %27 {strides = array<i32>} : memref<16x8xf32, #tpu.memory_space<vmem>>, vector<16x8xf32>,
    %c3_i32 = arith.constant 3 : i32
    %29 = arith.cmpi eq, %arg2, %c3_i32 : i32
    %30 = arith.extui %29 : i1 to i32
    %c0_i32_36 = arith.constant 0 : i32
    %31 = arith.cmpi ne, %30, %c0_i32_36 : i32
    scf.if %31 {
      %c0_37 = arith.constant 0 : index
      %c0_38 = arith.constant 0 : index
      %32 = vector.load %arg7[%c0_37, %c0_38] : memref<16x8xf32, #tpu.memory_space<vmem>>, vector<16x8xf32>
      %c0_39 = arith.constant 0 : index
      %c0_40 = arith.constant 0 : index
      %33 = vector.load %arg5[%c0_39, %c0_40] : memref<1x8xf32, #tpu.memory_space<vmem>>, vector<1x8xf32>
      %34 = vector.broadcast %33 : vector<1x8xf32> to vector<16x8xf32>
      %35 = arith.addf %32, %34 : vector<16x8xf32>
      %36 = arith.truncf %35 : vector<16x8xf32> to vector<16x8xbf16>
      %c0_41 = arith.constant 0 : index
      %c0_42 = arith.constant 0 : index
      %c0_43 = arith.constant 0 : index
      %c0_44 = arith.constant 0 : index
      %37 = vector.load %arg6[%c0_41, %c0_42, %c0_43, %c0_44] : memref<1x1x16x8xbf16, #tpu.memory_space<vmem>>, vector<1x1x16x8xbf16>
      %38 = vector.shape_cast %37 : vector<1x1x16x8xbf16> to vector<16x8xbf16>
      %39 = vector.shape_cast %36 : vector<16x8xbf16> to vector<1x1x16x8xbf16>
      tpu.vector_store %arg6[%c0_41, %c0_42, %c0_43, %c0_44], %39 {strides = array<i32>} : memref<1x1x16x8xbf16, #tpu.memory_space<vmem>>, vector<1x1x16x8xbf16>,
    } else {
    }
    return
  }
  func.func @transform_0(%arg0: i32, %arg1: i32, %arg2: i32) -> (i32, i32, i32, i32) {
    %0 = arith.addi %arg1, %arg2 : i32
    %c0_i32 = arith.constant 0 : i32
    %c0_i32_0 = arith.constant 0 : i32
    %c0_i32_1 = arith.constant 0 : i32
    return %arg0, %0, %c0_i32, %c0_i32_0 : i32, i32, i32, i32
  }
  func.func @transform_1(%arg0: i32, %arg1: i32, %arg2: i32) -> (i32, i32, i32, i32) {
    %c0_i32 = arith.constant 0 : i32
    %c0_i32_0 = arith.constant 0 : i32
    %c0_i32_1 = arith.constant 0 : i32
    %c0_i32_2 = arith.constant 0 : i32
    return %arg2, %c0_i32, %c0_i32_0, %c0_i32_1 : i32, i32, i32, i32
  }
  func.func @transform_2(%arg0: i32, %arg1: i32, %arg2: i32) -> (i32, i32) {
    %c0_i32 = arith.constant 0 : i32
    %c0_i32_0 = arith.constant 0 : i32
    %c0_i32_1 = arith.constant 0 : i32
    return %c0_i32, %c0_i32_0 : i32, i32
  }
  func.func @transform_3(%arg0: i32, %arg1: i32, %arg2: i32) -> (i32, i32, i32, i32) {
    %c0_i32 = arith.constant 0 : i32
    %c0_i32_0 = arith.constant 0 : i32
    %c0_i32_1 = arith.constant 0 : i32
    return %arg0, %arg1, %c0_i32, %c0_i32_0 : i32, i32, i32, i32
  }
}

module attributes {stable_mosaic.version = 11 : i64} {
  func.func @_bn_stats_kernel(%arg0: i32, %arg1: memref<384x8xbf16, #tpu.memory_space<vmem>>, %arg2: memref<2x8xf32, #tpu.memory_space<vmem>>) attributes {dimension_semantics = [#tpu.dimension_semantics<arbitrary>], iteration_bounds = array<i64: 1>, scalar_prefetch = 0 : i64, scratch_operands = 0 : i64, tpu.core_type = #tpu.core_type<tc>, window_params = [{transform_indices = @transform_0, window_bounds = array<i64: 384, 8>}, {pipeline_mode = #tpu.pipeline_mode<synchronous>, transform_indices = @transform_1, window_bounds = array<i64: 2, 8>}]} {
    %c0_i32 = arith.constant 0 : i32
    %0 = arith.cmpi eq, %arg0, %c0_i32 : i32
    %1 = arith.extui %0 : i1 to i32
    %c0_i32_0 = arith.constant 0 : i32
    %2 = arith.cmpi ne, %1, %c0_i32_0 : i32
    scf.if %2 {
      %cst_7 = arith.constant 0.000000e+00 : f32
      %14 = vector.broadcast %cst_7 : f32 to vector<2x8xf32>
      %c0_8 = arith.constant 0 : index
      %c0_9 = arith.constant 0 : index
      %15 = vector.load %arg2[%c0_8, %c0_9] : memref<2x8xf32, #tpu.memory_space<vmem>>, vector<2x8xf32>
      tpu.vector_store %arg2[%c0_8, %c0_9], %14 {strides = array<i32>} : memref<2x8xf32, #tpu.memory_space<vmem>>, vector<2x8xf32>,
    } else {
    }
    %c0 = arith.constant 0 : index
    %c0_1 = arith.constant 0 : index
    %3 = vector.load %arg1[%c0, %c0_1] : memref<384x8xbf16, #tpu.memory_space<vmem>>, vector<384x8xbf16>
    %4 = arith.extf %3 : vector<384x8xbf16> to vector<384x8xf32>
    %cst = arith.constant dense<0.000000e+00> : vector<8xf32>
    %5 = vector.multi_reduction <add>, %4, %cst [0] : vector<384x8xf32> to vector<8xf32>
    %6 = vector.shape_cast %5 : vector<8xf32> to vector<1x8xf32>
    %7 = arith.mulf %4, %4 : vector<384x8xf32>
    %cst_2 = arith.constant dense<0.000000e+00> : vector<8xf32>
    %8 = vector.multi_reduction <add>, %7, %cst_2 [0] : vector<384x8xf32> to vector<8xf32>
    %9 = vector.shape_cast %8 : vector<8xf32> to vector<1x8xf32>
    %10 = tpu.concatenate %6, %9 in 0 : vector<1x8xf32>, vector<1x8xf32> -> vector<2x8xf32>
    %c0_3 = arith.constant 0 : index
    %c0_4 = arith.constant 0 : index
    %11 = vector.load %arg2[%c0_3, %c0_4] : memref<2x8xf32, #tpu.memory_space<vmem>>, vector<2x8xf32>
    %12 = arith.addf %11, %10 : vector<2x8xf32>
    %c0_5 = arith.constant 0 : index
    %c0_6 = arith.constant 0 : index
    %13 = vector.load %arg2[%c0_5, %c0_6] : memref<2x8xf32, #tpu.memory_space<vmem>>, vector<2x8xf32>
    tpu.vector_store %arg2[%c0_5, %c0_6], %12 {strides = array<i32>} : memref<2x8xf32, #tpu.memory_space<vmem>>, vector<2x8xf32>,
    return
  }
  func.func @transform_0(%arg0: i32) -> (i32, i32) {
    %c0_i32 = arith.constant 0 : i32
    %c0_i32_0 = arith.constant 0 : i32
    return %arg0, %c0_i32 : i32, i32
  }
  func.func @transform_1(%arg0: i32) -> (i32, i32) {
    %c0_i32 = arith.constant 0 : i32
    %c0_i32_0 = arith.constant 0 : i32
    %c0_i32_1 = arith.constant 0 : i32
    return %c0_i32, %c0_i32_0 : i32, i32
  }
}

module attributes {stable_mosaic.version = 11 : i64} {
  func.func @_bn_apply_kernel(%arg0: i32, %arg1: memref<384x8xbf16, #tpu.memory_space<vmem>>, %arg2: memref<2x8xf32, #tpu.memory_space<vmem>>, %arg3: memref<1x8xf32, #tpu.memory_space<vmem>>, %arg4: memref<1x8xf32, #tpu.memory_space<vmem>>, %arg5: memref<384x8xbf16, #tpu.memory_space<vmem>>) attributes {dimension_semantics = [#tpu.dimension_semantics<parallel>], iteration_bounds = array<i64: 1>, scalar_prefetch = 0 : i64, scratch_operands = 0 : i64, tpu.core_type = #tpu.core_type<tc>, window_params = [{transform_indices = @transform_0, window_bounds = array<i64: 384, 8>}, {pipeline_mode = #tpu.pipeline_mode<synchronous>, transform_indices = @transform_1, window_bounds = array<i64: 2, 8>}, {pipeline_mode = #tpu.pipeline_mode<synchronous>, transform_indices = @transform_2, window_bounds = array<i64: 1, 8>}, {pipeline_mode = #tpu.pipeline_mode<synchronous>, transform_indices = @transform_3, window_bounds = array<i64: 1, 8>}, {transform_indices = @transform_4, window_bounds = array<i64: 384, 8>}]} {
    %c0 = arith.constant 0 : index
    %c0_0 = arith.constant 0 : index
    %0 = vector.load %arg1[%c0, %c0_0] : memref<384x8xbf16, #tpu.memory_space<vmem>>, vector<384x8xbf16>
    %1 = arith.extf %0 : vector<384x8xbf16> to vector<384x8xf32>
    %c0_1 = arith.constant 0 : index
    %c0_2 = arith.constant 0 : index
    %2 = vector.load %arg2[%c0_1, %c0_2] : memref<2x8xf32, #tpu.memory_space<vmem>>, vector<1x8xf32>
    %cst = arith.constant 0.00260416674 : f32
    %3 = vector.broadcast %cst : f32 to vector<1x8xf32>
    %4 = arith.mulf %2, %3 : vector<1x8xf32>
    %c1 = arith.constant 1 : index
    %c0_3 = arith.constant 0 : index
    %5 = vector.load %arg2[%c1, %c0_3] : memref<2x8xf32, #tpu.memory_space<vmem>>, vector<1x8xf32>
    %cst_4 = arith.constant 0.00260416674 : f32
    %6 = vector.broadcast %cst_4 : f32 to vector<1x8xf32>
    %7 = arith.mulf %5, %6 : vector<1x8xf32>
    %8 = arith.mulf %4, %4 : vector<1x8xf32>
    %9 = arith.subf %7, %8 : vector<1x8xf32>
    %cst_5 = arith.constant 0.000000e+00 : f32
    %10 = vector.broadcast %cst_5 : f32 to vector<1x8xf32>
    %11 = arith.maximumf %9, %10 : vector<1x8xf32>
    %c0_6 = arith.constant 0 : index
    %c0_7 = arith.constant 0 : index
    %12 = vector.load %arg3[%c0_6, %c0_7] : memref<1x8xf32, #tpu.memory_space<vmem>>, vector<1x8xf32>
    %cst_8 = arith.constant 9.99999974E-6 : f32
    %13 = vector.broadcast %cst_8 : f32 to vector<1x8xf32>
    %14 = arith.addf %11, %13 : vector<1x8xf32>
    %15 = math.rsqrt %14 : vector<1x8xf32>
    %16 = arith.mulf %12, %15 : vector<1x8xf32>
    %c0_9 = arith.constant 0 : index
    %c0_10 = arith.constant 0 : index
    %17 = vector.load %arg4[%c0_9, %c0_10] : memref<1x8xf32, #tpu.memory_space<vmem>>, vector<1x8xf32>
    %18 = arith.mulf %4, %16 : vector<1x8xf32>
    %19 = arith.subf %17, %18 : vector<1x8xf32>
    %20 = vector.broadcast %16 : vector<1x8xf32> to vector<384x8xf32>
    %21 = arith.mulf %1, %20 : vector<384x8xf32>
    %22 = vector.broadcast %19 : vector<1x8xf32> to vector<384x8xf32>
    %23 = arith.addf %21, %22 : vector<384x8xf32>
    %24 = arith.truncf %23 : vector<384x8xf32> to vector<384x8xbf16>
    %c0_11 = arith.constant 0 : index
    %c0_12 = arith.constant 0 : index
    %25 = vector.load %arg5[%c0_11, %c0_12] : memref<384x8xbf16, #tpu.memory_space<vmem>>, vector<384x8xbf16>
    tpu.vector_store %arg5[%c0_11, %c0_12], %24 {strides = array<i32>} : memref<384x8xbf16, #tpu.memory_space<vmem>>, vector<384x8xbf16>,
    return
  }
  func.func @transform_0(%arg0: i32) -> (i32, i32) {
    %c0_i32 = arith.constant 0 : i32
    %c0_i32_0 = arith.constant 0 : i32
    return %arg0, %c0_i32 : i32, i32
  }
  func.func @transform_1(%arg0: i32) -> (i32, i32) {
    %c0_i32 = arith.constant 0 : i32
    %c0_i32_0 = arith.constant 0 : i32
    %c0_i32_1 = arith.constant 0 : i32
    return %c0_i32, %c0_i32_0 : i32, i32
  }
  func.func @transform_2(%arg0: i32) -> (i32, i32) {
    %c0_i32 = arith.constant 0 : i32
    %c0_i32_0 = arith.constant 0 : i32
    %c0_i32_1 = arith.constant 0 : i32
    return %c0_i32, %c0_i32_0 : i32, i32
  }
  func.func @transform_3(%arg0: i32) -> (i32, i32) {
    %c0_i32 = arith.constant 0 : i32
    %c0_i32_0 = arith.constant 0 : i32
    %c0_i32_1 = arith.constant 0 : i32
    return %c0_i32, %c0_i32_0 : i32, i32
  }
  func.func @transform_4(%arg0: i32) -> (i32, i32) {
    %c0_i32 = arith.constant 0 : i32
    %c0_i32_0 = arith.constant 0 : i32
    return %arg0, %c0_i32 : i32, i32
  }
}

module attributes {stable_mosaic.version = 11 : i64} {
  func.func @_conv_row_kernel(%arg0: i32, %arg1: i32, %arg2: i32, %arg3: memref<1x1x35x8xbf16, #tpu.memory_space<vmem>>, %arg4: memref<1x4x8x4xbf16, #tpu.memory_space<vmem>>, %arg5: memref<1x4xf32, #tpu.memory_space<vmem>>, %arg6: memref<1x1x32x4xbf16, #tpu.memory_space<vmem>>, %arg7: memref<32x4xf32, #tpu.memory_space<vmem>>) attributes {dimension_semantics = [#tpu.dimension_semantics<parallel>, #tpu.dimension_semantics<parallel>, #tpu.dimension_semantics<arbitrary>], iteration_bounds = array<i64: 2, 24, 4>, scalar_prefetch = 0 : i64, scratch_operands = 1 : i64, tpu.core_type = #tpu.core_type<tc>, window_params = [{transform_indices = @transform_0, window_bounds = array<i64: 1, 1, 35, 8>}, {transform_indices = @transform_1, window_bounds = array<i64: 1, 4, 8, 4>}, {pipeline_mode = #tpu.pipeline_mode<synchronous>, transform_indices = @transform_2, window_bounds = array<i64: 1, 4>}, {transform_indices = @transform_3, window_bounds = array<i64: 1, 1, 32, 4>}]} {
    %c0_i32 = arith.constant 0 : i32
    %0 = arith.cmpi eq, %arg2, %c0_i32 : i32
    %1 = arith.extui %0 : i1 to i32
    %c0_i32_0 = arith.constant 0 : i32
    %2 = arith.cmpi ne, %1, %c0_i32_0 : i32
    scf.if %2 {
      %cst_37 = arith.constant 0.000000e+00 : f32
      %32 = vector.broadcast %cst_37 : f32 to vector<32x4xf32>
      %c0_38 = arith.constant 0 : index
      %c0_39 = arith.constant 0 : index
      %33 = vector.load %arg7[%c0_38, %c0_39] : memref<32x4xf32, #tpu.memory_space<vmem>>, vector<32x4xf32>
      tpu.vector_store %arg7[%c0_38, %c0_39], %32 {strides = array<i32>} : memref<32x4xf32, #tpu.memory_space<vmem>>, vector<32x4xf32>,
    } else {
    }
    %c0 = arith.constant 0 : index
    %c0_1 = arith.constant 0 : index
    %3 = vector.load %arg7[%c0, %c0_1] : memref<32x4xf32, #tpu.memory_space<vmem>>, vector<32x4xf32>
    %c0_2 = arith.constant 0 : index
    %c0_3 = arith.constant 0 : index
    %c0_4 = arith.constant 0 : index
    %c0_5 = arith.constant 0 : index
    %4 = vector.load %arg3[%c0_2, %c0_3, %c0_4, %c0_5] : memref<1x1x35x8xbf16, #tpu.memory_space<vmem>>, vector<1x1x32x8xbf16>
    %5 = vector.shape_cast %4 : vector<1x1x32x8xbf16> to vector<32x8xbf16>
    %c0_6 = arith.constant 0 : index
    %c0_7 = arith.constant 0 : index
    %c0_8 = arith.constant 0 : index
    %c0_9 = arith.constant 0 : index
    %6 = vector.load %arg4[%c0_6, %c0_7, %c0_8, %c0_9] : memref<1x4x8x4xbf16, #tpu.memory_space<vmem>>, vector<1x1x8x4xbf16>
    %7 = vector.shape_cast %6 : vector<1x1x8x4xbf16> to vector<8x4xbf16>
    %cst = arith.constant dense<0.000000e+00> : vector<32x4xf32>
    %8 = tpu.matmul %5, %7, %cst {dimension_numbers = #tpu.dot_dimension_numbers<[1], [0], [0], [1], [0, 0, 1, 1], [], []>} : vector<32x8xbf16>, vector<8x4xbf16>, vector<32x4xf32> -> vector<32x4xf32>
    %9 = arith.addf %3, %8 : vector<32x4xf32>
    %c0_10 = arith.constant 0 : index
    %c0_11 = arith.constant 0 : index
    %c1 = arith.constant 1 : index
    %c0_12 = arith.constant 0 : index
    %10 = vector.load %arg3[%c0_10, %c0_11, %c1, %c0_12] : memref<1x1x35x8xbf16, #tpu.memory_space<vmem>>, vector<1x1x32x8xbf16>
    %11 = vector.shape_cast %10 : vector<1x1x32x8xbf16> to vector<32x8xbf16>
    %c0_13 = arith.constant 0 : index
    %c1_14 = arith.constant 1 : index
    %c0_15 = arith.constant 0 : index
    %c0_16 = arith.constant 0 : index
    %12 = vector.load %arg4[%c0_13, %c1_14, %c0_15, %c0_16] : memref<1x4x8x4xbf16, #tpu.memory_space<vmem>>, vector<1x1x8x4xbf16>
    %13 = vector.shape_cast %12 : vector<1x1x8x4xbf16> to vector<8x4xbf16>
    %cst_17 = arith.constant dense<0.000000e+00> : vector<32x4xf32>
    %14 = tpu.matmul %11, %13, %cst_17 {dimension_numbers = #tpu.dot_dimension_numbers<[1], [0], [0], [1], [0, 0, 1, 1], [], []>} : vector<32x8xbf16>, vector<8x4xbf16>, vector<32x4xf32> -> vector<32x4xf32>
    %15 = arith.addf %9, %14 : vector<32x4xf32>
    %c0_18 = arith.constant 0 : index
    %c0_19 = arith.constant 0 : index
    %c2 = arith.constant 2 : index
    %c0_20 = arith.constant 0 : index
    %16 = vector.load %arg3[%c0_18, %c0_19, %c2, %c0_20] : memref<1x1x35x8xbf16, #tpu.memory_space<vmem>>, vector<1x1x32x8xbf16>
    %17 = vector.shape_cast %16 : vector<1x1x32x8xbf16> to vector<32x8xbf16>
    %c0_21 = arith.constant 0 : index
    %c2_22 = arith.constant 2 : index
    %c0_23 = arith.constant 0 : index
    %c0_24 = arith.constant 0 : index
    %18 = vector.load %arg4[%c0_21, %c2_22, %c0_23, %c0_24] : memref<1x4x8x4xbf16, #tpu.memory_space<vmem>>, vector<1x1x8x4xbf16>
    %19 = vector.shape_cast %18 : vector<1x1x8x4xbf16> to vector<8x4xbf16>
    %cst_25 = arith.constant dense<0.000000e+00> : vector<32x4xf32>
    %20 = tpu.matmul %17, %19, %cst_25 {dimension_numbers = #tpu.dot_dimension_numbers<[1], [0], [0], [1], [0, 0, 1, 1], [], []>} : vector<32x8xbf16>, vector<8x4xbf16>, vector<32x4xf32> -> vector<32x4xf32>
    %21 = arith.addf %15, %20 : vector<32x4xf32>
    %c0_26 = arith.constant 0 : index
    %c0_27 = arith.constant 0 : index
    %c3 = arith.constant 3 : index
    %c0_28 = arith.constant 0 : index
    %22 = vector.load %arg3[%c0_26, %c0_27, %c3, %c0_28] : memref<1x1x35x8xbf16, #tpu.memory_space<vmem>>, vector<1x1x32x8xbf16>
    %23 = vector.shape_cast %22 : vector<1x1x32x8xbf16> to vector<32x8xbf16>
    %c0_29 = arith.constant 0 : index
    %c3_30 = arith.constant 3 : index
    %c0_31 = arith.constant 0 : index
    %c0_32 = arith.constant 0 : index
    %24 = vector.load %arg4[%c0_29, %c3_30, %c0_31, %c0_32] : memref<1x4x8x4xbf16, #tpu.memory_space<vmem>>, vector<1x1x8x4xbf16>
    %25 = vector.shape_cast %24 : vector<1x1x8x4xbf16> to vector<8x4xbf16>
    %cst_33 = arith.constant dense<0.000000e+00> : vector<32x4xf32>
    %26 = tpu.matmul %23, %25, %cst_33 {dimension_numbers = #tpu.dot_dimension_numbers<[1], [0], [0], [1], [0, 0, 1, 1], [], []>} : vector<32x8xbf16>, vector<8x4xbf16>, vector<32x4xf32> -> vector<32x4xf32>
    %27 = arith.addf %21, %26 : vector<32x4xf32>
    %c0_34 = arith.constant 0 : index
    %c0_35 = arith.constant 0 : index
    %28 = vector.load %arg7[%c0_34, %c0_35] : memref<32x4xf32, #tpu.memory_space<vmem>>, vector<32x4xf32>
    tpu.vector_store %arg7[%c0_34, %c0_35], %27 {strides = array<i32>} : memref<32x4xf32, #tpu.memory_space<vmem>>, vector<32x4xf32>,
    %c3_i32 = arith.constant 3 : i32
    %29 = arith.cmpi eq, %arg2, %c3_i32 : i32
    %30 = arith.extui %29 : i1 to i32
    %c0_i32_36 = arith.constant 0 : i32
    %31 = arith.cmpi ne, %30, %c0_i32_36 : i32
    scf.if %31 {
      %c0_37 = arith.constant 0 : index
      %c0_38 = arith.constant 0 : index
      %32 = vector.load %arg7[%c0_37, %c0_38] : memref<32x4xf32, #tpu.memory_space<vmem>>, vector<32x4xf32>
      %c0_39 = arith.constant 0 : index
      %c0_40 = arith.constant 0 : index
      %33 = vector.load %arg5[%c0_39, %c0_40] : memref<1x4xf32, #tpu.memory_space<vmem>>, vector<1x4xf32>
      %34 = vector.broadcast %33 : vector<1x4xf32> to vector<32x4xf32>
      %35 = arith.addf %32, %34 : vector<32x4xf32>
      %36 = arith.truncf %35 : vector<32x4xf32> to vector<32x4xbf16>
      %c0_41 = arith.constant 0 : index
      %c0_42 = arith.constant 0 : index
      %c0_43 = arith.constant 0 : index
      %c0_44 = arith.constant 0 : index
      %37 = vector.load %arg6[%c0_41, %c0_42, %c0_43, %c0_44] : memref<1x1x32x4xbf16, #tpu.memory_space<vmem>>, vector<1x1x32x4xbf16>
      %38 = vector.shape_cast %37 : vector<1x1x32x4xbf16> to vector<32x4xbf16>
      %39 = vector.shape_cast %36 : vector<32x4xbf16> to vector<1x1x32x4xbf16>
      tpu.vector_store %arg6[%c0_41, %c0_42, %c0_43, %c0_44], %39 {strides = array<i32>} : memref<1x1x32x4xbf16, #tpu.memory_space<vmem>>, vector<1x1x32x4xbf16>,
    } else {
    }
    return
  }
  func.func @transform_0(%arg0: i32, %arg1: i32, %arg2: i32) -> (i32, i32, i32, i32) {
    %0 = arith.addi %arg1, %arg2 : i32
    %c0_i32 = arith.constant 0 : i32
    %c0_i32_0 = arith.constant 0 : i32
    %c0_i32_1 = arith.constant 0 : i32
    return %arg0, %0, %c0_i32, %c0_i32_0 : i32, i32, i32, i32
  }
  func.func @transform_1(%arg0: i32, %arg1: i32, %arg2: i32) -> (i32, i32, i32, i32) {
    %c0_i32 = arith.constant 0 : i32
    %c0_i32_0 = arith.constant 0 : i32
    %c0_i32_1 = arith.constant 0 : i32
    %c0_i32_2 = arith.constant 0 : i32
    return %arg2, %c0_i32, %c0_i32_0, %c0_i32_1 : i32, i32, i32, i32
  }
  func.func @transform_2(%arg0: i32, %arg1: i32, %arg2: i32) -> (i32, i32) {
    %c0_i32 = arith.constant 0 : i32
    %c0_i32_0 = arith.constant 0 : i32
    %c0_i32_1 = arith.constant 0 : i32
    return %c0_i32, %c0_i32_0 : i32, i32
  }
  func.func @transform_3(%arg0: i32, %arg1: i32, %arg2: i32) -> (i32, i32, i32, i32) {
    %c0_i32 = arith.constant 0 : i32
    %c0_i32_0 = arith.constant 0 : i32
    %c0_i32_1 = arith.constant 0 : i32
    return %arg0, %arg1, %c0_i32, %c0_i32_0 : i32, i32, i32, i32
  }
}

module attributes {stable_mosaic.version = 11 : i64} {
  func.func @_bn_stats_kernel(%arg0: i32, %arg1: memref<512x4xbf16, #tpu.memory_space<vmem>>, %arg2: memref<2x4xf32, #tpu.memory_space<vmem>>) attributes {dimension_semantics = [#tpu.dimension_semantics<arbitrary>], iteration_bounds = array<i64: 3>, scalar_prefetch = 0 : i64, scratch_operands = 0 : i64, tpu.core_type = #tpu.core_type<tc>, window_params = [{transform_indices = @transform_0, window_bounds = array<i64: 512, 4>}, {pipeline_mode = #tpu.pipeline_mode<synchronous>, transform_indices = @transform_1, window_bounds = array<i64: 2, 4>}]} {
    %c0_i32 = arith.constant 0 : i32
    %0 = arith.cmpi eq, %arg0, %c0_i32 : i32
    %1 = arith.extui %0 : i1 to i32
    %c0_i32_0 = arith.constant 0 : i32
    %2 = arith.cmpi ne, %1, %c0_i32_0 : i32
    scf.if %2 {
      %cst_7 = arith.constant 0.000000e+00 : f32
      %14 = vector.broadcast %cst_7 : f32 to vector<2x4xf32>
      %c0_8 = arith.constant 0 : index
      %c0_9 = arith.constant 0 : index
      %15 = vector.load %arg2[%c0_8, %c0_9] : memref<2x4xf32, #tpu.memory_space<vmem>>, vector<2x4xf32>
      tpu.vector_store %arg2[%c0_8, %c0_9], %14 {strides = array<i32>} : memref<2x4xf32, #tpu.memory_space<vmem>>, vector<2x4xf32>,
    } else {
    }
    %c0 = arith.constant 0 : index
    %c0_1 = arith.constant 0 : index
    %3 = vector.load %arg1[%c0, %c0_1] : memref<512x4xbf16, #tpu.memory_space<vmem>>, vector<512x4xbf16>
    %4 = arith.extf %3 : vector<512x4xbf16> to vector<512x4xf32>
    %cst = arith.constant dense<0.000000e+00> : vector<4xf32>
    %5 = vector.multi_reduction <add>, %4, %cst [0] : vector<512x4xf32> to vector<4xf32>
    %6 = vector.shape_cast %5 : vector<4xf32> to vector<1x4xf32>
    %7 = arith.mulf %4, %4 : vector<512x4xf32>
    %cst_2 = arith.constant dense<0.000000e+00> : vector<4xf32>
    %8 = vector.multi_reduction <add>, %7, %cst_2 [0] : vector<512x4xf32> to vector<4xf32>
    %9 = vector.shape_cast %8 : vector<4xf32> to vector<1x4xf32>
    %10 = tpu.concatenate %6, %9 in 0 : vector<1x4xf32>, vector<1x4xf32> -> vector<2x4xf32>
    %c0_3 = arith.constant 0 : index
    %c0_4 = arith.constant 0 : index
    %11 = vector.load %arg2[%c0_3, %c0_4] : memref<2x4xf32, #tpu.memory_space<vmem>>, vector<2x4xf32>
    %12 = arith.addf %11, %10 : vector<2x4xf32>
    %c0_5 = arith.constant 0 : index
    %c0_6 = arith.constant 0 : index
    %13 = vector.load %arg2[%c0_5, %c0_6] : memref<2x4xf32, #tpu.memory_space<vmem>>, vector<2x4xf32>
    tpu.vector_store %arg2[%c0_5, %c0_6], %12 {strides = array<i32>} : memref<2x4xf32, #tpu.memory_space<vmem>>, vector<2x4xf32>,
    return
  }
  func.func @transform_0(%arg0: i32) -> (i32, i32) {
    %c0_i32 = arith.constant 0 : i32
    %c0_i32_0 = arith.constant 0 : i32
    return %arg0, %c0_i32 : i32, i32
  }
  func.func @transform_1(%arg0: i32) -> (i32, i32) {
    %c0_i32 = arith.constant 0 : i32
    %c0_i32_0 = arith.constant 0 : i32
    %c0_i32_1 = arith.constant 0 : i32
    return %c0_i32, %c0_i32_0 : i32, i32
  }
}

module attributes {stable_mosaic.version = 11 : i64} {
  func.func @_bn_apply_kernel(%arg0: i32, %arg1: memref<512x4xbf16, #tpu.memory_space<vmem>>, %arg2: memref<2x4xf32, #tpu.memory_space<vmem>>, %arg3: memref<1x4xf32, #tpu.memory_space<vmem>>, %arg4: memref<1x4xf32, #tpu.memory_space<vmem>>, %arg5: memref<512x4xbf16, #tpu.memory_space<vmem>>) attributes {dimension_semantics = [#tpu.dimension_semantics<parallel>], iteration_bounds = array<i64: 3>, scalar_prefetch = 0 : i64, scratch_operands = 0 : i64, tpu.core_type = #tpu.core_type<tc>, window_params = [{transform_indices = @transform_0, window_bounds = array<i64: 512, 4>}, {pipeline_mode = #tpu.pipeline_mode<synchronous>, transform_indices = @transform_1, window_bounds = array<i64: 2, 4>}, {pipeline_mode = #tpu.pipeline_mode<synchronous>, transform_indices = @transform_2, window_bounds = array<i64: 1, 4>}, {pipeline_mode = #tpu.pipeline_mode<synchronous>, transform_indices = @transform_3, window_bounds = array<i64: 1, 4>}, {transform_indices = @transform_4, window_bounds = array<i64: 512, 4>}]} {
    %c0 = arith.constant 0 : index
    %c0_0 = arith.constant 0 : index
    %0 = vector.load %arg1[%c0, %c0_0] : memref<512x4xbf16, #tpu.memory_space<vmem>>, vector<512x4xbf16>
    %1 = arith.extf %0 : vector<512x4xbf16> to vector<512x4xf32>
    %c0_1 = arith.constant 0 : index
    %c0_2 = arith.constant 0 : index
    %2 = vector.load %arg2[%c0_1, %c0_2] : memref<2x4xf32, #tpu.memory_space<vmem>>, vector<1x4xf32>
    %cst = arith.constant 6.51041686E-4 : f32
    %3 = vector.broadcast %cst : f32 to vector<1x4xf32>
    %4 = arith.mulf %2, %3 : vector<1x4xf32>
    %c1 = arith.constant 1 : index
    %c0_3 = arith.constant 0 : index
    %5 = vector.load %arg2[%c1, %c0_3] : memref<2x4xf32, #tpu.memory_space<vmem>>, vector<1x4xf32>
    %cst_4 = arith.constant 6.51041686E-4 : f32
    %6 = vector.broadcast %cst_4 : f32 to vector<1x4xf32>
    %7 = arith.mulf %5, %6 : vector<1x4xf32>
    %8 = arith.mulf %4, %4 : vector<1x4xf32>
    %9 = arith.subf %7, %8 : vector<1x4xf32>
    %cst_5 = arith.constant 0.000000e+00 : f32
    %10 = vector.broadcast %cst_5 : f32 to vector<1x4xf32>
    %11 = arith.maximumf %9, %10 : vector<1x4xf32>
    %c0_6 = arith.constant 0 : index
    %c0_7 = arith.constant 0 : index
    %12 = vector.load %arg3[%c0_6, %c0_7] : memref<1x4xf32, #tpu.memory_space<vmem>>, vector<1x4xf32>
    %cst_8 = arith.constant 9.99999974E-6 : f32
    %13 = vector.broadcast %cst_8 : f32 to vector<1x4xf32>
    %14 = arith.addf %11, %13 : vector<1x4xf32>
    %15 = math.rsqrt %14 : vector<1x4xf32>
    %16 = arith.mulf %12, %15 : vector<1x4xf32>
    %c0_9 = arith.constant 0 : index
    %c0_10 = arith.constant 0 : index
    %17 = vector.load %arg4[%c0_9, %c0_10] : memref<1x4xf32, #tpu.memory_space<vmem>>, vector<1x4xf32>
    %18 = arith.mulf %4, %16 : vector<1x4xf32>
    %19 = arith.subf %17, %18 : vector<1x4xf32>
    %20 = vector.broadcast %16 : vector<1x4xf32> to vector<512x4xf32>
    %21 = arith.mulf %1, %20 : vector<512x4xf32>
    %22 = vector.broadcast %19 : vector<1x4xf32> to vector<512x4xf32>
    %23 = arith.addf %21, %22 : vector<512x4xf32>
    %24 = arith.truncf %23 : vector<512x4xf32> to vector<512x4xbf16>
    %c0_11 = arith.constant 0 : index
    %c0_12 = arith.constant 0 : index
    %25 = vector.load %arg5[%c0_11, %c0_12] : memref<512x4xbf16, #tpu.memory_space<vmem>>, vector<512x4xbf16>
    tpu.vector_store %arg5[%c0_11, %c0_12], %24 {strides = array<i32>} : memref<512x4xbf16, #tpu.memory_space<vmem>>, vector<512x4xbf16>,
    return
  }
  func.func @transform_0(%arg0: i32) -> (i32, i32) {
    %c0_i32 = arith.constant 0 : i32
    %c0_i32_0 = arith.constant 0 : i32
    return %arg0, %c0_i32 : i32, i32
  }
  func.func @transform_1(%arg0: i32) -> (i32, i32) {
    %c0_i32 = arith.constant 0 : i32
    %c0_i32_0 = arith.constant 0 : i32
    %c0_i32_1 = arith.constant 0 : i32
    return %c0_i32, %c0_i32_0 : i32, i32
  }
  func.func @transform_2(%arg0: i32) -> (i32, i32) {
    %c0_i32 = arith.constant 0 : i32
    %c0_i32_0 = arith.constant 0 : i32
    %c0_i32_1 = arith.constant 0 : i32
    return %c0_i32, %c0_i32_0 : i32, i32
  }
  func.func @transform_3(%arg0: i32) -> (i32, i32) {
    %c0_i32 = arith.constant 0 : i32
    %c0_i32_0 = arith.constant 0 : i32
    %c0_i32_1 = arith.constant 0 : i32
    return %c0_i32, %c0_i32_0 : i32, i32
  }
  func.func @transform_4(%arg0: i32) -> (i32, i32) {
    %c0_i32 = arith.constant 0 : i32
    %c0_i32_0 = arith.constant 0 : i32
    return %arg0, %c0_i32 : i32, i32
  }
}

module attributes {stable_mosaic.version = 11 : i64} {
  func.func @_conv_row_kernel(%arg0: i32, %arg1: i32, %arg2: i32, %arg3: memref<1x1x67x4xbf16, #tpu.memory_space<vmem>>, %arg4: memref<1x4x4x3xbf16, #tpu.memory_space<vmem>>, %arg5: memref<1x3xf32, #tpu.memory_space<vmem>>, %arg6: memref<1x1x64x3xf32, #tpu.memory_space<vmem>>, %arg7: memref<64x3xf32, #tpu.memory_space<vmem>>) attributes {dimension_semantics = [#tpu.dimension_semantics<parallel>, #tpu.dimension_semantics<parallel>, #tpu.dimension_semantics<arbitrary>], iteration_bounds = array<i64: 2, 48, 4>, scalar_prefetch = 0 : i64, scratch_operands = 1 : i64, tpu.core_type = #tpu.core_type<tc>, window_params = [{transform_indices = @transform_0, window_bounds = array<i64: 1, 1, 67, 4>}, {transform_indices = @transform_1, window_bounds = array<i64: 1, 4, 4, 3>}, {pipeline_mode = #tpu.pipeline_mode<synchronous>, transform_indices = @transform_2, window_bounds = array<i64: 1, 3>}, {transform_indices = @transform_3, window_bounds = array<i64: 1, 1, 64, 3>}]} {
    %c0_i32 = arith.constant 0 : i32
    %0 = arith.cmpi eq, %arg2, %c0_i32 : i32
    %1 = arith.extui %0 : i1 to i32
    %c0_i32_0 = arith.constant 0 : i32
    %2 = arith.cmpi ne, %1, %c0_i32_0 : i32
    scf.if %2 {
      %cst_37 = arith.constant 0.000000e+00 : f32
      %32 = vector.broadcast %cst_37 : f32 to vector<64x3xf32>
      %c0_38 = arith.constant 0 : index
      %c0_39 = arith.constant 0 : index
      %33 = vector.load %arg7[%c0_38, %c0_39] : memref<64x3xf32, #tpu.memory_space<vmem>>, vector<64x3xf32>
      tpu.vector_store %arg7[%c0_38, %c0_39], %32 {strides = array<i32>} : memref<64x3xf32, #tpu.memory_space<vmem>>, vector<64x3xf32>,
    } else {
    }
    %c0 = arith.constant 0 : index
    %c0_1 = arith.constant 0 : index
    %3 = vector.load %arg7[%c0, %c0_1] : memref<64x3xf32, #tpu.memory_space<vmem>>, vector<64x3xf32>
    %c0_2 = arith.constant 0 : index
    %c0_3 = arith.constant 0 : index
    %c0_4 = arith.constant 0 : index
    %c0_5 = arith.constant 0 : index
    %4 = vector.load %arg3[%c0_2, %c0_3, %c0_4, %c0_5] : memref<1x1x67x4xbf16, #tpu.memory_space<vmem>>, vector<1x1x64x4xbf16>
    %5 = vector.shape_cast %4 : vector<1x1x64x4xbf16> to vector<64x4xbf16>
    %c0_6 = arith.constant 0 : index
    %c0_7 = arith.constant 0 : index
    %c0_8 = arith.constant 0 : index
    %c0_9 = arith.constant 0 : index
    %6 = vector.load %arg4[%c0_6, %c0_7, %c0_8, %c0_9] : memref<1x4x4x3xbf16, #tpu.memory_space<vmem>>, vector<1x1x4x3xbf16>
    %7 = vector.shape_cast %6 : vector<1x1x4x3xbf16> to vector<4x3xbf16>
    %cst = arith.constant dense<0.000000e+00> : vector<64x3xf32>
    %8 = tpu.matmul %5, %7, %cst {dimension_numbers = #tpu.dot_dimension_numbers<[1], [0], [0], [1], [0, 0, 1, 1], [], []>} : vector<64x4xbf16>, vector<4x3xbf16>, vector<64x3xf32> -> vector<64x3xf32>
    %9 = arith.addf %3, %8 : vector<64x3xf32>
    %c0_10 = arith.constant 0 : index
    %c0_11 = arith.constant 0 : index
    %c1 = arith.constant 1 : index
    %c0_12 = arith.constant 0 : index
    %10 = vector.load %arg3[%c0_10, %c0_11, %c1, %c0_12] : memref<1x1x67x4xbf16, #tpu.memory_space<vmem>>, vector<1x1x64x4xbf16>
    %11 = vector.shape_cast %10 : vector<1x1x64x4xbf16> to vector<64x4xbf16>
    %c0_13 = arith.constant 0 : index
    %c1_14 = arith.constant 1 : index
    %c0_15 = arith.constant 0 : index
    %c0_16 = arith.constant 0 : index
    %12 = vector.load %arg4[%c0_13, %c1_14, %c0_15, %c0_16] : memref<1x4x4x3xbf16, #tpu.memory_space<vmem>>, vector<1x1x4x3xbf16>
    %13 = vector.shape_cast %12 : vector<1x1x4x3xbf16> to vector<4x3xbf16>
    %cst_17 = arith.constant dense<0.000000e+00> : vector<64x3xf32>
    %14 = tpu.matmul %11, %13, %cst_17 {dimension_numbers = #tpu.dot_dimension_numbers<[1], [0], [0], [1], [0, 0, 1, 1], [], []>} : vector<64x4xbf16>, vector<4x3xbf16>, vector<64x3xf32> -> vector<64x3xf32>
    %15 = arith.addf %9, %14 : vector<64x3xf32>
    %c0_18 = arith.constant 0 : index
    %c0_19 = arith.constant 0 : index
    %c2 = arith.constant 2 : index
    %c0_20 = arith.constant 0 : index
    %16 = vector.load %arg3[%c0_18, %c0_19, %c2, %c0_20] : memref<1x1x67x4xbf16, #tpu.memory_space<vmem>>, vector<1x1x64x4xbf16>
    %17 = vector.shape_cast %16 : vector<1x1x64x4xbf16> to vector<64x4xbf16>
    %c0_21 = arith.constant 0 : index
    %c2_22 = arith.constant 2 : index
    %c0_23 = arith.constant 0 : index
    %c0_24 = arith.constant 0 : index
    %18 = vector.load %arg4[%c0_21, %c2_22, %c0_23, %c0_24] : memref<1x4x4x3xbf16, #tpu.memory_space<vmem>>, vector<1x1x4x3xbf16>
    %19 = vector.shape_cast %18 : vector<1x1x4x3xbf16> to vector<4x3xbf16>
    %cst_25 = arith.constant dense<0.000000e+00> : vector<64x3xf32>
    %20 = tpu.matmul %17, %19, %cst_25 {dimension_numbers = #tpu.dot_dimension_numbers<[1], [0], [0], [1], [0, 0, 1, 1], [], []>} : vector<64x4xbf16>, vector<4x3xbf16>, vector<64x3xf32> -> vector<64x3xf32>
    %21 = arith.addf %15, %20 : vector<64x3xf32>
    %c0_26 = arith.constant 0 : index
    %c0_27 = arith.constant 0 : index
    %c3 = arith.constant 3 : index
    %c0_28 = arith.constant 0 : index
    %22 = vector.load %arg3[%c0_26, %c0_27, %c3, %c0_28] : memref<1x1x67x4xbf16, #tpu.memory_space<vmem>>, vector<1x1x64x4xbf16>
    %23 = vector.shape_cast %22 : vector<1x1x64x4xbf16> to vector<64x4xbf16>
    %c0_29 = arith.constant 0 : index
    %c3_30 = arith.constant 3 : index
    %c0_31 = arith.constant 0 : index
    %c0_32 = arith.constant 0 : index
    %24 = vector.load %arg4[%c0_29, %c3_30, %c0_31, %c0_32] : memref<1x4x4x3xbf16, #tpu.memory_space<vmem>>, vector<1x1x4x3xbf16>
    %25 = vector.shape_cast %24 : vector<1x1x4x3xbf16> to vector<4x3xbf16>
    %cst_33 = arith.constant dense<0.000000e+00> : vector<64x3xf32>
    %26 = tpu.matmul %23, %25, %cst_33 {dimension_numbers = #tpu.dot_dimension_numbers<[1], [0], [0], [1], [0, 0, 1, 1], [], []>} : vector<64x4xbf16>, vector<4x3xbf16>, vector<64x3xf32> -> vector<64x3xf32>
    %27 = arith.addf %21, %26 : vector<64x3xf32>
    %c0_34 = arith.constant 0 : index
    %c0_35 = arith.constant 0 : index
    %28 = vector.load %arg7[%c0_34, %c0_35] : memref<64x3xf32, #tpu.memory_space<vmem>>, vector<64x3xf32>
    tpu.vector_store %arg7[%c0_34, %c0_35], %27 {strides = array<i32>} : memref<64x3xf32, #tpu.memory_space<vmem>>, vector<64x3xf32>,
    %c3_i32 = arith.constant 3 : i32
    %29 = arith.cmpi eq, %arg2, %c3_i32 : i32
    %30 = arith.extui %29 : i1 to i32
    %c0_i32_36 = arith.constant 0 : i32
    %31 = arith.cmpi ne, %30, %c0_i32_36 : i32
    scf.if %31 {
      %c0_37 = arith.constant 0 : index
      %c0_38 = arith.constant 0 : index
      %32 = vector.load %arg7[%c0_37, %c0_38] : memref<64x3xf32, #tpu.memory_space<vmem>>, vector<64x3xf32>
      %c0_39 = arith.constant 0 : index
      %c0_40 = arith.constant 0 : index
      %33 = vector.load %arg5[%c0_39, %c0_40] : memref<1x3xf32, #tpu.memory_space<vmem>>, vector<1x3xf32>
      %34 = vector.broadcast %33 : vector<1x3xf32> to vector<64x3xf32>
      %35 = arith.addf %32, %34 : vector<64x3xf32>
      %36 = math.tanh %35 : vector<64x3xf32>
      %c0_41 = arith.constant 0 : index
      %c0_42 = arith.constant 0 : index
      %c0_43 = arith.constant 0 : index
      %c0_44 = arith.constant 0 : index
      %37 = vector.load %arg6[%c0_41, %c0_42, %c0_43, %c0_44] : memref<1x1x64x3xf32, #tpu.memory_space<vmem>>, vector<1x1x64x3xf32>
      %38 = vector.shape_cast %37 : vector<1x1x64x3xf32> to vector<64x3xf32>
      %39 = vector.shape_cast %36 : vector<64x3xf32> to vector<1x1x64x3xf32>
      tpu.vector_store %arg6[%c0_41, %c0_42, %c0_43, %c0_44], %39 {strides = array<i32>} : memref<1x1x64x3xf32, #tpu.memory_space<vmem>>, vector<1x1x64x3xf32>,
    } else {
    }
    return
  }
  func.func @transform_0(%arg0: i32, %arg1: i32, %arg2: i32) -> (i32, i32, i32, i32) {
    %0 = arith.addi %arg1, %arg2 : i32
    %c0_i32 = arith.constant 0 : i32
    %c0_i32_0 = arith.constant 0 : i32
    %c0_i32_1 = arith.constant 0 : i32
    return %arg0, %0, %c0_i32, %c0_i32_0 : i32, i32, i32, i32
  }
  func.func @transform_1(%arg0: i32, %arg1: i32, %arg2: i32) -> (i32, i32, i32, i32) {
    %c0_i32 = arith.constant 0 : i32
    %c0_i32_0 = arith.constant 0 : i32
    %c0_i32_1 = arith.constant 0 : i32
    %c0_i32_2 = arith.constant 0 : i32
    return %arg2, %c0_i32, %c0_i32_0, %c0_i32_1 : i32, i32, i32, i32
  }
  func.func @transform_2(%arg0: i32, %arg1: i32, %arg2: i32) -> (i32, i32) {
    %c0_i32 = arith.constant 0 : i32
    %c0_i32_0 = arith.constant 0 : i32
    %c0_i32_1 = arith.constant 0 : i32
    return %c0_i32, %c0_i32_0 : i32, i32
  }
  func.func @transform_3(%arg0: i32, %arg1: i32, %arg2: i32) -> (i32, i32, i32, i32) {
    %c0_i32 = arith.constant 0 : i32
    %c0_i32_0 = arith.constant 0 : i32
    %c0_i32_1 = arith.constant 0 : i32
    return %arg0, %arg1, %c0_i32, %c0_i32_0 : i32, i32, i32, i32
  }
}

</mosaic_0001>

<llo_original>
// kernel: generator_forward.15
$region0: #{generator_forward.15}
  #allocation0 [shape = 'u32[]', space=smem, size = 0x4, offset = 0x4, fixed_abs, tag = 'smem constant byte address 0x4 - core index']
  #allocation1 [shape = 'u32[144,128]{1,0:T(1,128)}', space=vmem, size = 0x12000, scoped, tag = 'internal scratch']
  %s0 = inlined_call_operand.vmem [shape: bf16[24,32], index: 0, kind: input, shape index: {}]
  %s1 = inlined_call_operand.vmem [shape: f32[2,32], index: 1, kind: input, shape index: {}]
  %s2 = inlined_call_operand.hbm [shape: f32[1,32], index: 2, kind: input, shape index: {}]
  %s3 = inlined_call_operand.hbm [shape: f32[1,32], index: 3, kind: input, shape index: {}]
  %s4 = inlined_call_operand.vmem [shape: bf16[24,32], index: 4, kind: output, shape index: {}]
  %s5 = sld [smem:[#allocation0]]
  $region34: #{generator_forward.15} parent=0
    _
  %s7 = ssub.s32 1, %s5
  %s8 = scalar_select 0, %s7, %s5
  $region1: #{generator_forward.15} parent=0
    #allocation2 [shape = 'u8[512]{0}', space=vmem, size = 0x400, scoped, tag = 'input window, operand 2, single buffered']
    #allocation3 [shape = 's32[1]{0}', space=sflag, size = 0x4, scoped, tag = 'scoped memory for generator_forward.15']
    #allocation4 [shape = 'u8[512]{0}', space=vmem, size = 0x400, scoped, tag = 'input window, operand 3, single buffered']
    #allocation5 [shape = 's32[1]{0}', space=sflag, size = 0x4, scoped, tag = 'scoped memory for generator_forward.15']
    %9 = vsyncpa [#allocation3], 0
    %10 = vsyncpa [#allocation5], 0
    // Predicated region
    $region2: #{generator_forward.15} parent=1 // pred_check
      _
    $region3: #{generator_forward.15} parent=1 // pred_check_branch
      %12 = sbr.rel (0) target = $region5
    $region4: #{generator_forward.15} parent=1 // pred_region
      _
    $region5: #{generator_forward.15} parent=1 // pred_fallthru
      _
    // Predicated region
    $region6: #{generator_forward.15} parent=1 // pred_check
      _
    $region7: #{generator_forward.15} parent=1 // pred_check_branch
      %14 = sbr.rel (0) target = $region9
    $region8: #{generator_forward.15} parent=1 // pred_region
      _
    $region9: #{generator_forward.15} parent=1 // pred_fallthru
      _
    // Predicated region
    $region10: #{generator_forward.15} parent=1 // pred_check
      _
    $region11: #{generator_forward.15} parent=1 // pred_check_branch
      %16 = sbr.rel (0) target = $region13
    $region12: #{generator_forward.15} parent=1 // pred_region
      %s18 = ssub.s32 16, 16
      %19 = vsyncadd [#allocation3], %s18
      %s21 = sshll.u32 [#allocation2], 4
      %s22 = int_to_ptr.vmem [resolvable:$true] %s21
      %24 = dma.hbm_to_vmem [thread:$0]  %s2, 16, %s22, [#allocation3]
    $region13: #{generator_forward.15} parent=1 // pred_fallthru
      _
    // Predicated region
    $region14: #{generator_forward.15} parent=1 // pred_check
      _
    $region15: #{generator_forward.15} parent=1 // pred_check_branch
      %26 = sbr.rel (0) target = $region17
    $region16: #{generator_forward.15} parent=1 // pred_region
      %s28 = ssub.s32 16, 16
      %29 = vsyncadd [#allocation5], %s28
      %s31 = sshll.u32 [#allocation4], 4
      %s32 = int_to_ptr.vmem [resolvable:$true] %s31
      %34 = dma.hbm_to_vmem [thread:$0]  %s3, 16, %s32, [#allocation5]
    $region17: #{generator_forward.15} parent=1 // pred_fallthru
      _
    // Predicated region
    $region18: #{generator_forward.15} parent=1 // pred_check
      _
    $region19: #{generator_forward.15} parent=1 // pred_check_branch
      %36 = sbr.rel (0) target = $region21
    $region20: #{generator_forward.15} parent=1 // pred_region
      %37 = dma.done [#allocation3], 16
    $region21: #{generator_forward.15} parent=1 // pred_fallthru
      _
    // Predicated region
    $region22: #{generator_forward.15} parent=1 // pred_check
      _
    $region23: #{generator_forward.15} parent=1 // pred_check_branch
      %39 = sbr.rel (0) target = $region25
    $region24: #{generator_forward.15} parent=1 // pred_region
      %40 = dma.done [#allocation5], 16
    $region25: #{generator_forward.15} parent=1 // pred_fallthru
      _
    %v41 = vld [vmem:[%s0] sm:$0xf]
    %v42 = vld [vmem:[%s0 + $0x4] sm:$0xf]
    %v43 = vld [vmem:[%s0 + $0x8] sm:$0xf]
    %v44 = vunpack.c.l.bf16 %v41
    %v45 = vunpack.c.l.bf16 %v42
    %v46 = vunpack.c.l.bf16 %v43
    %v47 = vld [vmem:[%s1] sm:$0x1]
    %v48 = vmul.f32 %v47, 0.041666668
    %v49 = vld [vmem:[%s1 + $0x1] sm:$0x1]
    %v50 = vmul.f32 %v49, 0.041666668
    %v51 = vmul.f32 %v48, %v48
    %v52 = vsub.f32 %v50, %v51
    %v53 = vmax.f32 %v52, 0.0
    %v54 = vld [vmem:[#allocation2] sm:$0x1]
    %v55 = vadd.f32 %v53, 1e-05
    %v56 = vrsqrt.pop %v55
    %v57 = vmul.f32 %v54, %v56
    %v58 = vld [vmem:[#allocation4] sm:$0x1]
    %v59 = vmul.f32 %v48, %v57
    %v60 = vsub.f32 %v58, %v59
    %v62 = vlaneseq
    %v63 = vshrl.u32 %v62, 7
    %v64 = vsub.s32 0, %v63
    %v65 = vrot.slane %v57, %v64
    %v67 = vmul.f32 %v44, %v65
    %v68 = vmul.f32 %v45, %v65
    %v69 = vmul.f32 %v46, %v65
    %v71 = vlaneseq
    %v72 = vshrl.u32 %v71, 7
    %v73 = vsub.s32 0, %v72
    %v74 = vrot.slane %v60, %v73
    %v76 = vadd.f32 %v67, %v74
    %v77 = vadd.f32 %v68, %v74
    %v78 = vadd.f32 %v69, %v74
    %v79 = vpack.c.bf16 %v77, %v76
    %v80 = vpack.c.bf16 %v78, %v78
    %v83 = vunpack.c.l.b16 %v79
    %v84 = vunpack.c.h.b16 %v79
    %v85 = vunpack.c.l.b16 %v80
    %v86 = vpack.c.b16 %v83, %v83
    %v87 = vpack.c.b16 %v84, %v84
    %v88 = vpack.c.b16 %v85, %v85
    %vm92 = vcmask 257024
    %93 = vst.msk [vmem:[%s4] sm:$0xf] %vm92, %v86
    %94 = vst.msk [vmem:[%s4 + $0x4] sm:$0xf] %vm92, %v87
    %95 = vst.msk [vmem:[%s4 + $0x8] sm:$0xf] %vm92, %v88
    // Predicated region
    $region26: #{generator_forward.15} parent=1 // pred_check
      _
    $region27: #{generator_forward.15} parent=1 // pred_check_branch
      %97 = sbr.rel (0) target = $region29
    $region28: #{generator_forward.15} parent=1 // pred_region
      _
    $region29: #{generator_forward.15} parent=1 // pred_fallthru
      _
    // Predicated region
    $region30: #{generator_forward.15} parent=1 // pred_check
      _
    $region31: #{generator_forward.15} parent=1 // pred_check_branch
      %99 = sbr.rel (0) target = $region33
    $region32: #{generator_forward.15} parent=1 // pred_region
      _
    $region33: #{generator_forward.15} parent=1 // pred_fallthru
      _
    %100 = vsyncpa [#allocation3], 1
    %101 = vsyncpa [#allocation5], 1

// kernel: generator_forward.14
$region0: #{generator_forward.14}
  #allocation0 [shape = 'u32[]', space=smem, size = 0x4, offset = 0x4, fixed_abs, tag = 'smem constant byte address 0x4 - core index']
  #allocation1 [shape = 'u32[144,128]{1,0:T(1,128)}', space=vmem, size = 0x12000, scoped, tag = 'internal scratch']
  %s0 = inlined_call_operand.vmem [shape: bf16[24,32], index: 0, kind: input, shape index: {}]
  %s1 = inlined_call_operand.vmem [shape: f32[2,32], index: 1, kind: output, shape index: {}]
  %s2 = sld [smem:[#allocation0]]
  $region18: #{generator_forward.14} parent=0
    _
  %s4 = ssub.s32 1, %s2
  %s5 = scalar_select 0, %s4, %s2
  // Predicated region
  $region2: #{generator_forward.14} parent=0 // pred_check
    _
  $region3: #{generator_forward.14} parent=0 // pred_check_branch
    %7 = sbr.rel (0) target = $region5
  $region4: #{generator_forward.14} parent=0 // pred_region
    _
  $region5: #{generator_forward.14} parent=0 // pred_fallthru
    _
  %p8 = scmp.eq.s32.totalorder 0, 0
  // Predicated region
  $region6: #{generator_forward.14} parent=0 // pred_check
    %p9 = pneg %p8
  $region7: #{generator_forward.14} parent=0 // pred_check_branch
    %11 = sbr.rel (%p9) target = $region9
  $region8: #{generator_forward.14} parent=0 // pred_region
    %vm12 = vcmask 254976
    %13 = vst.msk [vmem:[%s1] sm:$0x3] %vm12, 0.0
  $region9: #{generator_forward.14} parent=0 // pred_fallthru
    _
  %v14 = vld [vmem:[%s0] sm:$0xf]
  %v15 = vld [vmem:[%s0 + $0x4] sm:$0xf]
  %v16 = vld [vmem:[%s0 + $0x8] sm:$0xf]
  %v17 = vunpack.c.l.bf16 %v14
  %v18 = vunpack.c.l.bf16 %v15
  %v19 = vunpack.c.l.bf16 %v16
  %vm20 = vcmask 261120
  %v21 = vsel %vm20, %v17, 0.0
  %v22 = vsel %vm20, %v18, 0.0
  %v23 = vadd.f32 %v21, %v22
  %v24 = vsel %vm20, %v19, 0.0
  %v25 = vadd.f32 %v23, %v24
  %v26 = vrot.slane %v25, 4
  %v27 = vadd.f32 %v25, %v26
  %v28 = vrot.slane %v27, 2
  %v29 = vadd.f32 %v27, %v28
  %v30 = vrot.slane %v29, 1
  %v31 = vadd.f32 %v29, %v30
  %v32 = vmul.f32 %v17, %v17
  %v33 = vmul.f32 %v18, %v18
  %v34 = vmul.f32 %v19, %v19
  %v35 = vsel %vm20, %v32, 0.0
  %v36 = vsel %vm20, %v33, 0.0
  %v37 = vadd.f32 %v35, %v36
  %v38 = vsel %vm20, %v34, 0.0
  %v39 = vadd.f32 %v37, %v38
  %v40 = vrot.slane %v39, 4
  %v41 = vadd.f32 %v39, %v40
  %v42 = vrot.slane %v41, 2
  %v43 = vadd.f32 %v41, %v42
  %v44 = vrot.slane %v43, 1
  %v45 = vadd.f32 %v43, %v44
  %vm46 = vcmask 1040384
  %v47 = vsel %vm46, %v31, %v45
  %v48 = vld [vmem:[%s1] sm:$0x3]
  %v49 = vadd.f32 %v48, %v47
  %vm50 = vcmask 254976
  %51 = vst.msk [vmem:[%s1] sm:$0x3] %vm50, %v49
  // Predicated region
  $region10: #{generator_forward.14} parent=0 // pred_check
    _
  $region11: #{generator_forward.14} parent=0 // pred_check_branch
    %53 = sbr.rel (0) target = $region13
  $region12: #{generator_forward.14} parent=0 // pred_region
    _
  $region13: #{generator_forward.14} parent=0 // pred_fallthru
    _
  // Predicated region
  $region14: #{generator_forward.14} parent=0 // pred_check
    _
  $region15: #{generator_forward.14} parent=0 // pred_check_branch
    %55 = sbr.rel (0) target = $region17
  $region16: #{generator_forward.14} parent=0 // pred_region
    _
  $region17: #{generator_forward.14} parent=0 // pred_fallthru
    _

// kernel: generator_forward.13
$region0: #{generator_forward.13}
  #allocation0 [shape = 'u32[]', space=smem, size = 0x4, offset = 0x4, fixed_abs, tag = 'smem constant byte address 0x4 - core index']
  #allocation1 [shape = 'u32[144,128]{1,0:T(1,128)}', space=vmem, size = 0x12000, scoped, tag = 'internal scratch']
  #allocation2 [shape = 'f32[4,32]{1,0:T(4,128)}', space=vmem, size = 0x800, scoped, tag = 'scratch operand']
  %s0 = inlined_call_operand.vmem [shape: bf16[2,5,7,8], index: 0, kind: input, shape index: {}]
  %s1 = inlined_call_operand.vmem [shape: bf16[3,4,8,32], index: 1, kind: input, shape index: {}]
  %s2 = inlined_call_operand.hbm [shape: f32[1,32], index: 2, kind: input, shape index: {}]
  %s3 = inlined_call_operand.vmem [shape: bf16[2,3,4,32], index: 3, kind: output, shape index: {}]
  %s4 = sld [smem:[#allocation0]]
  $region57: #{generator_forward.13} parent=0
    _
  %s6 = ssub.s32 1, %s4
  %s7 = scalar_select 0, %s6, %s4
  $region1: #{generator_forward.13} parent=0
    #allocation3 [shape = 'u8[512]{0}', space=vmem, size = 0x400, scoped, tag = 'input window, operand 2, single buffered']
    #allocation4 [shape = 's32[2]{0}', space=sflag, size = 0x8, scoped, tag = 'scoped memory for generator_forward.13']
    %8 = vsyncpa [#allocation4], 0
    loop: start=0, step=1, limit=20
    $region2: #{generator_forward.13} parent=1 // loop_pre_header
      _
    $region3: #{generator_forward.13} parent=1 // loop_header
      %s10 = sphi 0, %s14
      %p11 = scmp.ge.s32.totalorder %s10, 20
      %s17 = sphi 0, %s36
      %s18 = sphi 0, %s32
      %s19 = sphi 0, %s28
      %s20 = sphi 0, %s17
      %s21 = sphi 0, %s18
      %s22 = sphi 0, %s19
      %s23 = sphi 0, %s20
      %s24 = sphi 0, %s21
      %s25 = sphi 0, %s22
      %s43 = sphi 0, %s45
      %s46 = sphi 0, %s43
      %s47 = sphi 0, %s46
      %s63 = sphi 0, %s47
      %s69 = sphi 0, %s71
      %s72 = sphi 0, %s69
      %s73 = sphi 0, %s72
      %s89 = sphi 0, %s73
      %s93 = sphi 0, %s93
      %s95 = sphi 0, %s93
      %s96 = sphi 0, %s95
      %s110 = sphi 0, %s96
      %s118 = sphi 0, %s120
      %s121 = sphi 0, %s118
      %s122 = sphi 0, %s121
      %s138 = sphi 0, %s122
    $region4: #{generator_forward.13} parent=1 // loop_header_branch
      %13 = sbr.rel (%p11) target = $region8
    $region5: #{generator_forward.13} parent=1 // loop_body
      %s15 = ssub.s32 %s10, 1
      %s16 = ssub.s32 %s10, 2
      %s26 = sadd.s32 1, %s19
      %p27 = scmp.ge.s32.totalorder %s26, 3
      %s28 = scalar_select %p27, 0, %s26
      %s29 = sadd.s32 1, %s18
      %s30 = scalar_select %p27, %s29, %s18
      %p31 = scmp.ge.s32.totalorder %s30, 3
      %s32 = scalar_select %p31, 0, %s30
      %s33 = sadd.s32 1, %s17
      %s34 = scalar_select %p31, %s33, %s17
      %p35 = scmp.ge.s32.totalorder %s34, 2
      %s36 = scalar_select %p35, 0, %s34
      %s37 = sadd.s32 %s18, %s19
      %s38 = sadd.s32 %s32, %s28
      %s39 = ssub.s32 %s17, %s36
      %s40 = ssub.s32 %s37, %s38
      %s41 = sor.u32 %s39, %s40
      %p42 = scmp.eq.s32.totalorder %s41, 0
      %s44 = sadd.s32 %s43, 1
      %s45 = scalar_select %p42, %s43, %s44
      %p48 = pneg %p42
      %p49 = scmp.eq.s32.totalorder %s10, 17
      %p50 = por %p48, %p49
      %p51 = scmp.ne.s32.totalorder %s43, %s46
      %p52 = scmp.eq.s32.totalorder %s10, 0
      %p53 = por %p51, %p52
      %p54 = scmp.ne.s32.totalorder %s43, %s46
      %p55 = scmp.eq.s32.totalorder %s15, 17
      %p56 = por %p54, %p55
      %p57 = scmp.ne.s32.totalorder %s46, %s47
      %p58 = scmp.eq.s32.totalorder %s15, 0
      %p59 = por %p57, %p58
      %p60 = scmp.ne.s32.totalorder %s46, %s47
      %p61 = scmp.eq.s32.totalorder %s16, 17
      %p62 = por %p60, %p61
      %p64 = scmp.ne.s32.totalorder %s47, %s63
      %p65 = scmp.eq.s32.totalorder %s16, 0
      %p66 = por %p64, %p65
      %s67 = ssub.s32 %s19, %s28
      %p68 = scmp.eq.s32.totalorder %s67, 0
      %s70 = sadd.s32 %s69, 1
      %s71 = scalar_select %p68, %s69, %s70
      %p74 = pneg %p68
      %p75 = scmp.eq.s32.totalorder %s10, 17
      %p76 = por %p74, %p75
      %p77 = scmp.ne.s32.totalorder %s69, %s72
      %p78 = scmp.eq.s32.totalorder %s10, 0
      %p79 = por %p77, %p78
      %p80 = scmp.ne.s32.totalorder %s69, %s72
      %p81 = scmp.eq.s32.totalorder %s15, 17
      %p82 = por %p80, %p81
      %p83 = scmp.ne.s32.totalorder %s72, %s73
      %p84 = scmp.eq.s32.totalorder %s15, 0
      %p85 = por %p83, %p84
      %p86 = scmp.ne.s32.totalorder %s72, %s73
      %p87 = scmp.eq.s32.totalorder %s16, 17
      %p88 = por %p86, %p87
      %p90 = scmp.ne.s32.totalorder %s73, %s89
      %p91 = scmp.eq.s32.totalorder %s16, 0
      %p92 = por %p90, %p91
      %s94 = sadd.s32 %s93, 1
      %p97 = scmp.eq.s32.totalorder %s10, 17
      %p98 = scmp.ne.s32.totalorder %s93, %s95
      %p99 = scmp.eq.s32.totalorder %s10, 0
      %p100 = por %p98, %p99
      %p101 = scmp.ne.s32.totalorder %s93, %s95
      %p102 = scmp.eq.s32.totalorder %s15, 17
      %p103 = por %p101, %p102
      %p104 = scmp.ne.s32.totalorder %s95, %s96
      %p105 = scmp.eq.s32.totalorder %s15, 0
      %p106 = por %p104, %p105
      %p107 = scmp.ne.s32.totalorder %s95, %s96
      %p108 = scmp.eq.s32.totalorder %s16, 17
      %p109 = por %p107, %p108
      %p111 = scmp.ne.s32.totalorder %s96, %s110
      %p112 = scmp.eq.s32.totalorder %s16, 0
      %p113 = por %p111, %p112
      %s114 = ssub.s32 %s17, %s36
      %s115 = ssub.s32 %s18, %s32
      %s116 = sor.u32 %s114, %s115
      %p117 = scmp.eq.s32.totalorder %s116, 0
      %s119 = sadd.s32 %s118, 1
      %s120 = scalar_select %p117, %s118, %s119
      %p123 = pneg %p117
      %p124 = scmp.eq.s32.totalorder %s10, 17
      %p125 = por %p123, %p124
      %p126 = scmp.ne.s32.totalorder %s118, %s121
      %p127 = scmp.eq.s32.totalorder %s10, 0
      %p128 = por %p126, %p127
      %p129 = scmp.ne.s32.totalorder %s118, %s121
      %p130 = scmp.eq.s32.totalorder %s15, 17
      %p131 = por %p129, %p130
      %p132 = scmp.ne.s32.totalorder %s121, %s122
      %p133 = scmp.eq.s32.totalorder %s15, 0
      %p134 = por %p132, %p133
      %p135 = scmp.ne.s32.totalorder %s121, %s122
      %p136 = scmp.eq.s32.totalorder %s16, 17
      %p137 = por %p135, %p136
      %p139 = scmp.ne.s32.totalorder %s122, %s138
      %p140 = scmp.eq.s32.totalorder %s16, 0
      %p141 = por %p139, %p140
      %p142 = scmp.le.s32.totalorder 1, %s10
      %p143 = scmp.lt.s32.totalorder %s10, 19
      %p144 = pnand %p142, %p143
      %p145 = pneg %p144
      // Predicated region
      $region9: #{generator_forward.13} parent=5 // pred_check
        _
      $region10: #{generator_forward.13} parent=5 // pred_check_branch
        %147 = sbr.rel (%p144) target = $region12
      $region11: #{generator_forward.13} parent=5 // pred_region
        %s148 = ssub.s32 %s10, 1
        // Predicated region
        $region13: #{generator_forward.13} parent=11 // pred_check
          %p149 = pneg %p106
        $region14: #{generator_forward.13} parent=11 // pred_check_branch
          %151 = sbr.rel (%p149) target = $region16
        $region15: #{generator_forward.13} parent=11 // pred_region
          %s153 = ssub.s32 16, 16
          %154 = vsyncadd [#allocation4], %s153
          %s156 = sshll.u32 [#allocation3], 4
          %s157 = int_to_ptr.vmem [resolvable:$true] %s156
          %159 = dma.hbm_to_vmem [thread:$0]  %s2, 16, %s157, [#allocation4]
        $region16: #{generator_forward.13} parent=11 // pred_fallthru
          _
      $region12: #{generator_forward.13} parent=5 // pred_fallthru
        _
      %p160 = scmp.lt.s32.totalorder %s10, 18
      // Predicated region
      $region17: #{generator_forward.13} parent=5 // pred_check
        %p161 = pneg %p160
      $region18: #{generator_forward.13} parent=5 // pred_check_branch
        %163 = sbr.rel (%p161) target = $region20
      $region19: #{generator_forward.13} parent=5 // pred_region
        // Predicated region
        $region21: #{generator_forward.13} parent=19 // pred_check
          %p164 = pneg %p53
        $region22: #{generator_forward.13} parent=19 // pred_check_branch
          %166 = sbr.rel (%p164) target = $region24
        $region23: #{generator_forward.13} parent=19 // pred_region
          %s167 = sadd.s32 %s18, %s19
          %p168 = scmp.lt.s32.totalorder %s17, 1
          %s169 = scalar_select %p168, %s17, 1
          %p170 = scmp.lt.s32.totalorder %s167, 4
          %s171 = scalar_select %p170, %s167, 4
          %s172 = smul.addr %s169, 5
          %s173 = sadd.s32 %s171, %s172
          %s174 = smul.addr %s173, 4
          %s175 = scalar_lea.vmem %s0, %s174
          %s176 = sadd.s32 %s18, %s19
        $region24: #{generator_forward.13} parent=19 // pred_fallthru
          _
        // Predicated region
        $region25: #{generator_forward.13} parent=19 // pred_check
          %p177 = pneg %p79
        $region26: #{generator_forward.13} parent=19 // pred_check_branch
          %179 = sbr.rel (%p177) target = $region28
        $region27: #{generator_forward.13} parent=19 // pred_region
          %p180 = scmp.lt.s32.totalorder %s19, 2
          %s181 = scalar_select %p180, %s19, 2
          %s182 = smul.addr %s181, 4
          %s183 = smul.addr %s182, 4
          %s184 = scalar_lea.vmem %s1, %s183
        $region28: #{generator_forward.13} parent=19 // pred_fallthru
          _
      $region20: #{generator_forward.13} parent=5 // pred_fallthru
        _
      %p185 = scmp.le.s32.totalorder 1, %s10
      %p186 = scmp.lt.s32.totalorder %s10, 19
      %p187 = pnand %p185, %p186
      %p188 = pneg %p187
      // Predicated region
      $region29: #{generator_forward.13} parent=5 // pred_check
        _
      $region30: #{generator_forward.13} parent=5 // pred_check_branch
        %190 = sbr.rel (%p187) target = $region32
      $region31: #{generator_forward.13} parent=5 // pred_region
        %s191 = ssub.s32 %s10, 1
        // Predicated region
        $region33: #{generator_forward.13} parent=31 // pred_check
          %p192 = pneg %p106
        $region34: #{generator_forward.13} parent=31 // pred_check_branch
          %194 = sbr.rel (%p192) target = $region36
        $region35: #{generator_forward.13} parent=31 // pred_region
          %195 = dma.done [#allocation4], 16
        $region36: #{generator_forward.13} parent=31 // pred_fallthru
          _
        %s196 = sadd.s32 %s21, %s22
        %p197 = scmp.lt.s32.totalorder %s20, 1
        %s198 = scalar_select %p197, %s20, 1
        %p199 = scmp.lt.s32.totalorder %s196, 4
        %s200 = scalar_select %p199, %s196, 4
        %s201 = smul.addr %s198, 5
        %s202 = sadd.s32 %s200, %s201
        %s203 = smul.addr %s202, 4
        %s204 = scalar_lea.vmem %s0, %s203
        %p205 = pneg %p59
        %p206 = pneg %p56
        %p207 = scmp.lt.s32.totalorder %s22, 2
        %s208 = scalar_select %p207, %s22, 2
        %s209 = smul.addr %s208, 4
        %s210 = smul.addr %s209, 4
        %s211 = scalar_lea.vmem %s1, %s210
        %p212 = pneg %p85
        %p213 = pneg %p82
        %p214 = pneg %p106
        %p215 = pneg %p103
        %p216 = pneg %p134
        %p217 = pneg %p131
        %p218 = scmp.lt.s32.totalorder %s20, 1
        %s219 = scalar_select %p218, %s20, 1
        %p220 = scmp.lt.s32.totalorder %s21, 2
        %s221 = scalar_select %p220, %s21, 2
        %s222 = smul.addr %s219, 3
        %s223 = sadd.s32 %s221, %s222
        %s224 = smul.addr %s223, 2
        %s225 = scalar_lea.vmem %s3, %s224
        %s226 = sadd.s32 %s21, %s22
        %p227 = scmp.lt.s32.totalorder %s20, 1
        %s228 = scalar_select %p227, %s20, 1
        %p229 = scmp.lt.s32.totalorder %s226, 4
        %s230 = scalar_select %p229, %s226, 4
        %s231 = smul.addr %s228, 5
        %s232 = sadd.s32 %s230, %s231
        %s233 = smul.addr %s232, 4
        %s234 = scalar_lea.vmem %s0, %s233
        %s235 = sadd.s32 %s21, %s22
        %p236 = scmp.lt.s32.totalorder %s22, 2
        %s237 = scalar_select %p236, %s22, 2
        %s238 = smul.addr %s237, 4
        %s239 = smul.addr %s238, 4
        %s240 = scalar_lea.vmem %s1, %s239
        %p241 = scmp.lt.s32.totalorder %s20, 1
        %s242 = scalar_select %p241, %s20, 1
        %p243 = scmp.lt.s32.totalorder %s21, 2
        %s244 = scalar_select %p243, %s21, 2
        %s245 = smul.addr %s242, 3
        %s246 = sadd.s32 %s244, %s245
        %s247 = smul.addr %s246, 2
        %s248 = scalar_lea.vmem %s3, %s247
        %p250 = scmp.eq.s32.totalorder %s22, 0
        // Predicated region
        $region37: #{generator_forward.13} parent=31 // pred_check
          %p251 = pneg %p250
        $region38: #{generator_forward.13} parent=31 // pred_check_branch
          %253 = sbr.rel (%p251) target = $region40
        $region39: #{generator_forward.13} parent=31 // pred_region
          %vm254 = vcmask 257024
          %255 = vst.msk [vmem:[#allocation2] sm:$0xf] %vm254, 0.0
        $region40: #{generator_forward.13} parent=31 // pred_fallthru
          _
        %v256 = vld [vmem:[#allocation2] sm:$0xf]
        %v257 = vld [vmem:[%s234] sm:$0x3]
        %v258 = vld [vmem:[%s240] sm:$0xf]
        %vm259 = vcmask 64512
        %v261 = vsel %vm259, %v257, 0
        %vm263 = vcmask 1043456
        %v265 = vsel %vm263, %v258, 0
        %267 = vmatprep.subr.bf16.mxu0 0
        %268 = vmatpush1.bf16.msra.mxu0 0
        %269 = vmatprep.subr.bf16.mxu0 0
        %270 = vmatpush1.bf16.msra.mxu0 0
        %271 = vmatprep.subr.bf16.mxu0 0
        %272 = vmatpush1.bf16.msra.mxu0 0
        %273 = vmatprep.subr.bf16.mxu0 0
        %274 = vmatpush1.bf16.msra.mxu0 0
        %275 = vmatprep.subr.bf16.mxu0 0
        %276 = vmatpush1.bf16.msra.mxu0 0
        %277 = vmatprep.subr.bf16.mxu0 0
        %278 = vmatpush1.bf16.msra.mxu0 0
        %279 = vmatprep.subr.bf16.mxu0 0
        %280 = vmatpush1.bf16.msra.mxu0 0
        %281 = vmatprep.subr.bf16.mxu0 0
        %282 = vmatpush1.bf16.msra.mxu0 %v265
        %283 = vmatprep.subr.bf16.mxu0 0
        %284 = vmatpush2.bf16.msra.mxu0 0
        %285 = vmatprep.subr.bf16.mxu0 0
        %286 = vmatpush2.bf16.msra.mxu0 0
        %287 = vmatprep.subr.bf16.mxu0 0
        %288 = vmatpush2.bf16.msra.mxu0 0
        %289 = vmatprep.subr.bf16.mxu0 0
        %290 = vmatpush2.bf16.msra.mxu0 0
        %291 = vmatprep.subr.bf16.mxu0 0
        %292 = vmatpush2.bf16.msra.mxu0 0
        %293 = vmatprep.subr.bf16.mxu0 0
        %294 = vmatpush2.bf16.msra.mxu0 0
        %295 = vmatprep.subr.bf16.mxu0 0
        %296 = vmatpush2.bf16.msra.mxu0 0
        %297 = vmatprep.subr.bf16.mxu0 0
        %298 = vmatpush2.bf16.msra.mxu0 0
        %299 = vmatprep.mubr.bf16.mxu0 0
        %300 = vmatmul.mubr.bf16.gmra.mxu0 %v261
        %v301 = vpop.f32.mrf.mxu0
        %v302 = vadd.f32 0.0, %v301
        %v303 = vpop.f32.mrf.mxu0
        %v304 = vpop.f32.mrf.mxu0
        %v305 = vpop.f32.mrf.mxu0
        %306 = vdwg.mxu0
        %v307 = vadd.f32 %v256, %v302
        %v308 = vld [vmem:[%s234] sm:$0x7]
        %s309 = scalar_lea.vmem %s240, 4
        %v310 = vld [vmem:[%s309] sm:$0xf]
        %v312 = vunpack.c.l.b16 %v308
        %v313 = vpack.c.b16 %v312, %v312
        %v315 = vshrl.u32 %v313, 16
        %v317 = vshll.u32 %v313, 16
        %v319 = vrot.slane %v317, 1
        %v320 = vor.u32 %v315, %v319
        %v322 = vsel %vm259, %v320, 0
        %v325 = vsel %vm263, %v310, 0
        %327 = vmatprep.subr.bf16.mxu0 0
        %328 = vmatpush1.bf16.msra.mxu0 0
        %329 = vmatprep.subr.bf16.mxu0 0
        %330 = vmatpush1.bf16.msra.mxu0 0
        %331 = vmatprep.subr.bf16.mxu0 0
        %332 = vmatpush1.bf16.msra.mxu0 0
        %333 = vmatprep.subr.bf16.mxu0 0
        %334 = vmatpush1.bf16.msra.mxu0 0
        %335 = vmatprep.subr.bf16.mxu0 0
        %336 = vmatpush1.bf16.msra.mxu0 0
        %337 = vmatprep.subr.bf16.mxu0 0
        %338 = vmatpush1.bf16.msra.mxu0 0
        %339 = vmatprep.subr.bf16.mxu0 0
        %340 = vmatpush1.bf16.msra.mxu0 0
        %341 = vmatprep.subr.bf16.mxu0 0
        %342 = vmatpush1.bf16.msra.mxu0 %v325
        %343 = vmatprep.subr.bf16.mxu0 0
        %344 = vmatpush2.bf16.msra.mxu0 0
        %345 = vmatprep.subr.bf16.mxu0 0
        %346 = vmatpush2.bf16.msra.mxu0 0
        %347 = vmatprep.subr.bf16.mxu0 0
        %348 = vmatpush2.bf16.msra.mxu0 0
        %349 = vmatprep.subr.bf16.mxu0 0
        %350 = vmatpush2.bf16.msra.mxu0 0
        %351 = vmatprep.subr.bf16.mxu0 0
        %352 = vmatpush2.bf16.msra.mxu0 0
        %353 = vmatprep.subr.bf16.mxu0 0
        %354 = vmatpush2.bf16.msra.mxu0 0
        %355 = vmatprep.subr.bf16.mxu0 0
        %356 = vmatpush2.bf16.msra.mxu0 0
        %357 = vmatprep.subr.bf16.mxu0 0
        %358 = vmatpush2.bf16.msra.mxu0 0
        %359 = vmatprep.mubr.bf16.mxu0 0
        %360 = vmatmul.mubr.bf16.gmra.mxu0 %v322
        %v361 = vpop.f32.mrf.mxu0
        %v362 = vadd.f32 0.0, %v361
        %v363 = vpop.f32.mrf.mxu0
        %v364 = vpop.f32.mrf.mxu0
        %v365 = vpop.f32.mrf.mxu0
        %366 = vdwg.mxu0
        %v367 = vadd.f32 %v307, %v362
        %v368 = vld [vmem:[%s234] sm:$0x6]
        %s369 = scalar_lea.vmem %s240, 8
        %v370 = vld [vmem:[%s369] sm:$0xf]
        %v372 = vunpack.c.l.b16 %v368
        %v373 = vpack.c.b16 %v372, %v372
        %v374 = vrot.slane %v373, 1
        %v376 = vsel %vm259, %v374, 0
        %v379 = vsel %vm263, %v370, 0
        %381 = vmatprep.subr.bf16.mxu0 0
        %382 = vmatpush1.bf16.msra.mxu0 0
        %383 = vmatprep.subr.bf16.mxu0 0
        %384 = vmatpush1.bf16.msra.mxu0 0
        %385 = vmatprep.subr.bf16.mxu0 0
        %386 = vmatpush1.bf16.msra.mxu0 0
        %387 = vmatprep.subr.bf16.mxu0 0
        %388 = vmatpush1.bf16.msra.mxu0 0
        %389 = vmatprep.subr.bf16.mxu0 0
        %390 = vmatpush1.bf16.msra.mxu0 0
        %391 = vmatprep.subr.bf16.mxu0 0
        %392 = vmatpush1.bf16.msra.mxu0 0
        %393 = vmatprep.subr.bf16.mxu0 0
        %394 = vmatpush1.bf16.msra.mxu0 0
        %395 = vmatprep.subr.bf16.mxu0 0
        %396 = vmatpush1.bf16.msra.mxu0 %v379
        %397 = vmatprep.subr.bf16.mxu0 0
        %398 = vmatpush2.bf16.msra.mxu0 0
        %399 = vmatprep.subr.bf16.mxu0 0
        %400 = vmatpush2.bf16.msra.mxu0 0
        %401 = vmatprep.subr.bf16.mxu0 0
        %402 = vmatpush2.bf16.msra.mxu0 0
        %403 = vmatprep.subr.bf16.mxu0 0
        %404 = vmatpush2.bf16.msra.mxu0 0
        %405 = vmatprep.subr.bf16.mxu0 0
        %406 = vmatpush2.bf16.msra.mxu0 0
        %407 = vmatprep.subr.bf16.mxu0 0
        %408 = vmatpush2.bf16.msra.mxu0 0
        %409 = vmatprep.subr.bf16.mxu0 0
        %410 = vmatpush2.bf16.msra.mxu0 0
        %411 = vmatprep.subr.bf16.mxu0 0
        %412 = vmatpush2.bf16.msra.mxu0 0
        %413 = vmatprep.mubr.bf16.mxu0 0
        %414 = vmatmul.mubr.bf16.gmra.mxu0 %v376
        %v415 = vpop.f32.mrf.mxu0
        %v416 = vadd.f32 0.0, %v415
        %v417 = vpop.f32.mrf.mxu0
        %v418 = vpop.f32.mrf.mxu0
        %v419 = vpop.f32.mrf.mxu0
        %420 = vdwg.mxu0
        %v421 = vadd.f32 %v367, %v416
        %v422 = vld [vmem:[%s234] sm:$0xe]
        %s423 = scalar_lea.vmem %s240, 12
        %v424 = vld [vmem:[%s423] sm:$0xf]
        %v426 = vunpack.c.l.b16 %v422
        %v427 = vpack.c.b16 %v426, %v426
        %v429 = vshrl.u32 %v427, 16
        %v431 = vrot.slane %v429, 1
        %v432 = vshll.u32 %v427, 16
        %v434 = vrot.slane %v432, 2
        %v435 = vor.u32 %v431, %v434
        %v437 = vsel %vm259, %v435, 0
        %v440 = vsel %vm263, %v424, 0
        %442 = vmatprep.subr.bf16.mxu0 0
        %443 = vmatpush1.bf16.msra.mxu0 0
        %444 = vmatprep.subr.bf16.mxu0 0
        %445 = vmatpush1.bf16.msra.mxu0 0
        %446 = vmatprep.subr.bf16.mxu0 0
        %447 = vmatpush1.bf16.msra.mxu0 0
        %448 = vmatprep.subr.bf16.mxu0 0
        %449 = vmatpush1.bf16.msra.mxu0 0
        %450 = vmatprep.subr.bf16.mxu0 0
        %451 = vmatpush1.bf16.msra.mxu0 0
        %452 = vmatprep.subr.bf16.mxu0 0
        %453 = vmatpush1.bf16.msra.mxu0 0
        %454 = vmatprep.subr.bf16.mxu0 0
        %455 = vmatpush1.bf16.msra.mxu0 0
        %456 = vmatprep.subr.bf16.mxu0 0
        %457 = vmatpush1.bf16.msra.mxu0 %v440
        %458 = vmatprep.subr.bf16.mxu0 0
        %459 = vmatpush2.bf16.msra.mxu0 0
        %460 = vmatprep.subr.bf16.mxu0 0
        %461 = vmatpush2.bf16.msra.mxu0 0
        %462 = vmatprep.subr.bf16.mxu0 0
        %463 = vmatpush2.bf16.msra.mxu0 0
        %464 = vmatprep.subr.bf16.mxu0 0
        %465 = vmatpush2.bf16.msra.mxu0 0
        %466 = vmatprep.subr.bf16.mxu0 0
        %467 = vmatpush2.bf16.msra.mxu0 0
        %468 = vmatprep.subr.bf16.mxu0 0
        %469 = vmatpush2.bf16.msra.mxu0 0
        %470 = vmatprep.subr.bf16.mxu0 0
        %471 = vmatpush2.bf16.msra.mxu0 0
        %472 = vmatprep.subr.bf16.mxu0 0
        %473 = vmatpush2.bf16.msra.mxu0 0
        %474 = vmatprep.mubr.bf16.mxu0 0
        %475 = vmatmul.mubr.bf16.gmra.mxu0 %v437
        %v476 = vpop.f32.mrf.mxu0
        %v477 = vadd.f32 0.0, %v476
        %v478 = vpop.f32.mrf.mxu0
        %v479 = vpop.f32.mrf.mxu0
        %v480 = vpop.f32.mrf.mxu0
        %481 = vdwg.mxu0
        %v482 = vadd.f32 %v421, %v477
        %vm483 = vcmask 257024
        %484 = vst.msk [vmem:[#allocation2] sm:$0xf] %vm483, %v482
        %p485 = scmp.eq.s32.totalorder %s22, 2
        // Predicated region
        $region41: #{generator_forward.13} parent=31 // pred_check
          %p486 = pneg %p485
        $region42: #{generator_forward.13} parent=31 // pred_check_branch
          %488 = sbr.rel (%p486) target = $region44
        $region43: #{generator_forward.13} parent=31 // pred_region
          %v489 = vld [vmem:[#allocation2] sm:$0xf]
          %v490 = vld [vmem:[#allocation3] sm:$0x1]
          %v492 = vlaneseq
          %v493 = vshrl.u32 %v492, 7
          %v494 = vsub.s32 0, %v493
          %v495 = vrot.slane %v490, %v494
          %v497 = vadd.f32 %v489, %v495
          %v498 = vpack.c.bf16 %v497, %v497
          %vm499 = vcmask 254976
          %500 = vst.msk [vmem:[%s248] sm:$0x3] %vm499, %v498
        $region44: #{generator_forward.13} parent=31 // pred_fallthru
          _
        %p501 = scmp.lt.s32.totalorder %s20, 1
        %s502 = scalar_select %p501, %s20, 1
        %p503 = scmp.lt.s32.totalorder %s21, 2
        %s504 = scalar_select %p503, %s21, 2
        %s505 = smul.addr %s502, 3
        %s506 = sadd.s32 %s504, %s505
        %s507 = smul.addr %s506, 2
        %s508 = scalar_lea.vmem %s3, %s507
        // Predicated region
        $region45: #{generator_forward.13} parent=31 // pred_check
          %p509 = pneg %p131
        $region46: #{generator_forward.13} parent=31 // pred_check_branch
          %511 = sbr.rel (%p509) target = $region48
        $region47: #{generator_forward.13} parent=31 // pred_region
          _
        $region48: #{generator_forward.13} parent=31 // pred_fallthru
          _
      $region32: #{generator_forward.13} parent=5 // pred_fallthru
        _
      %p512 = scmp.le.s32.totalorder 2, %s10
      // Predicated region
      $region49: #{generator_forward.13} parent=5 // pred_check
        %p513 = pneg %p512
      $region50: #{generator_forward.13} parent=5 // pred_check_branch
        %515 = sbr.rel (%p513) target = $region52
      $region51: #{generator_forward.13} parent=5 // pred_region
        %s516 = ssub.s32 %s10, 2
        // Predicated region
        $region53: #{generator_forward.13} parent=51 // pred_check
          %p517 = pneg %p137
        $region54: #{generator_forward.13} parent=51 // pred_check_branch
          %519 = sbr.rel (%p517) target = $region56
        $region55: #{generator_forward.13} parent=51 // pred_region
          %p520 = scmp.lt.s32.totalorder %s23, 1
          %s521 = scalar_select %p520, %s23, 1
          %p522 = scmp.lt.s32.totalorder %s24, 2
          %s523 = scalar_select %p522, %s24, 2
          %s524 = smul.addr %s521, 3
          %s525 = sadd.s32 %s523, %s524
          %s526 = smul.addr %s525, 2
          %s527 = scalar_lea.vmem %s3, %s526
        $region56: #{generator_forward.13} parent=51 // pred_fallthru
          _
      $region52: #{generator_forward.13} parent=5 // pred_fallthru
        _
    $region6: #{generator_forward.13} parent=1 // loop_footer
      %s14 = sadd.s32 1, %s10
    $region7: #{generator_forward.13} parent=1 // loop_footer_branch
      %9 = sbr.rel target = $region3
    $region8: #{generator_forward.13} parent=1 // loop_exit
      _
    %528 = vsyncpa [#allocation4], 1
    %s529 = scalar_lea.sflag [#allocation4], 1
    %530 = vsyncpa %s529, 1

// kernel: generator_forward.16
$region0: #{generator_forward.16}
  #allocation0 [shape = 'u32[]', space=smem, size = 0x4, offset = 0x4, fixed_abs, tag = 'smem constant byte address 0x4 - core index']
  #allocation1 [shape = 'u32[144,128]{1,0:T(1,128)}', space=vmem, size = 0x12000, scoped, tag = 'internal scratch']
  #allocation2 [shape = 'f32[8,16]{1,0:T(8,128)}', space=vmem, size = 0x1000, scoped, tag = 'scratch operand']
  %s0 = inlined_call_operand.vmem [shape: bf16[2,9,11,32], index: 0, kind: input, shape index: {}]
  %s1 = inlined_call_operand.vmem [shape: bf16[4,4,32,16], index: 1, kind: input, shape index: {}]
  %s2 = inlined_call_operand.hbm [shape: f32[1,16], index: 2, kind: input, shape index: {}]
  %s3 = inlined_call_operand.vmem [shape: bf16[2,6,8,16], index: 3, kind: output, shape index: {}]
  %s4 = sld [smem:[#allocation0]]
  $region57: #{generator_forward.16} parent=0
    _
  %s6 = ssub.s32 1, %s4
  %s7 = scalar_select 0, %s6, %s4
  $region1: #{generator_forward.16} parent=0
    #allocation3 [shape = 'u8[512]{0}', space=vmem, size = 0x400, scoped, tag = 'input window, operand 2, single buffered']
    #allocation4 [shape = 's32[2]{0}', space=sflag, size = 0x8, scoped, tag = 'scoped memory for generator_forward.16']
    %8 = vsyncpa [#allocation4], 0
    loop: start=0, step=1, limit=50
    $region2: #{generator_forward.16} parent=1 // loop_pre_header
      _
    $region3: #{generator_forward.16} parent=1 // loop_header
      %s10 = sphi 0, %s14
      %p11 = scmp.ge.s32.totalorder %s10, 50
      %s17 = sphi 0, %s36
      %s18 = sphi 0, %s32
      %s19 = sphi 0, %s28
      %s20 = sphi 0, %s17
      %s21 = sphi 0, %s18
      %s22 = sphi 0, %s19
      %s23 = sphi 0, %s20
      %s24 = sphi 0, %s21
      %s25 = sphi 0, %s22
      %s43 = sphi 0, %s45
      %s46 = sphi 0, %s43
      %s47 = sphi 0, %s46
      %s63 = sphi 0, %s47
      %s69 = sphi 0, %s71
      %s72 = sphi 0, %s69
      %s73 = sphi 0, %s72
      %s89 = sphi 0, %s73
      %s93 = sphi 0, %s93
      %s95 = sphi 0, %s93
      %s96 = sphi 0, %s95
      %s110 = sphi 0, %s96
      %s118 = sphi 0, %s120
      %s121 = sphi 0, %s118
      %s122 = sphi 0, %s121
      %s138 = sphi 0, %s122
    $region4: #{generator_forward.16} parent=1 // loop_header_branch
      %13 = sbr.rel (%p11) target = $region8
    $region5: #{generator_forward.16} parent=1 // loop_body
      %s15 = ssub.s32 %s10, 1
      %s16 = ssub.s32 %s10, 2
      %s26 = sadd.s32 1, %s19
      %p27 = scmp.ge.s32.totalorder %s26, 4
      %s28 = scalar_select %p27, 0, %s26
      %s29 = sadd.s32 1, %s18
      %s30 = scalar_select %p27, %s29, %s18
      %p31 = scmp.ge.s32.totalorder %s30, 6
      %s32 = scalar_select %p31, 0, %s30
      %s33 = sadd.s32 1, %s17
      %s34 = scalar_select %p31, %s33, %s17
      %p35 = scmp.ge.s32.totalorder %s34, 2
      %s36 = scalar_select %p35, 0, %s34
      %s37 = sadd.s32 %s18, %s19
      %s38 = sadd.s32 %s32, %s28
      %s39 = ssub.s32 %s17, %s36
      %s40 = ssub.s32 %s37, %s38
      %s41 = sor.u32 %s39, %s40
      %p42 = scmp.eq.s32.totalorder %s41, 0
      %s44 = sadd.s32 %s43, 1
      %s45 = scalar_select %p42, %s43, %s44
      %p48 = pneg %p42
      %p49 = scmp.eq.s32.totalorder %s10, 47
      %p50 = por %p48, %p49
      %p51 = scmp.ne.s32.totalorder %s43, %s46
      %p52 = scmp.eq.s32.totalorder %s10, 0
      %p53 = por %p51, %p52
      %p54 = scmp.ne.s32.totalorder %s43, %s46
      %p55 = scmp.eq.s32.totalorder %s15, 47
      %p56 = por %p54, %p55
      %p57 = scmp.ne.s32.totalorder %s46, %s47
      %p58 = scmp.eq.s32.totalorder %s15, 0
      %p59 = por %p57, %p58
      %p60 = scmp.ne.s32.totalorder %s46, %s47
      %p61 = scmp.eq.s32.totalorder %s16, 47
      %p62 = por %p60, %p61
      %p64 = scmp.ne.s32.totalorder %s47, %s63
      %p65 = scmp.eq.s32.totalorder %s16, 0
      %p66 = por %p64, %p65
      %s67 = ssub.s32 %s19, %s28
      %p68 = scmp.eq.s32.totalorder %s67, 0
      %s70 = sadd.s32 %s69, 1
      %s71 = scalar_select %p68, %s69, %s70
      %p74 = pneg %p68
      %p75 = scmp.eq.s32.totalorder %s10, 47
      %p76 = por %p74, %p75
      %p77 = scmp.ne.s32.totalorder %s69, %s72
      %p78 = scmp.eq.s32.totalorder %s10, 0
      %p79 = por %p77, %p78
      %p80 = scmp.ne.s32.totalorder %s69, %s72
      %p81 = scmp.eq.s32.totalorder %s15, 47
      %p82 = por %p80, %p81
      %p83 = scmp.ne.s32.totalorder %s72, %s73
      %p84 = scmp.eq.s32.totalorder %s15, 0
      %p85 = por %p83, %p84
      %p86 = scmp.ne.s32.totalorder %s72, %s73
      %p87 = scmp.eq.s32.totalorder %s16, 47
      %p88 = por %p86, %p87
      %p90 = scmp.ne.s32.totalorder %s73, %s89
      %p91 = scmp.eq.s32.totalorder %s16, 0
      %p92 = por %p90, %p91
      %s94 = sadd.s32 %s93, 1
      %p97 = scmp.eq.s32.totalorder %s10, 47
      %p98 = scmp.ne.s32.totalorder %s93, %s95
      %p99 = scmp.eq.s32.totalorder %s10, 0
      %p100 = por %p98, %p99
      %p101 = scmp.ne.s32.totalorder %s93, %s95
      %p102 = scmp.eq.s32.totalorder %s15, 47
      %p103 = por %p101, %p102
      %p104 = scmp.ne.s32.totalorder %s95, %s96
      %p105 = scmp.eq.s32.totalorder %s15, 0
      %p106 = por %p104, %p105
      %p107 = scmp.ne.s32.totalorder %s95, %s96
      %p108 = scmp.eq.s32.totalorder %s16, 47
      %p109 = por %p107, %p108
      %p111 = scmp.ne.s32.totalorder %s96, %s110
      %p112 = scmp.eq.s32.totalorder %s16, 0
      %p113 = por %p111, %p112
      %s114 = ssub.s32 %s17, %s36
      %s115 = ssub.s32 %s18, %s32
      %s116 = sor.u32 %s114, %s115
      %p117 = scmp.eq.s32.totalorder %s116, 0
      %s119 = sadd.s32 %s118, 1
      %s120 = scalar_select %p117, %s118, %s119
      %p123 = pneg %p117
      %p124 = scmp.eq.s32.totalorder %s10, 47
      %p125 = por %p123, %p124
      %p126 = scmp.ne.s32.totalorder %s118, %s121
      %p127 = scmp.eq.s32.totalorder %s10, 0
      %p128 = por %p126, %p127
      %p129 = scmp.ne.s32.totalorder %s118, %s121
      %p130 = scmp.eq.s32.totalorder %s15, 47
      %p131 = por %p129, %p130
      %p132 = scmp.ne.s32.totalorder %s121, %s122
      %p133 = scmp.eq.s32.totalorder %s15, 0
      %p134 = por %p132, %p133
      %p135 = scmp.ne.s32.totalorder %s121, %s122
      %p136 = scmp.eq.s32.totalorder %s16, 47
      %p137 = por %p135, %p136
      %p139 = scmp.ne.s32.totalorder %s122, %s138
      %p140 = scmp.eq.s32.totalorder %s16, 0
      %p141 = por %p139, %p140
      %p142 = scmp.le.s32.totalorder 1, %s10
      %p143 = scmp.lt.s32.totalorder %s10, 49
      %p144 = pnand %p142, %p143
      %p145 = pneg %p144
      // Predicated region
      $region9: #{generator_forward.16} parent=5 // pred_check
        _
      $region10: #{generator_forward.16} parent=5 // pred_check_branch
        %147 = sbr.rel (%p144) target = $region12
      $region11: #{generator_forward.16} parent=5 // pred_region
        %s148 = ssub.s32 %s10, 1
        // Predicated region
        $region13: #{generator_forward.16} parent=11 // pred_check
          %p149 = pneg %p106
        $region14: #{generator_forward.16} parent=11 // pred_check_branch
          %151 = sbr.rel (%p149) target = $region16
        $region15: #{generator_forward.16} parent=11 // pred_region
          %s153 = ssub.s32 16, 16
          %154 = vsyncadd [#allocation4], %s153
          %s156 = sshll.u32 [#allocation3], 4
          %s157 = int_to_ptr.vmem [resolvable:$true] %s156
          %159 = dma.hbm_to_vmem [thread:$0]  %s2, 16, %s157, [#allocation4]
        $region16: #{generator_forward.16} parent=11 // pred_fallthru
          _
      $region12: #{generator_forward.16} parent=5 // pred_fallthru
        _
      %p160 = scmp.lt.s32.totalorder %s10, 48
      // Predicated region
      $region17: #{generator_forward.16} parent=5 // pred_check
        %p161 = pneg %p160
      $region18: #{generator_forward.16} parent=5 // pred_check_branch
        %163 = sbr.rel (%p161) target = $region20
      $region19: #{generator_forward.16} parent=5 // pred_region
        // Predicated region
        $region21: #{generator_forward.16} parent=19 // pred_check
          %p164 = pneg %p53
        $region22: #{generator_forward.16} parent=19 // pred_check_branch
          %166 = sbr.rel (%p164) target = $region24
        $region23: #{generator_forward.16} parent=19 // pred_region
          %s167 = sadd.s32 %s18, %s19
          %p168 = scmp.lt.s32.totalorder %s17, 1
          %s169 = scalar_select %p168, %s17, 1
          %p170 = scmp.lt.s32.totalorder %s167, 8
          %s171 = scalar_select %p170, %s167, 8
          %s172 = smul.addr %s171, 2
          %s173 = smul.addr %s169, 18
          %s174 = sadd.s32 %s172, %s173
          %s175 = smul.addr %s174, 4
          %s176 = scalar_lea.vmem %s0, %s175
          %s177 = sadd.s32 %s18, %s19
        $region24: #{generator_forward.16} parent=19 // pred_fallthru
          _
        // Predicated region
        $region25: #{generator_forward.16} parent=19 // pred_check
          %p178 = pneg %p79
        $region26: #{generator_forward.16} parent=19 // pred_check_branch
          %180 = sbr.rel (%p178) target = $region28
        $region27: #{generator_forward.16} parent=19 // pred_region
          %p181 = scmp.lt.s32.totalorder %s19, 3
          %s182 = scalar_select %p181, %s19, 3
          %s183 = smul.addr %s182, 16
          %s184 = smul.addr %s183, 4
          %s185 = scalar_lea.vmem %s1, %s184
        $region28: #{generator_forward.16} parent=19 // pred_fallthru
          _
      $region20: #{generator_forward.16} parent=5 // pred_fallthru
        _
      %p186 = scmp.le.s32.totalorder 1, %s10
      %p187 = scmp.lt.s32.totalorder %s10, 49
      %p188 = pnand %p186, %p187
      %p189 = pneg %p188
      // Predicated region
      $region29: #{generator_forward.16} parent=5 // pred_check
        _
      $region30: #{generator_forward.16} parent=5 // pred_check_branch
        %191 = sbr.rel (%p188) target = $region32
      $region31: #{generator_forward.16} parent=5 // pred_region
        %s192 = ssub.s32 %s10, 1
        // Predicated region
        $region33: #{generator_forward.16} parent=31 // pred_check
          %p193 = pneg %p106
        $region34: #{generator_forward.16} parent=31 // pred_check_branch
          %195 = sbr.rel (%p193) target = $region36
        $region35: #{generator_forward.16} parent=31 // pred_region
          %196 = dma.done [#allocation4], 16
        $region36: #{generator_forward.16} parent=31 // pred_fallthru
          _
        %s197 = sadd.s32 %s21, %s22
        %p198 = scmp.lt.s32.totalorder %s20, 1
        %s199 = scalar_select %p198, %s20, 1
        %p200 = scmp.lt.s32.totalorder %s197, 8
        %s201 = scalar_select %p200, %s197, 8
        %s202 = smul.addr %s201, 2
        %s203 = smul.addr %s199, 18
        %s204 = sadd.s32 %s202, %s203
        %s205 = smul.addr %s204, 4
        %s206 = scalar_lea.vmem %s0, %s205
        %p207 = pneg %p59
        %p208 = pneg %p56
        %p209 = scmp.lt.s32.totalorder %s22, 3
        %s210 = scalar_select %p209, %s22, 3
        %s211 = smul.addr %s210, 16
        %s212 = smul.addr %s211, 4
        %s213 = scalar_lea.vmem %s1, %s212
        %p214 = pneg %p85
        %p215 = pneg %p82
        %p216 = pneg %p106
        %p217 = pneg %p103
        %p218 = pneg %p134
        %p219 = pneg %p131
        %p220 = scmp.lt.s32.totalorder %s20, 1
        %s221 = scalar_select %p220, %s20, 1
        %p222 = scmp.lt.s32.totalorder %s21, 5
        %s223 = scalar_select %p222, %s21, 5
        %s224 = smul.addr %s221, 6
        %s225 = sadd.s32 %s223, %s224
        %s226 = smul.addr %s225, 4
        %s227 = scalar_lea.vmem %s3, %s226
        %s228 = sadd.s32 %s21, %s22
        %p229 = scmp.lt.s32.totalorder %s20, 1
        %s230 = scalar_select %p229, %s20, 1
        %p231 = scmp.lt.s32.totalorder %s228, 8
        %s232 = scalar_select %p231, %s228, 8
        %s233 = smul.addr %s232, 2
        %s234 = smul.addr %s230, 18
        %s235 = sadd.s32 %s233, %s234
        %s236 = smul.addr %s235, 4
        %s237 = scalar_lea.vmem %s0, %s236
        %s238 = sadd.s32 %s21, %s22
        %p239 = scmp.lt.s32.totalorder %s22, 3
        %s240 = scalar_select %p239, %s22, 3
        %s241 = smul.addr %s240, 16
        %s242 = smul.addr %s241, 4
        %s243 = scalar_lea.vmem %s1, %s242
        %p244 = scmp.lt.s32.totalorder %s20, 1
        %s245 = scalar_select %p244, %s20, 1
        %p246 = scmp.lt.s32.totalorder %s21, 5
        %s247 = scalar_select %p246, %s21, 5
        %s248 = smul.addr %s245, 6
        %s249 = sadd.s32 %s247, %s248
        %s250 = smul.addr %s249, 4
        %s251 = scalar_lea.vmem %s3, %s250
        %p253 = scmp.eq.s32.totalorder %s22, 0
        // Predicated region
        $region37: #{generator_forward.16} parent=31 // pred_check
          %p254 = pneg %p253
        $region38: #{generator_forward.16} parent=31 // pred_check_branch
          %256 = sbr.rel (%p254) target = $region40
        $region39: #{generator_forward.16} parent=31 // pred_region
          %vm257 = vcmask 130048
          %258 = vst.msk [vmem:[#allocation2] sm:$0xff] %vm257, 0.0
        $region40: #{generator_forward.16} parent=31 // pred_fallthru
          _
        %v259 = vld [vmem:[#allocation2] sm:$0xff]
        %v260 = vld [vmem:[%s237] sm:$0xf]
        %v261 = vld [vmem:[%s243] sm:$0xf]
        %v262 = vld [vmem:[%s243 + $0x4] sm:$0xf]
        %v263 = vld [vmem:[%s243 + $0x8] sm:$0xf]
        %v264 = vld [vmem:[%s243 + $0xc] sm:$0xf]
        %v269 = vunpack.c.l.b16 %v261
        %v270 = vunpack.c.l.b16 %v262
        %v271 = vunpack.c.l.b16 %v263
        %v272 = vunpack.c.l.b16 %v264
        %v273 = vpack.c.b16 %v270, %v269
        %v274 = vpack.c.b16 %v272, %v271
        %vm277 = vcmask 261120
        %v279 = vsel %vm277, %v260, 0
        %281 = vmatprep.subr.bf16.mxu0 0
        %282 = vmatpush1.bf16.msra.mxu0 0
        %283 = vmatprep.subr.bf16.mxu0 0
        %284 = vmatpush1.bf16.msra.mxu0 0
        %285 = vmatprep.subr.bf16.mxu0 0
        %286 = vmatpush1.bf16.msra.mxu0 0
        %287 = vmatprep.subr.bf16.mxu0 0
        %288 = vmatpush1.bf16.msra.mxu0 0
        %289 = vmatprep.subr.bf16.mxu0 0
        %290 = vmatpush1.bf16.msra.mxu0 0
        %291 = vmatprep.subr.bf16.mxu0 0
        %292 = vmatpush1.bf16.msra.mxu0 0
        %293 = vmatprep.subr.bf16.mxu0 0
        %294 = vmatpush1.bf16.msra.mxu0 %v274
        %295 = vmatprep.subr.bf16.mxu0 0
        %296 = vmatpush1.bf16.msra.mxu0 %v273
        %297 = vmatprep.subr.bf16.mxu0 0
        %298 = vmatpush2.bf16.msra.mxu0 0
        %299 = vmatprep.subr.bf16.mxu0 0
        %300 = vmatpush2.bf16.msra.mxu0 0
        %301 = vmatprep.subr.bf16.mxu0 0
        %302 = vmatpush2.bf16.msra.mxu0 0
        %303 = vmatprep.subr.bf16.mxu0 0
        %304 = vmatpush2.bf16.msra.mxu0 0
        %305 = vmatprep.subr.bf16.mxu0 0
        %306 = vmatpush2.bf16.msra.mxu0 0
        %307 = vmatprep.subr.bf16.mxu0 0
        %308 = vmatpush2.bf16.msra.mxu0 0
        %309 = vmatprep.subr.bf16.mxu0 0
        %310 = vmatpush2.bf16.msra.mxu0 0
        %311 = vmatprep.subr.bf16.mxu0 0
        %312 = vmatpush2.bf16.msra.mxu0 0
        %313 = vmatprep.mubr.bf16.mxu0 0
        %314 = vmatmul.mubr.bf16.gmra.mxu0 %v279
        %v315 = vpop.f32.mrf.mxu0
        %v316 = vadd.f32 0.0, %v315
        %v317 = vpop.f32.mrf.mxu0
        %v318 = vpop.f32.mrf.mxu0
        %v319 = vpop.f32.mrf.mxu0
        %320 = vdwg.mxu0
        %v321 = vadd.f32 %v259, %v316
        %v322 = vld [vmem:[%s237] sm:$0xf]
        %v323 = vld [vmem:[%s237 + $0x4] sm:$0x1]
        %s324 = scalar_lea.vmem %s243, 16
        %v325 = vld [vmem:[%s324] sm:$0xf]
        %v326 = vld [vmem:[%s324 + $0x4] sm:$0xf]
        %v327 = vld [vmem:[%s324 + $0x8] sm:$0xf]
        %v328 = vld [vmem:[%s324 + $0xc] sm:$0xf]
        %v331 = vunpack.c.l.b16 %v322
        %v332 = vunpack.c.l.b16 %v323
        %v333 = vpack.c.b16 %v332, %v331
        %v335 = vshrl.u32 %v333, 16
        %v337 = vshll.u32 %v333, 16
        %v339 = vrot.slane %v337, 1
        %v340 = vor.u32 %v335, %v339
        %v345 = vunpack.c.l.b16 %v325
        %v346 = vunpack.c.l.b16 %v326
        %v347 = vunpack.c.l.b16 %v327
        %v348 = vunpack.c.l.b16 %v328
        %v349 = vpack.c.b16 %v346, %v345
        %v350 = vpack.c.b16 %v348, %v347
        %v354 = vsel %vm277, %v340, 0
        %356 = vmatprep.subr.bf16.mxu0 0
        %357 = vmatpush1.bf16.msra.mxu0 0
        %358 = vmatprep.subr.bf16.mxu0 0
        %359 = vmatpush1.bf16.msra.mxu0 0
        %360 = vmatprep.subr.bf16.mxu0 0
        %361 = vmatpush1.bf16.msra.mxu0 0
        %362 = vmatprep.subr.bf16.mxu0 0
        %363 = vmatpush1.bf16.msra.mxu0 0
        %364 = vmatprep.subr.bf16.mxu0 0
        %365 = vmatpush1.bf16.msra.mxu0 0
        %366 = vmatprep.subr.bf16.mxu0 0
        %367 = vmatpush1.bf16.msra.mxu0 0
        %368 = vmatprep.subr.bf16.mxu0 0
        %369 = vmatpush1.bf16.msra.mxu0 %v350
        %370 = vmatprep.subr.bf16.mxu0 0
        %371 = vmatpush1.bf16.msra.mxu0 %v349
        %372 = vmatprep.subr.bf16.mxu0 0
        %373 = vmatpush2.bf16.msra.mxu0 0
        %374 = vmatprep.subr.bf16.mxu0 0
        %375 = vmatpush2.bf16.msra.mxu0 0
        %376 = vmatprep.subr.bf16.mxu0 0
        %377 = vmatpush2.bf16.msra.mxu0 0
        %378 = vmatprep.subr.bf16.mxu0 0
        %379 = vmatpush2.bf16.msra.mxu0 0
        %380 = vmatprep.subr.bf16.mxu0 0
        %381 = vmatpush2.bf16.msra.mxu0 0
        %382 = vmatprep.subr.bf16.mxu0 0
        %383 = vmatpush2.bf16.msra.mxu0 0
        %384 = vmatprep.subr.bf16.mxu0 0
        %385 = vmatpush2.bf16.msra.mxu0 0
        %386 = vmatprep.subr.bf16.mxu0 0
        %387 = vmatpush2.bf16.msra.mxu0 0
        %388 = vmatprep.mubr.bf16.mxu0 0
        %389 = vmatmul.mubr.bf16.gmra.mxu0 %v354
        %v390 = vpop.f32.mrf.mxu0
        %v391 = vadd.f32 0.0, %v390
        %v392 = vpop.f32.mrf.mxu0
        %v393 = vpop.f32.mrf.mxu0
        %v394 = vpop.f32.mrf.mxu0
        %395 = vdwg.mxu0
        %v396 = vadd.f32 %v321, %v391
        %v397 = vld [vmem:[%s237] sm:$0xe]
        %s398 = scalar_lea.vmem %s243, 32
        %v399 = vld [vmem:[%s398] sm:$0xf]
        %v400 = vld [vmem:[%s398 + $0x4] sm:$0xf]
        %v401 = vld [vmem:[%s398 + $0x8] sm:$0xf]
        %v402 = vld [vmem:[%s398 + $0xc] sm:$0xf]
        %v404 = vunpack.c.l.b16 %v397
        %v405 = vpack.c.b16 %v332, %v404
        %v406 = vrot.slane %v405, 1
        %v411 = vunpack.c.l.b16 %v399
        %v412 = vunpack.c.l.b16 %v400
        %v413 = vunpack.c.l.b16 %v401
        %v414 = vunpack.c.l.b16 %v402
        %v415 = vpack.c.b16 %v412, %v411
        %v416 = vpack.c.b16 %v414, %v413
        %v420 = vsel %vm277, %v406, 0
        %422 = vmatprep.subr.bf16.mxu0 0
        %423 = vmatpush1.bf16.msra.mxu0 0
        %424 = vmatprep.subr.bf16.mxu0 0
        %425 = vmatpush1.bf16.msra.mxu0 0
        %426 = vmatprep.subr.bf16.mxu0 0
        %427 = vmatpush1.bf16.msra.mxu0 0
        %428 = vmatprep.subr.bf16.mxu0 0
        %429 = vmatpush1.bf16.msra.mxu0 0
        %430 = vmatprep.subr.bf16.mxu0 0
        %431 = vmatpush1.bf16.msra.mxu0 0
        %432 = vmatprep.subr.bf16.mxu0 0
        %433 = vmatpush1.bf16.msra.mxu0 0
        %434 = vmatprep.subr.bf16.mxu0 0
        %435 = vmatpush1.bf16.msra.mxu0 %v416
        %436 = vmatprep.subr.bf16.mxu0 0
        %437 = vmatpush1.bf16.msra.mxu0 %v415
        %438 = vmatprep.subr.bf16.mxu0 0
        %439 = vmatpush2.bf16.msra.mxu0 0
        %440 = vmatprep.subr.bf16.mxu0 0
        %441 = vmatpush2.bf16.msra.mxu0 0
        %442 = vmatprep.subr.bf16.mxu0 0
        %443 = vmatpush2.bf16.msra.mxu0 0
        %444 = vmatprep.subr.bf16.mxu0 0
        %445 = vmatpush2.bf16.msra.mxu0 0
        %446 = vmatprep.subr.bf16.mxu0 0
        %447 = vmatpush2.bf16.msra.mxu0 0
        %448 = vmatprep.subr.bf16.mxu0 0
        %449 = vmatpush2.bf16.msra.mxu0 0
        %450 = vmatprep.subr.bf16.mxu0 0
        %451 = vmatpush2.bf16.msra.mxu0 0
        %452 = vmatprep.subr.bf16.mxu0 0
        %453 = vmatpush2.bf16.msra.mxu0 0
        %454 = vmatprep.mubr.bf16.mxu0 0
        %455 = vmatmul.mubr.bf16.gmra.mxu0 %v420
        %v456 = vpop.f32.mrf.mxu0
        %v457 = vadd.f32 0.0, %v456
        %v458 = vpop.f32.mrf.mxu0
        %v459 = vpop.f32.mrf.mxu0
        %v460 = vpop.f32.mrf.mxu0
        %461 = vdwg.mxu0
        %v462 = vadd.f32 %v396, %v457
        %v463 = vld [vmem:[%s237 + $0x4] sm:$0x3]
        %s464 = scalar_lea.vmem %s243, 48
        %v465 = vld [vmem:[%s464] sm:$0xf]
        %v466 = vld [vmem:[%s464 + $0x4] sm:$0xf]
        %v467 = vld [vmem:[%s464 + $0x8] sm:$0xf]
        %v468 = vld [vmem:[%s464 + $0xc] sm:$0xf]
        %v470 = vunpack.c.l.b16 %v463
        %v471 = vpack.c.b16 %v470, %v404
        %v473 = vshrl.u32 %v471, 16
        %v475 = vrot.slane %v473, 1
        %v476 = vshll.u32 %v471, 16
        %v478 = vrot.slane %v476, 2
        %v479 = vor.u32 %v475, %v478
        %v484 = vunpack.c.l.b16 %v465
        %v485 = vunpack.c.l.b16 %v466
        %v486 = vunpack.c.l.b16 %v467
        %v487 = vunpack.c.l.b16 %v468
        %v488 = vpack.c.b16 %v485, %v484
        %v489 = vpack.c.b16 %v487, %v486
        %v493 = vsel %vm277, %v479, 0
        %495 = vmatprep.subr.bf16.mxu0 0
        %496 = vmatpush1.bf16.msra.mxu0 0
        %497 = vmatprep.subr.bf16.mxu0 0
        %498 = vmatpush1.bf16.msra.mxu0 0
        %499 = vmatprep.subr.bf16.mxu0 0
        %500 = vmatpush1.bf16.msra.mxu0 0
        %501 = vmatprep.subr.bf16.mxu0 0
        %502 = vmatpush1.bf16.msra.mxu0 0
        %503 = vmatprep.subr.bf16.mxu0 0
        %504 = vmatpush1.bf16.msra.mxu0 0
        %505 = vmatprep.subr.bf16.mxu0 0
        %506 = vmatpush1.bf16.msra.mxu0 0
        %507 = vmatprep.subr.bf16.mxu0 0
        %508 = vmatpush1.bf16.msra.mxu0 %v489
        %509 = vmatprep.subr.bf16.mxu0 0
        %510 = vmatpush1.bf16.msra.mxu0 %v488
        %511 = vmatprep.subr.bf16.mxu0 0
        %512 = vmatpush2.bf16.msra.mxu0 0
        %513 = vmatprep.subr.bf16.mxu0 0
        %514 = vmatpush2.bf16.msra.mxu0 0
        %515 = vmatprep.subr.bf16.mxu0 0
        %516 = vmatpush2.bf16.msra.mxu0 0
        %517 = vmatprep.subr.bf16.mxu0 0
        %518 = vmatpush2.bf16.msra.mxu0 0
        %519 = vmatprep.subr.bf16.mxu0 0
        %520 = vmatpush2.bf16.msra.mxu0 0
        %521 = vmatprep.subr.bf16.mxu0 0
        %522 = vmatpush2.bf16.msra.mxu0 0
        %523 = vmatprep.subr.bf16.mxu0 0
        %524 = vmatpush2.bf16.msra.mxu0 0
        %525 = vmatprep.subr.bf16.mxu0 0
        %526 = vmatpush2.bf16.msra.mxu0 0
        %527 = vmatprep.mubr.bf16.mxu0 0
        %528 = vmatmul.mubr.bf16.gmra.mxu0 %v493
        %v529 = vpop.f32.mrf.mxu0
        %v530 = vadd.f32 0.0, %v529
        %v531 = vpop.f32.mrf.mxu0
        %v532 = vpop.f32.mrf.mxu0
        %v533 = vpop.f32.mrf.mxu0
        %534 = vdwg.mxu0
        %v535 = vadd.f32 %v462, %v530
        %vm536 = vcmask 130048
        %537 = vst.msk [vmem:[#allocation2] sm:$0xff] %vm536, %v535
        %p538 = scmp.eq.s32.totalorder %s22, 3
        // Predicated region
        $region41: #{generator_forward.16} parent=31 // pred_check
          %p539 = pneg %p538
        $region42: #{generator_forward.16} parent=31 // pred_check_branch
          %541 = sbr.rel (%p539) target = $region44
        $region43: #{generator_forward.16} parent=31 // pred_region
          %v542 = vld [vmem:[#allocation2] sm:$0xff]
          %v543 = vld [vmem:[#allocation3] sm:$0x1]
          %v545 = vlaneseq
          %v546 = vshrl.u32 %v545, 7
          %v547 = vsub.s32 0, %v546
          %v548 = vrot.slane %v543, %v547
          %v550 = vadd.f32 %v542, %v548
          %v551 = vpack.c.bf16 %v550, %v550
          %vm552 = vcmask 125952
          %553 = vst.msk [vmem:[%s251] sm:$0xf] %vm552, %v551
        $region44: #{generator_forward.16} parent=31 // pred_fallthru
          _
        %p554 = scmp.lt.s32.totalorder %s20, 1
        %s555 = scalar_select %p554, %s20, 1
        %p556 = scmp.lt.s32.totalorder %s21, 5
        %s557 = scalar_select %p556, %s21, 5
        %s558 = smul.addr %s555, 6
        %s559 = sadd.s32 %s557, %s558
        %s560 = smul.addr %s559, 4
        %s561 = scalar_lea.vmem %s3, %s560
        // Predicated region
        $region45: #{generator_forward.16} parent=31 // pred_check
          %p562 = pneg %p131
        $region46: #{generator_forward.16} parent=31 // pred_check_branch
          %564 = sbr.rel (%p562) target = $region48
        $region47: #{generator_forward.16} parent=31 // pred_region
          _
        $region48: #{generator_forward.16} parent=31 // pred_fallthru
          _
      $region32: #{generator_forward.16} parent=5 // pred_fallthru
        _
      %p565 = scmp.le.s32.totalorder 2, %s10
      // Predicated region
      $region49: #{generator_forward.16} parent=5 // pred_check
        %p566 = pneg %p565
      $region50: #{generator_forward.16} parent=5 // pred_check_branch
        %568 = sbr.rel (%p566) target = $region52
      $region51: #{generator_forward.16} parent=5 // pred_region
        %s569 = ssub.s32 %s10, 2
        // Predicated region
        $region53: #{generator_forward.16} parent=51 // pred_check
          %p570 = pneg %p137
        $region54: #{generator_forward.16} parent=51 // pred_check_branch
          %572 = sbr.rel (%p570) target = $region56
        $region55: #{generator_forward.16} parent=51 // pred_region
          %p573 = scmp.lt.s32.totalorder %s23, 1
          %s574 = scalar_select %p573, %s23, 1
          %p575 = scmp.lt.s32.totalorder %s24, 5
          %s576 = scalar_select %p575, %s24, 5
          %s577 = smul.addr %s574, 6
          %s578 = sadd.s32 %s576, %s577
          %s579 = smul.addr %s578, 4
          %s580 = scalar_lea.vmem %s3, %s579
        $region56: #{generator_forward.16} parent=51 // pred_fallthru
          _
      $region52: #{generator_forward.16} parent=5 // pred_fallthru
        _
    $region6: #{generator_forward.16} parent=1 // loop_footer
      %s14 = sadd.s32 1, %s10
    $region7: #{generator_forward.16} parent=1 // loop_footer_branch
      %9 = sbr.rel target = $region3
    $region8: #{generator_forward.16} parent=1 // loop_exit
      _
    %581 = vsyncpa [#allocation4], 1
    %s582 = scalar_lea.sflag [#allocation4], 1
    %583 = vsyncpa %s582, 1

// kernel: generator_forward.17
$region0: #{generator_forward.17}
  #allocation0 [shape = 'u32[]', space=smem, size = 0x4, offset = 0x4, fixed_abs, tag = 'smem constant byte address 0x4 - core index']
  #allocation1 [shape = 'u32[144,128]{1,0:T(1,128)}', space=vmem, size = 0x12000, scoped, tag = 'internal scratch']
  %s0 = inlined_call_operand.vmem [shape: bf16[96,16], index: 0, kind: input, shape index: {}]
  %s1 = inlined_call_operand.vmem [shape: f32[2,16], index: 1, kind: output, shape index: {}]
  %s2 = sld [smem:[#allocation0]]
  $region18: #{generator_forward.17} parent=0
    _
  %s4 = ssub.s32 1, %s2
  %s5 = scalar_select 0, %s4, %s2
  // Predicated region
  $region2: #{generator_forward.17} parent=0 // pred_check
    _
  $region3: #{generator_forward.17} parent=0 // pred_check_branch
    %7 = sbr.rel (0) target = $region5
  $region4: #{generator_forward.17} parent=0 // pred_region
    _
  $region5: #{generator_forward.17} parent=0 // pred_fallthru
    _
  %p8 = scmp.eq.s32.totalorder 0, 0
  // Predicated region
  $region6: #{generator_forward.17} parent=0 // pred_check
    %p9 = pneg %p8
  $region7: #{generator_forward.17} parent=0 // pred_check_branch
    %11 = sbr.rel (%p9) target = $region9
  $region8: #{generator_forward.17} parent=0 // pred_region
    %vm12 = vcmask 123904
    %13 = vst.msk [vmem:[%s1] sm:$0x3] %vm12, 0.0
  $region9: #{generator_forward.17} parent=0 // pred_fallthru
    _
  %v14 = vld [vmem:[%s0] sm:$0xf]
  %v15 = vld [vmem:[%s0 + $0x4] sm:$0xf]
  %v16 = vld [vmem:[%s0 + $0x8] sm:$0xf]
  %v17 = vld [vmem:[%s0 + $0xc] sm:$0xf]
  %v18 = vld [vmem:[%s0 + $0x10] sm:$0xf]
  %v19 = vld [vmem:[%s0 + $0x14] sm:$0xf]
  %v20 = vld [vmem:[%s0 + $0x18] sm:$0xf]
  %v21 = vld [vmem:[%s0 + $0x1c] sm:$0xf]
  %v22 = vld [vmem:[%s0 + $0x20] sm:$0xf]
  %v23 = vld [vmem:[%s0 + $0x24] sm:$0xf]
  %v24 = vld [vmem:[%s0 + $0x28] sm:$0xf]
  %v25 = vld [vmem:[%s0 + $0x2c] sm:$0xf]
  %v26 = vunpack.c.l.bf16 %v14
  %v27 = vunpack.c.l.bf16 %v15
  %v28 = vunpack.c.l.bf16 %v16
  %v29 = vunpack.c.l.bf16 %v17
  %v30 = vunpack.c.l.bf16 %v18
  %v31 = vunpack.c.l.bf16 %v19
  %v32 = vunpack.c.l.bf16 %v20
  %v33 = vunpack.c.l.bf16 %v21
  %v34 = vunpack.c.l.bf16 %v22
  %v35 = vunpack.c.l.bf16 %v23
  %v36 = vunpack.c.l.bf16 %v24
  %v37 = vunpack.c.l.bf16 %v25
  %vm38 = vcmask 130048
  %v39 = vsel %vm38, %v26, 0.0
  %v40 = vsel %vm38, %v27, 0.0
  %v41 = vadd.f32 %v39, %v40
  %v42 = vsel %vm38, %v28, 0.0
  %v43 = vadd.f32 %v41, %v42
  %v44 = vsel %vm38, %v29, 0.0
  %v45 = vadd.f32 %v43, %v44
  %v46 = vsel %vm38, %v30, 0.0
  %v47 = vadd.f32 %v45, %v46
  %v48 = vsel %vm38, %v31, 0.0
  %v49 = vadd.f32 %v47, %v48
  %v50 = vsel %vm38, %v32, 0.0
  %v51 = vadd.f32 %v49, %v50
  %v52 = vsel %vm38, %v33, 0.0
  %v53 = vadd.f32 %v51, %v52
  %v54 = vsel %vm38, %v34, 0.0
  %v55 = vadd.f32 %v53, %v54
  %v56 = vsel %vm38, %v35, 0.0
  %v57 = vadd.f32 %v55, %v56
  %v58 = vsel %vm38, %v36, 0.0
  %v59 = vadd.f32 %v57, %v58
  %v60 = vsel %vm38, %v37, 0.0
  %v61 = vadd.f32 %v59, %v60
  %v62 = vrot.slane %v61, 4
  %v63 = vadd.f32 %v61, %v62
  %v64 = vrot.slane %v63, 2
  %v65 = vadd.f32 %v63, %v64
  %v66 = vrot.slane %v65, 1
  %v67 = vadd.f32 %v65, %v66
  %v68 = vmul.f32 %v26, %v26
  %v69 = vmul.f32 %v27, %v27
  %v70 = vmul.f32 %v28, %v28
  %v71 = vmul.f32 %v29, %v29
  %v72 = vmul.f32 %v30, %v30
  %v73 = vmul.f32 %v31, %v31
  %v74 = vmul.f32 %v32, %v32
  %v75 = vmul.f32 %v33, %v33
  %v76 = vmul.f32 %v34, %v34
  %v77 = vmul.f32 %v35, %v35
  %v78 = vmul.f32 %v36, %v36
  %v79 = vmul.f32 %v37, %v37
  %v80 = vsel %vm38, %v68, 0.0
  %v81 = vsel %vm38, %v69, 0.0
  %v82 = vadd.f32 %v80, %v81
  %v83 = vsel %vm38, %v70, 0.0
  %v84 = vadd.f32 %v82, %v83
  %v85 = vsel %vm38, %v71, 0.0
  %v86 = vadd.f32 %v84, %v85
  %v87 = vsel %vm38, %v72, 0.0
  %v88 = vadd.f32 %v86, %v87
  %v89 = vsel %vm38, %v73, 0.0
  %v90 = vadd.f32 %v88, %v89
  %v91 = vsel %vm38, %v74, 0.0
  %v92 = vadd.f32 %v90, %v91
  %v93 = vsel %vm38, %v75, 0.0
  %v94 = vadd.f32 %v92, %v93
  %v95 = vsel %vm38, %v76, 0.0
  %v96 = vadd.f32 %v94, %v95
  %v97 = vsel %vm38, %v77, 0.0
  %v98 = vadd.f32 %v96, %v97
  %v99 = vsel %vm38, %v78, 0.0
  %v100 = vadd.f32 %v98, %v99
  %v101 = vsel %vm38, %v79, 0.0
  %v102 = vadd.f32 %v100, %v101
  %v103 = vrot.slane %v102, 4
  %v104 = vadd.f32 %v102, %v103
  %v105 = vrot.slane %v104, 2
  %v106 = vadd.f32 %v104, %v105
  %v107 = vrot.slane %v106, 1
  %v108 = vadd.f32 %v106, %v107
  %vm109 = vcmask 1040384
  %v110 = vsel %vm109, %v67, %v108
  %v111 = vld [vmem:[%s1] sm:$0x3]
  %v112 = vadd.f32 %v111, %v110
  %vm113 = vcmask 123904
  %114 = vst.msk [vmem:[%s1] sm:$0x3] %vm113, %v112
  // Predicated region
  $region10: #{generator_forward.17} parent=0 // pred_check
    _
  $region11: #{generator_forward.17} parent=0 // pred_check_branch
    %116 = sbr.rel (0) target = $region13
  $region12: #{generator_forward.17} parent=0 // pred_region
    _
  $region13: #{generator_forward.17} parent=0 // pred_fallthru
    _
  // Predicated region
  $region14: #{generator_forward.17} parent=0 // pred_check
    _
  $region15: #{generator_forward.17} parent=0 // pred_check_branch
    %118 = sbr.rel (0) target = $region17
  $region16: #{generator_forward.17} parent=0 // pred_region
    _
  $region17: #{generator_forward.17} parent=0 // pred_fallthru
    _

// kernel: generator_forward.18
$region0: #{generator_forward.18}
  #allocation0 [shape = 'u32[]', space=smem, size = 0x4, offset = 0x4, fixed_abs, tag = 'smem constant byte address 0x4 - core index']
  #allocation1 [shape = 'u32[144,128]{1,0:T(1,128)}', space=vmem, size = 0x12000, scoped, tag = 'internal scratch']
  %s0 = inlined_call_operand.vmem [shape: bf16[96,16], index: 0, kind: input, shape index: {}]
  %s1 = inlined_call_operand.vmem [shape: f32[2,16], index: 1, kind: input, shape index: {}]
  %s2 = inlined_call_operand.vmem [shape: f32[1,16], index: 2, kind: input, shape index: {}]
  %s3 = inlined_call_operand.vmem [shape: f32[1,16], index: 3, kind: input, shape index: {}]
  %s4 = inlined_call_operand.vmem [shape: bf16[96,16], index: 4, kind: output, shape index: {}]
  %s5 = sld [smem:[#allocation0]]
  $region26: #{generator_forward.18} parent=0
    _
  %s7 = ssub.s32 1, %s5
  %s8 = scalar_select 0, %s7, %s5
  // Predicated region
  $region2: #{generator_forward.18} parent=0 // pred_check
    _
  $region3: #{generator_forward.18} parent=0 // pred_check_branch
    %10 = sbr.rel (0) target = $region5
  $region4: #{generator_forward.18} parent=0 // pred_region
    _
  $region5: #{generator_forward.18} parent=0 // pred_fallthru
    _
  // Predicated region
  $region6: #{generator_forward.18} parent=0 // pred_check
    _
  $region7: #{generator_forward.18} parent=0 // pred_check_branch
    %12 = sbr.rel (0) target = $region9
  $region8: #{generator_forward.18} parent=0 // pred_region
    _
  $region9: #{generator_forward.18} parent=0 // pred_fallthru
    _
  // Predicated region
  $region10: #{generator_forward.18} parent=0 // pred_check
    _
  $region11: #{generator_forward.18} parent=0 // pred_check_branch
    %14 = sbr.rel (0) target = $region13
  $region12: #{generator_forward.18} parent=0 // pred_region
    _
  $region13: #{generator_forward.18} parent=0 // pred_fallthru
    _
  // Predicated region
  $region14: #{generator_forward.18} parent=0 // pred_check
    _
  $region15: #{generator_forward.18} parent=0 // pred_check_branch
    %16 = sbr.rel (0) target = $region17
  $region16: #{generator_forward.18} parent=0 // pred_region
    _
  $region17: #{generator_forward.18} parent=0 // pred_fallthru
    _
  %v17 = vld [vmem:[%s0] sm:$0xf]
  %v18 = vld [vmem:[%s0 + $0x4] sm:$0xf]
  %v19 = vld [vmem:[%s0 + $0x8] sm:$0xf]
  %v20 = vld [vmem:[%s0 + $0xc] sm:$0xf]
  %v21 = vld [vmem:[%s0 + $0x10] sm:$0xf]
  %v22 = vld [vmem:[%s0 + $0x14] sm:$0xf]
  %v23 = vld [vmem:[%s0 + $0x18] sm:$0xf]
  %v24 = vld [vmem:[%s0 + $0x1c] sm:$0xf]
  %v25 = vld [vmem:[%s0 + $0x20] sm:$0xf]
  %v26 = vld [vmem:[%s0 + $0x24] sm:$0xf]
  %v27 = vld [vmem:[%s0 + $0x28] sm:$0xf]
  %v28 = vld [vmem:[%s0 + $0x2c] sm:$0xf]
  %v29 = vunpack.c.l.bf16 %v17
  %v30 = vunpack.c.l.bf16 %v18
  %v31 = vunpack.c.l.bf16 %v19
  %v32 = vunpack.c.l.bf16 %v20
  %v33 = vunpack.c.l.bf16 %v21
  %v34 = vunpack.c.l.bf16 %v22
  %v35 = vunpack.c.l.bf16 %v23
  %v36 = vunpack.c.l.bf16 %v24
  %v37 = vunpack.c.l.bf16 %v25
  %v38 = vunpack.c.l.bf16 %v26
  %v39 = vunpack.c.l.bf16 %v27
  %v40 = vunpack.c.l.bf16 %v28
  %v41 = vld [vmem:[%s1] sm:$0x1]
  %v42 = vmul.f32 %v41, 0.010416667
  %v43 = vld [vmem:[%s1 + $0x1] sm:$0x1]
  %v44 = vmul.f32 %v43, 0.010416667
  %v45 = vmul.f32 %v42, %v42
  %v46 = vsub.f32 %v44, %v45
  %v47 = vmax.f32 %v46, 0.0
  %v48 = vld [vmem:[%s2] sm:$0x1]
  %v49 = vadd.f32 %v47, 1e-05
  %v50 = vrsqrt.pop %v49
  %v51 = vmul.f32 %v48, %v50
  %v52 = vld [vmem:[%s3] sm:$0x1]
  %v53 = vmul.f32 %v42, %v51
  %v54 = vsub.f32 %v52, %v53
  %v56 = vlaneseq
  %v57 = vshrl.u32 %v56, 7
  %v58 = vsub.s32 0, %v57
  %v59 = vrot.slane %v51, %v58
  %v61 = vmul.f32 %v29, %v59
  %v62 = vmul.f32 %v30, %v59
  %v63 = vmul.f32 %v31, %v59
  %v64 = vmul.f32 %v32, %v59
  %v65 = vmul.f32 %v33, %v59
  %v66 = vmul.f32 %v34, %v59
  %v67 = vmul.f32 %v35, %v59
  %v68 = vmul.f32 %v36, %v59
  %v69 = vmul.f32 %v37, %v59
  %v70 = vmul.f32 %v38, %v59
  %v71 = vmul.f32 %v39, %v59
  %v72 = vmul.f32 %v40, %v59
  %v74 = vlaneseq
  %v75 = vshrl.u32 %v74, 7
  %v76 = vsub.s32 0, %v75
  %v77 = vrot.slane %v54, %v76
  %v79 = vadd.f32 %v61, %v77
  %v80 = vadd.f32 %v62, %v77
  %v81 = vadd.f32 %v63, %v77
  %v82 = vadd.f32 %v64, %v77
  %v83 = vadd.f32 %v65, %v77
  %v84 = vadd.f32 %v66, %v77
  %v85 = vadd.f32 %v67, %v77
  %v86 = vadd.f32 %v68, %v77
  %v87 = vadd.f32 %v69, %v77
  %v88 = vadd.f32 %v70, %v77
  %v89 = vadd.f32 %v71, %v77
  %v90 = vadd.f32 %v72, %v77
  %v91 = vpack.c.bf16 %v80, %v79
  %v92 = vpack.c.bf16 %v82, %v81
  %v93 = vpack.c.bf16 %v84, %v83
  %v94 = vpack.c.bf16 %v86, %v85
  %v95 = vpack.c.bf16 %v88, %v87
  %v96 = vpack.c.bf16 %v90, %v89
  %v103 = vunpack.c.l.b16 %v91
  %v104 = vunpack.c.h.b16 %v91
  %v105 = vunpack.c.l.b16 %v92
  %v106 = vunpack.c.h.b16 %v92
  %v107 = vunpack.c.l.b16 %v93
  %v108 = vunpack.c.h.b16 %v93
  %v109 = vunpack.c.l.b16 %v94
  %v110 = vunpack.c.h.b16 %v94
  %v111 = vunpack.c.l.b16 %v95
  %v112 = vunpack.c.h.b16 %v95
  %v113 = vunpack.c.l.b16 %v96
  %v114 = vunpack.c.h.b16 %v96
  %v115 = vpack.c.b16 %v103, %v103
  %v116 = vpack.c.b16 %v104, %v104
  %v117 = vpack.c.b16 %v105, %v105
  %v118 = vpack.c.b16 %v106, %v106
  %v119 = vpack.c.b16 %v107, %v107
  %v120 = vpack.c.b16 %v108, %v108
  %v121 = vpack.c.b16 %v109, %v109
  %v122 = vpack.c.b16 %v110, %v110
  %v123 = vpack.c.b16 %v111, %v111
  %v124 = vpack.c.b16 %v112, %v112
  %v125 = vpack.c.b16 %v113, %v113
  %v126 = vpack.c.b16 %v114, %v114
  %vm139 = vcmask 125952
  %140 = vst.msk [vmem:[%s4] sm:$0xf] %vm139, %v115
  %141 = vst.msk [vmem:[%s4 + $0x4] sm:$0xf] %vm139, %v116
  %142 = vst.msk [vmem:[%s4 + $0x8] sm:$0xf] %vm139, %v117
  %143 = vst.msk [vmem:[%s4 + $0xc] sm:$0xf] %vm139, %v118
  %144 = vst.msk [vmem:[%s4 + $0x10] sm:$0xf] %vm139, %v119
  %145 = vst.msk [vmem:[%s4 + $0x14] sm:$0xf] %vm139, %v120
  %146 = vst.msk [vmem:[%s4 + $0x18] sm:$0xf] %vm139, %v121
  %147 = vst.msk [vmem:[%s4 + $0x1c] sm:$0xf] %vm139, %v122
  %148 = vst.msk [vmem:[%s4 + $0x20] sm:$0xf] %vm139, %v123
  %149 = vst.msk [vmem:[%s4 + $0x24] sm:$0xf] %vm139, %v124
  %150 = vst.msk [vmem:[%s4 + $0x28] sm:$0xf] %vm139, %v125
  %151 = vst.msk [vmem:[%s4 + $0x2c] sm:$0xf] %vm139, %v126
  // Predicated region
  $region18: #{generator_forward.18} parent=0 // pred_check
    _
  $region19: #{generator_forward.18} parent=0 // pred_check_branch
    %153 = sbr.rel (0) target = $region21
  $region20: #{generator_forward.18} parent=0 // pred_region
    _
  $region21: #{generator_forward.18} parent=0 // pred_fallthru
    _
  // Predicated region
  $region22: #{generator_forward.18} parent=0 // pred_check
    _
  $region23: #{generator_forward.18} parent=0 // pred_check_branch
    %155 = sbr.rel (0) target = $region25
  $region24: #{generator_forward.18} parent=0 // pred_region
    _
  $region25: #{generator_forward.18} parent=0 // pred_fallthru
    _

// kernel: generator_forward.19
$region0: #{generator_forward.19}
  #allocation0 [shape = 'u32[]', space=smem, size = 0x4, offset = 0x4, fixed_abs, tag = 'smem constant byte address 0x4 - core index']
  #allocation1 [shape = 'u32[144,128]{1,0:T(1,128)}', space=vmem, size = 0x12000, scoped, tag = 'internal scratch']
  #allocation2 [shape = 'f32[16,8]{1,0:T(8,128)}', space=vmem, size = 0x2000, scoped, tag = 'scratch operand']
  %s0 = inlined_call_operand.vmem [shape: bf16[2,15,19,16], index: 0, kind: input, shape index: {}]
  %s1 = inlined_call_operand.vmem [shape: bf16[4,4,16,8], index: 1, kind: input, shape index: {}]
  %s2 = inlined_call_operand.vmem [shape: f32[1,8], index: 2, kind: input, shape index: {}]
  %s3 = inlined_call_operand.vmem [shape: bf16[2,12,16,8], index: 3, kind: output, shape index: {}]
  %s4 = sld [smem:[#allocation0]]
  $region53: #{generator_forward.19} parent=0
    _
  %s6 = ssub.s32 1, %s4
  %s7 = scalar_select 0, %s6, %s4
  loop: start=0, step=1, limit=98
  $region2: #{generator_forward.19} parent=0 // loop_pre_header
    _
  $region3: #{generator_forward.19} parent=0 // loop_header
    %s9 = sphi 0, %s13
    %p10 = scmp.ge.s32.totalorder %s9, 98
    %s16 = sphi 0, %s35
    %s17 = sphi 0, %s31
    %s18 = sphi 0, %s27
    %s19 = sphi 0, %s16
    %s20 = sphi 0, %s17
    %s21 = sphi 0, %s18
    %s22 = sphi 0, %s19
    %s23 = sphi 0, %s20
    %s24 = sphi 0, %s21
    %s42 = sphi 0, %s44
    %s45 = sphi 0, %s42
    %s46 = sphi 0, %s45
    %s62 = sphi 0, %s46
    %s68 = sphi 0, %s70
    %s71 = sphi 0, %s68
    %s72 = sphi 0, %s71
    %s88 = sphi 0, %s72
    %s92 = sphi 0, %s92
    %s94 = sphi 0, %s92
    %s95 = sphi 0, %s94
    %s109 = sphi 0, %s95
    %s117 = sphi 0, %s119
    %s120 = sphi 0, %s117
    %s121 = sphi 0, %s120
    %s137 = sphi 0, %s121
  $region4: #{generator_forward.19} parent=0 // loop_header_branch
    %12 = sbr.rel (%p10) target = $region8
  $region5: #{generator_forward.19} parent=0 // loop_body
    %s14 = ssub.s32 %s9, 1
    %s15 = ssub.s32 %s9, 2
    %s25 = sadd.s32 1, %s18
    %p26 = scmp.ge.s32.totalorder %s25, 4
    %s27 = scalar_select %p26, 0, %s25
    %s28 = sadd.s32 1, %s17
    %s29 = scalar_select %p26, %s28, %s17
    %p30 = scmp.ge.s32.totalorder %s29, 12
    %s31 = scalar_select %p30, 0, %s29
    %s32 = sadd.s32 1, %s16
    %s33 = scalar_select %p30, %s32, %s16
    %p34 = scmp.ge.s32.totalorder %s33, 2
    %s35 = scalar_select %p34, 0, %s33
    %s36 = sadd.s32 %s17, %s18
    %s37 = sadd.s32 %s31, %s27
    %s38 = ssub.s32 %s16, %s35
    %s39 = ssub.s32 %s36, %s37
    %s40 = sor.u32 %s38, %s39
    %p41 = scmp.eq.s32.totalorder %s40, 0
    %s43 = sadd.s32 %s42, 1
    %s44 = scalar_select %p41, %s42, %s43
    %p47 = pneg %p41
    %p48 = scmp.eq.s32.totalorder %s9, 95
    %p49 = por %p47, %p48
    %p50 = scmp.ne.s32.totalorder %s42, %s45
    %p51 = scmp.eq.s32.totalorder %s9, 0
    %p52 = por %p50, %p51
    %p53 = scmp.ne.s32.totalorder %s42, %s45
    %p54 = scmp.eq.s32.totalorder %s14, 95
    %p55 = por %p53, %p54
    %p56 = scmp.ne.s32.totalorder %s45, %s46
    %p57 = scmp.eq.s32.totalorder %s14, 0
    %p58 = por %p56, %p57
    %p59 = scmp.ne.s32.totalorder %s45, %s46
    %p60 = scmp.eq.s32.totalorder %s15, 95
    %p61 = por %p59, %p60
    %p63 = scmp.ne.s32.totalorder %s46, %s62
    %p64 = scmp.eq.s32.totalorder %s15, 0
    %p65 = por %p63, %p64
    %s66 = ssub.s32 %s18, %s27
    %p67 = scmp.eq.s32.totalorder %s66, 0
    %s69 = sadd.s32 %s68, 1
    %s70 = scalar_select %p67, %s68, %s69
    %p73 = pneg %p67
    %p74 = scmp.eq.s32.totalorder %s9, 95
    %p75 = por %p73, %p74
    %p76 = scmp.ne.s32.totalorder %s68, %s71
    %p77 = scmp.eq.s32.totalorder %s9, 0
    %p78 = por %p76, %p77
    %p79 = scmp.ne.s32.totalorder %s68, %s71
    %p80 = scmp.eq.s32.totalorder %s14, 95
    %p81 = por %p79, %p80
    %p82 = scmp.ne.s32.totalorder %s71, %s72
    %p83 = scmp.eq.s32.totalorder %s14, 0
    %p84 = por %p82, %p83
    %p85 = scmp.ne.s32.totalorder %s71, %s72
    %p86 = scmp.eq.s32.totalorder %s15, 95
    %p87 = por %p85, %p86
    %p89 = scmp.ne.s32.totalorder %s72, %s88
    %p90 = scmp.eq.s32.totalorder %s15, 0
    %p91 = por %p89, %p90
    %s93 = sadd.s32 %s92, 1
    %p96 = scmp.eq.s32.totalorder %s9, 95
    %p97 = scmp.ne.s32.totalorder %s92, %s94
    %p98 = scmp.eq.s32.totalorder %s9, 0
    %p99 = por %p97, %p98
    %p100 = scmp.ne.s32.totalorder %s92, %s94
    %p101 = scmp.eq.s32.totalorder %s14, 95
    %p102 = por %p100, %p101
    %p103 = scmp.ne.s32.totalorder %s94, %s95
    %p104 = scmp.eq.s32.totalorder %s14, 0
    %p105 = por %p103, %p104
    %p106 = scmp.ne.s32.totalorder %s94, %s95
    %p107 = scmp.eq.s32.totalorder %s15, 95
    %p108 = por %p106, %p107
    %p110 = scmp.ne.s32.totalorder %s95, %s109
    %p111 = scmp.eq.s32.totalorder %s15, 0
    %p112 = por %p110, %p111
    %s113 = ssub.s32 %s16, %s35
    %s114 = ssub.s32 %s17, %s31
    %s115 = sor.u32 %s113, %s114
    %p116 = scmp.eq.s32.totalorder %s115, 0
    %s118 = sadd.s32 %s117, 1
    %s119 = scalar_select %p116, %s117, %s118
    %p122 = pneg %p116
    %p123 = scmp.eq.s32.totalorder %s9, 95
    %p124 = por %p122, %p123
    %p125 = scmp.ne.s32.totalorder %s117, %s120
    %p126 = scmp.eq.s32.totalorder %s9, 0
    %p127 = por %p125, %p126
    %p128 = scmp.ne.s32.totalorder %s117, %s120
    %p129 = scmp.eq.s32.totalorder %s14, 95
    %p130 = por %p128, %p129
    %p131 = scmp.ne.s32.totalorder %s120, %s121
    %p132 = scmp.eq.s32.totalorder %s14, 0
    %p133 = por %p131, %p132
    %p134 = scmp.ne.s32.totalorder %s120, %s121
    %p135 = scmp.eq.s32.totalorder %s15, 95
    %p136 = por %p134, %p135
    %p138 = scmp.ne.s32.totalorder %s121, %s137
    %p139 = scmp.eq.s32.totalorder %s15, 0
    %p140 = por %p138, %p139
    %p141 = scmp.le.s32.totalorder 1, %s9
    %p142 = scmp.lt.s32.totalorder %s9, 97
    %p143 = pnand %p141, %p142
    %p144 = pneg %p143
    // Predicated region
    $region9: #{generator_forward.19} parent=5 // pred_check
      _
    $region10: #{generator_forward.19} parent=5 // pred_check_branch
      %146 = sbr.rel (%p143) target = $region12
    $region11: #{generator_forward.19} parent=5 // pred_region
      %s147 = ssub.s32 %s9, 1
      // Predicated region
      $region13: #{generator_forward.19} parent=11 // pred_check
        %p148 = pneg %p105
      $region14: #{generator_forward.19} parent=11 // pred_check_branch
        %150 = sbr.rel (%p148) target = $region16
      $region15: #{generator_forward.19} parent=11 // pred_region
        _
      $region16: #{generator_forward.19} parent=11 // pred_fallthru
        _
    $region12: #{generator_forward.19} parent=5 // pred_fallthru
      _
    %p151 = scmp.lt.s32.totalorder %s9, 96
    // Predicated region
    $region17: #{generator_forward.19} parent=5 // pred_check
      %p152 = pneg %p151
    $region18: #{generator_forward.19} parent=5 // pred_check_branch
      %154 = sbr.rel (%p152) target = $region20
    $region19: #{generator_forward.19} parent=5 // pred_region
      // Predicated region
      $region21: #{generator_forward.19} parent=19 // pred_check
        %p155 = pneg %p52
      $region22: #{generator_forward.19} parent=19 // pred_check_branch
        %157 = sbr.rel (%p155) target = $region24
      $region23: #{generator_forward.19} parent=19 // pred_region
        %s158 = sadd.s32 %s17, %s18
        %p159 = scmp.lt.s32.totalorder %s16, 1
        %s160 = scalar_select %p159, %s16, 1
        %p161 = scmp.lt.s32.totalorder %s158, 14
        %s162 = scalar_select %p161, %s158, 14
        %s163 = smul.addr %s162, 3
        %s164 = smul.addr %s160, 45
        %s165 = sadd.s32 %s163, %s164
        %s166 = smul.addr %s165, 4
        %s167 = scalar_lea.vmem %s0, %s166
        %s168 = sadd.s32 %s17, %s18
      $region24: #{generator_forward.19} parent=19 // pred_fallthru
        _
      // Predicated region
      $region25: #{generator_forward.19} parent=19 // pred_check
        %p169 = pneg %p78
      $region26: #{generator_forward.19} parent=19 // pred_check_branch
        %171 = sbr.rel (%p169) target = $region28
      $region27: #{generator_forward.19} parent=19 // pred_region
        %p172 = scmp.lt.s32.totalorder %s18, 3
        %s173 = scalar_select %p172, %s18, 3
        %s174 = smul.addr %s173, 8
        %s175 = smul.addr %s174, 4
        %s176 = scalar_lea.vmem %s1, %s175
      $region28: #{generator_forward.19} parent=19 // pred_fallthru
        _
    $region20: #{generator_forward.19} parent=5 // pred_fallthru
      _
    %p177 = scmp.le.s32.totalorder 1, %s9
    %p178 = scmp.lt.s32.totalorder %s9, 97
    %p179 = pnand %p177, %p178
    %p180 = pneg %p179
    // Predicated region
    $region29: #{generator_forward.19} parent=5 // pred_check
      _
    $region30: #{generator_forward.19} parent=5 // pred_check_branch
      %182 = sbr.rel (%p179) target = $region32
    $region31: #{generator_forward.19} parent=5 // pred_region
      %s183 = ssub.s32 %s9, 1
      %s184 = sadd.s32 %s20, %s21
      %p185 = scmp.lt.s32.totalorder %s19, 1
      %s186 = scalar_select %p185, %s19, 1
      %p187 = scmp.lt.s32.totalorder %s184, 14
      %s188 = scalar_select %p187, %s184, 14
      %s189 = smul.addr %s188, 3
      %s190 = smul.addr %s186, 45
      %s191 = sadd.s32 %s189, %s190
      %s192 = smul.addr %s191, 4
      %s193 = scalar_lea.vmem %s0, %s192
      %p194 = pneg %p58
      %p195 = pneg %p55
      %p196 = scmp.lt.s32.totalorder %s21, 3
      %s197 = scalar_select %p196, %s21, 3
      %s198 = smul.addr %s197, 8
      %s199 = smul.addr %s198, 4
      %s200 = scalar_lea.vmem %s1, %s199
      %p201 = pneg %p84
      %p202 = pneg %p81
      %p203 = pneg %p105
      %p204 = pneg %p102
      %p205 = pneg %p133
      %p206 = pneg %p130
      %p207 = scmp.lt.s32.totalorder %s19, 1
      %s208 = scalar_select %p207, %s19, 1
      %p209 = scmp.lt.s32.totalorder %s20, 11
      %s210 = scalar_select %p209, %s20, 11
      %s211 = smul.addr %s210, 2
      %s212 = smul.addr %s208, 24
      %s213 = sadd.s32 %s211, %s212
      %s214 = smul.addr %s213, 4
      %s215 = scalar_lea.vmem %s3, %s214
      %s216 = sadd.s32 %s20, %s21
      %p217 = scmp.lt.s32.totalorder %s19, 1
      %s218 = scalar_select %p217, %s19, 1
      %p219 = scmp.lt.s32.totalorder %s216, 14
      %s220 = scalar_select %p219, %s216, 14
      %s221 = smul.addr %s220, 3
      %s222 = smul.addr %s218, 45
      %s223 = sadd.s32 %s221, %s222
      %s224 = smul.addr %s223, 4
      %s225 = scalar_lea.vmem %s0, %s224
      %s226 = sadd.s32 %s20, %s21
      %p227 = scmp.lt.s32.totalorder %s21, 3
      %s228 = scalar_select %p227, %s21, 3
      %s229 = smul.addr %s228, 8
      %s230 = smul.addr %s229, 4
      %s231 = scalar_lea.vmem %s1, %s230
      %p232 = scmp.lt.s32.totalorder %s19, 1
      %s233 = scalar_select %p232, %s19, 1
      %p234 = scmp.lt.s32.totalorder %s20, 11
      %s235 = scalar_select %p234, %s20, 11
      %s236 = smul.addr %s235, 2
      %s237 = smul.addr %s233, 24
      %s238 = sadd.s32 %s236, %s237
      %s239 = smul.addr %s238, 4
      %s240 = scalar_lea.vmem %s3, %s239
      %p242 = scmp.eq.s32.totalorder %s21, 0
      // Predicated region
      $region33: #{generator_forward.19} parent=31 // pred_check
        %p243 = pneg %p242
      $region34: #{generator_forward.19} parent=31 // pred_check_branch
        %245 = sbr.rel (%p243) target = $region36
      $region35: #{generator_forward.19} parent=31 // pred_region
        %vm246 = vcmask 64512
        %247 = vst.msk [vmem:[#allocation2] sm:$0xff] %vm246, 0.0
        %248 = vst.msk [vmem:[#allocation2 + $0x8] sm:$0xff] %vm246, 0.0
      $region36: #{generator_forward.19} parent=31 // pred_fallthru
        _
      %v249 = vld [vmem:[#allocation2] sm:$0xff]
      %v250 = vld [vmem:[#allocation2 + $0x8] sm:$0xff]
      %v251 = vld [vmem:[%s225] sm:$0xf]
      %v252 = vld [vmem:[%s225 + $0x4] sm:$0xf]
      %v253 = vld [vmem:[%s231] sm:$0xf]
      %v254 = vld [vmem:[%s231 + $0x4] sm:$0xf]
      %v257 = vunpack.c.l.b16 %v251
      %v258 = vunpack.c.l.b16 %v252
      %v259 = vpack.c.b16 %v258, %v257
      %v262 = vunpack.c.l.b16 %v253
      %v263 = vunpack.c.l.b16 %v254
      %v264 = vpack.c.b16 %v263, %v262
      %vm266 = vcmask 130048
      %v268 = vsel %vm266, %v259, 0
      %270 = vmatprep.subr.bf16.mxu0 0
      %271 = vmatpush1.bf16.msra.mxu0 0
      %272 = vmatprep.subr.bf16.mxu0 0
      %273 = vmatpush1.bf16.msra.mxu0 0
      %274 = vmatprep.subr.bf16.mxu0 0
      %275 = vmatpush1.bf16.msra.mxu0 0
      %276 = vmatprep.subr.bf16.mxu0 0
      %277 = vmatpush1.bf16.msra.mxu0 0
      %278 = vmatprep.subr.bf16.mxu0 0
      %279 = vmatpush1.bf16.msra.mxu0 0
      %280 = vmatprep.subr.bf16.mxu0 0
      %281 = vmatpush1.bf16.msra.mxu0 0
      %282 = vmatprep.subr.bf16.mxu0 0
      %283 = vmatpush1.bf16.msra.mxu0 0
      %284 = vmatprep.subr.bf16.mxu0 0
      %285 = vmatpush1.bf16.msra.mxu0 %v264
      %286 = vmatprep.subr.bf16.mxu0 0
      %287 = vmatpush2.bf16.msra.mxu0 0
      %288 = vmatprep.subr.bf16.mxu0 0
      %289 = vmatpush2.bf16.msra.mxu0 0
      %290 = vmatprep.subr.bf16.mxu0 0
      %291 = vmatpush2.bf16.msra.mxu0 0
      %292 = vmatprep.subr.bf16.mxu0 0
      %293 = vmatpush2.bf16.msra.mxu0 0
      %294 = vmatprep.subr.bf16.mxu0 0
      %295 = vmatpush2.bf16.msra.mxu0 0
      %296 = vmatprep.subr.bf16.mxu0 0
      %297 = vmatpush2.bf16.msra.mxu0 0
      %298 = vmatprep.subr.bf16.mxu0 0
      %299 = vmatpush2.bf16.msra.mxu0 0
      %300 = vmatprep.subr.bf16.mxu0 0
      %301 = vmatpush2.bf16.msra.mxu0 0
      %302 = vmatprep.mubr.bf16.mxu0 0
      %303 = vmatmul.mubr.bf16.gmra.mxu0 %v268
      %v304 = vpop.f32.mrf.mxu0
      %v305 = vadd.f32 0.0, %v304
      %v306 = vpop.f32.mrf.mxu0
      %v307 = vpop.f32.mrf.mxu0
      %v308 = vadd.f32 0.0, %v307
      %v309 = vpop.f32.mrf.mxu0
      %310 = vdwg.mxu0
      %v311 = vadd.f32 %v249, %v305
      %v312 = vadd.f32 %v250, %v308
      %v313 = vld [vmem:[%s225] sm:$0xf]
      %v314 = vld [vmem:[%s225 + $0x4] sm:$0xf]
      %v315 = vld [vmem:[%s225 + $0x8] sm:$0x1]
      %s316 = scalar_lea.vmem %s231, 8
      %v317 = vld [vmem:[%s316] sm:$0xf]
      %v318 = vld [vmem:[%s316 + $0x4] sm:$0xf]
      %v322 = vunpack.c.l.b16 %v313
      %v323 = vunpack.c.l.b16 %v314
      %v324 = vunpack.c.l.b16 %v315
      %v325 = vpack.c.b16 %v323, %v322
      %v326 = vpack.c.b16 %v324, %v324
      %vm327 = vsmask.f32 7424
      %v329 = vshrl.u32 %v325, 16
      %v331 = vshll.u32 %v325, 16
      %v333 = vrot.slane %v331, 1
      %v334 = vor.u32 %v329, %v333
      %v336 = vshll.u32 %v326, 16
      %v338 = vrot.slane %v336, 1
      %v339 = vsel %vm327, %v334, %v338
      %v342 = vunpack.c.l.b16 %v317
      %v343 = vunpack.c.l.b16 %v318
      %v344 = vpack.c.b16 %v343, %v342
      %v347 = vsel %vm266, %v339, 0
      %349 = vmatprep.subr.bf16.mxu0 0
      %350 = vmatpush1.bf16.msra.mxu0 0
      %351 = vmatprep.subr.bf16.mxu0 0
      %352 = vmatpush1.bf16.msra.mxu0 0
      %353 = vmatprep.subr.bf16.mxu0 0
      %354 = vmatpush1.bf16.msra.mxu0 0
      %355 = vmatprep.subr.bf16.mxu0 0
      %356 = vmatpush1.bf16.msra.mxu0 0
      %357 = vmatprep.subr.bf16.mxu0 0
      %358 = vmatpush1.bf16.msra.mxu0 0
      %359 = vmatprep.subr.bf16.mxu0 0
      %360 = vmatpush1.bf16.msra.mxu0 0
      %361 = vmatprep.subr.bf16.mxu0 0
      %362 = vmatpush1.bf16.msra.mxu0 0
      %363 = vmatprep.subr.bf16.mxu0 0
      %364 = vmatpush1.bf16.msra.mxu0 %v344
      %365 = vmatprep.subr.bf16.mxu0 0
      %366 = vmatpush2.bf16.msra.mxu0 0
      %367 = vmatprep.subr.bf16.mxu0 0
      %368 = vmatpush2.bf16.msra.mxu0 0
      %369 = vmatprep.subr.bf16.mxu0 0
      %370 = vmatpush2.bf16.msra.mxu0 0
      %371 = vmatprep.subr.bf16.mxu0 0
      %372 = vmatpush2.bf16.msra.mxu0 0
      %373 = vmatprep.subr.bf16.mxu0 0
      %374 = vmatpush2.bf16.msra.mxu0 0
      %375 = vmatprep.subr.bf16.mxu0 0
      %376 = vmatpush2.bf16.msra.mxu0 0
      %377 = vmatprep.subr.bf16.mxu0 0
      %378 = vmatpush2.bf16.msra.mxu0 0
      %379 = vmatprep.subr.bf16.mxu0 0
      %380 = vmatpush2.bf16.msra.mxu0 0
      %381 = vmatprep.mubr.bf16.mxu0 0
      %382 = vmatmul.mubr.bf16.gmra.mxu0 %v347
      %v383 = vpop.f32.mrf.mxu0
      %v384 = vadd.f32 0.0, %v383
      %v385 = vpop.f32.mrf.mxu0
      %v386 = vpop.f32.mrf.mxu0
      %v387 = vadd.f32 0.0, %v386
      %v388 = vpop.f32.mrf.mxu0
      %389 = vdwg.mxu0
      %v390 = vadd.f32 %v311, %v384
      %v391 = vadd.f32 %v312, %v387
      %v392 = vld [vmem:[%s225] sm:$0xe]
      %s393 = scalar_lea.vmem %s231, 16
      %v394 = vld [vmem:[%s393] sm:$0xf]
      %v395 = vld [vmem:[%s393 + $0x4] sm:$0xf]
      %v397 = vunpack.c.l.b16 %v392
      %v398 = vpack.c.b16 %v323, %v397
      %vm399 = vcmask 1046528
      %v400 = vrot.slane %v398, 1
      %v401 = vrot.slane %v326, 1
      %v402 = vsel %vm399, %v400, %v401
      %v405 = vunpack.c.l.b16 %v394
      %v406 = vunpack.c.l.b16 %v395
      %v407 = vpack.c.b16 %v406, %v405
      %v410 = vsel %vm266, %v402, 0
      %412 = vmatprep.subr.bf16.mxu0 0
      %413 = vmatpush1.bf16.msra.mxu0 0
      %414 = vmatprep.subr.bf16.mxu0 0
      %415 = vmatpush1.bf16.msra.mxu0 0
      %416 = vmatprep.subr.bf16.mxu0 0
      %417 = vmatpush1.bf16.msra.mxu0 0
      %418 = vmatprep.subr.bf16.mxu0 0
      %419 = vmatpush1.bf16.msra.mxu0 0
      %420 = vmatprep.subr.bf16.mxu0 0
      %421 = vmatpush1.bf16.msra.mxu0 0
      %422 = vmatprep.subr.bf16.mxu0 0
      %423 = vmatpush1.bf16.msra.mxu0 0
      %424 = vmatprep.subr.bf16.mxu0 0
      %425 = vmatpush1.bf16.msra.mxu0 0
      %426 = vmatprep.subr.bf16.mxu0 0
      %427 = vmatpush1.bf16.msra.mxu0 %v407
      %428 = vmatprep.subr.bf16.mxu0 0
      %429 = vmatpush2.bf16.msra.mxu0 0
      %430 = vmatprep.subr.bf16.mxu0 0
      %431 = vmatpush2.bf16.msra.mxu0 0
      %432 = vmatprep.subr.bf16.mxu0 0
      %433 = vmatpush2.bf16.msra.mxu0 0
      %434 = vmatprep.subr.bf16.mxu0 0
      %435 = vmatpush2.bf16.msra.mxu0 0
      %436 = vmatprep.subr.bf16.mxu0 0
      %437 = vmatpush2.bf16.msra.mxu0 0
      %438 = vmatprep.subr.bf16.mxu0 0
      %439 = vmatpush2.bf16.msra.mxu0 0
      %440 = vmatprep.subr.bf16.mxu0 0
      %441 = vmatpush2.bf16.msra.mxu0 0
      %442 = vmatprep.subr.bf16.mxu0 0
      %443 = vmatpush2.bf16.msra.mxu0 0
      %444 = vmatprep.mubr.bf16.mxu0 0
      %445 = vmatmul.mubr.bf16.gmra.mxu0 %v410
      %v446 = vpop.f32.mrf.mxu0
      %v447 = vadd.f32 0.0, %v446
      %v448 = vpop.f32.mrf.mxu0
      %v449 = vpop.f32.mrf.mxu0
      %v450 = vadd.f32 0.0, %v449
      %v451 = vpop.f32.mrf.mxu0
      %452 = vdwg.mxu0
      %v453 = vadd.f32 %v390, %v447
      %v454 = vadd.f32 %v391, %v450
      %v455 = vld [vmem:[%s225 + $0x8] sm:$0x3]
      %s456 = scalar_lea.vmem %s231, 24
      %v457 = vld [vmem:[%s456] sm:$0xf]
      %v458 = vld [vmem:[%s456 + $0x4] sm:$0xf]
      %v460 = vunpack.c.l.b16 %v455
      %v461 = vpack.c.b16 %v460, %v460
      %vm462 = vsmask.f32 6400
      %v464 = vshrl.u32 %v398, 16
      %v466 = vrot.slane %v464, 1
      %v467 = vshll.u32 %v398, 16
      %v469 = vrot.slane %v467, 2
      %v470 = vor.u32 %v466, %v469
      %v472 = vshrl.u32 %v461, 16
      %v474 = vrot.slane %v472, 1
      %v475 = vshll.u32 %v461, 16
      %v477 = vrot.slane %v475, 2
      %v478 = vor.u32 %v474, %v477
      %v479 = vsel %vm462, %v470, %v478
      %v482 = vunpack.c.l.b16 %v457
      %v483 = vunpack.c.l.b16 %v458
      %v484 = vpack.c.b16 %v483, %v482
      %v487 = vsel %vm266, %v479, 0
      %489 = vmatprep.subr.bf16.mxu0 0
      %490 = vmatpush1.bf16.msra.mxu0 0
      %491 = vmatprep.subr.bf16.mxu0 0
      %492 = vmatpush1.bf16.msra.mxu0 0
      %493 = vmatprep.subr.bf16.mxu0 0
      %494 = vmatpush1.bf16.msra.mxu0 0
      %495 = vmatprep.subr.bf16.mxu0 0
      %496 = vmatpush1.bf16.msra.mxu0 0
      %497 = vmatprep.subr.bf16.mxu0 0
      %498 = vmatpush1.bf16.msra.mxu0 0
      %499 = vmatprep.subr.bf16.mxu0 0
      %500 = vmatpush1.bf16.msra.mxu0 0
      %501 = vmatprep.subr.bf16.mxu0 0
      %502 = vmatpush1.bf16.msra.mxu0 0
      %503 = vmatprep.subr.bf16.mxu0 0
      %504 = vmatpush1.bf16.msra.mxu0 %v484
      %505 = vmatprep.subr.bf16.mxu0 0
      %506 = vmatpush2.bf16.msra.mxu0 0
      %507 = vmatprep.subr.bf16.mxu0 0
      %508 = vmatpush2.bf16.msra.mxu0 0
      %509 = vmatprep.subr.bf16.mxu0 0
      %510 = vmatpush2.bf16.msra.mxu0 0
      %511 = vmatprep.subr.bf16.mxu0 0
      %512 = vmatpush2.bf16.msra.mxu0 0
      %513 = vmatprep.subr.bf16.mxu0 0
      %514 = vmatpush2.bf16.msra.mxu0 0
      %515 = vmatprep.subr.bf16.mxu0 0
      %516 = vmatpush2.bf16.msra.mxu0 0
      %517 = vmatprep.subr.bf16.mxu0 0
      %518 = vmatpush2.bf16.msra.mxu0 0
      %519 = vmatprep.subr.bf16.mxu0 0
      %520 = vmatpush2.bf16.msra.mxu0 0
      %521 = vmatprep.mubr.bf16.mxu0 0
      %522 = vmatmul.mubr.bf16.gmra.mxu0 %v487
      %v523 = vpop.f32.mrf.mxu0
      %v524 = vadd.f32 0.0, %v523
      %v525 = vpop.f32.mrf.mxu0
      %v526 = vpop.f32.mrf.mxu0
      %v527 = vadd.f32 0.0, %v526
      %v528 = vpop.f32.mrf.mxu0
      %529 = vdwg.mxu0
      %v530 = vadd.f32 %v453, %v524
      %v531 = vadd.f32 %v454, %v527
      %vm532 = vcmask 64512
      %533 = vst.msk [vmem:[#allocation2] sm:$0xff] %vm532, %v530
      %534 = vst.msk [vmem:[#allocation2 + $0x8] sm:$0xff] %vm532, %v531
      %p535 = scmp.eq.s32.totalorder %s21, 3
      // Predicated region
      $region37: #{generator_forward.19} parent=31 // pred_check
        %p536 = pneg %p535
      $region38: #{generator_forward.19} parent=31 // pred_check_branch
        %538 = sbr.rel (%p536) target = $region40
      $region39: #{generator_forward.19} parent=31 // pred_region
        %v539 = vld [vmem:[#allocation2] sm:$0xff]
        %v540 = vld [vmem:[#allocation2 + $0x8] sm:$0xff]
        %v541 = vld [vmem:[%s2] sm:$0x1]
        %v543 = vlaneseq
        %v544 = vshrl.u32 %v543, 7
        %v545 = vsub.s32 0, %v544
        %v546 = vrot.slane %v541, %v545
        %v548 = vadd.f32 %v539, %v546
        %v549 = vadd.f32 %v540, %v546
        %v550 = vpack.c.bf16 %v549, %v548
        %v552 = vunpack.c.l.b16 %v550
        %v553 = vunpack.c.h.b16 %v550
        %v554 = vpack.c.b16 %v552, %v552
        %v555 = vpack.c.b16 %v553, %v553
        %vm558 = vcmask 60416
        %559 = vst.msk [vmem:[%s240] sm:$0xf] %vm558, %v554
        %560 = vst.msk [vmem:[%s240 + $0x4] sm:$0xf] %vm558, %v555
      $region40: #{generator_forward.19} parent=31 // pred_fallthru
        _
      %p561 = scmp.lt.s32.totalorder %s19, 1
      %s562 = scalar_select %p561, %s19, 1
      %p563 = scmp.lt.s32.totalorder %s20, 11
      %s564 = scalar_select %p563, %s20, 11
      %s565 = smul.addr %s564, 2
      %s566 = smul.addr %s562, 24
      %s567 = sadd.s32 %s565, %s566
      %s568 = smul.addr %s567, 4
      %s569 = scalar_lea.vmem %s3, %s568
      // Predicated region
      $region41: #{generator_forward.19} parent=31 // pred_check
        %p570 = pneg %p130
      $region42: #{generator_forward.19} parent=31 // pred_check_branch
        %572 = sbr.rel (%p570) target = $region44
      $region43: #{generator_forward.19} parent=31 // pred_region
        _
      $region44: #{generator_forward.19} parent=31 // pred_fallthru
        _
    $region32: #{generator_forward.19} parent=5 // pred_fallthru
      _
    %p573 = scmp.le.s32.totalorder 2, %s9
    // Predicated region
    $region45: #{generator_forward.19} parent=5 // pred_check
      %p574 = pneg %p573
    $region46: #{generator_forward.19} parent=5 // pred_check_branch
      %576 = sbr.rel (%p574) target = $region48
    $region47: #{generator_forward.19} parent=5 // pred_region
      %s577 = ssub.s32 %s9, 2
      // Predicated region
      $region49: #{generator_forward.19} parent=47 // pred_check
        %p578 = pneg %p136
      $region50: #{generator_forward.19} parent=47 // pred_check_branch
        %580 = sbr.rel (%p578) target = $region52
      $region51: #{generator_forward.19} parent=47 // pred_region
        %p581 = scmp.lt.s32.totalorder %s22, 1
        %s582 = scalar_select %p581, %s22, 1
        %p583 = scmp.lt.s32.totalorder %s23, 11
        %s584 = scalar_select %p583, %s23, 11
        %s585 = smul.addr %s584, 2
        %s586 = smul.addr %s582, 24
        %s587 = sadd.s32 %s585, %s586
        %s588 = smul.addr %s587, 4
        %s589 = scalar_lea.vmem %s3, %s588
      $region52: #{generator_forward.19} parent=47 // pred_fallthru
        _
    $region48: #{generator_forward.19} parent=5 // pred_fallthru
      _
  $region6: #{generator_forward.19} parent=0 // loop_footer
    %s13 = sadd.s32 1, %s9
  $region7: #{generator_forward.19} parent=0 // loop_footer_branch
    %8 = sbr.rel target = $region3
  $region8: #{generator_forward.19} parent=0 // loop_exit
    _

// kernel: generator_forward.20
$region0: #{generator_forward.20}
  #allocation0 [shape = 'u32[]', space=smem, size = 0x4, offset = 0x4, fixed_abs, tag = 'smem constant byte address 0x4 - core index']
  #allocation1 [shape = 'u32[144,128]{1,0:T(1,128)}', space=vmem, size = 0x12000, scoped, tag = 'internal scratch']
  %s0 = inlined_call_operand.vmem [shape: bf16[384,8], index: 0, kind: input, shape index: {}]
  %s1 = inlined_call_operand.vmem [shape: f32[2,8], index: 1, kind: output, shape index: {}]
  %s2 = sld [smem:[#allocation0]]
  $region18: #{generator_forward.20} parent=0
    _
  %s4 = ssub.s32 1, %s2
  %s5 = scalar_select 0, %s4, %s2
  // Predicated region
  $region2: #{generator_forward.20} parent=0 // pred_check
    _
  $region3: #{generator_forward.20} parent=0 // pred_check_branch
    %7 = sbr.rel (0) target = $region5
  $region4: #{generator_forward.20} parent=0 // pred_region
    _
  $region5: #{generator_forward.20} parent=0 // pred_fallthru
    _
  %p8 = scmp.eq.s32.totalorder 0, 0
  // Predicated region
  $region6: #{generator_forward.20} parent=0 // pred_check
    %p9 = pneg %p8
  $region7: #{generator_forward.20} parent=0 // pred_check_branch
    %11 = sbr.rel (%p9) target = $region9
  $region8: #{generator_forward.20} parent=0 // pred_region
    %vm12 = vcmask 58368
    %13 = vst.msk [vmem:[%s1] sm:$0x3] %vm12, 0.0
  $region9: #{generator_forward.20} parent=0 // pred_fallthru
    _
  %v14 = vld [vmem:[%s0] sm:$0xf]
  %v15 = vld [vmem:[%s0 + $0x4] sm:$0xf]
  %v16 = vld [vmem:[%s0 + $0x8] sm:$0xf]
  %v17 = vld [vmem:[%s0 + $0xc] sm:$0xf]
  %v18 = vld [vmem:[%s0 + $0x10] sm:$0xf]
  %v19 = vld [vmem:[%s0 + $0x14] sm:$0xf]
  %v20 = vld [vmem:[%s0 + $0x18] sm:$0xf]
  %v21 = vld [vmem:[%s0 + $0x1c] sm:$0xf]
  %v22 = vld [vmem:[%s0 + $0x20] sm:$0xf]
  %v23 = vld [vmem:[%s0 + $0x24] sm:$0xf]
  %v24 = vld [vmem:[%s0 + $0x28] sm:$0xf]
  %v25 = vld [vmem:[%s0 + $0x2c] sm:$0xf]
  %v26 = vld [vmem:[%s0 + $0x30] sm:$0xf]
  %v27 = vld [vmem:[%s0 + $0x34] sm:$0xf]
  %v28 = vld [vmem:[%s0 + $0x38] sm:$0xf]
  %v29 = vld [vmem:[%s0 + $0x3c] sm:$0xf]
  %v30 = vld [vmem:[%s0 + $0x40] sm:$0xf]
  %v31 = vld [vmem:[%s0 + $0x44] sm:$0xf]
  %v32 = vld [vmem:[%s0 + $0x48] sm:$0xf]
  %v33 = vld [vmem:[%s0 + $0x4c] sm:$0xf]
  %v34 = vld [vmem:[%s0 + $0x50] sm:$0xf]
  %v35 = vld [vmem:[%s0 + $0x54] sm:$0xf]
  %v36 = vld [vmem:[%s0 + $0x58] sm:$0xf]
  %v37 = vld [vmem:[%s0 + $0x5c] sm:$0xf]
  %v38 = vld [vmem:[%s0 + $0x60] sm:$0xf]
  %v39 = vld [vmem:[%s0 + $0x64] sm:$0xf]
  %v40 = vld [vmem:[%s0 + $0x68] sm:$0xf]
  %v41 = vld [vmem:[%s0 + $0x6c] sm:$0xf]
  %v42 = vld [vmem:[%s0 + $0x70] sm:$0xf]
  %v43 = vld [vmem:[%s0 + $0x74] sm:$0xf]
  %v44 = vld [vmem:[%s0 + $0x78] sm:$0xf]
  %v45 = vld [vmem:[%s0 + $0x7c] sm:$0xf]
  %v46 = vld [vmem:[%s0 + $0x80] sm:$0xf]
  %v47 = vld [vmem:[%s0 + $0x84] sm:$0xf]
  %v48 = vld [vmem:[%s0 + $0x88] sm:$0xf]
  %v49 = vld [vmem:[%s0 + $0x8c] sm:$0xf]
  %v50 = vld [vmem:[%s0 + $0x90] sm:$0xf]
  %v51 = vld [vmem:[%s0 + $0x94] sm:$0xf]
  %v52 = vld [vmem:[%s0 + $0x98] sm:$0xf]
  %v53 = vld [vmem:[%s0 + $0x9c] sm:$0xf]
  %v54 = vld [vmem:[%s0 + $0xa0] sm:$0xf]
  %v55 = vld [vmem:[%s0 + $0xa4] sm:$0xf]
  %v56 = vld [vmem:[%s0 + $0xa8] sm:$0xf]
  %v57 = vld [vmem:[%s0 + $0xac] sm:$0xf]
  %v58 = vld [vmem:[%s0 + $0xb0] sm:$0xf]
  %v59 = vld [vmem:[%s0 + $0xb4] sm:$0xf]
  %v60 = vld [vmem:[%s0 + $0xb8] sm:$0xf]
  %v61 = vld [vmem:[%s0 + $0xbc] sm:$0xf]
  %v62 = vunpack.c.l.bf16 %v14
  %v63 = vunpack.c.l.bf16 %v15
  %v64 = vunpack.c.l.bf16 %v16
  %v65 = vunpack.c.l.bf16 %v17
  %v66 = vunpack.c.l.bf16 %v18
  %v67 = vunpack.c.l.bf16 %v19
  %v68 = vunpack.c.l.bf16 %v20
  %v69 = vunpack.c.l.bf16 %v21
  %v70 = vunpack.c.l.bf16 %v22
  %v71 = vunpack.c.l.bf16 %v23
  %v72 = vunpack.c.l.bf16 %v24
  %v73 = vunpack.c.l.bf16 %v25
  %v74 = vunpack.c.l.bf16 %v26
  %v75 = vunpack.c.l.bf16 %v27
  %v76 = vunpack.c.l.bf16 %v28
  %v77 = vunpack.c.l.bf16 %v29
  %v78 = vunpack.c.l.bf16 %v30
  %v79 = vunpack.c.l.bf16 %v31
  %v80 = vunpack.c.l.bf16 %v32
  %v81 = vunpack.c.l.bf16 %v33
  %v82 = vunpack.c.l.bf16 %v34
  %v83 = vunpack.c.l.bf16 %v35
  %v84 = vunpack.c.l.bf16 %v36
  %v85 = vunpack.c.l.bf16 %v37
  %v86 = vunpack.c.l.bf16 %v38
  %v87 = vunpack.c.l.bf16 %v39
  %v88 = vunpack.c.l.bf16 %v40
  %v89 = vunpack.c.l.bf16 %v41
  %v90 = vunpack.c.l.bf16 %v42
  %v91 = vunpack.c.l.bf16 %v43
  %v92 = vunpack.c.l.bf16 %v44
  %v93 = vunpack.c.l.bf16 %v45
  %v94 = vunpack.c.l.bf16 %v46
  %v95 = vunpack.c.l.bf16 %v47
  %v96 = vunpack.c.l.bf16 %v48
  %v97 = vunpack.c.l.bf16 %v49
  %v98 = vunpack.c.l.bf16 %v50
  %v99 = vunpack.c.l.bf16 %v51
  %v100 = vunpack.c.l.bf16 %v52
  %v101 = vunpack.c.l.bf16 %v53
  %v102 = vunpack.c.l.bf16 %v54
  %v103 = vunpack.c.l.bf16 %v55
  %v104 = vunpack.c.l.bf16 %v56
  %v105 = vunpack.c.l.bf16 %v57
  %v106 = vunpack.c.l.bf16 %v58
  %v107 = vunpack.c.l.bf16 %v59
  %v108 = vunpack.c.l.bf16 %v60
  %v109 = vunpack.c.l.bf16 %v61
  %vm110 = vcmask 64512
  %v111 = vsel %vm110, %v62, 0.0
  %v112 = vsel %vm110, %v63, 0.0
  %v113 = vadd.f32 %v111, %v112
  %v114 = vsel %vm110, %v64, 0.0
  %v115 = vadd.f32 %v113, %v114
  %v116 = vsel %vm110, %v65, 0.0
  %v117 = vadd.f32 %v115, %v116
  %v118 = vsel %vm110, %v66, 0.0
  %v119 = vadd.f32 %v117, %v118
  %v120 = vsel %vm110, %v67, 0.0
  %v121 = vadd.f32 %v119, %v120
  %v122 = vsel %vm110, %v68, 0.0
  %v123 = vadd.f32 %v121, %v122
  %v124 = vsel %vm110, %v69, 0.0
  %v125 = vadd.f32 %v123, %v124
  %v126 = vsel %vm110, %v70, 0.0
  %v127 = vadd.f32 %v125, %v126
  %v128 = vsel %vm110, %v71, 0.0
  %v129 = vadd.f32 %v127, %v128
  %v130 = vsel %vm110, %v72, 0.0
  %v131 = vadd.f32 %v129, %v130
  %v132 = vsel %vm110, %v73, 0.0
  %v133 = vadd.f32 %v131, %v132
  %v134 = vsel %vm110, %v74, 0.0
  %v135 = vadd.f32 %v133, %v134
  %v136 = vsel %vm110, %v75, 0.0
  %v137 = vadd.f32 %v135, %v136
  %v138 = vsel %vm110, %v76, 0.0
  %v139 = vadd.f32 %v137, %v138
  %v140 = vsel %vm110, %v77, 0.0
  %v141 = vadd.f32 %v139, %v140
  %v142 = vsel %vm110, %v78, 0.0
  %v143 = vadd.f32 %v141, %v142
  %v144 = vsel %vm110, %v79, 0.0
  %v145 = vadd.f32 %v143, %v144
  %v146 = vsel %vm110, %v80, 0.0
  %v147 = vadd.f32 %v145, %v146
  %v148 = vsel %vm110, %v81, 0.0
  %v149 = vadd.f32 %v147, %v148
  %v150 = vsel %vm110, %v82, 0.0
  %v151 = vadd.f32 %v149, %v150
  %v152 = vsel %vm110, %v83, 0.0
  %v153 = vadd.f32 %v151, %v152
  %v154 = vsel %vm110, %v84, 0.0
  %v155 = vadd.f32 %v153, %v154
  %v156 = vsel %vm110, %v85, 0.0
  %v157 = vadd.f32 %v155, %v156
  %v158 = vsel %vm110, %v86, 0.0
  %v159 = vadd.f32 %v157, %v158
  %v160 = vsel %vm110, %v87, 0.0
  %v161 = vadd.f32 %v159, %v160
  %v162 = vsel %vm110, %v88, 0.0
  %v163 = vadd.f32 %v161, %v162
  %v164 = vsel %vm110, %v89, 0.0
  %v165 = vadd.f32 %v163, %v164
  %v166 = vsel %vm110, %v90, 0.0
  %v167 = vadd.f32 %v165, %v166
  %v168 = vsel %vm110, %v91, 0.0
  %v169 = vadd.f32 %v167, %v168
  %v170 = vsel %vm110, %v92, 0.0
  %v171 = vadd.f32 %v169, %v170
  %v172 = vsel %vm110, %v93, 0.0
  %v173 = vadd.f32 %v171, %v172
  %v174 = vsel %vm110, %v94, 0.0
  %v175 = vadd.f32 %v173, %v174
  %v176 = vsel %vm110, %v95, 0.0
  %v177 = vadd.f32 %v175, %v176
  %v178 = vsel %vm110, %v96, 0.0
  %v179 = vadd.f32 %v177, %v178
  %v180 = vsel %vm110, %v97, 0.0
  %v181 = vadd.f32 %v179, %v180
  %v182 = vsel %vm110, %v98, 0.0
  %v183 = vadd.f32 %v181, %v182
  %v184 = vsel %vm110, %v99, 0.0
  %v185 = vadd.f32 %v183, %v184
  %v186 = vsel %vm110, %v100, 0.0
  %v187 = vadd.f32 %v185, %v186
  %v188 = vsel %vm110, %v101, 0.0
  %v189 = vadd.f32 %v187, %v188
  %v190 = vsel %vm110, %v102, 0.0
  %v191 = vadd.f32 %v189, %v190
  %v192 = vsel %vm110, %v103, 0.0
  %v193 = vadd.f32 %v191, %v192
  %v194 = vsel %vm110, %v104, 0.0
  %v195 = vadd.f32 %v193, %v194
  %v196 = vsel %vm110, %v105, 0.0
  %v197 = vadd.f32 %v195, %v196
  %v198 = vsel %vm110, %v106, 0.0
  %v199 = vadd.f32 %v197, %v198
  %v200 = vsel %vm110, %v107, 0.0
  %v201 = vadd.f32 %v199, %v200
  %v202 = vsel %vm110, %v108, 0.0
  %v203 = vadd.f32 %v201, %v202
  %v204 = vsel %vm110, %v109, 0.0
  %v205 = vadd.f32 %v203, %v204
  %v206 = vrot.slane %v205, 4
  %v207 = vadd.f32 %v205, %v206
  %v208 = vrot.slane %v207, 2
  %v209 = vadd.f32 %v207, %v208
  %v210 = vrot.slane %v209, 1
  %v211 = vadd.f32 %v209, %v210
  %v212 = vmul.f32 %v62, %v62
  %v213 = vmul.f32 %v63, %v63
  %v214 = vmul.f32 %v64, %v64
  %v215 = vmul.f32 %v65, %v65
  %v216 = vmul.f32 %v66, %v66
  %v217 = vmul.f32 %v67, %v67
  %v218 = vmul.f32 %v68, %v68
  %v219 = vmul.f32 %v69, %v69
  %v220 = vmul.f32 %v70, %v70
  %v221 = vmul.f32 %v71, %v71
  %v222 = vmul.f32 %v72, %v72
  %v223 = vmul.f32 %v73, %v73
  %v224 = vmul.f32 %v74, %v74
  %v225 = vmul.f32 %v75, %v75
  %v226 = vmul.f32 %v76, %v76
  %v227 = vmul.f32 %v77, %v77
  %v228 = vmul.f32 %v78, %v78
  %v229 = vmul.f32 %v79, %v79
  %v230 = vmul.f32 %v80, %v80
  %v231 = vmul.f32 %v81, %v81
  %v232 = vmul.f32 %v82, %v82
  %v233 = vmul.f32 %v83, %v83
  %v234 = vmul.f32 %v84, %v84
  %v235 = vmul.f32 %v85, %v85
  %v236 = vmul.f32 %v86, %v86
  %v237 = vmul.f32 %v87, %v87
  %v238 = vmul.f32 %v88, %v88
  %v239 = vmul.f32 %v89, %v89
  %v240 = vmul.f32 %v90, %v90
  %v241 = vmul.f32 %v91, %v91
  %v242 = vmul.f32 %v92, %v92
  %v243 = vmul.f32 %v93, %v93
  %v244 = vmul.f32 %v94, %v94
  %v245 = vmul.f32 %v95, %v95
  %v246 = vmul.f32 %v96, %v96
  %v247 = vmul.f32 %v97, %v97
  %v248 = vmul.f32 %v98, %v98
  %v249 = vmul.f32 %v99, %v99
  %v250 = vmul.f32 %v100, %v100
  %v251 = vmul.f32 %v101, %v101
  %v252 = vmul.f32 %v102, %v102
  %v253 = vmul.f32 %v103, %v103
  %v254 = vmul.f32 %v104, %v104
  %v255 = vmul.f32 %v105, %v105
  %v256 = vmul.f32 %v106, %v106
  %v257 = vmul.f32 %v107, %v107
  %v258 = vmul.f32 %v108, %v108
  %v259 = vmul.f32 %v109, %v109
  %v260 = vsel %vm110, %v212, 0.0
  %v261 = vsel %vm110, %v213, 0.0
  %v262 = vadd.f32 %v260, %v261
  %v263 = vsel %vm110, %v214, 0.0
  %v264 = vadd.f32 %v262, %v263
  %v265 = vsel %vm110, %v215, 0.0
  %v266 = vadd.f32 %v264, %v265
  %v267 = vsel %vm110, %v216, 0.0
  %v268 = vadd.f32 %v266, %v267
  %v269 = vsel %vm110, %v217, 0.0
  %v270 = vadd.f32 %v268, %v269
  %v271 = vsel %vm110, %v218, 0.0
  %v272 = vadd.f32 %v270, %v271
  %v273 = vsel %vm110, %v219, 0.0
  %v274 = vadd.f32 %v272, %v273
  %v275 = vsel %vm110, %v220, 0.0
  %v276 = vadd.f32 %v274, %v275
  %v277 = vsel %vm110, %v221, 0.0
  %v278 = vadd.f32 %v276, %v277
  %v279 = vsel %vm110, %v222, 0.0
  %v280 = vadd.f32 %v278, %v279
  %v281 = vsel %vm110, %v223, 0.0
  %v282 = vadd.f32 %v280, %v281
  %v283 = vsel %vm110, %v224, 0.0
  %v284 = vadd.f32 %v282, %v283
  %v285 = vsel %vm110, %v225, 0.0
  %v286 = vadd.f32 %v284, %v285
  %v287 = vsel %vm110, %v226, 0.0
  %v288 = vadd.f32 %v286, %v287
  %v289 = vsel %vm110, %v227, 0.0
  %v290 = vadd.f32 %v288, %v289
  %v291 = vsel %vm110, %v228, 0.0
  %v292 = vadd.f32 %v290, %v291
  %v293 = vsel %vm110, %v229, 0.0
  %v294 = vadd.f32 %v292, %v293
  %v295 = vsel %vm110, %v230, 0.0
  %v296 = vadd.f32 %v294, %v295
  %v297 = vsel %vm110, %v231, 0.0
  %v298 = vadd.f32 %v296, %v297
  %v299 = vsel %vm110, %v232, 0.0
  %v300 = vadd.f32 %v298, %v299
  %v301 = vsel %vm110, %v233, 0.0
  %v302 = vadd.f32 %v300, %v301
  %v303 = vsel %vm110, %v234, 0.0
  %v304 = vadd.f32 %v302, %v303
  %v305 = vsel %vm110, %v235, 0.0
  %v306 = vadd.f32 %v304, %v305
  %v307 = vsel %vm110, %v236, 0.0
  %v308 = vadd.f32 %v306, %v307
  %v309 = vsel %vm110, %v237, 0.0
  %v310 = vadd.f32 %v308, %v309
  %v311 = vsel %vm110, %v238, 0.0
  %v312 = vadd.f32 %v310, %v311
  %v313 = vsel %vm110, %v239, 0.0
  %v314 = vadd.f32 %v312, %v313
  %v315 = vsel %vm110, %v240, 0.0
  %v316 = vadd.f32 %v314, %v315
  %v317 = vsel %vm110, %v241, 0.0
  %v318 = vadd.f32 %v316, %v317
  %v319 = vsel %vm110, %v242, 0.0
  %v320 = vadd.f32 %v318, %v319
  %v321 = vsel %vm110, %v243, 0.0
  %v322 = vadd.f32 %v320, %v321
  %v323 = vsel %vm110, %v244, 0.0
  %v324 = vadd.f32 %v322, %v323
  %v325 = vsel %vm110, %v245, 0.0
  %v326 = vadd.f32 %v324, %v325
  %v327 = vsel %vm110, %v246, 0.0
  %v328 = vadd.f32 %v326, %v327
  %v329 = vsel %vm110, %v247, 0.0
  %v330 = vadd.f32 %v328, %v329
  %v331 = vsel %vm110, %v248, 0.0
  %v332 = vadd.f32 %v330, %v331
  %v333 = vsel %vm110, %v249, 0.0
  %v334 = vadd.f32 %v332, %v333
  %v335 = vsel %vm110, %v250, 0.0
  %v336 = vadd.f32 %v334, %v335
  %v337 = vsel %vm110, %v251, 0.0
  %v338 = vadd.f32 %v336, %v337
  %v339 = vsel %vm110, %v252, 0.0
  %v340 = vadd.f32 %v338, %v339
  %v341 = vsel %vm110, %v253, 0.0
  %v342 = vadd.f32 %v340, %v341
  %v343 = vsel %vm110, %v254, 0.0
  %v344 = vadd.f32 %v342, %v343
  %v345 = vsel %vm110, %v255, 0.0
  %v346 = vadd.f32 %v344, %v345
  %v347 = vsel %vm110, %v256, 0.0
  %v348 = vadd.f32 %v346, %v347
  %v349 = vsel %vm110, %v257, 0.0
  %v350 = vadd.f32 %v348, %v349
  %v351 = vsel %vm110, %v258, 0.0
  %v352 = vadd.f32 %v350, %v351
  %v353 = vsel %vm110, %v259, 0.0
  %v354 = vadd.f32 %v352, %v353
  %v355 = vrot.slane %v354, 4
  %v356 = vadd.f32 %v354, %v355
  %v357 = vrot.slane %v356, 2
  %v358 = vadd.f32 %v356, %v357
  %v359 = vrot.slane %v358, 1
  %v360 = vadd.f32 %v358, %v359
  %vm361 = vcmask 1040384
  %v362 = vsel %vm361, %v211, %v360
  %v363 = vld [vmem:[%s1] sm:$0x3]
  %v364 = vadd.f32 %v363, %v362
  %vm365 = vcmask 58368
  %366 = vst.msk [vmem:[%s1] sm:$0x3] %vm365, %v364
  // Predicated region
  $region10: #{generator_forward.20} parent=0 // pred_check
    _
  $region11: #{generator_forward.20} parent=0 // pred_check_branch
    %368 = sbr.rel (0) target = $region13
  $region12: #{generator_forward.20} parent=0 // pred_region
    _
  $region13: #{generator_forward.20} parent=0 // pred_fallthru
    _
  // Predicated region
  $region14: #{generator_forward.20} parent=0 // pred_check
    _
  $region15: #{generator_forward.20} parent=0 // pred_check_branch
    %370 = sbr.rel (0) target = $region17
  $region16: #{generator_forward.20} parent=0 // pred_region
    _
  $region17: #{generator_forward.20} parent=0 // pred_fallthru
    _

// kernel: generator_forward.21
$region0: #{generator_forward.21}
  #allocation0 [shape = 'u32[]', space=smem, size = 0x4, offset = 0x4, fixed_abs, tag = 'smem constant byte address 0x4 - core index']
  #allocation1 [shape = 'u32[144,128]{1,0:T(1,128)}', space=vmem, size = 0x12000, scoped, tag = 'internal scratch']
  %s0 = inlined_call_operand.vmem [shape: bf16[384,8], index: 0, kind: input, shape index: {}]
  %s1 = inlined_call_operand.vmem [shape: f32[2,8], index: 1, kind: input, shape index: {}]
  %s2 = inlined_call_operand.vmem [shape: f32[1,8], index: 2, kind: input, shape index: {}]
  %s3 = inlined_call_operand.vmem [shape: f32[1,8], index: 3, kind: input, shape index: {}]
  %s4 = inlined_call_operand.vmem [shape: bf16[384,8], index: 4, kind: output, shape index: {}]
  %s5 = sld [smem:[#allocation0]]
  $region26: #{generator_forward.21} parent=0
    _
  %s7 = ssub.s32 1, %s5
  %s8 = scalar_select 0, %s7, %s5
  // Predicated region
  $region2: #{generator_forward.21} parent=0 // pred_check
    _
  $region3: #{generator_forward.21} parent=0 // pred_check_branch
    %10 = sbr.rel (0) target = $region5
  $region4: #{generator_forward.21} parent=0 // pred_region
    _
  $region5: #{generator_forward.21} parent=0 // pred_fallthru
    _
  // Predicated region
  $region6: #{generator_forward.21} parent=0 // pred_check
    _
  $region7: #{generator_forward.21} parent=0 // pred_check_branch
    %12 = sbr.rel (0) target = $region9
  $region8: #{generator_forward.21} parent=0 // pred_region
    _
  $region9: #{generator_forward.21} parent=0 // pred_fallthru
    _
  // Predicated region
  $region10: #{generator_forward.21} parent=0 // pred_check
    _
  $region11: #{generator_forward.21} parent=0 // pred_check_branch
    %14 = sbr.rel (0) target = $region13
  $region12: #{generator_forward.21} parent=0 // pred_region
    _
  $region13: #{generator_forward.21} parent=0 // pred_fallthru
    _
  // Predicated region
  $region14: #{generator_forward.21} parent=0 // pred_check
    _
  $region15: #{generator_forward.21} parent=0 // pred_check_branch
    %16 = sbr.rel (0) target = $region17
  $region16: #{generator_forward.21} parent=0 // pred_region
    _
  $region17: #{generator_forward.21} parent=0 // pred_fallthru
    _
  %v17 = vld [vmem:[%s0] sm:$0xf]
  %v18 = vld [vmem:[%s0 + $0x4] sm:$0xf]
  %v19 = vld [vmem:[%s0 + $0x8] sm:$0xf]
  %v20 = vld [vmem:[%s0 + $0xc] sm:$0xf]
  %v21 = vld [vmem:[%s0 + $0x10] sm:$0xf]
  %v22 = vld [vmem:[%s0 + $0x14] sm:$0xf]
  %v23 = vld [vmem:[%s0 + $0x18] sm:$0xf]
  %v24 = vld [vmem:[%s0 + $0x1c] sm:$0xf]
  %v25 = vld [vmem:[%s0 + $0x20] sm:$0xf]
  %v26 = vld [vmem:[%s0 + $0x24] sm:$0xf]
  %v27 = vld [vmem:[%s0 + $0x28] sm:$0xf]
  %v28 = vld [vmem:[%s0 + $0x2c] sm:$0xf]
  %v29 = vld [vmem:[%s0 + $0x30] sm:$0xf]
  %v30 = vld [vmem:[%s0 + $0x34] sm:$0xf]
  %v31 = vld [vmem:[%s0 + $0x38] sm:$0xf]
  %v32 = vld [vmem:[%s0 + $0x3c] sm:$0xf]
  %v33 = vld [vmem:[%s0 + $0x40] sm:$0xf]
  %v34 = vld [vmem:[%s0 + $0x44] sm:$0xf]
  %v35 = vld [vmem:[%s0 + $0x48] sm:$0xf]
  %v36 = vld [vmem:[%s0 + $0x4c] sm:$0xf]
  %v37 = vld [vmem:[%s0 + $0x50] sm:$0xf]
  %v38 = vld [vmem:[%s0 + $0x54] sm:$0xf]
  %v39 = vld [vmem:[%s0 + $0x58] sm:$0xf]
  %v40 = vld [vmem:[%s0 + $0x5c] sm:$0xf]
  %v41 = vld [vmem:[%s0 + $0x60] sm:$0xf]
  %v42 = vld [vmem:[%s0 + $0x64] sm:$0xf]
  %v43 = vld [vmem:[%s0 + $0x68] sm:$0xf]
  %v44 = vld [vmem:[%s0 + $0x6c] sm:$0xf]
  %v45 = vld [vmem:[%s0 + $0x70] sm:$0xf]
  %v46 = vld [vmem:[%s0 + $0x74] sm:$0xf]
  %v47 = vld [vmem:[%s0 + $0x78] sm:$0xf]
  %v48 = vld [vmem:[%s0 + $0x7c] sm:$0xf]
  %v49 = vld [vmem:[%s0 + $0x80] sm:$0xf]
  %v50 = vld [vmem:[%s0 + $0x84] sm:$0xf]
  %v51 = vld [vmem:[%s0 + $0x88] sm:$0xf]
  %v52 = vld [vmem:[%s0 + $0x8c] sm:$0xf]
  %v53 = vld [vmem:[%s0 + $0x90] sm:$0xf]
  %v54 = vld [vmem:[%s0 + $0x94] sm:$0xf]
  %v55 = vld [vmem:[%s0 + $0x98] sm:$0xf]
  %v56 = vld [vmem:[%s0 + $0x9c] sm:$0xf]
  %v57 = vld [vmem:[%s0 + $0xa0] sm:$0xf]
  %v58 = vld [vmem:[%s0 + $0xa4] sm:$0xf]
  %v59 = vld [vmem:[%s0 + $0xa8] sm:$0xf]
  %v60 = vld [vmem:[%s0 + $0xac] sm:$0xf]
  %v61 = vld [vmem:[%s0 + $0xb0] sm:$0xf]
  %v62 = vld [vmem:[%s0 + $0xb4] sm:$0xf]
  %v63 = vld [vmem:[%s0 + $0xb8] sm:$0xf]
  %v64 = vld [vmem:[%s0 + $0xbc] sm:$0xf]
  %v65 = vunpack.c.l.bf16 %v17
  %v66 = vunpack.c.l.bf16 %v18
  %v67 = vunpack.c.l.bf16 %v19
  %v68 = vunpack.c.l.bf16 %v20
  %v69 = vunpack.c.l.bf16 %v21
  %v70 = vunpack.c.l.bf16 %v22
  %v71 = vunpack.c.l.bf16 %v23
  %v72 = vunpack.c.l.bf16 %v24
  %v73 = vunpack.c.l.bf16 %v25
  %v74 = vunpack.c.l.bf16 %v26
  %v75 = vunpack.c.l.bf16 %v27
  %v76 = vunpack.c.l.bf16 %v28
  %v77 = vunpack.c.l.bf16 %v29
  %v78 = vunpack.c.l.bf16 %v30
  %v79 = vunpack.c.l.bf16 %v31
  %v80 = vunpack.c.l.bf16 %v32
  %v81 = vunpack.c.l.bf16 %v33
  %v82 = vunpack.c.l.bf16 %v34
  %v83 = vunpack.c.l.bf16 %v35
  %v84 = vunpack.c.l.bf16 %v36
  %v85 = vunpack.c.l.bf16 %v37
  %v86 = vunpack.c.l.bf16 %v38
  %v87 = vunpack.c.l.bf16 %v39
  %v88 = vunpack.c.l.bf16 %v40
  %v89 = vunpack.c.l.bf16 %v41
  %v90 = vunpack.c.l.bf16 %v42
  %v91 = vunpack.c.l.bf16 %v43
  %v92 = vunpack.c.l.bf16 %v44
  %v93 = vunpack.c.l.bf16 %v45
  %v94 = vunpack.c.l.bf16 %v46
  %v95 = vunpack.c.l.bf16 %v47
  %v96 = vunpack.c.l.bf16 %v48
  %v97 = vunpack.c.l.bf16 %v49
  %v98 = vunpack.c.l.bf16 %v50
  %v99 = vunpack.c.l.bf16 %v51
  %v100 = vunpack.c.l.bf16 %v52
  %v101 = vunpack.c.l.bf16 %v53
  %v102 = vunpack.c.l.bf16 %v54
  %v103 = vunpack.c.l.bf16 %v55
  %v104 = vunpack.c.l.bf16 %v56
  %v105 = vunpack.c.l.bf16 %v57
  %v106 = vunpack.c.l.bf16 %v58
  %v107 = vunpack.c.l.bf16 %v59
  %v108 = vunpack.c.l.bf16 %v60
  %v109 = vunpack.c.l.bf16 %v61
  %v110 = vunpack.c.l.bf16 %v62
  %v111 = vunpack.c.l.bf16 %v63
  %v112 = vunpack.c.l.bf16 %v64
  %v113 = vld [vmem:[%s1] sm:$0x1]
  %v114 = vmul.f32 %v113, 0.0026041667
  %v115 = vld [vmem:[%s1 + $0x1] sm:$0x1]
  %v116 = vmul.f32 %v115, 0.0026041667
  %v117 = vmul.f32 %v114, %v114
  %v118 = vsub.f32 %v116, %v117
  %v119 = vmax.f32 %v118, 0.0
  %v120 = vld [vmem:[%s2] sm:$0x1]
  %v121 = vadd.f32 %v119, 1e-05
  %v122 = vrsqrt.pop %v121
  %v123 = vmul.f32 %v120, %v122
  %v124 = vld [vmem:[%s3] sm:$0x1]
  %v125 = vmul.f32 %v114, %v123
  %v126 = vsub.f32 %v124, %v125
  %v128 = vlaneseq
  %v129 = vshrl.u32 %v128, 7
  %v130 = vsub.s32 0, %v129
  %v131 = vrot.slane %v123, %v130
  %v133 = vmul.f32 %v65, %v131
  %v134 = vmul.f32 %v66, %v131
  %v135 = vmul.f32 %v67, %v131
  %v136 = vmul.f32 %v68, %v131
  %v137 = vmul.f32 %v69, %v131
  %v138 = vmul.f32 %v70, %v131
  %v139 = vmul.f32 %v71, %v131
  %v140 = vmul.f32 %v72, %v131
  %v141 = vmul.f32 %v73, %v131
  %v142 = vmul.f32 %v74, %v131
  %v143 = vmul.f32 %v75, %v131
  %v144 = vmul.f32 %v76, %v131
  %v145 = vmul.f32 %v77, %v131
  %v146 = vmul.f32 %v78, %v131
  %v147 = vmul.f32 %v79, %v131
  %v148 = vmul.f32 %v80, %v131
  %v149 = vmul.f32 %v81, %v131
  %v150 = vmul.f32 %v82, %v131
  %v151 = vmul.f32 %v83, %v131
  %v152 = vmul.f32 %v84, %v131
  %v153 = vmul.f32 %v85, %v131
  %v154 = vmul.f32 %v86, %v131
  %v155 = vmul.f32 %v87, %v131
  %v156 = vmul.f32 %v88, %v131
  %v157 = vmul.f32 %v89, %v131
  %v158 = vmul.f32 %v90, %v131
  %v159 = vmul.f32 %v91, %v131
  %v160 = vmul.f32 %v92, %v131
  %v161 = vmul.f32 %v93, %v131
  %v162 = vmul.f32 %v94, %v131
  %v163 = vmul.f32 %v95, %v131
  %v164 = vmul.f32 %v96, %v131
  %v165 = vmul.f32 %v97, %v131
  %v166 = vmul.f32 %v98, %v131
  %v167 = vmul.f32 %v99, %v131
  %v168 = vmul.f32 %v100, %v131
  %v169 = vmul.f32 %v101, %v131
  %v170 = vmul.f32 %v102, %v131
  %v171 = vmul.f32 %v103, %v131
  %v172 = vmul.f32 %v104, %v131
  %v173 = vmul.f32 %v105, %v131
  %v174 = vmul.f32 %v106, %v131
  %v175 = vmul.f32 %v107, %v131
  %v176 = vmul.f32 %v108, %v131
  %v177 = vmul.f32 %v109, %v131
  %v178 = vmul.f32 %v110, %v131
  %v179 = vmul.f32 %v111, %v131
  %v180 = vmul.f32 %v112, %v131
  %v182 = vlaneseq
  %v183 = vshrl.u32 %v182, 7
  %v184 = vsub.s32 0, %v183
  %v185 = vrot.slane %v126, %v184
  %v187 = vadd.f32 %v133, %v185
  %v188 = vadd.f32 %v134, %v185
  %v189 = vadd.f32 %v135, %v185
  %v190 = vadd.f32 %v136, %v185
  %v191 = vadd.f32 %v137, %v185
  %v192 = vadd.f32 %v138, %v185
  %v193 = vadd.f32 %v139, %v185
  %v194 = vadd.f32 %v140, %v185
  %v195 = vadd.f32 %v141, %v185
  %v196 = vadd.f32 %v142, %v185
  %v197 = vadd.f32 %v143, %v185
  %v198 = vadd.f32 %v144, %v185
  %v199 = vadd.f32 %v145, %v185
  %v200 = vadd.f32 %v146, %v185
  %v201 = vadd.f32 %v147, %v185
  %v202 = vadd.f32 %v148, %v185
  %v203 = vadd.f32 %v149, %v185
  %v204 = vadd.f32 %v150, %v185
  %v205 = vadd.f32 %v151, %v185
  %v206 = vadd.f32 %v152, %v185
  %v207 = vadd.f32 %v153, %v185
  %v208 = vadd.f32 %v154, %v185
  %v209 = vadd.f32 %v155, %v185
  %v210 = vadd.f32 %v156, %v185
  %v211 = vadd.f32 %v157, %v185
  %v212 = vadd.f32 %v158, %v185
  %v213 = vadd.f32 %v159, %v185
  %v214 = vadd.f32 %v160, %v185
  %v215 = vadd.f32 %v161, %v185
  %v216 = vadd.f32 %v162, %v185
  %v217 = vadd.f32 %v163, %v185
  %v218 = vadd.f32 %v164, %v185
  %v219 = vadd.f32 %v165, %v185
  %v220 = vadd.f32 %v166, %v185
  %v221 = vadd.f32 %v167, %v185
  %v222 = vadd.f32 %v168, %v185
  %v223 = vadd.f32 %v169, %v185
  %v224 = vadd.f32 %v170, %v185
  %v225 = vadd.f32 %v171, %v185
  %v226 = vadd.f32 %v172, %v185
  %v227 = vadd.f32 %v173, %v185
  %v228 = vadd.f32 %v174, %v185
  %v229 = vadd.f32 %v175, %v185
  %v230 = vadd.f32 %v176, %v185
  %v231 = vadd.f32 %v177, %v185
  %v232 = vadd.f32 %v178, %v185
  %v233 = vadd.f32 %v179, %v185
  %v234 = vadd.f32 %v180, %v185
  %v235 = vpack.c.bf16 %v188, %v187
  %v236 = vpack.c.bf16 %v190, %v189
  %v237 = vpack.c.bf16 %v192, %v191
  %v238 = vpack.c.bf16 %v194, %v193
  %v239 = vpack.c.bf16 %v196, %v195
  %v240 = vpack.c.bf16 %v198, %v197
  %v241 = vpack.c.bf16 %v200, %v199
  %v242 = vpack.c.bf16 %v202, %v201
  %v243 = vpack.c.bf16 %v204, %v203
  %v244 = vpack.c.bf16 %v206, %v205
  %v245 = vpack.c.bf16 %v208, %v207
  %v246 = vpack.c.bf16 %v210, %v209
  %v247 = vpack.c.bf16 %v212, %v211
  %v248 = vpack.c.bf16 %v214, %v213
  %v249 = vpack.c.bf16 %v216, %v215
  %v250 = vpack.c.bf16 %v218, %v217
  %v251 = vpack.c.bf16 %v220, %v219
  %v252 = vpack.c.bf16 %v222, %v221
  %v253 = vpack.c.bf16 %v224, %v223
  %v254 = vpack.c.bf16 %v226, %v225
  %v255 = vpack.c.bf16 %v228, %v227
  %v256 = vpack.c.bf16 %v230, %v229
  %v257 = vpack.c.bf16 %v232, %v231
  %v258 = vpack.c.bf16 %v234, %v233
  %v283 = vunpack.c.l.b16 %v235
  %v284 = vunpack.c.h.b16 %v235
  %v285 = vunpack.c.l.b16 %v236
  %v286 = vunpack.c.h.b16 %v236
  %v287 = vunpack.c.l.b16 %v237
  %v288 = vunpack.c.h.b16 %v237
  %v289 = vunpack.c.l.b16 %v238
  %v290 = vunpack.c.h.b16 %v238
  %v291 = vunpack.c.l.b16 %v239
  %v292 = vunpack.c.h.b16 %v239
  %v293 = vunpack.c.l.b16 %v240
  %v294 = vunpack.c.h.b16 %v240
  %v295 = vunpack.c.l.b16 %v241
  %v296 = vunpack.c.h.b16 %v241
  %v297 = vunpack.c.l.b16 %v242
  %v298 = vunpack.c.h.b16 %v242
  %v299 = vunpack.c.l.b16 %v243
  %v300 = vunpack.c.h.b16 %v243
  %v301 = vunpack.c.l.b16 %v244
  %v302 = vunpack.c.h.b16 %v244
  %v303 = vunpack.c.l.b16 %v245
  %v304 = vunpack.c.h.b16 %v245
  %v305 = vunpack.c.l.b16 %v246
  %v306 = vunpack.c.h.b16 %v246
  %v307 = vunpack.c.l.b16 %v247
  %v308 = vunpack.c.h.b16 %v247
  %v309 = vunpack.c.l.b16 %v248
  %v310 = vunpack.c.h.b16 %v248
  %v311 = vunpack.c.l.b16 %v249
  %v312 = vunpack.c.h.b16 %v249
  %v313 = vunpack.c.l.b16 %v250
  %v314 = vunpack.c.h.b16 %v250
  %v315 = vunpack.c.l.b16 %v251
  %v316 = vunpack.c.h.b16 %v251
  %v317 = vunpack.c.l.b16 %v252
  %v318 = vunpack.c.h.b16 %v252
  %v319 = vunpack.c.l.b16 %v253
  %v320 = vunpack.c.h.b16 %v253
  %v321 = vunpack.c.l.b16 %v254
  %v322 = vunpack.c.h.b16 %v254
  %v323 = vunpack.c.l.b16 %v255
  %v324 = vunpack.c.h.b16 %v255
  %v325 = vunpack.c.l.b16 %v256
  %v326 = vunpack.c.h.b16 %v256
  %v327 = vunpack.c.l.b16 %v257
  %v328 = vunpack.c.h.b16 %v257
  %v329 = vunpack.c.l.b16 %v258
  %v330 = vunpack.c.h.b16 %v258
  %v331 = vpack.c.b16 %v283, %v283
  %v332 = vpack.c.b16 %v284, %v284
  %v333 = vpack.c.b16 %v285, %v285
  %v334 = vpack.c.b16 %v286, %v286
  %v335 = vpack.c.b16 %v287, %v287
  %v336 = vpack.c.b16 %v288, %v288
  %v337 = vpack.c.b16 %v289, %v289
  %v338 = vpack.c.b16 %v290, %v290
  %v339 = vpack.c.b16 %v291, %v291
  %v340 = vpack.c.b16 %v292, %v292
  %v341 = vpack.c.b16 %v293, %v293
  %v342 = vpack.c.b16 %v294, %v294
  %v343 = vpack.c.b16 %v295, %v295
  %v344 = vpack.c.b16 %v296, %v296
  %v345 = vpack.c.b16 %v297, %v297
  %v346 = vpack.c.b16 %v298, %v298
  %v347 = vpack.c.b16 %v299, %v299
  %v348 = vpack.c.b16 %v300, %v300
  %v349 = vpack.c.b16 %v301, %v301
  %v350 = vpack.c.b16 %v302, %v302
  %v351 = vpack.c.b16 %v303, %v303
  %v352 = vpack.c.b16 %v304, %v304
  %v353 = vpack.c.b16 %v305, %v305
  %v354 = vpack.c.b16 %v306, %v306
  %v355 = vpack.c.b16 %v307, %v307
  %v356 = vpack.c.b16 %v308, %v308
  %v357 = vpack.c.b16 %v309, %v309
  %v358 = vpack.c.b16 %v310, %v310
  %v359 = vpack.c.b16 %v311, %v311
  %v360 = vpack.c.b16 %v312, %v312
  %v361 = vpack.c.b16 %v313, %v313
  %v362 = vpack.c.b16 %v314, %v314
  %v363 = vpack.c.b16 %v315, %v315
  %v364 = vpack.c.b16 %v316, %v316
  %v365 = vpack.c.b16 %v317, %v317
  %v366 = vpack.c.b16 %v318, %v318
  %v367 = vpack.c.b16 %v319, %v319
  %v368 = vpack.c.b16 %v320, %v320
  %v369 = vpack.c.b16 %v321, %v321
  %v370 = vpack.c.b16 %v322, %v322
  %v371 = vpack.c.b16 %v323, %v323
  %v372 = vpack.c.b16 %v324, %v324
  %v373 = vpack.c.b16 %v325, %v325
  %v374 = vpack.c.b16 %v326, %v326
  %v375 = vpack.c.b16 %v327, %v327
  %v376 = vpack.c.b16 %v328, %v328
  %v377 = vpack.c.b16 %v329, %v329
  %v378 = vpack.c.b16 %v330, %v330
  %vm427 = vcmask 60416
  %428 = vst.msk [vmem:[%s4] sm:$0xf] %vm427, %v331
  %429 = vst.msk [vmem:[%s4 + $0x4] sm:$0xf] %vm427, %v332
  %430 = vst.msk [vmem:[%s4 + $0x8] sm:$0xf] %vm427, %v333
  %431 = vst.msk [vmem:[%s4 + $0xc] sm:$0xf] %vm427, %v334
  %432 = vst.msk [vmem:[%s4 + $0x10] sm:$0xf] %vm427, %v335
  %433 = vst.msk [vmem:[%s4 + $0x14] sm:$0xf] %vm427, %v336
  %434 = vst.msk [vmem:[%s4 + $0x18] sm:$0xf] %vm427, %v337
  %435 = vst.msk [vmem:[%s4 + $0x1c] sm:$0xf] %vm427, %v338
  %436 = vst.msk [vmem:[%s4 + $0x20] sm:$0xf] %vm427, %v339
  %437 = vst.msk [vmem:[%s4 + $0x24] sm:$0xf] %vm427, %v340
  %438 = vst.msk [vmem:[%s4 + $0x28] sm:$0xf] %vm427, %v341
  %439 = vst.msk [vmem:[%s4 + $0x2c] sm:$0xf] %vm427, %v342
  %440 = vst.msk [vmem:[%s4 + $0x30] sm:$0xf] %vm427, %v343
  %441 = vst.msk [vmem:[%s4 + $0x34] sm:$0xf] %vm427, %v344
  %442 = vst.msk [vmem:[%s4 + $0x38] sm:$0xf] %vm427, %v345
  %443 = vst.msk [vmem:[%s4 + $0x3c] sm:$0xf] %vm427, %v346
  %444 = vst.msk [vmem:[%s4 + $0x40] sm:$0xf] %vm427, %v347
  %445 = vst.msk [vmem:[%s4 + $0x44] sm:$0xf] %vm427, %v348
  %446 = vst.msk [vmem:[%s4 + $0x48] sm:$0xf] %vm427, %v349
  %447 = vst.msk [vmem:[%s4 + $0x4c] sm:$0xf] %vm427, %v350
  %448 = vst.msk [vmem:[%s4 + $0x50] sm:$0xf] %vm427, %v351
  %449 = vst.msk [vmem:[%s4 + $0x54] sm:$0xf] %vm427, %v352
  %450 = vst.msk [vmem:[%s4 + $0x58] sm:$0xf] %vm427, %v353
  %451 = vst.msk [vmem:[%s4 + $0x5c] sm:$0xf] %vm427, %v354
  %452 = vst.msk [vmem:[%s4 + $0x60] sm:$0xf] %vm427, %v355
  %453 = vst.msk [vmem:[%s4 + $0x64] sm:$0xf] %vm427, %v356
  %454 = vst.msk [vmem:[%s4 + $0x68] sm:$0xf] %vm427, %v357
  %455 = vst.msk [vmem:[%s4 + $0x6c] sm:$0xf] %vm427, %v358
  %456 = vst.msk [vmem:[%s4 + $0x70] sm:$0xf] %vm427, %v359
  %457 = vst.msk [vmem:[%s4 + $0x74] sm:$0xf] %vm427, %v360
  %458 = vst.msk [vmem:[%s4 + $0x78] sm:$0xf] %vm427, %v361
  %459 = vst.msk [vmem:[%s4 + $0x7c] sm:$0xf] %vm427, %v362
  %460 = vst.msk [vmem:[%s4 + $0x80] sm:$0xf] %vm427, %v363
  %461 = vst.msk [vmem:[%s4 + $0x84] sm:$0xf] %vm427, %v364
  %462 = vst.msk [vmem:[%s4 + $0x88] sm:$0xf] %vm427, %v365
  %463 = vst.msk [vmem:[%s4 + $0x8c] sm:$0xf] %vm427, %v366
  %464 = vst.msk [vmem:[%s4 + $0x90] sm:$0xf] %vm427, %v367
  %465 = vst.msk [vmem:[%s4 + $0x94] sm:$0xf] %vm427, %v368
  %466 = vst.msk [vmem:[%s4 + $0x98] sm:$0xf] %vm427, %v369
  %467 = vst.msk [vmem:[%s4 + $0x9c] sm:$0xf] %vm427, %v370
  %468 = vst.msk [vmem:[%s4 + $0xa0] sm:$0xf] %vm427, %v371
  %469 = vst.msk [vmem:[%s4 + $0xa4] sm:$0xf] %vm427, %v372
  %470 = vst.msk [vmem:[%s4 + $0xa8] sm:$0xf] %vm427, %v373
  %471 = vst.msk [vmem:[%s4 + $0xac] sm:$0xf] %vm427, %v374
  %472 = vst.msk [vmem:[%s4 + $0xb0] sm:$0xf] %vm427, %v375
  %473 = vst.msk [vmem:[%s4 + $0xb4] sm:$0xf] %vm427, %v376
  %474 = vst.msk [vmem:[%s4 + $0xb8] sm:$0xf] %vm427, %v377
  %475 = vst.msk [vmem:[%s4 + $0xbc] sm:$0xf] %vm427, %v378
  // Predicated region
  $region18: #{generator_forward.21} parent=0 // pred_check
    _
  $region19: #{generator_forward.21} parent=0 // pred_check_branch
    %477 = sbr.rel (0) target = $region21
  $region20: #{generator_forward.21} parent=0 // pred_region
    _
  $region21: #{generator_forward.21} parent=0 // pred_fallthru
    _
  // Predicated region
  $region22: #{generator_forward.21} parent=0 // pred_check
    _
  $region23: #{generator_forward.21} parent=0 // pred_check_branch
    %479 = sbr.rel (0) target = $region25
  $region24: #{generator_forward.21} parent=0 // pred_region
    _
  $region25: #{generator_forward.21} parent=0 // pred_fallthru
    _

// kernel: generator_forward.22
$region0: #{generator_forward.22}
  #allocation0 [shape = 'u32[]', space=smem, size = 0x4, offset = 0x4, fixed_abs, tag = 'smem constant byte address 0x4 - core index']
  #allocation1 [shape = 'u32[144,128]{1,0:T(1,128)}', space=vmem, size = 0x12000, scoped, tag = 'internal scratch']
  #allocation2 [shape = 'f32[32,4]{1,0:T(8,128)}', space=vmem, size = 0x4000, scoped, tag = 'scratch operand']
  %s0 = inlined_call_operand.vmem [shape: bf16[2,27,35,8], index: 0, kind: input, shape index: {}]
  %s1 = inlined_call_operand.vmem [shape: bf16[4,4,8,4], index: 1, kind: input, shape index: {}]
  %s2 = inlined_call_operand.vmem [shape: f32[1,4], index: 2, kind: input, shape index: {}]
  %s3 = inlined_call_operand.vmem [shape: bf16[2,24,32,4], index: 3, kind: output, shape index: {}]
  %s4 = sld [smem:[#allocation0]]
  $region53: #{generator_forward.22} parent=0
    _
  %s6 = ssub.s32 1, %s4
  %s7 = scalar_select 0, %s6, %s4
  loop: start=0, step=1, limit=194
  $region2: #{generator_forward.22} parent=0 // loop_pre_header
    _
  $region3: #{generator_forward.22} parent=0 // loop_header
    %s9 = sphi 0, %s13
    %p10 = scmp.ge.s32.totalorder %s9, 194
    %s16 = sphi 0, %s35
    %s17 = sphi 0, %s31
    %s18 = sphi 0, %s27
    %s19 = sphi 0, %s16
    %s20 = sphi 0, %s17
    %s21 = sphi 0, %s18
    %s22 = sphi 0, %s19
    %s23 = sphi 0, %s20
    %s24 = sphi 0, %s21
    %s42 = sphi 0, %s44
    %s45 = sphi 0, %s42
    %s46 = sphi 0, %s45
    %s62 = sphi 0, %s46
    %s68 = sphi 0, %s70
    %s71 = sphi 0, %s68
    %s72 = sphi 0, %s71
    %s88 = sphi 0, %s72
    %s92 = sphi 0, %s92
    %s94 = sphi 0, %s92
    %s95 = sphi 0, %s94
    %s109 = sphi 0, %s95
    %s117 = sphi 0, %s119
    %s120 = sphi 0, %s117
    %s121 = sphi 0, %s120
    %s137 = sphi 0, %s121
  $region4: #{generator_forward.22} parent=0 // loop_header_branch
    %12 = sbr.rel (%p10) target = $region8
  $region5: #{generator_forward.22} parent=0 // loop_body
    %s14 = ssub.s32 %s9, 1
    %s15 = ssub.s32 %s9, 2
    %s25 = sadd.s32 1, %s18
    %p26 = scmp.ge.s32.totalorder %s25, 4
    %s27 = scalar_select %p26, 0, %s25
    %s28 = sadd.s32 1, %s17
    %s29 = scalar_select %p26, %s28, %s17
    %p30 = scmp.ge.s32.totalorder %s29, 24
    %s31 = scalar_select %p30, 0, %s29
    %s32 = sadd.s32 1, %s16
    %s33 = scalar_select %p30, %s32, %s16
    %p34 = scmp.ge.s32.totalorder %s33, 2
    %s35 = scalar_select %p34, 0, %s33
    %s36 = sadd.s32 %s17, %s18
    %s37 = sadd.s32 %s31, %s27
    %s38 = ssub.s32 %s16, %s35
    %s39 = ssub.s32 %s36, %s37
    %s40 = sor.u32 %s38, %s39
    %p41 = scmp.eq.s32.totalorder %s40, 0
    %s43 = sadd.s32 %s42, 1
    %s44 = scalar_select %p41, %s42, %s43
    %p47 = pneg %p41
    %p48 = scmp.eq.s32.totalorder %s9, 191
    %p49 = por %p47, %p48
    %p50 = scmp.ne.s32.totalorder %s42, %s45
    %p51 = scmp.eq.s32.totalorder %s9, 0
    %p52 = por %p50, %p51
    %p53 = scmp.ne.s32.totalorder %s42, %s45
    %p54 = scmp.eq.s32.totalorder %s14, 191
    %p55 = por %p53, %p54
    %p56 = scmp.ne.s32.totalorder %s45, %s46
    %p57 = scmp.eq.s32.totalorder %s14, 0
    %p58 = por %p56, %p57
    %p59 = scmp.ne.s32.totalorder %s45, %s46
    %p60 = scmp.eq.s32.totalorder %s15, 191
    %p61 = por %p59, %p60
    %p63 = scmp.ne.s32.totalorder %s46, %s62
    %p64 = scmp.eq.s32.totalorder %s15, 0
    %p65 = por %p63, %p64
    %s66 = ssub.s32 %s18, %s27
    %p67 = scmp.eq.s32.totalorder %s66, 0
    %s69 = sadd.s32 %s68, 1
    %s70 = scalar_select %p67, %s68, %s69
    %p73 = pneg %p67
    %p74 = scmp.eq.s32.totalorder %s9, 191
    %p75 = por %p73, %p74
    %p76 = scmp.ne.s32.totalorder %s68, %s71
    %p77 = scmp.eq.s32.totalorder %s9, 0
    %p78 = por %p76, %p77
    %p79 = scmp.ne.s32.totalorder %s68, %s71
    %p80 = scmp.eq.s32.totalorder %s14, 191
    %p81 = por %p79, %p80
    %p82 = scmp.ne.s32.totalorder %s71, %s72
    %p83 = scmp.eq.s32.totalorder %s14, 0
    %p84 = por %p82, %p83
    %p85 = scmp.ne.s32.totalorder %s71, %s72
    %p86 = scmp.eq.s32.totalorder %s15, 191
    %p87 = por %p85, %p86
    %p89 = scmp.ne.s32.totalorder %s72, %s88
    %p90 = scmp.eq.s32.totalorder %s15, 0
    %p91 = por %p89, %p90
    %s93 = sadd.s32 %s92, 1
    %p96 = scmp.eq.s32.totalorder %s9, 191
    %p97 = scmp.ne.s32.totalorder %s92, %s94
    %p98 = scmp.eq.s32.totalorder %s9, 0
    %p99 = por %p97, %p98
    %p100 = scmp.ne.s32.totalorder %s92, %s94
    %p101 = scmp.eq.s32.totalorder %s14, 191
    %p102 = por %p100, %p101
    %p103 = scmp.ne.s32.totalorder %s94, %s95
    %p104 = scmp.eq.s32.totalorder %s14, 0
    %p105 = por %p103, %p104
    %p106 = scmp.ne.s32.totalorder %s94, %s95
    %p107 = scmp.eq.s32.totalorder %s15, 191
    %p108 = por %p106, %p107
    %p110 = scmp.ne.s32.totalorder %s95, %s109
    %p111 = scmp.eq.s32.totalorder %s15, 0
    %p112 = por %p110, %p111
    %s113 = ssub.s32 %s16, %s35
    %s114 = ssub.s32 %s17, %s31
    %s115 = sor.u32 %s113, %s114
    %p116 = scmp.eq.s32.totalorder %s115, 0
    %s118 = sadd.s32 %s117, 1
    %s119 = scalar_select %p116, %s117, %s118
    %p122 = pneg %p116
    %p123 = scmp.eq.s32.totalorder %s9, 191
    %p124 = por %p122, %p123
    %p125 = scmp.ne.s32.totalorder %s117, %s120
    %p126 = scmp.eq.s32.totalorder %s9, 0
    %p127 = por %p125, %p126
    %p128 = scmp.ne.s32.totalorder %s117, %s120
    %p129 = scmp.eq.s32.totalorder %s14, 191
    %p130 = por %p128, %p129
    %p131 = scmp.ne.s32.totalorder %s120, %s121
    %p132 = scmp.eq.s32.totalorder %s14, 0
    %p133 = por %p131, %p132
    %p134 = scmp.ne.s32.totalorder %s120, %s121
    %p135 = scmp.eq.s32.totalorder %s15, 191
    %p136 = por %p134, %p135
    %p138 = scmp.ne.s32.totalorder %s121, %s137
    %p139 = scmp.eq.s32.totalorder %s15, 0
    %p140 = por %p138, %p139
    %p141 = scmp.le.s32.totalorder 1, %s9
    %p142 = scmp.lt.s32.totalorder %s9, 193
    %p143 = pnand %p141, %p142
    %p144 = pneg %p143
    // Predicated region
    $region9: #{generator_forward.22} parent=5 // pred_check
      _
    $region10: #{generator_forward.22} parent=5 // pred_check_branch
      %146 = sbr.rel (%p143) target = $region12
    $region11: #{generator_forward.22} parent=5 // pred_region
      %s147 = ssub.s32 %s9, 1
      // Predicated region
      $region13: #{generator_forward.22} parent=11 // pred_check
        %p148 = pneg %p105
      $region14: #{generator_forward.22} parent=11 // pred_check_branch
        %150 = sbr.rel (%p148) target = $region16
      $region15: #{generator_forward.22} parent=11 // pred_region
        _
      $region16: #{generator_forward.22} parent=11 // pred_fallthru
        _
    $region12: #{generator_forward.22} parent=5 // pred_fallthru
      _
    %p151 = scmp.lt.s32.totalorder %s9, 192
    // Predicated region
    $region17: #{generator_forward.22} parent=5 // pred_check
      %p152 = pneg %p151
    $region18: #{generator_forward.22} parent=5 // pred_check_branch
      %154 = sbr.rel (%p152) target = $region20
    $region19: #{generator_forward.22} parent=5 // pred_region
      // Predicated region
      $region21: #{generator_forward.22} parent=19 // pred_check
        %p155 = pneg %p52
      $region22: #{generator_forward.22} parent=19 // pred_check_branch
        %157 = sbr.rel (%p155) target = $region24
      $region23: #{generator_forward.22} parent=19 // pred_region
        %s158 = sadd.s32 %s17, %s18
        %p159 = scmp.lt.s32.totalorder %s16, 1
        %s160 = scalar_select %p159, %s16, 1
        %p161 = scmp.lt.s32.totalorder %s158, 26
        %s162 = scalar_select %p161, %s158, 26
        %s163 = smul.addr %s162, 5
        %s164 = smul.addr %s160, 135
        %s165 = sadd.s32 %s163, %s164
        %s166 = smul.addr %s165, 4
        %s167 = scalar_lea.vmem %s0, %s166
        %s168 = sadd.s32 %s17, %s18
      $region24: #{generator_forward.22} parent=19 // pred_fallthru
        _
      // Predicated region
      $region25: #{generator_forward.22} parent=19 // pred_check
        %p169 = pneg %p78
      $region26: #{generator_forward.22} parent=19 // pred_check_branch
        %171 = sbr.rel (%p169) target = $region28
      $region27: #{generator_forward.22} parent=19 // pred_region
        %p172 = scmp.lt.s32.totalorder %s18, 3
        %s173 = scalar_select %p172, %s18, 3
        %s174 = smul.addr %s173, 4
        %s175 = smul.addr %s174, 4
        %s176 = scalar_lea.vmem %s1, %s175
      $region28: #{generator_forward.22} parent=19 // pred_fallthru
        _
    $region20: #{generator_forward.22} parent=5 // pred_fallthru
      _
    %p177 = scmp.le.s32.totalorder 1, %s9
    %p178 = scmp.lt.s32.totalorder %s9, 193
    %p179 = pnand %p177, %p178
    %p180 = pneg %p179
    // Predicated region
    $region29: #{generator_forward.22} parent=5 // pred_check
      _
    $region30: #{generator_forward.22} parent=5 // pred_check_branch
      %182 = sbr.rel (%p179) target = $region32
    $region31: #{generator_forward.22} parent=5 // pred_region
      %s183 = ssub.s32 %s9, 1
      %s184 = sadd.s32 %s20, %s21
      %p185 = scmp.lt.s32.totalorder %s19, 1
      %s186 = scalar_select %p185, %s19, 1
      %p187 = scmp.lt.s32.totalorder %s184, 26
      %s188 = scalar_select %p187, %s184, 26
      %s189 = smul.addr %s188, 5
      %s190 = smul.addr %s186, 135
      %s191 = sadd.s32 %s189, %s190
      %s192 = smul.addr %s191, 4
      %s193 = scalar_lea.vmem %s0, %s192
      %p194 = pneg %p58
      %p195 = pneg %p55
      %p196 = scmp.lt.s32.totalorder %s21, 3
      %s197 = scalar_select %p196, %s21, 3
      %s198 = smul.addr %s197, 4
      %s199 = smul.addr %s198, 4
      %s200 = scalar_lea.vmem %s1, %s199
      %p201 = pneg %p84
      %p202 = pneg %p81
      %p203 = pneg %p105
      %p204 = pneg %p102
      %p205 = pneg %p133
      %p206 = pneg %p130
      %p207 = scmp.lt.s32.totalorder %s19, 1
      %s208 = scalar_select %p207, %s19, 1
      %p209 = scmp.lt.s32.totalorder %s20, 23
      %s210 = scalar_select %p209, %s20, 23
      %s211 = smul.addr %s210, 4
      %s212 = smul.addr %s208, 96
      %s213 = sadd.s32 %s211, %s212
      %s214 = smul.addr %s213, 4
      %s215 = scalar_lea.vmem %s3, %s214
      %s216 = sadd.s32 %s20, %s21
      %p217 = scmp.lt.s32.totalorder %s19, 1
      %s218 = scalar_select %p217, %s19, 1
      %p219 = scmp.lt.s32.totalorder %s216, 26
      %s220 = scalar_select %p219, %s216, 26
      %s221 = smul.addr %s220, 5
      %s222 = smul.addr %s218, 135
      %s223 = sadd.s32 %s221, %s222
      %s224 = smul.addr %s223, 4
      %s225 = scalar_lea.vmem %s0, %s224
      %s226 = sadd.s32 %s20, %s21
      %p227 = scmp.lt.s32.totalorder %s21, 3
      %s228 = scalar_select %p227, %s21, 3
      %s229 = smul.addr %s228, 4
      %s230 = smul.addr %s229, 4
      %s231 = scalar_lea.vmem %s1, %s230
      %p232 = scmp.lt.s32.totalorder %s19, 1
      %s233 = scalar_select %p232, %s19, 1
      %p234 = scmp.lt.s32.totalorder %s20, 23
      %s235 = scalar_select %p234, %s20, 23
      %s236 = smul.addr %s235, 4
      %s237 = smul.addr %s233, 96
      %s238 = sadd.s32 %s236, %s237
      %s239 = smul.addr %s238, 4
      %s240 = scalar_lea.vmem %s3, %s239
      %p242 = scmp.eq.s32.totalorder %s21, 0
      // Predicated region
      $region33: #{generator_forward.22} parent=31 // pred_check
        %p243 = pneg %p242
      $region34: #{generator_forward.22} parent=31 // pred_check_branch
        %245 = sbr.rel (%p243) target = $region36
      $region35: #{generator_forward.22} parent=31 // pred_region
        %vm246 = vcmask 31744
        %247 = vst.msk [vmem:[#allocation2] sm:$0xff] %vm246, 0.0
        %248 = vst.msk [vmem:[#allocation2 + $0x8] sm:$0xff] %vm246, 0.0
        %249 = vst.msk [vmem:[#allocation2 + $0x10] sm:$0xff] %vm246, 0.0
        %250 = vst.msk [vmem:[#allocation2 + $0x18] sm:$0xff] %vm246, 0.0
      $region36: #{generator_forward.22} parent=31 // pred_fallthru
        _
      %v251 = vld [vmem:[#allocation2] sm:$0xff]
      %v252 = vld [vmem:[#allocation2 + $0x8] sm:$0xff]
      %v253 = vld [vmem:[#allocation2 + $0x10] sm:$0xff]
      %v254 = vld [vmem:[#allocation2 + $0x18] sm:$0xff]
      %v255 = vld [vmem:[%s225] sm:$0xf]
      %v256 = vld [vmem:[%s225 + $0x4] sm:$0xf]
      %v257 = vld [vmem:[%s225 + $0x8] sm:$0xf]
      %v258 = vld [vmem:[%s225 + $0xc] sm:$0xf]
      %v259 = vld [vmem:[%s231] sm:$0xf]
      %v264 = vunpack.c.l.b16 %v255
      %v265 = vunpack.c.l.b16 %v256
      %v266 = vunpack.c.l.b16 %v257
      %v267 = vunpack.c.l.b16 %v258
      %v268 = vpack.c.b16 %v265, %v264
      %v269 = vpack.c.b16 %v267, %v266
      %vm270 = vcmask 64512
      %v272 = vsel %vm270, %v268, 0
      %v275 = vsel %vm270, %v269, 0
      %vm277 = vcmask 1043456
      %v279 = vsel %vm277, %v259, 0
      %281 = vmatprep.subr.bf16.mxu0 0
      %282 = vmatpush1.bf16.msra.mxu0 0
      %283 = vmatprep.subr.bf16.mxu0 0
      %284 = vmatpush1.bf16.msra.mxu0 0
      %285 = vmatprep.subr.bf16.mxu0 0
      %286 = vmatpush1.bf16.msra.mxu0 0
      %287 = vmatprep.subr.bf16.mxu0 0
      %288 = vmatpush1.bf16.msra.mxu0 0
      %289 = vmatprep.subr.bf16.mxu0 0
      %290 = vmatpush1.bf16.msra.mxu0 0
      %291 = vmatprep.subr.bf16.mxu0 0
      %292 = vmatpush1.bf16.msra.mxu0 0
      %293 = vmatprep.subr.bf16.mxu0 0
      %294 = vmatpush1.bf16.msra.mxu0 0
      %295 = vmatprep.subr.bf16.mxu0 0
      %296 = vmatpush1.bf16.msra.mxu0 %v279
      %297 = vmatprep.subr.bf16.mxu0 0
      %298 = vmatpush2.bf16.msra.mxu0 0
      %299 = vmatprep.subr.bf16.mxu0 0
      %300 = vmatpush2.bf16.msra.mxu0 0
      %301 = vmatprep.subr.bf16.mxu0 0
      %302 = vmatpush2.bf16.msra.mxu0 0
      %303 = vmatprep.subr.bf16.mxu0 0
      %304 = vmatpush2.bf16.msra.mxu0 0
      %305 = vmatprep.subr.bf16.mxu0 0
      %306 = vmatpush2.bf16.msra.mxu0 0
      %307 = vmatprep.subr.bf16.mxu0 0
      %308 = vmatpush2.bf16.msra.mxu0 0
      %309 = vmatprep.subr.bf16.mxu0 0
      %310 = vmatpush2.bf16.msra.mxu0 0
      %311 = vmatprep.subr.bf16.mxu0 0
      %312 = vmatpush2.bf16.msra.mxu0 0
      %313 = vmatprep.mubr.bf16.mxu0 0
      %314 = vmatmul.mubr.bf16.gmra.mxu0 %v272
      %v315 = vpop.f32.mrf.mxu0
      %v316 = vadd.f32 0.0, %v315
      %v317 = vpop.f32.mrf.mxu0
      %v318 = vpop.f32.mrf.mxu0
      %v319 = vadd.f32 0.0, %v318
      %v320 = vpop.f32.mrf.mxu0
      %321 = vmatprep.mubr.bf16.mxu0 0
      %322 = vmatmul.mubr.bf16.gmra.mxu0 %v275
      %v323 = vpop.f32.mrf.mxu0
      %v324 = vadd.f32 0.0, %v323
      %v325 = vpop.f32.mrf.mxu0
      %v326 = vpop.f32.mrf.mxu0
      %v327 = vadd.f32 0.0, %v326
      %v328 = vpop.f32.mrf.mxu0
      %329 = vdwg.mxu0
      %v330 = vadd.f32 %v251, %v316
      %v331 = vadd.f32 %v252, %v319
      %v332 = vadd.f32 %v253, %v324
      %v333 = vadd.f32 %v254, %v327
      %v334 = vld [vmem:[%s225] sm:$0xf]
      %v335 = vld [vmem:[%s225 + $0x4] sm:$0xf]
      %v336 = vld [vmem:[%s225 + $0x8] sm:$0xf]
      %v337 = vld [vmem:[%s225 + $0xc] sm:$0xf]
      %v338 = vld [vmem:[%s225 + $0x10] sm:$0x1]
      %s339 = scalar_lea.vmem %s231, 4
      %v340 = vld [vmem:[%s339] sm:$0xf]
      %v346 = vunpack.c.l.b16 %v334
      %v347 = vunpack.c.l.b16 %v335
      %v348 = vunpack.c.l.b16 %v336
      %v349 = vunpack.c.l.b16 %v337
      %v350 = vunpack.c.l.b16 %v338
      %v351 = vpack.c.b16 %v347, %v346
      %v352 = vpack.c.b16 %v349, %v348
      %v353 = vpack.c.b16 %v350, %v350
      %vm354 = vsmask.f32 7424
      %v356 = vshrl.u32 %v351, 16
      %v358 = vshll.u32 %v351, 16
      %v360 = vrot.slane %v358, 1
      %v361 = vor.u32 %v356, %v360
      %v363 = vshll.u32 %v352, 16
      %v365 = vrot.slane %v363, 1
      %v366 = vsel %vm354, %v361, %v365
      %v367 = vshrl.u32 %v352, 16
      %v369 = vor.u32 %v367, %v365
      %v371 = vshll.u32 %v353, 16
      %v373 = vrot.slane %v371, 1
      %v374 = vsel %vm354, %v369, %v373
      %v376 = vsel %vm270, %v366, 0
      %v379 = vsel %vm270, %v374, 0
      %v382 = vsel %vm277, %v340, 0
      %384 = vmatprep.subr.bf16.mxu0 0
      %385 = vmatpush1.bf16.msra.mxu0 0
      %386 = vmatprep.subr.bf16.mxu0 0
      %387 = vmatpush1.bf16.msra.mxu0 0
      %388 = vmatprep.subr.bf16.mxu0 0
      %389 = vmatpush1.bf16.msra.mxu0 0
      %390 = vmatprep.subr.bf16.mxu0 0
      %391 = vmatpush1.bf16.msra.mxu0 0
      %392 = vmatprep.subr.bf16.mxu0 0
      %393 = vmatpush1.bf16.msra.mxu0 0
      %394 = vmatprep.subr.bf16.mxu0 0
      %395 = vmatpush1.bf16.msra.mxu0 0
      %396 = vmatprep.subr.bf16.mxu0 0
      %397 = vmatpush1.bf16.msra.mxu0 0
      %398 = vmatprep.subr.bf16.mxu0 0
      %399 = vmatpush1.bf16.msra.mxu0 %v382
      %400 = vmatprep.subr.bf16.mxu0 0
      %401 = vmatpush2.bf16.msra.mxu0 0
      %402 = vmatprep.subr.bf16.mxu0 0
      %403 = vmatpush2.bf16.msra.mxu0 0
      %404 = vmatprep.subr.bf16.mxu0 0
      %405 = vmatpush2.bf16.msra.mxu0 0
      %406 = vmatprep.subr.bf16.mxu0 0
      %407 = vmatpush2.bf16.msra.mxu0 0
      %408 = vmatprep.subr.bf16.mxu0 0
      %409 = vmatpush2.bf16.msra.mxu0 0
      %410 = vmatprep.subr.bf16.mxu0 0
      %411 = vmatpush2.bf16.msra.mxu0 0
      %412 = vmatprep.subr.bf16.mxu0 0
      %413 = vmatpush2.bf16.msra.mxu0 0
      %414 = vmatprep.subr.bf16.mxu0 0
      %415 = vmatpush2.bf16.msra.mxu0 0
      %416 = vmatprep.mubr.bf16.mxu0 0
      %417 = vmatmul.mubr.bf16.gmra.mxu0 %v376
      %v418 = vpop.f32.mrf.mxu0
      %v419 = vadd.f32 0.0, %v418
      %v420 = vpop.f32.mrf.mxu0
      %v421 = vpop.f32.mrf.mxu0
      %v422 = vadd.f32 0.0, %v421
      %v423 = vpop.f32.mrf.mxu0
      %424 = vmatprep.mubr.bf16.mxu0 0
      %425 = vmatmul.mubr.bf16.gmra.mxu0 %v379
      %v426 = vpop.f32.mrf.mxu0
      %v427 = vadd.f32 0.0, %v426
      %v428 = vpop.f32.mrf.mxu0
      %v429 = vpop.f32.mrf.mxu0
      %v430 = vadd.f32 0.0, %v429
      %v431 = vpop.f32.mrf.mxu0
      %432 = vdwg.mxu0
      %v433 = vadd.f32 %v330, %v419
      %v434 = vadd.f32 %v331, %v422
      %v435 = vadd.f32 %v332, %v427
      %v436 = vadd.f32 %v333, %v430
      %v437 = vld [vmem:[%s225] sm:$0xe]
      %s438 = scalar_lea.vmem %s231, 8
      %v439 = vld [vmem:[%s438] sm:$0xf]
      %v441 = vunpack.c.l.b16 %v437
      %v442 = vpack.c.b16 %v347, %v441
      %vm443 = vcmask 1046528
      %v444 = vrot.slane %v442, 1
      %v445 = vrot.slane %v352, 1
      %v446 = vsel %vm443, %v444, %v445
      %v447 = vrot.slane %v353, 1
      %v448 = vsel %vm443, %v445, %v447
      %v450 = vsel %vm270, %v446, 0
      %v453 = vsel %vm270, %v448, 0
      %v456 = vsel %vm277, %v439, 0
      %458 = vmatprep.subr.bf16.mxu0 0
      %459 = vmatpush1.bf16.msra.mxu0 0
      %460 = vmatprep.subr.bf16.mxu0 0
      %461 = vmatpush1.bf16.msra.mxu0 0
      %462 = vmatprep.subr.bf16.mxu0 0
      %463 = vmatpush1.bf16.msra.mxu0 0
      %464 = vmatprep.subr.bf16.mxu0 0
      %465 = vmatpush1.bf16.msra.mxu0 0
      %466 = vmatprep.subr.bf16.mxu0 0
      %467 = vmatpush1.bf16.msra.mxu0 0
      %468 = vmatprep.subr.bf16.mxu0 0
      %469 = vmatpush1.bf16.msra.mxu0 0
      %470 = vmatprep.subr.bf16.mxu0 0
      %471 = vmatpush1.bf16.msra.mxu0 0
      %472 = vmatprep.subr.bf16.mxu0 0
      %473 = vmatpush1.bf16.msra.mxu0 %v456
      %474 = vmatprep.subr.bf16.mxu0 0
      %475 = vmatpush2.bf16.msra.mxu0 0
      %476 = vmatprep.subr.bf16.mxu0 0
      %477 = vmatpush2.bf16.msra.mxu0 0
      %478 = vmatprep.subr.bf16.mxu0 0
      %479 = vmatpush2.bf16.msra.mxu0 0
      %480 = vmatprep.subr.bf16.mxu0 0
      %481 = vmatpush2.bf16.msra.mxu0 0
      %482 = vmatprep.subr.bf16.mxu0 0
      %483 = vmatpush2.bf16.msra.mxu0 0
      %484 = vmatprep.subr.bf16.mxu0 0
      %485 = vmatpush2.bf16.msra.mxu0 0
      %486 = vmatprep.subr.bf16.mxu0 0
      %487 = vmatpush2.bf16.msra.mxu0 0
      %488 = vmatprep.subr.bf16.mxu0 0
      %489 = vmatpush2.bf16.msra.mxu0 0
      %490 = vmatprep.mubr.bf16.mxu0 0
      %491 = vmatmul.mubr.bf16.gmra.mxu0 %v450
      %v492 = vpop.f32.mrf.mxu0
      %v493 = vadd.f32 0.0, %v492
      %v494 = vpop.f32.mrf.mxu0
      %v495 = vpop.f32.mrf.mxu0
      %v496 = vadd.f32 0.0, %v495
      %v497 = vpop.f32.mrf.mxu0
      %498 = vmatprep.mubr.bf16.mxu0 0
      %499 = vmatmul.mubr.bf16.gmra.mxu0 %v453
      %v500 = vpop.f32.mrf.mxu0
      %v501 = vadd.f32 0.0, %v500
      %v502 = vpop.f32.mrf.mxu0
      %v503 = vpop.f32.mrf.mxu0
      %v504 = vadd.f32 0.0, %v503
      %v505 = vpop.f32.mrf.mxu0
      %506 = vdwg.mxu0
      %v507 = vadd.f32 %v433, %v493
      %v508 = vadd.f32 %v434, %v496
      %v509 = vadd.f32 %v435, %v501
      %v510 = vadd.f32 %v436, %v504
      %v511 = vld [vmem:[%s225 + $0x10] sm:$0x3]
      %s512 = scalar_lea.vmem %s231, 12
      %v513 = vld [vmem:[%s512] sm:$0xf]
      %v515 = vunpack.c.l.b16 %v511
      %v516 = vpack.c.b16 %v515, %v515
      %vm517 = vsmask.f32 6400
      %v519 = vshrl.u32 %v442, 16
      %v521 = vrot.slane %v519, 1
      %v522 = vshll.u32 %v442, 16
      %v524 = vrot.slane %v522, 2
      %v525 = vor.u32 %v521, %v524
      %v526 = vrot.slane %v367, 1
      %v527 = vrot.slane %v363, 2
      %v528 = vor.u32 %v526, %v527
      %v529 = vsel %vm517, %v525, %v528
      %v531 = vshrl.u32 %v516, 16
      %v533 = vrot.slane %v531, 1
      %v534 = vshll.u32 %v516, 16
      %v536 = vrot.slane %v534, 2
      %v537 = vor.u32 %v533, %v536
      %v538 = vsel %vm517, %v528, %v537
      %v540 = vsel %vm270, %v529, 0
      %v543 = vsel %vm270, %v538, 0
      %v546 = vsel %vm277, %v513, 0
      %548 = vmatprep.subr.bf16.mxu0 0
      %549 = vmatpush1.bf16.msra.mxu0 0
      %550 = vmatprep.subr.bf16.mxu0 0
      %551 = vmatpush1.bf16.msra.mxu0 0
      %552 = vmatprep.subr.bf16.mxu0 0
      %553 = vmatpush1.bf16.msra.mxu0 0
      %554 = vmatprep.subr.bf16.mxu0 0
      %555 = vmatpush1.bf16.msra.mxu0 0
      %556 = vmatprep.subr.bf16.mxu0 0
      %557 = vmatpush1.bf16.msra.mxu0 0
      %558 = vmatprep.subr.bf16.mxu0 0
      %559 = vmatpush1.bf16.msra.mxu0 0
      %560 = vmatprep.subr.bf16.mxu0 0
      %561 = vmatpush1.bf16.msra.mxu0 0
      %562 = vmatprep.subr.bf16.mxu0 0
      %563 = vmatpush1.bf16.msra.mxu0 %v546
      %564 = vmatprep.subr.bf16.mxu0 0
      %565 = vmatpush2.bf16.msra.mxu0 0
      %566 = vmatprep.subr.bf16.mxu0 0
      %567 = vmatpush2.bf16.msra.mxu0 0
      %568 = vmatprep.subr.bf16.mxu0 0
      %569 = vmatpush2.bf16.msra.mxu0 0
      %570 = vmatprep.subr.bf16.mxu0 0
      %571 = vmatpush2.bf16.msra.mxu0 0
      %572 = vmatprep.subr.bf16.mxu0 0
      %573 = vmatpush2.bf16.msra.mxu0 0
      %574 = vmatprep.subr.bf16.mxu0 0
      %575 = vmatpush2.bf16.msra.mxu0 0
      %576 = vmatprep.subr.bf16.mxu0 0
      %577 = vmatpush2.bf16.msra.mxu0 0
      %578 = vmatprep.subr.bf16.mxu0 0
      %579 = vmatpush2.bf16.msra.mxu0 0
      %580 = vmatprep.mubr.bf16.mxu0 0
      %581 = vmatmul.mubr.bf16.gmra.mxu0 %v540
      %v582 = vpop.f32.mrf.mxu0
      %v583 = vadd.f32 0.0, %v582
      %v584 = vpop.f32.mrf.mxu0
      %v585 = vpop.f32.mrf.mxu0
      %v586 = vadd.f32 0.0, %v585
      %v587 = vpop.f32.mrf.mxu0
      %588 = vmatprep.mubr.bf16.mxu0 0
      %589 = vmatmul.mubr.bf16.gmra.mxu0 %v543
      %v590 = vpop.f32.mrf.mxu0
      %v591 = vadd.f32 0.0, %v590
      %v592 = vpop.f32.mrf.mxu0
      %v593 = vpop.f32.mrf.mxu0
      %v594 = vadd.f32 0.0, %v593
      %v595 = vpop.f32.mrf.mxu0
      %596 = vdwg.mxu0
      %v597 = vadd.f32 %v507, %v583
      %v598 = vadd.f32 %v508, %v586
      %v599 = vadd.f32 %v509, %v591
      %v600 = vadd.f32 %v510, %v594
      %vm601 = vcmask 31744
      %602 = vst.msk [vmem:[#allocation2] sm:$0xff] %vm601, %v597
      %603 = vst.msk [vmem:[#allocation2 + $0x8] sm:$0xff] %vm601, %v598
      %604 = vst.msk [vmem:[#allocation2 + $0x10] sm:$0xff] %vm601, %v599
      %605 = vst.msk [vmem:[#allocation2 + $0x18] sm:$0xff] %vm601, %v600
      %p606 = scmp.eq.s32.totalorder %s21, 3
      // Predicated region
      $region37: #{generator_forward.22} parent=31 // pred_check
        %p607 = pneg %p606
      $region38: #{generator_forward.22} parent=31 // pred_check_branch
        %609 = sbr.rel (%p607) target = $region40
      $region39: #{generator_forward.22} parent=31 // pred_region
        %v610 = vld [vmem:[#allocation2] sm:$0xff]
        %v611 = vld [vmem:[#allocation2 + $0x8] sm:$0xff]
        %v612 = vld [vmem:[#allocation2 + $0x10] sm:$0xff]
        %v613 = vld [vmem:[#allocation2 + $0x18] sm:$0xff]
        %v614 = vld [vmem:[%s2] sm:$0x1]
        %v616 = vlaneseq
        %v617 = vshrl.u32 %v616, 7
        %v618 = vsub.s32 0, %v617
        %v619 = vrot.slane %v614, %v618
        %v621 = vadd.f32 %v610, %v619
        %v622 = vadd.f32 %v611, %v619
        %v623 = vadd.f32 %v612, %v619
        %v624 = vadd.f32 %v613, %v619
        %v625 = vpack.c.bf16 %v622, %v621
        %v626 = vpack.c.bf16 %v624, %v623
        %v629 = vunpack.c.l.b16 %v625
        %v630 = vunpack.c.h.b16 %v625
        %v631 = vunpack.c.l.b16 %v626
        %v632 = vunpack.c.h.b16 %v626
        %v633 = vpack.c.b16 %v629, %v629
        %v634 = vpack.c.b16 %v630, %v630
        %v635 = vpack.c.b16 %v631, %v631
        %v636 = vpack.c.b16 %v632, %v632
        %vm641 = vcmask 27648
        %642 = vst.msk [vmem:[%s240] sm:$0xf] %vm641, %v633
        %643 = vst.msk [vmem:[%s240 + $0x4] sm:$0xf] %vm641, %v634
        %644 = vst.msk [vmem:[%s240 + $0x8] sm:$0xf] %vm641, %v635
        %645 = vst.msk [vmem:[%s240 + $0xc] sm:$0xf] %vm641, %v636
      $region40: #{generator_forward.22} parent=31 // pred_fallthru
        _
      %p646 = scmp.lt.s32.totalorder %s19, 1
      %s647 = scalar_select %p646, %s19, 1
      %p648 = scmp.lt.s32.totalorder %s20, 23
      %s649 = scalar_select %p648, %s20, 23
      %s650 = smul.addr %s649, 4
      %s651 = smul.addr %s647, 96
      %s652 = sadd.s32 %s650, %s651
      %s653 = smul.addr %s652, 4
      %s654 = scalar_lea.vmem %s3, %s653
      // Predicated region
      $region41: #{generator_forward.22} parent=31 // pred_check
        %p655 = pneg %p130
      $region42: #{generator_forward.22} parent=31 // pred_check_branch
        %657 = sbr.rel (%p655) target = $region44
      $region43: #{generator_forward.22} parent=31 // pred_region
        _
      $region44: #{generator_forward.22} parent=31 // pred_fallthru
        _
    $region32: #{generator_forward.22} parent=5 // pred_fallthru
      _
    %p658 = scmp.le.s32.totalorder 2, %s9
    // Predicated region
    $region45: #{generator_forward.22} parent=5 // pred_check
      %p659 = pneg %p658
    $region46: #{generator_forward.22} parent=5 // pred_check_branch
      %661 = sbr.rel (%p659) target = $region48
    $region47: #{generator_forward.22} parent=5 // pred_region
      %s662 = ssub.s32 %s9, 2
      // Predicated region
      $region49: #{generator_forward.22} parent=47 // pred_check
        %p663 = pneg %p136
      $region50: #{generator_forward.22} parent=47 // pred_check_branch
        %665 = sbr.rel (%p663) target = $region52
      $region51: #{generator_forward.22} parent=47 // pred_region
        %p666 = scmp.lt.s32.totalorder %s22, 1
        %s667 = scalar_select %p666, %s22, 1
        %p668 = scmp.lt.s32.totalorder %s23, 23
        %s669 = scalar_select %p668, %s23, 23
        %s670 = smul.addr %s669, 4
        %s671 = smul.addr %s667, 96
        %s672 = sadd.s32 %s670, %s671
        %s673 = smul.addr %s672, 4
        %s674 = scalar_lea.vmem %s3, %s673
      $region52: #{generator_forward.22} parent=47 // pred_fallthru
        _
    $region48: #{generator_forward.22} parent=5 // pred_fallthru
      _
  $region6: #{generator_forward.22} parent=0 // loop_footer
    %s13 = sadd.s32 1, %s9
  $region7: #{generator_forward.22} parent=0 // loop_footer_branch
    %8 = sbr.rel target = $region3
  $region8: #{generator_forward.22} parent=0 // loop_exit
    _

// kernel: generator_forward.23
$region0: #{generator_forward.23}
  #allocation0 [shape = 'u32[]', space=smem, size = 0x4, offset = 0x4, fixed_abs, tag = 'smem constant byte address 0x4 - core index']
  #allocation1 [shape = 'u32[144,128]{1,0:T(1,128)}', space=vmem, size = 0x12000, scoped, tag = 'internal scratch']
  %s0 = inlined_call_operand.vmem [shape: bf16[1536,4], index: 0, kind: input, shape index: {}]
  %s1 = inlined_call_operand.vmem [shape: f32[2,4], index: 1, kind: output, shape index: {}]
  %s2 = sld [smem:[#allocation0]]
  $region41: #{generator_forward.23} parent=0
    _
  %s4 = ssub.s32 1, %s2
  %s5 = scalar_select 0, %s4, %s2
  loop: start=0, step=1, limit=5
  $region2: #{generator_forward.23} parent=0 // loop_pre_header
    _
  $region3: #{generator_forward.23} parent=0 // loop_header
    %s7 = sphi 0, %s11
    %p8 = scmp.ge.s32.totalorder %s7, 5
    %s17 = sphi 0, %s19
    %s20 = sphi 0, %s17
    %s21 = sphi 0, %s20
    %s37 = sphi 0, %s21
    %s41 = sphi 0, %s41
    %s43 = sphi 0, %s41
    %s44 = sphi 0, %s43
    %s58 = sphi 0, %s44
  $region4: #{generator_forward.23} parent=0 // loop_header_branch
    %10 = sbr.rel (%p8) target = $region8
  $region5: #{generator_forward.23} parent=0 // loop_body
    %s12 = ssub.s32 %s7, 1
    %s13 = ssub.s32 %s7, 2
    %s14 = sadd.s32 %s7, 1
    %s15 = ssub.s32 %s7, %s14
    %p16 = scmp.eq.s32.totalorder %s15, 0
    %s18 = sadd.s32 %s17, 1
    %s19 = scalar_select %p16, %s17, %s18
    %p22 = pneg %p16
    %p23 = scmp.eq.s32.totalorder %s7, 2
    %p24 = por %p22, %p23
    %p25 = scmp.ne.s32.totalorder %s17, %s20
    %p26 = scmp.eq.s32.totalorder %s7, 0
    %p27 = por %p25, %p26
    %p28 = scmp.ne.s32.totalorder %s17, %s20
    %p29 = scmp.eq.s32.totalorder %s12, 2
    %p30 = por %p28, %p29
    %p31 = scmp.ne.s32.totalorder %s20, %s21
    %p32 = scmp.eq.s32.totalorder %s12, 0
    %p33 = por %p31, %p32
    %p34 = scmp.ne.s32.totalorder %s20, %s21
    %p35 = scmp.eq.s32.totalorder %s13, 2
    %p36 = por %p34, %p35
    %p38 = scmp.ne.s32.totalorder %s21, %s37
    %p39 = scmp.eq.s32.totalorder %s13, 0
    %p40 = por %p38, %p39
    %s42 = sadd.s32 %s41, 1
    %p45 = scmp.eq.s32.totalorder %s7, 2
    %p46 = scmp.ne.s32.totalorder %s41, %s43
    %p47 = scmp.eq.s32.totalorder %s7, 0
    %p48 = por %p46, %p47
    %p49 = scmp.ne.s32.totalorder %s41, %s43
    %p50 = scmp.eq.s32.totalorder %s12, 2
    %p51 = por %p49, %p50
    %p52 = scmp.ne.s32.totalorder %s43, %s44
    %p53 = scmp.eq.s32.totalorder %s12, 0
    %p54 = por %p52, %p53
    %p55 = scmp.ne.s32.totalorder %s43, %s44
    %p56 = scmp.eq.s32.totalorder %s13, 2
    %p57 = por %p55, %p56
    %p59 = scmp.ne.s32.totalorder %s44, %s58
    %p60 = scmp.eq.s32.totalorder %s13, 0
    %p61 = por %p59, %p60
    %p62 = scmp.le.s32.totalorder 1, %s7
    %p63 = scmp.lt.s32.totalorder %s7, 4
    %p64 = pnand %p62, %p63
    %p65 = pneg %p64
    // Predicated region
    $region9: #{generator_forward.23} parent=5 // pred_check
      _
    $region10: #{generator_forward.23} parent=5 // pred_check_branch
      %67 = sbr.rel (%p64) target = $region12
    $region11: #{generator_forward.23} parent=5 // pred_region
      %s68 = ssub.s32 %s7, 1
    $region12: #{generator_forward.23} parent=5 // pred_fallthru
      _
    %p69 = scmp.lt.s32.totalorder %s7, 3
    // Predicated region
    $region13: #{generator_forward.23} parent=5 // pred_check
      %p70 = pneg %p69
    $region14: #{generator_forward.23} parent=5 // pred_check_branch
      %72 = sbr.rel (%p70) target = $region16
    $region15: #{generator_forward.23} parent=5 // pred_region
      // Predicated region
      $region17: #{generator_forward.23} parent=15 // pred_check
        %p73 = pneg %p27
      $region18: #{generator_forward.23} parent=15 // pred_check_branch
        %75 = sbr.rel (%p73) target = $region20
      $region19: #{generator_forward.23} parent=15 // pred_region
        %s76 = smul.u32 64, %s7
        %p77 = scmp.lt.s32.totalorder %s76, 191
        %s78 = scalar_select %p77, %s76, 191
        %s79 = smul.addr %s78, 4
        %s80 = scalar_lea.vmem %s0, %s79
        %s81 = smul.u32 64, %s7
      $region20: #{generator_forward.23} parent=15 // pred_fallthru
        _
    $region16: #{generator_forward.23} parent=5 // pred_fallthru
      _
    %p82 = scmp.le.s32.totalorder 1, %s7
    %p83 = scmp.lt.s32.totalorder %s7, 4
    %p84 = pnand %p82, %p83
    %p85 = pneg %p84
    // Predicated region
    $region21: #{generator_forward.23} parent=5 // pred_check
      _
    $region22: #{generator_forward.23} parent=5 // pred_check_branch
      %87 = sbr.rel (%p84) target = $region24
    $region23: #{generator_forward.23} parent=5 // pred_region
      %s88 = ssub.s32 %s7, 1
      %s89 = smul.u32 64, %s12
      %p90 = scmp.lt.s32.totalorder %s89, 191
      %s91 = scalar_select %p90, %s89, 191
      %s92 = smul.addr %s91, 4
      %s93 = scalar_lea.vmem %s0, %s92
      %p94 = pneg %p33
      %p95 = pneg %p30
      %p96 = pneg %p54
      %p97 = pneg %p51
      %s98 = smul.u32 64, %s12
      %p99 = scmp.lt.s32.totalorder %s98, 191
      %s100 = scalar_select %p99, %s98, 191
      %s101 = smul.addr %s100, 4
      %s102 = scalar_lea.vmem %s0, %s101
      %s103 = smul.u32 64, %s12
      %p104 = scmp.eq.s32.totalorder %s12, 0
      // Predicated region
      $region25: #{generator_forward.23} parent=23 // pred_check
        %p105 = pneg %p104
      $region26: #{generator_forward.23} parent=23 // pred_check_branch
        %107 = sbr.rel (%p105) target = $region28
      $region27: #{generator_forward.23} parent=23 // pred_region
        %vm108 = vcmask 25600
        %109 = vst.msk [vmem:[%s1] sm:$0x3] %vm108, 0.0
      $region28: #{generator_forward.23} parent=23 // pred_fallthru
        _
      %v110 = vld [vmem:[%s102] sm:$0xf]
      %v111 = vld [vmem:[%s102 + $0x4] sm:$0xf]
      %v112 = vld [vmem:[%s102 + $0x8] sm:$0xf]
      %v113 = vld [vmem:[%s102 + $0xc] sm:$0xf]
      %v114 = vld [vmem:[%s102 + $0x10] sm:$0xf]
      %v115 = vld [vmem:[%s102 + $0x14] sm:$0xf]
      %v116 = vld [vmem:[%s102 + $0x18] sm:$0xf]
      %v117 = vld [vmem:[%s102 + $0x1c] sm:$0xf]
      %v118 = vld [vmem:[%s102 + $0x20] sm:$0xf]
      %v119 = vld [vmem:[%s102 + $0x24] sm:$0xf]
      %v120 = vld [vmem:[%s102 + $0x28] sm:$0xf]
      %v121 = vld [vmem:[%s102 + $0x2c] sm:$0xf]
      %v122 = vld [vmem:[%s102 + $0x30] sm:$0xf]
      %v123 = vld [vmem:[%s102 + $0x34] sm:$0xf]
      %v124 = vld [vmem:[%s102 + $0x38] sm:$0xf]
      %v125 = vld [vmem:[%s102 + $0x3c] sm:$0xf]
      %v126 = vld [vmem:[%s102 + $0x40] sm:$0xf]
      %v127 = vld [vmem:[%s102 + $0x44] sm:$0xf]
      %v128 = vld [vmem:[%s102 + $0x48] sm:$0xf]
      %v129 = vld [vmem:[%s102 + $0x4c] sm:$0xf]
      %v130 = vld [vmem:[%s102 + $0x50] sm:$0xf]
      %v131 = vld [vmem:[%s102 + $0x54] sm:$0xf]
      %v132 = vld [vmem:[%s102 + $0x58] sm:$0xf]
      %v133 = vld [vmem:[%s102 + $0x5c] sm:$0xf]
      %v134 = vld [vmem:[%s102 + $0x60] sm:$0xf]
      %v135 = vld [vmem:[%s102 + $0x64] sm:$0xf]
      %v136 = vld [vmem:[%s102 + $0x68] sm:$0xf]
      %v137 = vld [vmem:[%s102 + $0x6c] sm:$0xf]
      %v138 = vld [vmem:[%s102 + $0x70] sm:$0xf]
      %v139 = vld [vmem:[%s102 + $0x74] sm:$0xf]
      %v140 = vld [vmem:[%s102 + $0x78] sm:$0xf]
      %v141 = vld [vmem:[%s102 + $0x7c] sm:$0xf]
      %v142 = vld [vmem:[%s102 + $0x80] sm:$0xf]
      %v143 = vld [vmem:[%s102 + $0x84] sm:$0xf]
      %v144 = vld [vmem:[%s102 + $0x88] sm:$0xf]
      %v145 = vld [vmem:[%s102 + $0x8c] sm:$0xf]
      %v146 = vld [vmem:[%s102 + $0x90] sm:$0xf]
      %v147 = vld [vmem:[%s102 + $0x94] sm:$0xf]
      %v148 = vld [vmem:[%s102 + $0x98] sm:$0xf]
      %v149 = vld [vmem:[%s102 + $0x9c] sm:$0xf]
      %v150 = vld [vmem:[%s102 + $0xa0] sm:$0xf]
      %v151 = vld [vmem:[%s102 + $0xa4] sm:$0xf]
      %v152 = vld [vmem:[%s102 + $0xa8] sm:$0xf]
      %v153 = vld [vmem:[%s102 + $0xac] sm:$0xf]
      %v154 = vld [vmem:[%s102 + $0xb0] sm:$0xf]
      %v155 = vld [vmem:[%s102 + $0xb4] sm:$0xf]
      %v156 = vld [vmem:[%s102 + $0xb8] sm:$0xf]
      %v157 = vld [vmem:[%s102 + $0xbc] sm:$0xf]
      %v158 = vld [vmem:[%s102 + $0xc0] sm:$0xf]
      %v159 = vld [vmem:[%s102 + $0xc4] sm:$0xf]
      %v160 = vld [vmem:[%s102 + $0xc8] sm:$0xf]
      %v161 = vld [vmem:[%s102 + $0xcc] sm:$0xf]
      %v162 = vld [vmem:[%s102 + $0xd0] sm:$0xf]
      %v163 = vld [vmem:[%s102 + $0xd4] sm:$0xf]
      %v164 = vld [vmem:[%s102 + $0xd8] sm:$0xf]
      %v165 = vld [vmem:[%s102 + $0xdc] sm:$0xf]
      %v166 = vld [vmem:[%s102 + $0xe0] sm:$0xf]
      %v167 = vld [vmem:[%s102 + $0xe4] sm:$0xf]
      %v168 = vld [vmem:[%s102 + $0xe8] sm:$0xf]
      %v169 = vld [vmem:[%s102 + $0xec] sm:$0xf]
      %v170 = vld [vmem:[%s102 + $0xf0] sm:$0xf]
      %v171 = vld [vmem:[%s102 + $0xf4] sm:$0xf]
      %v172 = vld [vmem:[%s102 + $0xf8] sm:$0xf]
      %v173 = vld [vmem:[%s102 + $0xfc] sm:$0xf]
      %v174 = vunpack.c.l.bf16 %v110
      %v175 = vunpack.c.l.bf16 %v111
      %v176 = vunpack.c.l.bf16 %v112
      %v177 = vunpack.c.l.bf16 %v113
      %v178 = vunpack.c.l.bf16 %v114
      %v179 = vunpack.c.l.bf16 %v115
      %v180 = vunpack.c.l.bf16 %v116
      %v181 = vunpack.c.l.bf16 %v117
      %v182 = vunpack.c.l.bf16 %v118
      %v183 = vunpack.c.l.bf16 %v119
      %v184 = vunpack.c.l.bf16 %v120
      %v185 = vunpack.c.l.bf16 %v121
      %v186 = vunpack.c.l.bf16 %v122
      %v187 = vunpack.c.l.bf16 %v123
      %v188 = vunpack.c.l.bf16 %v124
      %v189 = vunpack.c.l.bf16 %v125
      %v190 = vunpack.c.l.bf16 %v126
      %v191 = vunpack.c.l.bf16 %v127
      %v192 = vunpack.c.l.bf16 %v128
      %v193 = vunpack.c.l.bf16 %v129
      %v194 = vunpack.c.l.bf16 %v130
      %v195 = vunpack.c.l.bf16 %v131
      %v196 = vunpack.c.l.bf16 %v132
      %v197 = vunpack.c.l.bf16 %v133
      %v198 = vunpack.c.l.bf16 %v134
      %v199 = vunpack.c.l.bf16 %v135
      %v200 = vunpack.c.l.bf16 %v136
      %v201 = vunpack.c.l.bf16 %v137
      %v202 = vunpack.c.l.bf16 %v138
      %v203 = vunpack.c.l.bf16 %v139
      %v204 = vunpack.c.l.bf16 %v140
      %v205 = vunpack.c.l.bf16 %v141
      %v206 = vunpack.c.l.bf16 %v142
      %v207 = vunpack.c.l.bf16 %v143
      %v208 = vunpack.c.l.bf16 %v144
      %v209 = vunpack.c.l.bf16 %v145
      %v210 = vunpack.c.l.bf16 %v146
      %v211 = vunpack.c.l.bf16 %v147
      %v212 = vunpack.c.l.bf16 %v148
      %v213 = vunpack.c.l.bf16 %v149
      %v214 = vunpack.c.l.bf16 %v150
      %v215 = vunpack.c.l.bf16 %v151
      %v216 = vunpack.c.l.bf16 %v152
      %v217 = vunpack.c.l.bf16 %v153
      %v218 = vunpack.c.l.bf16 %v154
      %v219 = vunpack.c.l.bf16 %v155
      %v220 = vunpack.c.l.bf16 %v156
      %v221 = vunpack.c.l.bf16 %v157
      %v222 = vunpack.c.l.bf16 %v158
      %v223 = vunpack.c.l.bf16 %v159
      %v224 = vunpack.c.l.bf16 %v160
      %v225 = vunpack.c.l.bf16 %v161
      %v226 = vunpack.c.l.bf16 %v162
      %v227 = vunpack.c.l.bf16 %v163
      %v228 = vunpack.c.l.bf16 %v164
      %v229 = vunpack.c.l.bf16 %v165
      %v230 = vunpack.c.l.bf16 %v166
      %v231 = vunpack.c.l.bf16 %v167
      %v232 = vunpack.c.l.bf16 %v168
      %v233 = vunpack.c.l.bf16 %v169
      %v234 = vunpack.c.l.bf16 %v170
      %v235 = vunpack.c.l.bf16 %v171
      %v236 = vunpack.c.l.bf16 %v172
      %v237 = vunpack.c.l.bf16 %v173
      %vm238 = vcmask 31744
      %v239 = vsel %vm238, %v174, 0.0
      %v240 = vsel %vm238, %v175, 0.0
      %v241 = vadd.f32 %v239, %v240
      %v242 = vsel %vm238, %v176, 0.0
      %v243 = vadd.f32 %v241, %v242
      %v244 = vsel %vm238, %v177, 0.0
      %v245 = vadd.f32 %v243, %v244
      %v246 = vsel %vm238, %v178, 0.0
      %v247 = vadd.f32 %v245, %v246
      %v248 = vsel %vm238, %v179, 0.0
      %v249 = vadd.f32 %v247, %v248
      %v250 = vsel %vm238, %v180, 0.0
      %v251 = vadd.f32 %v249, %v250
      %v252 = vsel %vm238, %v181, 0.0
      %v253 = vadd.f32 %v251, %v252
      %v254 = vsel %vm238, %v182, 0.0
      %v255 = vadd.f32 %v253, %v254
      %v256 = vsel %vm238, %v183, 0.0
      %v257 = vadd.f32 %v255, %v256
      %v258 = vsel %vm238, %v184, 0.0
      %v259 = vadd.f32 %v257, %v258
      %v260 = vsel %vm238, %v185, 0.0
      %v261 = vadd.f32 %v259, %v260
      %v262 = vsel %vm238, %v186, 0.0
      %v263 = vadd.f32 %v261, %v262
      %v264 = vsel %vm238, %v187, 0.0
      %v265 = vadd.f32 %v263, %v264
      %v266 = vsel %vm238, %v188, 0.0
      %v267 = vadd.f32 %v265, %v266
      %v268 = vsel %vm238, %v189, 0.0
      %v269 = vadd.f32 %v267, %v268
      %v270 = vsel %vm238, %v190, 0.0
      %v271 = vadd.f32 %v269, %v270
      %v272 = vsel %vm238, %v191, 0.0
      %v273 = vadd.f32 %v271, %v272
      %v274 = vsel %vm238, %v192, 0.0
      %v275 = vadd.f32 %v273, %v274
      %v276 = vsel %vm238, %v193, 0.0
      %v277 = vadd.f32 %v275, %v276
      %v278 = vsel %vm238, %v194, 0.0
      %v279 = vadd.f32 %v277, %v278
      %v280 = vsel %vm238, %v195, 0.0
      %v281 = vadd.f32 %v279, %v280
      %v282 = vsel %vm238, %v196, 0.0
      %v283 = vadd.f32 %v281, %v282
      %v284 = vsel %vm238, %v197, 0.0
      %v285 = vadd.f32 %v283, %v284
      %v286 = vsel %vm238, %v198, 0.0
      %v287 = vadd.f32 %v285, %v286
      %v288 = vsel %vm238, %v199, 0.0
      %v289 = vadd.f32 %v287, %v288
      %v290 = vsel %vm238, %v200, 0.0
      %v291 = vadd.f32 %v289, %v290
      %v292 = vsel %vm238, %v201, 0.0
      %v293 = vadd.f32 %v291, %v292
      %v294 = vsel %vm238, %v202, 0.0
      %v295 = vadd.f32 %v293, %v294
      %v296 = vsel %vm238, %v203, 0.0
      %v297 = vadd.f32 %v295, %v296
      %v298 = vsel %vm238, %v204, 0.0
      %v299 = vadd.f32 %v297, %v298
      %v300 = vsel %vm238, %v205, 0.0
      %v301 = vadd.f32 %v299, %v300
      %v302 = vsel %vm238, %v206, 0.0
      %v303 = vadd.f32 %v301, %v302
      %v304 = vsel %vm238, %v207, 0.0
      %v305 = vadd.f32 %v303, %v304
      %v306 = vsel %vm238, %v208, 0.0
      %v307 = vadd.f32 %v305, %v306
      %v308 = vsel %vm238, %v209, 0.0
      %v309 = vadd.f32 %v307, %v308
      %v310 = vsel %vm238, %v210, 0.0
      %v311 = vadd.f32 %v309, %v310
      %v312 = vsel %vm238, %v211, 0.0
      %v313 = vadd.f32 %v311, %v312
      %v314 = vsel %vm238, %v212, 0.0
      %v315 = vadd.f32 %v313, %v314
      %v316 = vsel %vm238, %v213, 0.0
      %v317 = vadd.f32 %v315, %v316
      %v318 = vsel %vm238, %v214, 0.0
      %v319 = vadd.f32 %v317, %v318
      %v320 = vsel %vm238, %v215, 0.0
      %v321 = vadd.f32 %v319, %v320
      %v322 = vsel %vm238, %v216, 0.0
      %v323 = vadd.f32 %v321, %v322
      %v324 = vsel %vm238, %v217, 0.0
      %v325 = vadd.f32 %v323, %v324
      %v326 = vsel %vm238, %v218, 0.0
      %v327 = vadd.f32 %v325, %v326
      %v328 = vsel %vm238, %v219, 0.0
      %v329 = vadd.f32 %v327, %v328
      %v330 = vsel %vm238, %v220, 0.0
      %v331 = vadd.f32 %v329, %v330
      %v332 = vsel %vm238, %v221, 0.0
      %v333 = vadd.f32 %v331, %v332
      %v334 = vsel %vm238, %v222, 0.0
      %v335 = vadd.f32 %v333, %v334
      %v336 = vsel %vm238, %v223, 0.0
      %v337 = vadd.f32 %v335, %v336
      %v338 = vsel %vm238, %v224, 0.0
      %v339 = vadd.f32 %v337, %v338
      %v340 = vsel %vm238, %v225, 0.0
      %v341 = vadd.f32 %v339, %v340
      %v342 = vsel %vm238, %v226, 0.0
      %v343 = vadd.f32 %v341, %v342
      %v344 = vsel %vm238, %v227, 0.0
      %v345 = vadd.f32 %v343, %v344
      %v346 = vsel %vm238, %v228, 0.0
      %v347 = vadd.f32 %v345, %v346
      %v348 = vsel %vm238, %v229, 0.0
      %v349 = vadd.f32 %v347, %v348
      %v350 = vsel %vm238, %v230, 0.0
      %v351 = vadd.f32 %v349, %v350
      %v352 = vsel %vm238, %v231, 0.0
      %v353 = vadd.f32 %v351, %v352
      %v354 = vsel %vm238, %v232, 0.0
      %v355 = vadd.f32 %v353, %v354
      %v356 = vsel %vm238, %v233, 0.0
      %v357 = vadd.f32 %v355, %v356
      %v358 = vsel %vm238, %v234, 0.0
      %v359 = vadd.f32 %v357, %v358
      %v360 = vsel %vm238, %v235, 0.0
      %v361 = vadd.f32 %v359, %v360
      %v362 = vsel %vm238, %v236, 0.0
      %v363 = vadd.f32 %v361, %v362
      %v364 = vsel %vm238, %v237, 0.0
      %v365 = vadd.f32 %v363, %v364
      %v366 = vrot.slane %v365, 4
      %v367 = vadd.f32 %v365, %v366
      %v368 = vrot.slane %v367, 2
      %v369 = vadd.f32 %v367, %v368
      %v370 = vrot.slane %v369, 1
      %v371 = vadd.f32 %v369, %v370
      %v372 = vmul.f32 %v174, %v174
      %v373 = vmul.f32 %v175, %v175
      %v374 = vmul.f32 %v176, %v176
      %v375 = vmul.f32 %v177, %v177
      %v376 = vmul.f32 %v178, %v178
      %v377 = vmul.f32 %v179, %v179
      %v378 = vmul.f32 %v180, %v180
      %v379 = vmul.f32 %v181, %v181
      %v380 = vmul.f32 %v182, %v182
      %v381 = vmul.f32 %v183, %v183
      %v382 = vmul.f32 %v184, %v184
      %v383 = vmul.f32 %v185, %v185
      %v384 = vmul.f32 %v186, %v186
      %v385 = vmul.f32 %v187, %v187
      %v386 = vmul.f32 %v188, %v188
      %v387 = vmul.f32 %v189, %v189
      %v388 = vmul.f32 %v190, %v190
      %v389 = vmul.f32 %v191, %v191
      %v390 = vmul.f32 %v192, %v192
      %v391 = vmul.f32 %v193, %v193
      %v392 = vmul.f32 %v194, %v194
      %v393 = vmul.f32 %v195, %v195
      %v394 = vmul.f32 %v196, %v196
      %v395 = vmul.f32 %v197, %v197
      %v396 = vmul.f32 %v198, %v198
      %v397 = vmul.f32 %v199, %v199
      %v398 = vmul.f32 %v200, %v200
      %v399 = vmul.f32 %v201, %v201
      %v400 = vmul.f32 %v202, %v202
      %v401 = vmul.f32 %v203, %v203
      %v402 = vmul.f32 %v204, %v204
      %v403 = vmul.f32 %v205, %v205
      %v404 = vmul.f32 %v206, %v206
      %v405 = vmul.f32 %v207, %v207
      %v406 = vmul.f32 %v208, %v208
      %v407 = vmul.f32 %v209, %v209
      %v408 = vmul.f32 %v210, %v210
      %v409 = vmul.f32 %v211, %v211
      %v410 = vmul.f32 %v212, %v212
      %v411 = vmul.f32 %v213, %v213
      %v412 = vmul.f32 %v214, %v214
      %v413 = vmul.f32 %v215, %v215
      %v414 = vmul.f32 %v216, %v216
      %v415 = vmul.f32 %v217, %v217
      %v416 = vmul.f32 %v218, %v218
      %v417 = vmul.f32 %v219, %v219
      %v418 = vmul.f32 %v220, %v220
      %v419 = vmul.f32 %v221, %v221
      %v420 = vmul.f32 %v222, %v222
      %v421 = vmul.f32 %v223, %v223
      %v422 = vmul.f32 %v224, %v224
      %v423 = vmul.f32 %v225, %v225
      %v424 = vmul.f32 %v226, %v226
      %v425 = vmul.f32 %v227, %v227
      %v426 = vmul.f32 %v228, %v228
      %v427 = vmul.f32 %v229, %v229
      %v428 = vmul.f32 %v230, %v230
      %v429 = vmul.f32 %v231, %v231
      %v430 = vmul.f32 %v232, %v232
      %v431 = vmul.f32 %v233, %v233
      %v432 = vmul.f32 %v234, %v234
      %v433 = vmul.f32 %v235, %v235
      %v434 = vmul.f32 %v236, %v236
      %v435 = vmul.f32 %v237, %v237
      %v436 = vsel %vm238, %v372, 0.0
      %v437 = vsel %vm238, %v373, 0.0
      %v438 = vadd.f32 %v436, %v437
      %v439 = vsel %vm238, %v374, 0.0
      %v440 = vadd.f32 %v438, %v439
      %v441 = vsel %vm238, %v375, 0.0
      %v442 = vadd.f32 %v440, %v441
      %v443 = vsel %vm238, %v376, 0.0
      %v444 = vadd.f32 %v442, %v443
      %v445 = vsel %vm238, %v377, 0.0
      %v446 = vadd.f32 %v444, %v445
      %v447 = vsel %vm238, %v378, 0.0
      %v448 = vadd.f32 %v446, %v447
      %v449 = vsel %vm238, %v379, 0.0
      %v450 = vadd.f32 %v448, %v449
      %v451 = vsel %vm238, %v380, 0.0
      %v452 = vadd.f32 %v450, %v451
      %v453 = vsel %vm238, %v381, 0.0
      %v454 = vadd.f32 %v452, %v453
      %v455 = vsel %vm238, %v382, 0.0
      %v456 = vadd.f32 %v454, %v455
      %v457 = vsel %vm238, %v383, 0.0
      %v458 = vadd.f32 %v456, %v457
      %v459 = vsel %vm238, %v384, 0.0
      %v460 = vadd.f32 %v458, %v459
      %v461 = vsel %vm238, %v385, 0.0
      %v462 = vadd.f32 %v460, %v461
      %v463 = vsel %vm238, %v386, 0.0
      %v464 = vadd.f32 %v462, %v463
      %v465 = vsel %vm238, %v387, 0.0
      %v466 = vadd.f32 %v464, %v465
      %v467 = vsel %vm238, %v388, 0.0
      %v468 = vadd.f32 %v466, %v467
      %v469 = vsel %vm238, %v389, 0.0
      %v470 = vadd.f32 %v468, %v469
      %v471 = vsel %vm238, %v390, 0.0
      %v472 = vadd.f32 %v470, %v471
      %v473 = vsel %vm238, %v391, 0.0
      %v474 = vadd.f32 %v472, %v473
      %v475 = vsel %vm238, %v392, 0.0
      %v476 = vadd.f32 %v474, %v475
      %v477 = vsel %vm238, %v393, 0.0
      %v478 = vadd.f32 %v476, %v477
      %v479 = vsel %vm238, %v394, 0.0
      %v480 = vadd.f32 %v478, %v479
      %v481 = vsel %vm238, %v395, 0.0
      %v482 = vadd.f32 %v480, %v481
      %v483 = vsel %vm238, %v396, 0.0
      %v484 = vadd.f32 %v482, %v483
      %v485 = vsel %vm238, %v397, 0.0
      %v486 = vadd.f32 %v484, %v485
      %v487 = vsel %vm238, %v398, 0.0
      %v488 = vadd.f32 %v486, %v487
      %v489 = vsel %vm238, %v399, 0.0
      %v490 = vadd.f32 %v488, %v489
      %v491 = vsel %vm238, %v400, 0.0
      %v492 = vadd.f32 %v490, %v491
      %v493 = vsel %vm238, %v401, 0.0
      %v494 = vadd.f32 %v492, %v493
      %v495 = vsel %vm238, %v402, 0.0
      %v496 = vadd.f32 %v494, %v495
      %v497 = vsel %vm238, %v403, 0.0
      %v498 = vadd.f32 %v496, %v497
      %v499 = vsel %vm238, %v404, 0.0
      %v500 = vadd.f32 %v498, %v499
      %v501 = vsel %vm238, %v405, 0.0
      %v502 = vadd.f32 %v500, %v501
      %v503 = vsel %vm238, %v406, 0.0
      %v504 = vadd.f32 %v502, %v503
      %v505 = vsel %vm238, %v407, 0.0
      %v506 = vadd.f32 %v504, %v505
      %v507 = vsel %vm238, %v408, 0.0
      %v508 = vadd.f32 %v506, %v507
      %v509 = vsel %vm238, %v409, 0.0
      %v510 = vadd.f32 %v508, %v509
      %v511 = vsel %vm238, %v410, 0.0
      %v512 = vadd.f32 %v510, %v511
      %v513 = vsel %vm238, %v411, 0.0
      %v514 = vadd.f32 %v512, %v513
      %v515 = vsel %vm238, %v412, 0.0
      %v516 = vadd.f32 %v514, %v515
      %v517 = vsel %vm238, %v413, 0.0
      %v518 = vadd.f32 %v516, %v517
      %v519 = vsel %vm238, %v414, 0.0
      %v520 = vadd.f32 %v518, %v519
      %v521 = vsel %vm238, %v415, 0.0
      %v522 = vadd.f32 %v520, %v521
      %v523 = vsel %vm238, %v416, 0.0
      %v524 = vadd.f32 %v522, %v523
      %v525 = vsel %vm238, %v417, 0.0
      %v526 = vadd.f32 %v524, %v525
      %v527 = vsel %vm238, %v418, 0.0
      %v528 = vadd.f32 %v526, %v527
      %v529 = vsel %vm238, %v419, 0.0
      %v530 = vadd.f32 %v528, %v529
      %v531 = vsel %vm238, %v420, 0.0
      %v532 = vadd.f32 %v530, %v531
      %v533 = vsel %vm238, %v421, 0.0
      %v534 = vadd.f32 %v532, %v533
      %v535 = vsel %vm238, %v422, 0.0
      %v536 = vadd.f32 %v534, %v535
      %v537 = vsel %vm238, %v423, 0.0
      %v538 = vadd.f32 %v536, %v537
      %v539 = vsel %vm238, %v424, 0.0
      %v540 = vadd.f32 %v538, %v539
      %v541 = vsel %vm238, %v425, 0.0
      %v542 = vadd.f32 %v540, %v541
      %v543 = vsel %vm238, %v426, 0.0
      %v544 = vadd.f32 %v542, %v543
      %v545 = vsel %vm238, %v427, 0.0
      %v546 = vadd.f32 %v544, %v545
      %v547 = vsel %vm238, %v428, 0.0
      %v548 = vadd.f32 %v546, %v547
      %v549 = vsel %vm238, %v429, 0.0
      %v550 = vadd.f32 %v548, %v549
      %v551 = vsel %vm238, %v430, 0.0
      %v552 = vadd.f32 %v550, %v551
      %v553 = vsel %vm238, %v431, 0.0
      %v554 = vadd.f32 %v552, %v553
      %v555 = vsel %vm238, %v432, 0.0
      %v556 = vadd.f32 %v554, %v555
      %v557 = vsel %vm238, %v433, 0.0
      %v558 = vadd.f32 %v556, %v557
      %v559 = vsel %vm238, %v434, 0.0
      %v560 = vadd.f32 %v558, %v559
      %v561 = vsel %vm238, %v435, 0.0
      %v562 = vadd.f32 %v560, %v561
      %v563 = vrot.slane %v562, 4
      %v564 = vadd.f32 %v562, %v563
      %v565 = vrot.slane %v564, 2
      %v566 = vadd.f32 %v564, %v565
      %v567 = vrot.slane %v566, 1
      %v568 = vadd.f32 %v566, %v567
      %vm569 = vcmask 1040384
      %v570 = vsel %vm569, %v371, %v568
      %v571 = vld [vmem:[%s1] sm:$0x3]
      %v572 = vadd.f32 %v571, %v570
      %vm573 = vcmask 25600
      %574 = vst.msk [vmem:[%s1] sm:$0x3] %vm573, %v572
      // Predicated region
      $region29: #{generator_forward.23} parent=23 // pred_check
        %p575 = pneg %p51
      $region30: #{generator_forward.23} parent=23 // pred_check_branch
        %577 = sbr.rel (%p575) target = $region32
      $region31: #{generator_forward.23} parent=23 // pred_region
        _
      $region32: #{generator_forward.23} parent=23 // pred_fallthru
        _
      // Predicated region
      $region33: #{generator_forward.23} parent=23 // pred_check
        %p578 = pneg %p51
      $region34: #{generator_forward.23} parent=23 // pred_check_branch
        %580 = sbr.rel (%p578) target = $region36
      $region35: #{generator_forward.23} parent=23 // pred_region
        _
      $region36: #{generator_forward.23} parent=23 // pred_fallthru
        _
    $region24: #{generator_forward.23} parent=5 // pred_fallthru
      _
    %p581 = scmp.le.s32.totalorder 2, %s7
    // Predicated region
    $region37: #{generator_forward.23} parent=5 // pred_check
      %p582 = pneg %p581
    $region38: #{generator_forward.23} parent=5 // pred_check_branch
      %584 = sbr.rel (%p582) target = $region40
    $region39: #{generator_forward.23} parent=5 // pred_region
      %s585 = ssub.s32 %s7, 2
    $region40: #{generator_forward.23} parent=5 // pred_fallthru
      _
  $region6: #{generator_forward.23} parent=0 // loop_footer
    %s11 = sadd.s32 1, %s7
  $region7: #{generator_forward.23} parent=0 // loop_footer_branch
    %6 = sbr.rel target = $region3
  $region8: #{generator_forward.23} parent=0 // loop_exit
    _

// kernel: generator_forward.24
$region0: #{generator_forward.24}
  #allocation0 [shape = 'u32[]', space=smem, size = 0x4, offset = 0x4, fixed_abs, tag = 'smem constant byte address 0x4 - core index']
  #allocation1 [shape = 'u32[144,128]{1,0:T(1,128)}', space=vmem, size = 0x12000, scoped, tag = 'internal scratch']
  %s0 = inlined_call_operand.vmem [shape: bf16[1536,4], index: 0, kind: input, shape index: {}]
  %s1 = inlined_call_operand.vmem [shape: f32[2,4], index: 1, kind: input, shape index: {}]
  %s2 = inlined_call_operand.vmem [shape: f32[1,4], index: 2, kind: input, shape index: {}]
  %s3 = inlined_call_operand.vmem [shape: f32[1,4], index: 3, kind: input, shape index: {}]
  %s4 = inlined_call_operand.vmem [shape: bf16[1536,4], index: 4, kind: output, shape index: {}]
  %s5 = sld [smem:[#allocation0]]
  $region49: #{generator_forward.24} parent=0
    _
  %s7 = ssub.s32 1, %s5
  %s8 = scalar_select 0, %s7, %s5
  loop: start=0, step=1, limit=5
  $region2: #{generator_forward.24} parent=0 // loop_pre_header
    _
  $region3: #{generator_forward.24} parent=0 // loop_header
    %s10 = sphi 0, %s14
    %p11 = scmp.ge.s32.totalorder %s10, 5
    %s20 = sphi 0, %s22
    %s23 = sphi 0, %s20
    %s24 = sphi 0, %s23
    %s40 = sphi 0, %s24
    %s44 = sphi 0, %s44
    %s46 = sphi 0, %s44
    %s47 = sphi 0, %s46
    %s61 = sphi 0, %s47
    %s65 = sphi 0, %s65
    %s67 = sphi 0, %s65
    %s68 = sphi 0, %s67
    %s82 = sphi 0, %s68
    %s86 = sphi 0, %s86
    %s88 = sphi 0, %s86
    %s89 = sphi 0, %s88
    %s103 = sphi 0, %s89
    %s109 = sphi 0, %s111
    %s112 = sphi 0, %s109
    %s113 = sphi 0, %s112
    %s129 = sphi 0, %s113
  $region4: #{generator_forward.24} parent=0 // loop_header_branch
    %13 = sbr.rel (%p11) target = $region8
  $region5: #{generator_forward.24} parent=0 // loop_body
    %s15 = ssub.s32 %s10, 1
    %s16 = ssub.s32 %s10, 2
    %s17 = sadd.s32 %s10, 1
    %s18 = ssub.s32 %s10, %s17
    %p19 = scmp.eq.s32.totalorder %s18, 0
    %s21 = sadd.s32 %s20, 1
    %s22 = scalar_select %p19, %s20, %s21
    %p25 = pneg %p19
    %p26 = scmp.eq.s32.totalorder %s10, 2
    %p27 = por %p25, %p26
    %p28 = scmp.ne.s32.totalorder %s20, %s23
    %p29 = scmp.eq.s32.totalorder %s10, 0
    %p30 = por %p28, %p29
    %p31 = scmp.ne.s32.totalorder %s20, %s23
    %p32 = scmp.eq.s32.totalorder %s15, 2
    %p33 = por %p31, %p32
    %p34 = scmp.ne.s32.totalorder %s23, %s24
    %p35 = scmp.eq.s32.totalorder %s15, 0
    %p36 = por %p34, %p35
    %p37 = scmp.ne.s32.totalorder %s23, %s24
    %p38 = scmp.eq.s32.totalorder %s16, 2
    %p39 = por %p37, %p38
    %p41 = scmp.ne.s32.totalorder %s24, %s40
    %p42 = scmp.eq.s32.totalorder %s16, 0
    %p43 = por %p41, %p42
    %s45 = sadd.s32 %s44, 1
    %p48 = scmp.eq.s32.totalorder %s10, 2
    %p49 = scmp.ne.s32.totalorder %s44, %s46
    %p50 = scmp.eq.s32.totalorder %s10, 0
    %p51 = por %p49, %p50
    %p52 = scmp.ne.s32.totalorder %s44, %s46
    %p53 = scmp.eq.s32.totalorder %s15, 2
    %p54 = por %p52, %p53
    %p55 = scmp.ne.s32.totalorder %s46, %s47
    %p56 = scmp.eq.s32.totalorder %s15, 0
    %p57 = por %p55, %p56
    %p58 = scmp.ne.s32.totalorder %s46, %s47
    %p59 = scmp.eq.s32.totalorder %s16, 2
    %p60 = por %p58, %p59
    %p62 = scmp.ne.s32.totalorder %s47, %s61
    %p63 = scmp.eq.s32.totalorder %s16, 0
    %p64 = por %p62, %p63
    %s66 = sadd.s32 %s65, 1
    %p69 = scmp.eq.s32.totalorder %s10, 2
    %p70 = scmp.ne.s32.totalorder %s65, %s67
    %p71 = scmp.eq.s32.totalorder %s10, 0
    %p72 = por %p70, %p71
    %p73 = scmp.ne.s32.totalorder %s65, %s67
    %p74 = scmp.eq.s32.totalorder %s15, 2
    %p75 = por %p73, %p74
    %p76 = scmp.ne.s32.totalorder %s67, %s68
    %p77 = scmp.eq.s32.totalorder %s15, 0
    %p78 = por %p76, %p77
    %p79 = scmp.ne.s32.totalorder %s67, %s68
    %p80 = scmp.eq.s32.totalorder %s16, 2
    %p81 = por %p79, %p80
    %p83 = scmp.ne.s32.totalorder %s68, %s82
    %p84 = scmp.eq.s32.totalorder %s16, 0
    %p85 = por %p83, %p84
    %s87 = sadd.s32 %s86, 1
    %p90 = scmp.eq.s32.totalorder %s10, 2
    %p91 = scmp.ne.s32.totalorder %s86, %s88
    %p92 = scmp.eq.s32.totalorder %s10, 0
    %p93 = por %p91, %p92
    %p94 = scmp.ne.s32.totalorder %s86, %s88
    %p95 = scmp.eq.s32.totalorder %s15, 2
    %p96 = por %p94, %p95
    %p97 = scmp.ne.s32.totalorder %s88, %s89
    %p98 = scmp.eq.s32.totalorder %s15, 0
    %p99 = por %p97, %p98
    %p100 = scmp.ne.s32.totalorder %s88, %s89
    %p101 = scmp.eq.s32.totalorder %s16, 2
    %p102 = por %p100, %p101
    %p104 = scmp.ne.s32.totalorder %s89, %s103
    %p105 = scmp.eq.s32.totalorder %s16, 0
    %p106 = por %p104, %p105
    %s107 = ssub.s32 %s10, %s17
    %p108 = scmp.eq.s32.totalorder %s107, 0
    %s110 = sadd.s32 %s109, 1
    %s111 = scalar_select %p108, %s109, %s110
    %p114 = pneg %p108
    %p115 = scmp.eq.s32.totalorder %s10, 2
    %p116 = por %p114, %p115
    %p117 = scmp.ne.s32.totalorder %s109, %s112
    %p118 = scmp.eq.s32.totalorder %s10, 0
    %p119 = por %p117, %p118
    %p120 = scmp.ne.s32.totalorder %s109, %s112
    %p121 = scmp.eq.s32.totalorder %s15, 2
    %p122 = por %p120, %p121
    %p123 = scmp.ne.s32.totalorder %s112, %s113
    %p124 = scmp.eq.s32.totalorder %s15, 0
    %p125 = por %p123, %p124
    %p126 = scmp.ne.s32.totalorder %s112, %s113
    %p127 = scmp.eq.s32.totalorder %s16, 2
    %p128 = por %p126, %p127
    %p130 = scmp.ne.s32.totalorder %s113, %s129
    %p131 = scmp.eq.s32.totalorder %s16, 0
    %p132 = por %p130, %p131
    %p133 = scmp.le.s32.totalorder 1, %s10
    %p134 = scmp.lt.s32.totalorder %s10, 4
    %p135 = pnand %p133, %p134
    %p136 = pneg %p135
    // Predicated region
    $region9: #{generator_forward.24} parent=5 // pred_check
      _
    $region10: #{generator_forward.24} parent=5 // pred_check_branch
      %138 = sbr.rel (%p135) target = $region12
    $region11: #{generator_forward.24} parent=5 // pred_region
      %s139 = ssub.s32 %s10, 1
      // Predicated region
      $region13: #{generator_forward.24} parent=11 // pred_check
        %p140 = pneg %p57
      $region14: #{generator_forward.24} parent=11 // pred_check_branch
        %142 = sbr.rel (%p140) target = $region16
      $region15: #{generator_forward.24} parent=11 // pred_region
        _
      $region16: #{generator_forward.24} parent=11 // pred_fallthru
        _
      // Predicated region
      $region17: #{generator_forward.24} parent=11 // pred_check
        %p143 = pneg %p78
      $region18: #{generator_forward.24} parent=11 // pred_check_branch
        %145 = sbr.rel (%p143) target = $region20
      $region19: #{generator_forward.24} parent=11 // pred_region
        _
      $region20: #{generator_forward.24} parent=11 // pred_fallthru
        _
      // Predicated region
      $region21: #{generator_forward.24} parent=11 // pred_check
        %p146 = pneg %p99
      $region22: #{generator_forward.24} parent=11 // pred_check_branch
        %148 = sbr.rel (%p146) target = $region24
      $region23: #{generator_forward.24} parent=11 // pred_region
        _
      $region24: #{generator_forward.24} parent=11 // pred_fallthru
        _
    $region12: #{generator_forward.24} parent=5 // pred_fallthru
      _
    %p149 = scmp.lt.s32.totalorder %s10, 3
    // Predicated region
    $region25: #{generator_forward.24} parent=5 // pred_check
      %p150 = pneg %p149
    $region26: #{generator_forward.24} parent=5 // pred_check_branch
      %152 = sbr.rel (%p150) target = $region28
    $region27: #{generator_forward.24} parent=5 // pred_region
      // Predicated region
      $region29: #{generator_forward.24} parent=27 // pred_check
        %p153 = pneg %p30
      $region30: #{generator_forward.24} parent=27 // pred_check_branch
        %155 = sbr.rel (%p153) target = $region32
      $region31: #{generator_forward.24} parent=27 // pred_region
        %s156 = smul.u32 64, %s10
        %p157 = scmp.lt.s32.totalorder %s156, 191
        %s158 = scalar_select %p157, %s156, 191
        %s159 = smul.addr %s158, 4
        %s160 = scalar_lea.vmem %s0, %s159
        %s161 = smul.u32 64, %s10
      $region32: #{generator_forward.24} parent=27 // pred_fallthru
        _
    $region28: #{generator_forward.24} parent=5 // pred_fallthru
      _
    %p162 = scmp.le.s32.totalorder 1, %s10
    %p163 = scmp.lt.s32.totalorder %s10, 4
    %p164 = pnand %p162, %p163
    %p165 = pneg %p164
    // Predicated region
    $region33: #{generator_forward.24} parent=5 // pred_check
      _
    $region34: #{generator_forward.24} parent=5 // pred_check_branch
      %167 = sbr.rel (%p164) target = $region36
    $region35: #{generator_forward.24} parent=5 // pred_region
      %s168 = ssub.s32 %s10, 1
      %s169 = smul.u32 64, %s15
      %p170 = scmp.lt.s32.totalorder %s169, 191
      %s171 = scalar_select %p170, %s169, 191
      %s172 = smul.addr %s171, 4
      %s173 = scalar_lea.vmem %s0, %s172
      %p174 = pneg %p36
      %p175 = pneg %p33
      %p176 = pneg %p57
      %p177 = pneg %p54
      %p178 = pneg %p78
      %p179 = pneg %p75
      %p180 = pneg %p99
      %p181 = pneg %p96
      %p182 = pneg %p125
      %p183 = pneg %p122
      %s184 = smul.u32 64, %s15
      %p185 = scmp.lt.s32.totalorder %s184, 191
      %s186 = scalar_select %p185, %s184, 191
      %s187 = smul.addr %s186, 4
      %s188 = scalar_lea.vmem %s4, %s187
      %s189 = smul.u32 64, %s15
      %p190 = scmp.lt.s32.totalorder %s189, 191
      %s191 = scalar_select %p190, %s189, 191
      %s192 = smul.addr %s191, 4
      %s193 = scalar_lea.vmem %s0, %s192
      %s194 = smul.u32 64, %s15
      %s195 = smul.u32 64, %s15
      %p196 = scmp.lt.s32.totalorder %s195, 191
      %s197 = scalar_select %p196, %s195, 191
      %s198 = smul.addr %s197, 4
      %s199 = scalar_lea.vmem %s4, %s198
      %s200 = smul.u32 64, %s15
      %v201 = vld [vmem:[%s193] sm:$0xf]
      %v202 = vld [vmem:[%s193 + $0x4] sm:$0xf]
      %v203 = vld [vmem:[%s193 + $0x8] sm:$0xf]
      %v204 = vld [vmem:[%s193 + $0xc] sm:$0xf]
      %v205 = vld [vmem:[%s193 + $0x10] sm:$0xf]
      %v206 = vld [vmem:[%s193 + $0x14] sm:$0xf]
      %v207 = vld [vmem:[%s193 + $0x18] sm:$0xf]
      %v208 = vld [vmem:[%s193 + $0x1c] sm:$0xf]
      %v209 = vld [vmem:[%s193 + $0x20] sm:$0xf]
      %v210 = vld [vmem:[%s193 + $0x24] sm:$0xf]
      %v211 = vld [vmem:[%s193 + $0x28] sm:$0xf]
      %v212 = vld [vmem:[%s193 + $0x2c] sm:$0xf]
      %v213 = vld [vmem:[%s193 + $0x30] sm:$0xf]
      %v214 = vld [vmem:[%s193 + $0x34] sm:$0xf]
      %v215 = vld [vmem:[%s193 + $0x38] sm:$0xf]
      %v216 = vld [vmem:[%s193 + $0x3c] sm:$0xf]
      %v217 = vld [vmem:[%s193 + $0x40] sm:$0xf]
      %v218 = vld [vmem:[%s193 + $0x44] sm:$0xf]
      %v219 = vld [vmem:[%s193 + $0x48] sm:$0xf]
      %v220 = vld [vmem:[%s193 + $0x4c] sm:$0xf]
      %v221 = vld [vmem:[%s193 + $0x50] sm:$0xf]
      %v222 = vld [vmem:[%s193 + $0x54] sm:$0xf]
      %v223 = vld [vmem:[%s193 + $0x58] sm:$0xf]
      %v224 = vld [vmem:[%s193 + $0x5c] sm:$0xf]
      %v225 = vld [vmem:[%s193 + $0x60] sm:$0xf]
      %v226 = vld [vmem:[%s193 + $0x64] sm:$0xf]
      %v227 = vld [vmem:[%s193 + $0x68] sm:$0xf]
      %v228 = vld [vmem:[%s193 + $0x6c] sm:$0xf]
      %v229 = vld [vmem:[%s193 + $0x70] sm:$0xf]
      %v230 = vld [vmem:[%s193 + $0x74] sm:$0xf]
      %v231 = vld [vmem:[%s193 + $0x78] sm:$0xf]
      %v232 = vld [vmem:[%s193 + $0x7c] sm:$0xf]
      %v233 = vld [vmem:[%s193 + $0x80] sm:$0xf]
      %v234 = vld [vmem:[%s193 + $0x84] sm:$0xf]
      %v235 = vld [vmem:[%s193 + $0x88] sm:$0xf]
      %v236 = vld [vmem:[%s193 + $0x8c] sm:$0xf]
      %v237 = vld [vmem:[%s193 + $0x90] sm:$0xf]
      %v238 = vld [vmem:[%s193 + $0x94] sm:$0xf]
      %v239 = vld [vmem:[%s193 + $0x98] sm:$0xf]
      %v240 = vld [vmem:[%s193 + $0x9c] sm:$0xf]
      %v241 = vld [vmem:[%s193 + $0xa0] sm:$0xf]
      %v242 = vld [vmem:[%s193 + $0xa4] sm:$0xf]
      %v243 = vld [vmem:[%s193 + $0xa8] sm:$0xf]
      %v244 = vld [vmem:[%s193 + $0xac] sm:$0xf]
      %v245 = vld [vmem:[%s193 + $0xb0] sm:$0xf]
      %v246 = vld [vmem:[%s193 + $0xb4] sm:$0xf]
      %v247 = vld [vmem:[%s193 + $0xb8] sm:$0xf]
      %v248 = vld [vmem:[%s193 + $0xbc] sm:$0xf]
      %v249 = vld [vmem:[%s193 + $0xc0] sm:$0xf]
      %v250 = vld [vmem:[%s193 + $0xc4] sm:$0xf]
      %v251 = vld [vmem:[%s193 + $0xc8] sm:$0xf]
      %v252 = vld [vmem:[%s193 + $0xcc] sm:$0xf]
      %v253 = vld [vmem:[%s193 + $0xd0] sm:$0xf]
      %v254 = vld [vmem:[%s193 + $0xd4] sm:$0xf]
      %v255 = vld [vmem:[%s193 + $0xd8] sm:$0xf]
      %v256 = vld [vmem:[%s193 + $0xdc] sm:$0xf]
      %v257 = vld [vmem:[%s193 + $0xe0] sm:$0xf]
      %v258 = vld [vmem:[%s193 + $0xe4] sm:$0xf]
      %v259 = vld [vmem:[%s193 + $0xe8] sm:$0xf]
      %v260 = vld [vmem:[%s193 + $0xec] sm:$0xf]
      %v261 = vld [vmem:[%s193 + $0xf0] sm:$0xf]
      %v262 = vld [vmem:[%s193 + $0xf4] sm:$0xf]
      %v263 = vld [vmem:[%s193 + $0xf8] sm:$0xf]
      %v264 = vld [vmem:[%s193 + $0xfc] sm:$0xf]
      %v265 = vunpack.c.l.bf16 %v201
      %v266 = vunpack.c.l.bf16 %v202
      %v267 = vunpack.c.l.bf16 %v203
      %v268 = vunpack.c.l.bf16 %v204
      %v269 = vunpack.c.l.bf16 %v205
      %v270 = vunpack.c.l.bf16 %v206
      %v271 = vunpack.c.l.bf16 %v207
      %v272 = vunpack.c.l.bf16 %v208
      %v273 = vunpack.c.l.bf16 %v209
      %v274 = vunpack.c.l.bf16 %v210
      %v275 = vunpack.c.l.bf16 %v211
      %v276 = vunpack.c.l.bf16 %v212
      %v277 = vunpack.c.l.bf16 %v213
      %v278 = vunpack.c.l.bf16 %v214
      %v279 = vunpack.c.l.bf16 %v215
      %v280 = vunpack.c.l.bf16 %v216
      %v281 = vunpack.c.l.bf16 %v217
      %v282 = vunpack.c.l.bf16 %v218
      %v283 = vunpack.c.l.bf16 %v219
      %v284 = vunpack.c.l.bf16 %v220
      %v285 = vunpack.c.l.bf16 %v221
      %v286 = vunpack.c.l.bf16 %v222
      %v287 = vunpack.c.l.bf16 %v223
      %v288 = vunpack.c.l.bf16 %v224
      %v289 = vunpack.c.l.bf16 %v225
      %v290 = vunpack.c.l.bf16 %v226
      %v291 = vunpack.c.l.bf16 %v227
      %v292 = vunpack.c.l.bf16 %v228
      %v293 = vunpack.c.l.bf16 %v229
      %v294 = vunpack.c.l.bf16 %v230
      %v295 = vunpack.c.l.bf16 %v231
      %v296 = vunpack.c.l.bf16 %v232
      %v297 = vunpack.c.l.bf16 %v233
      %v298 = vunpack.c.l.bf16 %v234
      %v299 = vunpack.c.l.bf16 %v235
      %v300 = vunpack.c.l.bf16 %v236
      %v301 = vunpack.c.l.bf16 %v237
      %v302 = vunpack.c.l.bf16 %v238
      %v303 = vunpack.c.l.bf16 %v239
      %v304 = vunpack.c.l.bf16 %v240
      %v305 = vunpack.c.l.bf16 %v241
      %v306 = vunpack.c.l.bf16 %v242
      %v307 = vunpack.c.l.bf16 %v243
      %v308 = vunpack.c.l.bf16 %v244
      %v309 = vunpack.c.l.bf16 %v245
      %v310 = vunpack.c.l.bf16 %v246
      %v311 = vunpack.c.l.bf16 %v247
      %v312 = vunpack.c.l.bf16 %v248
      %v313 = vunpack.c.l.bf16 %v249
      %v314 = vunpack.c.l.bf16 %v250
      %v315 = vunpack.c.l.bf16 %v251
      %v316 = vunpack.c.l.bf16 %v252
      %v317 = vunpack.c.l.bf16 %v253
      %v318 = vunpack.c.l.bf16 %v254
      %v319 = vunpack.c.l.bf16 %v255
      %v320 = vunpack.c.l.bf16 %v256
      %v321 = vunpack.c.l.bf16 %v257
      %v322 = vunpack.c.l.bf16 %v258
      %v323 = vunpack.c.l.bf16 %v259
      %v324 = vunpack.c.l.bf16 %v260
      %v325 = vunpack.c.l.bf16 %v261
      %v326 = vunpack.c.l.bf16 %v262
      %v327 = vunpack.c.l.bf16 %v263
      %v328 = vunpack.c.l.bf16 %v264
      %v329 = vld [vmem:[%s1] sm:$0x1]
      %v330 = vmul.f32 %v329, 0.0006510417
      %v331 = vld [vmem:[%s1 + $0x1] sm:$0x1]
      %v332 = vmul.f32 %v331, 0.0006510417
      %v333 = vmul.f32 %v330, %v330
      %v334 = vsub.f32 %v332, %v333
      %v335 = vmax.f32 %v334, 0.0
      %v336 = vld [vmem:[%s2] sm:$0x1]
      %v337 = vadd.f32 %v335, 1e-05
      %v338 = vrsqrt.pop %v337
      %v339 = vmul.f32 %v336, %v338
      %v340 = vld [vmem:[%s3] sm:$0x1]
      %v341 = vmul.f32 %v330, %v339
      %v342 = vsub.f32 %v340, %v341
      %v344 = vlaneseq
      %v345 = vshrl.u32 %v344, 7
      %v346 = vsub.s32 0, %v345
      %v347 = vrot.slane %v339, %v346
      %v349 = vmul.f32 %v265, %v347
      %v350 = vmul.f32 %v266, %v347
      %v351 = vmul.f32 %v267, %v347
      %v352 = vmul.f32 %v268, %v347
      %v353 = vmul.f32 %v269, %v347
      %v354 = vmul.f32 %v270, %v347
      %v355 = vmul.f32 %v271, %v347
      %v356 = vmul.f32 %v272, %v347
      %v357 = vmul.f32 %v273, %v347
      %v358 = vmul.f32 %v274, %v347
      %v359 = vmul.f32 %v275, %v347
      %v360 = vmul.f32 %v276, %v347
      %v361 = vmul.f32 %v277, %v347
      %v362 = vmul.f32 %v278, %v347
      %v363 = vmul.f32 %v279, %v347
      %v364 = vmul.f32 %v280, %v347
      %v365 = vmul.f32 %v281, %v347
      %v366 = vmul.f32 %v282, %v347
      %v367 = vmul.f32 %v283, %v347
      %v368 = vmul.f32 %v284, %v347
      %v369 = vmul.f32 %v285, %v347
      %v370 = vmul.f32 %v286, %v347
      %v371 = vmul.f32 %v287, %v347
      %v372 = vmul.f32 %v288, %v347
      %v373 = vmul.f32 %v289, %v347
      %v374 = vmul.f32 %v290, %v347
      %v375 = vmul.f32 %v291, %v347
      %v376 = vmul.f32 %v292, %v347
      %v377 = vmul.f32 %v293, %v347
      %v378 = vmul.f32 %v294, %v347
      %v379 = vmul.f32 %v295, %v347
      %v380 = vmul.f32 %v296, %v347
      %v381 = vmul.f32 %v297, %v347
      %v382 = vmul.f32 %v298, %v347
      %v383 = vmul.f32 %v299, %v347
      %v384 = vmul.f32 %v300, %v347
      %v385 = vmul.f32 %v301, %v347
      %v386 = vmul.f32 %v302, %v347
      %v387 = vmul.f32 %v303, %v347
      %v388 = vmul.f32 %v304, %v347
      %v389 = vmul.f32 %v305, %v347
      %v390 = vmul.f32 %v306, %v347
      %v391 = vmul.f32 %v307, %v347
      %v392 = vmul.f32 %v308, %v347
      %v393 = vmul.f32 %v309, %v347
      %v394 = vmul.f32 %v310, %v347
      %v395 = vmul.f32 %v311, %v347
      %v396 = vmul.f32 %v312, %v347
      %v397 = vmul.f32 %v313, %v347
      %v398 = vmul.f32 %v314, %v347
      %v399 = vmul.f32 %v315, %v347
      %v400 = vmul.f32 %v316, %v347
      %v401 = vmul.f32 %v317, %v347
      %v402 = vmul.f32 %v318, %v347
      %v403 = vmul.f32 %v319, %v347
      %v404 = vmul.f32 %v320, %v347
      %v405 = vmul.f32 %v321, %v347
      %v406 = vmul.f32 %v322, %v347
      %v407 = vmul.f32 %v323, %v347
      %v408 = vmul.f32 %v324, %v347
      %v409 = vmul.f32 %v325, %v347
      %v410 = vmul.f32 %v326, %v347
      %v411 = vmul.f32 %v327, %v347
      %v412 = vmul.f32 %v328, %v347
      %v414 = vlaneseq
      %v415 = vshrl.u32 %v414, 7
      %v416 = vsub.s32 0, %v415
      %v417 = vrot.slane %v342, %v416
      %v419 = vadd.f32 %v349, %v417
      %v420 = vadd.f32 %v350, %v417
      %v421 = vadd.f32 %v351, %v417
      %v422 = vadd.f32 %v352, %v417
      %v423 = vadd.f32 %v353, %v417
      %v424 = vadd.f32 %v354, %v417
      %v425 = vadd.f32 %v355, %v417
      %v426 = vadd.f32 %v356, %v417
      %v427 = vadd.f32 %v357, %v417
      %v428 = vadd.f32 %v358, %v417
      %v429 = vadd.f32 %v359, %v417
      %v430 = vadd.f32 %v360, %v417
      %v431 = vadd.f32 %v361, %v417
      %v432 = vadd.f32 %v362, %v417
      %v433 = vadd.f32 %v363, %v417
      %v434 = vadd.f32 %v364, %v417
      %v435 = vadd.f32 %v365, %v417
      %v436 = vadd.f32 %v366, %v417
      %v437 = vadd.f32 %v367, %v417
      %v438 = vadd.f32 %v368, %v417
      %v439 = vadd.f32 %v369, %v417
      %v440 = vadd.f32 %v370, %v417
      %v441 = vadd.f32 %v371, %v417
      %v442 = vadd.f32 %v372, %v417
      %v443 = vadd.f32 %v373, %v417
      %v444 = vadd.f32 %v374, %v417
      %v445 = vadd.f32 %v375, %v417
      %v446 = vadd.f32 %v376, %v417
      %v447 = vadd.f32 %v377, %v417
      %v448 = vadd.f32 %v378, %v417
      %v449 = vadd.f32 %v379, %v417
      %v450 = vadd.f32 %v380, %v417
      %v451 = vadd.f32 %v381, %v417
      %v452 = vadd.f32 %v382, %v417
      %v453 = vadd.f32 %v383, %v417
      %v454 = vadd.f32 %v384, %v417
      %v455 = vadd.f32 %v385, %v417
      %v456 = vadd.f32 %v386, %v417
      %v457 = vadd.f32 %v387, %v417
      %v458 = vadd.f32 %v388, %v417
      %v459 = vadd.f32 %v389, %v417
      %v460 = vadd.f32 %v390, %v417
      %v461 = vadd.f32 %v391, %v417
      %v462 = vadd.f32 %v392, %v417
      %v463 = vadd.f32 %v393, %v417
      %v464 = vadd.f32 %v394, %v417
      %v465 = vadd.f32 %v395, %v417
      %v466 = vadd.f32 %v396, %v417
      %v467 = vadd.f32 %v397, %v417
      %v468 = vadd.f32 %v398, %v417
      %v469 = vadd.f32 %v399, %v417
      %v470 = vadd.f32 %v400, %v417
      %v471 = vadd.f32 %v401, %v417
      %v472 = vadd.f32 %v402, %v417
      %v473 = vadd.f32 %v403, %v417
      %v474 = vadd.f32 %v404, %v417
      %v475 = vadd.f32 %v405, %v417
      %v476 = vadd.f32 %v406, %v417
      %v477 = vadd.f32 %v407, %v417
      %v478 = vadd.f32 %v408, %v417
      %v479 = vadd.f32 %v409, %v417
      %v480 = vadd.f32 %v410, %v417
      %v481 = vadd.f32 %v411, %v417
      %v482 = vadd.f32 %v412, %v417
      %v483 = vpack.c.bf16 %v420, %v419
      %v484 = vpack.c.bf16 %v422, %v421
      %v485 = vpack.c.bf16 %v424, %v423
      %v486 = vpack.c.bf16 %v426, %v425
      %v487 = vpack.c.bf16 %v428, %v427
      %v488 = vpack.c.bf16 %v430, %v429
      %v489 = vpack.c.bf16 %v432, %v431
      %v490 = vpack.c.bf16 %v434, %v433
      %v491 = vpack.c.bf16 %v436, %v435
      %v492 = vpack.c.bf16 %v438, %v437
      %v493 = vpack.c.bf16 %v440, %v439
      %v494 = vpack.c.bf16 %v442, %v441
      %v495 = vpack.c.bf16 %v444, %v443
      %v496 = vpack.c.bf16 %v446, %v445
      %v497 = vpack.c.bf16 %v448, %v447
      %v498 = vpack.c.bf16 %v450, %v449
      %v499 = vpack.c.bf16 %v452, %v451
      %v500 = vpack.c.bf16 %v454, %v453
      %v501 = vpack.c.bf16 %v456, %v455
      %v502 = vpack.c.bf16 %v458, %v457
      %v503 = vpack.c.bf16 %v460, %v459
      %v504 = vpack.c.bf16 %v462, %v461
      %v505 = vpack.c.bf16 %v464, %v463
      %v506 = vpack.c.bf16 %v466, %v465
      %v507 = vpack.c.bf16 %v468, %v467
      %v508 = vpack.c.bf16 %v470, %v469
      %v509 = vpack.c.bf16 %v472, %v471
      %v510 = vpack.c.bf16 %v474, %v473
      %v511 = vpack.c.bf16 %v476, %v475
      %v512 = vpack.c.bf16 %v478, %v477
      %v513 = vpack.c.bf16 %v480, %v479
      %v514 = vpack.c.bf16 %v482, %v481
      %v547 = vunpack.c.l.b16 %v483
      %v548 = vunpack.c.h.b16 %v483
      %v549 = vunpack.c.l.b16 %v484
      %v550 = vunpack.c.h.b16 %v484
      %v551 = vunpack.c.l.b16 %v485
      %v552 = vunpack.c.h.b16 %v485
      %v553 = vunpack.c.l.b16 %v486
      %v554 = vunpack.c.h.b16 %v486
      %v555 = vunpack.c.l.b16 %v487
      %v556 = vunpack.c.h.b16 %v487
      %v557 = vunpack.c.l.b16 %v488
      %v558 = vunpack.c.h.b16 %v488
      %v559 = vunpack.c.l.b16 %v489
      %v560 = vunpack.c.h.b16 %v489
      %v561 = vunpack.c.l.b16 %v490
      %v562 = vunpack.c.h.b16 %v490
      %v563 = vunpack.c.l.b16 %v491
      %v564 = vunpack.c.h.b16 %v491
      %v565 = vunpack.c.l.b16 %v492
      %v566 = vunpack.c.h.b16 %v492
      %v567 = vunpack.c.l.b16 %v493
      %v568 = vunpack.c.h.b16 %v493
      %v569 = vunpack.c.l.b16 %v494
      %v570 = vunpack.c.h.b16 %v494
      %v571 = vunpack.c.l.b16 %v495
      %v572 = vunpack.c.h.b16 %v495
      %v573 = vunpack.c.l.b16 %v496
      %v574 = vunpack.c.h.b16 %v496
      %v575 = vunpack.c.l.b16 %v497
      %v576 = vunpack.c.h.b16 %v497
      %v577 = vunpack.c.l.b16 %v498
      %v578 = vunpack.c.h.b16 %v498
      %v579 = vunpack.c.l.b16 %v499
      %v580 = vunpack.c.h.b16 %v499
      %v581 = vunpack.c.l.b16 %v500
      %v582 = vunpack.c.h.b16 %v500
      %v583 = vunpack.c.l.b16 %v501
      %v584 = vunpack.c.h.b16 %v501
      %v585 = vunpack.c.l.b16 %v502
      %v586 = vunpack.c.h.b16 %v502
      %v587 = vunpack.c.l.b16 %v503
      %v588 = vunpack.c.h.b16 %v503
      %v589 = vunpack.c.l.b16 %v504
      %v590 = vunpack.c.h.b16 %v504
      %v591 = vunpack.c.l.b16 %v505
      %v592 = vunpack.c.h.b16 %v505
      %v593 = vunpack.c.l.b16 %v506
      %v594 = vunpack.c.h.b16 %v506
      %v595 = vunpack.c.l.b16 %v507
      %v596 = vunpack.c.h.b16 %v507
      %v597 = vunpack.c.l.b16 %v508
      %v598 = vunpack.c.h.b16 %v508
      %v599 = vunpack.c.l.b16 %v509
      %v600 = vunpack.c.h.b16 %v509
      %v601 = vunpack.c.l.b16 %v510
      %v602 = vunpack.c.h.b16 %v510
      %v603 = vunpack.c.l.b16 %v511
      %v604 = vunpack.c.h.b16 %v511
      %v605 = vunpack.c.l.b16 %v512
      %v606 = vunpack.c.h.b16 %v512
      %v607 = vunpack.c.l.b16 %v513
      %v608 = vunpack.c.h.b16 %v513
      %v609 = vunpack.c.l.b16 %v514
      %v610 = vunpack.c.h.b16 %v514
      %v611 = vpack.c.b16 %v547, %v547
      %v612 = vpack.c.b16 %v548, %v548
      %v613 = vpack.c.b16 %v549, %v549
      %v614 = vpack.c.b16 %v550, %v550
      %v615 = vpack.c.b16 %v551, %v551
      %v616 = vpack.c.b16 %v552, %v552
      %v617 = vpack.c.b16 %v553, %v553
      %v618 = vpack.c.b16 %v554, %v554
      %v619 = vpack.c.b16 %v555, %v555
      %v620 = vpack.c.b16 %v556, %v556
      %v621 = vpack.c.b16 %v557, %v557
      %v622 = vpack.c.b16 %v558, %v558
      %v623 = vpack.c.b16 %v559, %v559
      %v624 = vpack.c.b16 %v560, %v560
      %v625 = vpack.c.b16 %v561, %v561
      %v626 = vpack.c.b16 %v562, %v562
      %v627 = vpack.c.b16 %v563, %v563
      %v628 = vpack.c.b16 %v564, %v564
      %v629 = vpack.c.b16 %v565, %v565
      %v630 = vpack.c.b16 %v566, %v566
      %v631 = vpack.c.b16 %v567, %v567
      %v632 = vpack.c.b16 %v568, %v568
      %v633 = vpack.c.b16 %v569, %v569
      %v634 = vpack.c.b16 %v570, %v570
      %v635 = vpack.c.b16 %v571, %v571
      %v636 = vpack.c.b16 %v572, %v572
      %v637 = vpack.c.b16 %v573, %v573
      %v638 = vpack.c.b16 %v574, %v574
      %v639 = vpack.c.b16 %v575, %v575
      %v640 = vpack.c.b16 %v576, %v576
      %v641 = vpack.c.b16 %v577, %v577
      %v642 = vpack.c.b16 %v578, %v578
      %v643 = vpack.c.b16 %v579, %v579
      %v644 = vpack.c.b16 %v580, %v580
      %v645 = vpack.c.b16 %v581, %v581
      %v646 = vpack.c.b16 %v582, %v582
      %v647 = vpack.c.b16 %v583, %v583
      %v648 = vpack.c.b16 %v584, %v584
      %v649 = vpack.c.b16 %v585, %v585
      %v650 = vpack.c.b16 %v586, %v586
      %v651 = vpack.c.b16 %v587, %v587
      %v652 = vpack.c.b16 %v588, %v588
      %v653 = vpack.c.b16 %v589, %v589
      %v654 = vpack.c.b16 %v590, %v590
      %v655 = vpack.c.b16 %v591, %v591
      %v656 = vpack.c.b16 %v592, %v592
      %v657 = vpack.c.b16 %v593, %v593
      %v658 = vpack.c.b16 %v594, %v594
      %v659 = vpack.c.b16 %v595, %v595
      %v660 = vpack.c.b16 %v596, %v596
      %v661 = vpack.c.b16 %v597, %v597
      %v662 = vpack.c.b16 %v598, %v598
      %v663 = vpack.c.b16 %v599, %v599
      %v664 = vpack.c.b16 %v600, %v600
      %v665 = vpack.c.b16 %v601, %v601
      %v666 = vpack.c.b16 %v602, %v602
      %v667 = vpack.c.b16 %v603, %v603
      %v668 = vpack.c.b16 %v604, %v604
      %v669 = vpack.c.b16 %v605, %v605
      %v670 = vpack.c.b16 %v606, %v606
      %v671 = vpack.c.b16 %v607, %v607
      %v672 = vpack.c.b16 %v608, %v608
      %v673 = vpack.c.b16 %v609, %v609
      %v674 = vpack.c.b16 %v610, %v610
      %vm739 = vcmask 27648
      %740 = vst.msk [vmem:[%s199] sm:$0xf] %vm739, %v611
      %741 = vst.msk [vmem:[%s199 + $0x4] sm:$0xf] %vm739, %v612
      %742 = vst.msk [vmem:[%s199 + $0x8] sm:$0xf] %vm739, %v613
      %743 = vst.msk [vmem:[%s199 + $0xc] sm:$0xf] %vm739, %v614
      %744 = vst.msk [vmem:[%s199 + $0x10] sm:$0xf] %vm739, %v615
      %745 = vst.msk [vmem:[%s199 + $0x14] sm:$0xf] %vm739, %v616
      %746 = vst.msk [vmem:[%s199 + $0x18] sm:$0xf] %vm739, %v617
      %747 = vst.msk [vmem:[%s199 + $0x1c] sm:$0xf] %vm739, %v618
      %748 = vst.msk [vmem:[%s199 + $0x20] sm:$0xf] %vm739, %v619
      %749 = vst.msk [vmem:[%s199 + $0x24] sm:$0xf] %vm739, %v620
      %750 = vst.msk [vmem:[%s199 + $0x28] sm:$0xf] %vm739, %v621
      %751 = vst.msk [vmem:[%s199 + $0x2c] sm:$0xf] %vm739, %v622
      %752 = vst.msk [vmem:[%s199 + $0x30] sm:$0xf] %vm739, %v623
      %753 = vst.msk [vmem:[%s199 + $0x34] sm:$0xf] %vm739, %v624
      %754 = vst.msk [vmem:[%s199 + $0x38] sm:$0xf] %vm739, %v625
      %755 = vst.msk [vmem:[%s199 + $0x3c] sm:$0xf] %vm739, %v626
      %756 = vst.msk [vmem:[%s199 + $0x40] sm:$0xf] %vm739, %v627
      %757 = vst.msk [vmem:[%s199 + $0x44] sm:$0xf] %vm739, %v628
      %758 = vst.msk [vmem:[%s199 + $0x48] sm:$0xf] %vm739, %v629
      %759 = vst.msk [vmem:[%s199 + $0x4c] sm:$0xf] %vm739, %v630
      %760 = vst.msk [vmem:[%s199 + $0x50] sm:$0xf] %vm739, %v631
      %761 = vst.msk [vmem:[%s199 + $0x54] sm:$0xf] %vm739, %v632
      %762 = vst.msk [vmem:[%s199 + $0x58] sm:$0xf] %vm739, %v633
      %763 = vst.msk [vmem:[%s199 + $0x5c] sm:$0xf] %vm739, %v634
      %764 = vst.msk [vmem:[%s199 + $0x60] sm:$0xf] %vm739, %v635
      %765 = vst.msk [vmem:[%s199 + $0x64] sm:$0xf] %vm739, %v636
      %766 = vst.msk [vmem:[%s199 + $0x68] sm:$0xf] %vm739, %v637
      %767 = vst.msk [vmem:[%s199 + $0x6c] sm:$0xf] %vm739, %v638
      %768 = vst.msk [vmem:[%s199 + $0x70] sm:$0xf] %vm739, %v639
      %769 = vst.msk [vmem:[%s199 + $0x74] sm:$0xf] %vm739, %v640
      %770 = vst.msk [vmem:[%s199 + $0x78] sm:$0xf] %vm739, %v641
      %771 = vst.msk [vmem:[%s199 + $0x7c] sm:$0xf] %vm739, %v642
      %772 = vst.msk [vmem:[%s199 + $0x80] sm:$0xf] %vm739, %v643
      %773 = vst.msk [vmem:[%s199 + $0x84] sm:$0xf] %vm739, %v644
      %774 = vst.msk [vmem:[%s199 + $0x88] sm:$0xf] %vm739, %v645
      %775 = vst.msk [vmem:[%s199 + $0x8c] sm:$0xf] %vm739, %v646
      %776 = vst.msk [vmem:[%s199 + $0x90] sm:$0xf] %vm739, %v647
      %777 = vst.msk [vmem:[%s199 + $0x94] sm:$0xf] %vm739, %v648
      %778 = vst.msk [vmem:[%s199 + $0x98] sm:$0xf] %vm739, %v649
      %779 = vst.msk [vmem:[%s199 + $0x9c] sm:$0xf] %vm739, %v650
      %780 = vst.msk [vmem:[%s199 + $0xa0] sm:$0xf] %vm739, %v651
      %781 = vst.msk [vmem:[%s199 + $0xa4] sm:$0xf] %vm739, %v652
      %782 = vst.msk [vmem:[%s199 + $0xa8] sm:$0xf] %vm739, %v653
      %783 = vst.msk [vmem:[%s199 + $0xac] sm:$0xf] %vm739, %v654
      %784 = vst.msk [vmem:[%s199 + $0xb0] sm:$0xf] %vm739, %v655
      %785 = vst.msk [vmem:[%s199 + $0xb4] sm:$0xf] %vm739, %v656
      %786 = vst.msk [vmem:[%s199 + $0xb8] sm:$0xf] %vm739, %v657
      %787 = vst.msk [vmem:[%s199 + $0xbc] sm:$0xf] %vm739, %v658
      %788 = vst.msk [vmem:[%s199 + $0xc0] sm:$0xf] %vm739, %v659
      %789 = vst.msk [vmem:[%s199 + $0xc4] sm:$0xf] %vm739, %v660
      %790 = vst.msk [vmem:[%s199 + $0xc8] sm:$0xf] %vm739, %v661
      %791 = vst.msk [vmem:[%s199 + $0xcc] sm:$0xf] %vm739, %v662
      %792 = vst.msk [vmem:[%s199 + $0xd0] sm:$0xf] %vm739, %v663
      %793 = vst.msk [vmem:[%s199 + $0xd4] sm:$0xf] %vm739, %v664
      %794 = vst.msk [vmem:[%s199 + $0xd8] sm:$0xf] %vm739, %v665
      %795 = vst.msk [vmem:[%s199 + $0xdc] sm:$0xf] %vm739, %v666
      %796 = vst.msk [vmem:[%s199 + $0xe0] sm:$0xf] %vm739, %v667
      %797 = vst.msk [vmem:[%s199 + $0xe4] sm:$0xf] %vm739, %v668
      %798 = vst.msk [vmem:[%s199 + $0xe8] sm:$0xf] %vm739, %v669
      %799 = vst.msk [vmem:[%s199 + $0xec] sm:$0xf] %vm739, %v670
      %800 = vst.msk [vmem:[%s199 + $0xf0] sm:$0xf] %vm739, %v671
      %801 = vst.msk [vmem:[%s199 + $0xf4] sm:$0xf] %vm739, %v672
      %802 = vst.msk [vmem:[%s199 + $0xf8] sm:$0xf] %vm739, %v673
      %803 = vst.msk [vmem:[%s199 + $0xfc] sm:$0xf] %vm739, %v674
      %s804 = smul.u32 64, %s15
      %p805 = scmp.lt.s32.totalorder %s804, 191
      %s806 = scalar_select %p805, %s804, 191
      %s807 = smul.addr %s806, 4
      %s808 = scalar_lea.vmem %s4, %s807
      // Predicated region
      $region37: #{generator_forward.24} parent=35 // pred_check
        %p809 = pneg %p122
      $region38: #{generator_forward.24} parent=35 // pred_check_branch
        %811 = sbr.rel (%p809) target = $region40
      $region39: #{generator_forward.24} parent=35 // pred_region
        %s812 = smul.u32 64, %s15
      $region40: #{generator_forward.24} parent=35 // pred_fallthru
        _
    $region36: #{generator_forward.24} parent=5 // pred_fallthru
      _
    %p813 = scmp.le.s32.totalorder 2, %s10
    // Predicated region
    $region41: #{generator_forward.24} parent=5 // pred_check
      %p814 = pneg %p813
    $region42: #{generator_forward.24} parent=5 // pred_check_branch
      %816 = sbr.rel (%p814) target = $region44
    $region43: #{generator_forward.24} parent=5 // pred_region
      %s817 = ssub.s32 %s10, 2
      // Predicated region
      $region45: #{generator_forward.24} parent=43 // pred_check
        %p818 = pneg %p128
      $region46: #{generator_forward.24} parent=43 // pred_check_branch
        %820 = sbr.rel (%p818) target = $region48
      $region47: #{generator_forward.24} parent=43 // pred_region
        %s821 = smul.u32 64, %s16
        %p822 = scmp.lt.s32.totalorder %s821, 191
        %s823 = scalar_select %p822, %s821, 191
        %s824 = smul.addr %s823, 4
        %s825 = scalar_lea.vmem %s4, %s824
      $region48: #{generator_forward.24} parent=43 // pred_fallthru
        _
    $region44: #{generator_forward.24} parent=5 // pred_fallthru
      _
  $region6: #{generator_forward.24} parent=0 // loop_footer
    %s14 = sadd.s32 1, %s10
  $region7: #{generator_forward.24} parent=0 // loop_footer_branch
    %9 = sbr.rel target = $region3
  $region8: #{generator_forward.24} parent=0 // loop_exit
    _

// kernel: generator_forward.25
$region0: #{generator_forward.25}
  #allocation0 [shape = 'u32[]', space=smem, size = 0x4, offset = 0x4, fixed_abs, tag = 'smem constant byte address 0x4 - core index']
  #allocation1 [shape = 'u32[144,128]{1,0:T(1,128)}', space=vmem, size = 0x12000, scoped, tag = 'internal scratch']
  #allocation2 [shape = 'f32[64,3]{1,0:T(8,128)}', space=vmem, size = 0x8000, scoped, tag = 'scratch operand']
  %s0 = inlined_call_operand.vmem [shape: bf16[2,51,67,4], index: 0, kind: input, shape index: {}]
  %s1 = inlined_call_operand.vmem [shape: bf16[4,4,4,3], index: 1, kind: input, shape index: {}]
  %s2 = inlined_call_operand.vmem [shape: f32[1,3], index: 2, kind: input, shape index: {}]
  %s3 = inlined_call_operand.vmem [shape: f32[2,48,64,3], index: 3, kind: output, shape index: {}]
  %s4 = sld [smem:[#allocation0]]
  $region53: #{generator_forward.25} parent=0
    _
  %s6 = ssub.s32 1, %s4
  %s7 = scalar_select 0, %s6, %s4
  loop: start=0, step=1, limit=386
  $region2: #{generator_forward.25} parent=0 // loop_pre_header
    _
  $region3: #{generator_forward.25} parent=0 // loop_header
    %s9 = sphi 0, %s13
    %p10 = scmp.ge.s32.totalorder %s9, 386
    %s16 = sphi 0, %s35
    %s17 = sphi 0, %s31
    %s18 = sphi 0, %s27
    %s19 = sphi 0, %s16
    %s20 = sphi 0, %s17
    %s21 = sphi 0, %s18
    %s22 = sphi 0, %s19
    %s23 = sphi 0, %s20
    %s24 = sphi 0, %s21
    %s42 = sphi 0, %s44
    %s45 = sphi 0, %s42
    %s46 = sphi 0, %s45
    %s62 = sphi 0, %s46
    %s68 = sphi 0, %s70
    %s71 = sphi 0, %s68
    %s72 = sphi 0, %s71
    %s88 = sphi 0, %s72
    %s92 = sphi 0, %s92
    %s94 = sphi 0, %s92
    %s95 = sphi 0, %s94
    %s109 = sphi 0, %s95
    %s117 = sphi 0, %s119
    %s120 = sphi 0, %s117
    %s121 = sphi 0, %s120
    %s137 = sphi 0, %s121
  $region4: #{generator_forward.25} parent=0 // loop_header_branch
    %12 = sbr.rel (%p10) target = $region8
  $region5: #{generator_forward.25} parent=0 // loop_body
    %s14 = ssub.s32 %s9, 1
    %s15 = ssub.s32 %s9, 2
    %s25 = sadd.s32 1, %s18
    %p26 = scmp.ge.s32.totalorder %s25, 4
    %s27 = scalar_select %p26, 0, %s25
    %s28 = sadd.s32 1, %s17
    %s29 = scalar_select %p26, %s28, %s17
    %p30 = scmp.ge.s32.totalorder %s29, 48
    %s31 = scalar_select %p30, 0, %s29
    %s32 = sadd.s32 1, %s16
    %s33 = scalar_select %p30, %s32, %s16
    %p34 = scmp.ge.s32.totalorder %s33, 2
    %s35 = scalar_select %p34, 0, %s33
    %s36 = sadd.s32 %s17, %s18
    %s37 = sadd.s32 %s31, %s27
    %s38 = ssub.s32 %s16, %s35
    %s39 = ssub.s32 %s36, %s37
    %s40 = sor.u32 %s38, %s39
    %p41 = scmp.eq.s32.totalorder %s40, 0
    %s43 = sadd.s32 %s42, 1
    %s44 = scalar_select %p41, %s42, %s43
    %p47 = pneg %p41
    %p48 = scmp.eq.s32.totalorder %s9, 383
    %p49 = por %p47, %p48
    %p50 = scmp.ne.s32.totalorder %s42, %s45
    %p51 = scmp.eq.s32.totalorder %s9, 0
    %p52 = por %p50, %p51
    %p53 = scmp.ne.s32.totalorder %s42, %s45
    %p54 = scmp.eq.s32.totalorder %s14, 383
    %p55 = por %p53, %p54
    %p56 = scmp.ne.s32.totalorder %s45, %s46
    %p57 = scmp.eq.s32.totalorder %s14, 0
    %p58 = por %p56, %p57
    %p59 = scmp.ne.s32.totalorder %s45, %s46
    %p60 = scmp.eq.s32.totalorder %s15, 383
    %p61 = por %p59, %p60
    %p63 = scmp.ne.s32.totalorder %s46, %s62
    %p64 = scmp.eq.s32.totalorder %s15, 0
    %p65 = por %p63, %p64
    %s66 = ssub.s32 %s18, %s27
    %p67 = scmp.eq.s32.totalorder %s66, 0
    %s69 = sadd.s32 %s68, 1
    %s70 = scalar_select %p67, %s68, %s69
    %p73 = pneg %p67
    %p74 = scmp.eq.s32.totalorder %s9, 383
    %p75 = por %p73, %p74
    %p76 = scmp.ne.s32.totalorder %s68, %s71
    %p77 = scmp.eq.s32.totalorder %s9, 0
    %p78 = por %p76, %p77
    %p79 = scmp.ne.s32.totalorder %s68, %s71
    %p80 = scmp.eq.s32.totalorder %s14, 383
    %p81 = por %p79, %p80
    %p82 = scmp.ne.s32.totalorder %s71, %s72
    %p83 = scmp.eq.s32.totalorder %s14, 0
    %p84 = por %p82, %p83
    %p85 = scmp.ne.s32.totalorder %s71, %s72
    %p86 = scmp.eq.s32.totalorder %s15, 383
    %p87 = por %p85, %p86
    %p89 = scmp.ne.s32.totalorder %s72, %s88
    %p90 = scmp.eq.s32.totalorder %s15, 0
    %p91 = por %p89, %p90
    %s93 = sadd.s32 %s92, 1
    %p96 = scmp.eq.s32.totalorder %s9, 383
    %p97 = scmp.ne.s32.totalorder %s92, %s94
    %p98 = scmp.eq.s32.totalorder %s9, 0
    %p99 = por %p97, %p98
    %p100 = scmp.ne.s32.totalorder %s92, %s94
    %p101 = scmp.eq.s32.totalorder %s14, 383
    %p102 = por %p100, %p101
    %p103 = scmp.ne.s32.totalorder %s94, %s95
    %p104 = scmp.eq.s32.totalorder %s14, 0
    %p105 = por %p103, %p104
    %p106 = scmp.ne.s32.totalorder %s94, %s95
    %p107 = scmp.eq.s32.totalorder %s15, 383
    %p108 = por %p106, %p107
    %p110 = scmp.ne.s32.totalorder %s95, %s109
    %p111 = scmp.eq.s32.totalorder %s15, 0
    %p112 = por %p110, %p111
    %s113 = ssub.s32 %s16, %s35
    %s114 = ssub.s32 %s17, %s31
    %s115 = sor.u32 %s113, %s114
    %p116 = scmp.eq.s32.totalorder %s115, 0
    %s118 = sadd.s32 %s117, 1
    %s119 = scalar_select %p116, %s117, %s118
    %p122 = pneg %p116
    %p123 = scmp.eq.s32.totalorder %s9, 383
    %p124 = por %p122, %p123
    %p125 = scmp.ne.s32.totalorder %s117, %s120
    %p126 = scmp.eq.s32.totalorder %s9, 0
    %p127 = por %p125, %p126
    %p128 = scmp.ne.s32.totalorder %s117, %s120
    %p129 = scmp.eq.s32.totalorder %s14, 383
    %p130 = por %p128, %p129
    %p131 = scmp.ne.s32.totalorder %s120, %s121
    %p132 = scmp.eq.s32.totalorder %s14, 0
    %p133 = por %p131, %p132
    %p134 = scmp.ne.s32.totalorder %s120, %s121
    %p135 = scmp.eq.s32.totalorder %s15, 383
    %p136 = por %p134, %p135
    %p138 = scmp.ne.s32.totalorder %s121, %s137
    %p139 = scmp.eq.s32.totalorder %s15, 0
    %p140 = por %p138, %p139
    %p141 = scmp.le.s32.totalorder 1, %s9
    %p142 = scmp.lt.s32.totalorder %s9, 385
    %p143 = pnand %p141, %p142
    %p144 = pneg %p143
    // Predicated region
    $region9: #{generator_forward.25} parent=5 // pred_check
      _
    $region10: #{generator_forward.25} parent=5 // pred_check_branch
      %146 = sbr.rel (%p143) target = $region12
    $region11: #{generator_forward.25} parent=5 // pred_region
      %s147 = ssub.s32 %s9, 1
      // Predicated region
      $region13: #{generator_forward.25} parent=11 // pred_check
        %p148 = pneg %p105
      $region14: #{generator_forward.25} parent=11 // pred_check_branch
        %150 = sbr.rel (%p148) target = $region16
      $region15: #{generator_forward.25} parent=11 // pred_region
        _
      $region16: #{generator_forward.25} parent=11 // pred_fallthru
        _
    $region12: #{generator_forward.25} parent=5 // pred_fallthru
      _
    %p151 = scmp.lt.s32.totalorder %s9, 384
    // Predicated region
    $region17: #{generator_forward.25} parent=5 // pred_check
      %p152 = pneg %p151
    $region18: #{generator_forward.25} parent=5 // pred_check_branch
      %154 = sbr.rel (%p152) target = $region20
    $region19: #{generator_forward.25} parent=5 // pred_region
      // Predicated region
      $region21: #{generator_forward.25} parent=19 // pred_check
        %p155 = pneg %p52
      $region22: #{generator_forward.25} parent=19 // pred_check_branch
        %157 = sbr.rel (%p155) target = $region24
      $region23: #{generator_forward.25} parent=19 // pred_region
        %s158 = sadd.s32 %s17, %s18
        %p159 = scmp.lt.s32.totalorder %s16, 1
        %s160 = scalar_select %p159, %s16, 1
        %p161 = scmp.lt.s32.totalorder %s158, 50
        %s162 = scalar_select %p161, %s158, 50
        %s163 = smul.addr %s162, 9
        %s164 = smul.addr %s160, 459
        %s165 = sadd.s32 %s163, %s164
        %s166 = smul.addr %s165, 4
        %s167 = scalar_lea.vmem %s0, %s166
        %s168 = sadd.s32 %s17, %s18
      $region24: #{generator_forward.25} parent=19 // pred_fallthru
        _
      // Predicated region
      $region25: #{generator_forward.25} parent=19 // pred_check
        %p169 = pneg %p78
      $region26: #{generator_forward.25} parent=19 // pred_check_branch
        %171 = sbr.rel (%p169) target = $region28
      $region27: #{generator_forward.25} parent=19 // pred_region
        %p172 = scmp.lt.s32.totalorder %s18, 3
        %s173 = scalar_select %p172, %s18, 3
        %s174 = smul.addr %s173, 4
        %s175 = smul.addr %s174, 2
        %s176 = scalar_lea.vmem %s1, %s175
      $region28: #{generator_forward.25} parent=19 // pred_fallthru
        _
    $region20: #{generator_forward.25} parent=5 // pred_fallthru
      _
    %p177 = scmp.le.s32.totalorder 1, %s9
    %p178 = scmp.lt.s32.totalorder %s9, 385
    %p179 = pnand %p177, %p178
    %p180 = pneg %p179
    // Predicated region
    $region29: #{generator_forward.25} parent=5 // pred_check
      _
    $region30: #{generator_forward.25} parent=5 // pred_check_branch
      %182 = sbr.rel (%p179) target = $region32
    $region31: #{generator_forward.25} parent=5 // pred_region
      %s183 = ssub.s32 %s9, 1
      %s184 = sadd.s32 %s20, %s21
      %p185 = scmp.lt.s32.totalorder %s19, 1
      %s186 = scalar_select %p185, %s19, 1
      %p187 = scmp.lt.s32.totalorder %s184, 50
      %s188 = scalar_select %p187, %s184, 50
      %s189 = smul.addr %s188, 9
      %s190 = smul.addr %s186, 459
      %s191 = sadd.s32 %s189, %s190
      %s192 = smul.addr %s191, 4
      %s193 = scalar_lea.vmem %s0, %s192
      %p194 = pneg %p58
      %p195 = pneg %p55
      %p196 = scmp.lt.s32.totalorder %s21, 3
      %s197 = scalar_select %p196, %s21, 3
      %s198 = smul.addr %s197, 4
      %s199 = smul.addr %s198, 2
      %s200 = scalar_lea.vmem %s1, %s199
      %p201 = pneg %p84
      %p202 = pneg %p81
      %p203 = pneg %p105
      %p204 = pneg %p102
      %p205 = pneg %p133
      %p206 = pneg %p130
      %p207 = scmp.lt.s32.totalorder %s19, 1
      %s208 = scalar_select %p207, %s19, 1
      %p209 = scmp.lt.s32.totalorder %s20, 47
      %s210 = scalar_select %p209, %s20, 47
      %s211 = smul.addr %s210, 8
      %s212 = smul.addr %s208, 384
      %s213 = sadd.s32 %s211, %s212
      %s214 = smul.addr %s213, 8
      %s215 = scalar_lea.vmem %s3, %s214
      %s216 = sadd.s32 %s20, %s21
      %p217 = scmp.lt.s32.totalorder %s19, 1
      %s218 = scalar_select %p217, %s19, 1
      %p219 = scmp.lt.s32.totalorder %s216, 50
      %s220 = scalar_select %p219, %s216, 50
      %s221 = smul.addr %s220, 9
      %s222 = smul.addr %s218, 459
      %s223 = sadd.s32 %s221, %s222
      %s224 = smul.addr %s223, 4
      %s225 = scalar_lea.vmem %s0, %s224
      %s226 = sadd.s32 %s20, %s21
      %p227 = scmp.lt.s32.totalorder %s21, 3
      %s228 = scalar_select %p227, %s21, 3
      %s229 = smul.addr %s228, 4
      %s230 = smul.addr %s229, 2
      %s231 = scalar_lea.vmem %s1, %s230
      %p232 = scmp.lt.s32.totalorder %s19, 1
      %s233 = scalar_select %p232, %s19, 1
      %p234 = scmp.lt.s32.totalorder %s20, 47
      %s235 = scalar_select %p234, %s20, 47
      %s236 = smul.addr %s235, 8
      %s237 = smul.addr %s233, 384
      %s238 = sadd.s32 %s236, %s237
      %s239 = smul.addr %s238, 8
      %s240 = scalar_lea.vmem %s3, %s239
      %p242 = scmp.eq.s32.totalorder %s21, 0
      // Predicated region
      $region33: #{generator_forward.25} parent=31 // pred_check
        %p243 = pneg %p242
      $region34: #{generator_forward.25} parent=31 // pred_check_branch
        %245 = sbr.rel (%p243) target = $region36
      $region35: #{generator_forward.25} parent=31 // pred_region
        %vm246 = vcmask 23552
        %247 = vst.msk [vmem:[#allocation2] sm:$0xff] %vm246, 0.0
        %248 = vst.msk [vmem:[#allocation2 + $0x8] sm:$0xff] %vm246, 0.0
        %249 = vst.msk [vmem:[#allocation2 + $0x10] sm:$0xff] %vm246, 0.0
        %250 = vst.msk [vmem:[#allocation2 + $0x18] sm:$0xff] %vm246, 0.0
        %251 = vst.msk [vmem:[#allocation2 + $0x20] sm:$0xff] %vm246, 0.0
        %252 = vst.msk [vmem:[#allocation2 + $0x28] sm:$0xff] %vm246, 0.0
        %253 = vst.msk [vmem:[#allocation2 + $0x30] sm:$0xff] %vm246, 0.0
        %254 = vst.msk [vmem:[#allocation2 + $0x38] sm:$0xff] %vm246, 0.0
      $region36: #{generator_forward.25} parent=31 // pred_fallthru
        _
      %v255 = vld [vmem:[#allocation2] sm:$0xff]
      %v256 = vld [vmem:[#allocation2 + $0x8] sm:$0xff]
      %v257 = vld [vmem:[#allocation2 + $0x10] sm:$0xff]
      %v258 = vld [vmem:[#allocation2 + $0x18] sm:$0xff]
      %v259 = vld [vmem:[#allocation2 + $0x20] sm:$0xff]
      %v260 = vld [vmem:[#allocation2 + $0x28] sm:$0xff]
      %v261 = vld [vmem:[#allocation2 + $0x30] sm:$0xff]
      %v262 = vld [vmem:[#allocation2 + $0x38] sm:$0xff]
      %v263 = vld [vmem:[%s225] sm:$0xf]
      %v264 = vld [vmem:[%s225 + $0x4] sm:$0xf]
      %v265 = vld [vmem:[%s225 + $0x8] sm:$0xf]
      %v266 = vld [vmem:[%s225 + $0xc] sm:$0xf]
      %v267 = vld [vmem:[%s225 + $0x10] sm:$0xf]
      %v268 = vld [vmem:[%s225 + $0x14] sm:$0xf]
      %v269 = vld [vmem:[%s225 + $0x18] sm:$0xf]
      %v270 = vld [vmem:[%s225 + $0x1c] sm:$0xf]
      %v271 = vld [vmem:[%s231] sm:$0x3]
      %v280 = vunpack.c.l.b16 %v263
      %v281 = vunpack.c.l.b16 %v264
      %v282 = vunpack.c.l.b16 %v265
      %v283 = vunpack.c.l.b16 %v266
      %v284 = vunpack.c.l.b16 %v267
      %v285 = vunpack.c.l.b16 %v268
      %v286 = vunpack.c.l.b16 %v269
      %v287 = vunpack.c.l.b16 %v270
      %v288 = vpack.c.b16 %v281, %v280
      %v289 = vpack.c.b16 %v283, %v282
      %v290 = vpack.c.b16 %v285, %v284
      %v291 = vpack.c.b16 %v287, %v286
      %vm292 = vcmask 31744
      %v294 = vsel %vm292, %v288, 0
      %v297 = vsel %vm292, %v289, 0
      %v300 = vsel %vm292, %v290, 0
      %v303 = vsel %vm292, %v291, 0
      %vm305 = vcmask 1041408
      %v307 = vsel %vm305, %v271, 0
      %309 = vmatprep.subr.bf16.mxu0 0
      %310 = vmatpush1.bf16.msra.mxu0 0
      %311 = vmatprep.subr.bf16.mxu0 0
      %312 = vmatpush1.bf16.msra.mxu0 0
      %313 = vmatprep.subr.bf16.mxu0 0
      %314 = vmatpush1.bf16.msra.mxu0 0
      %315 = vmatprep.subr.bf16.mxu0 0
      %316 = vmatpush1.bf16.msra.mxu0 0
      %317 = vmatprep.subr.bf16.mxu0 0
      %318 = vmatpush1.bf16.msra.mxu0 0
      %319 = vmatprep.subr.bf16.mxu0 0
      %320 = vmatpush1.bf16.msra.mxu0 0
      %321 = vmatprep.subr.bf16.mxu0 0
      %322 = vmatpush1.bf16.msra.mxu0 0
      %323 = vmatprep.subr.bf16.mxu0 0
      %324 = vmatpush1.bf16.msra.mxu0 %v307
      %325 = vmatprep.subr.bf16.mxu0 0
      %326 = vmatpush2.bf16.msra.mxu0 0
      %327 = vmatprep.subr.bf16.mxu0 0
      %328 = vmatpush2.bf16.msra.mxu0 0
      %329 = vmatprep.subr.bf16.mxu0 0
      %330 = vmatpush2.bf16.msra.mxu0 0
      %331 = vmatprep.subr.bf16.mxu0 0
      %332 = vmatpush2.bf16.msra.mxu0 0
      %333 = vmatprep.subr.bf16.mxu0 0
      %334 = vmatpush2.bf16.msra.mxu0 0
      %335 = vmatprep.subr.bf16.mxu0 0
      %336 = vmatpush2.bf16.msra.mxu0 0
      %337 = vmatprep.subr.bf16.mxu0 0
      %338 = vmatpush2.bf16.msra.mxu0 0
      %339 = vmatprep.subr.bf16.mxu0 0
      %340 = vmatpush2.bf16.msra.mxu0 0
      %341 = vmatprep.mubr.bf16.mxu0 0
      %342 = vmatmul.mubr.bf16.gmra.mxu0 %v294
      %v343 = vpop.f32.mrf.mxu0
      %v344 = vadd.f32 0.0, %v343
      %v345 = vpop.f32.mrf.mxu0
      %v346 = vpop.f32.mrf.mxu0
      %v347 = vadd.f32 0.0, %v346
      %v348 = vpop.f32.mrf.mxu0
      %349 = vmatprep.mubr.bf16.mxu0 0
      %350 = vmatmul.mubr.bf16.gmra.mxu0 %v297
      %v351 = vpop.f32.mrf.mxu0
      %v352 = vadd.f32 0.0, %v351
      %v353 = vpop.f32.mrf.mxu0
      %v354 = vpop.f32.mrf.mxu0
      %v355 = vadd.f32 0.0, %v354
      %v356 = vpop.f32.mrf.mxu0
      %357 = vmatprep.mubr.bf16.mxu0 0
      %358 = vmatmul.mubr.bf16.gmra.mxu0 %v300
      %v359 = vpop.f32.mrf.mxu0
      %v360 = vadd.f32 0.0, %v359
      %v361 = vpop.f32.mrf.mxu0
      %v362 = vpop.f32.mrf.mxu0
      %v363 = vadd.f32 0.0, %v362
      %v364 = vpop.f32.mrf.mxu0
      %365 = vmatprep.mubr.bf16.mxu0 0
      %366 = vmatmul.mubr.bf16.gmra.mxu0 %v303
      %v367 = vpop.f32.mrf.mxu0
      %v368 = vadd.f32 0.0, %v367
      %v369 = vpop.f32.mrf.mxu0
      %v370 = vpop.f32.mrf.mxu0
      %v371 = vadd.f32 0.0, %v370
      %v372 = vpop.f32.mrf.mxu0
      %373 = vdwg.mxu0
      %v374 = vadd.f32 %v255, %v344
      %v375 = vadd.f32 %v256, %v347
      %v376 = vadd.f32 %v257, %v352
      %v377 = vadd.f32 %v258, %v355
      %v378 = vadd.f32 %v259, %v360
      %v379 = vadd.f32 %v260, %v363
      %v380 = vadd.f32 %v261, %v368
      %v381 = vadd.f32 %v262, %v371
      %v382 = vld [vmem:[%s225] sm:$0xf]
      %v383 = vld [vmem:[%s225 + $0x4] sm:$0xf]
      %v384 = vld [vmem:[%s225 + $0x8] sm:$0xf]
      %v385 = vld [vmem:[%s225 + $0xc] sm:$0xf]
      %v386 = vld [vmem:[%s225 + $0x10] sm:$0xf]
      %v387 = vld [vmem:[%s225 + $0x14] sm:$0xf]
      %v388 = vld [vmem:[%s225 + $0x18] sm:$0xf]
      %v389 = vld [vmem:[%s225 + $0x1c] sm:$0xf]
      %v390 = vld [vmem:[%s225 + $0x20] sm:$0x1]
      %s391 = scalar_lea.vmem %s231, 2
      %v392 = vld [vmem:[%s391] sm:$0x3]
      %v402 = vunpack.c.l.b16 %v382
      %v403 = vunpack.c.l.b16 %v383
      %v404 = vunpack.c.l.b16 %v384
      %v405 = vunpack.c.l.b16 %v385
      %v406 = vunpack.c.l.b16 %v386
      %v407 = vunpack.c.l.b16 %v387
      %v408 = vunpack.c.l.b16 %v388
      %v409 = vunpack.c.l.b16 %v389
      %v410 = vunpack.c.l.b16 %v390
      %v411 = vpack.c.b16 %v403, %v402
      %v412 = vpack.c.b16 %v405, %v404
      %v413 = vpack.c.b16 %v407, %v406
      %v414 = vpack.c.b16 %v409, %v408
      %v415 = vpack.c.b16 %v410, %v410
      %vm416 = vsmask.f32 7424
      %v418 = vshrl.u32 %v411, 16
      %v420 = vshll.u32 %v411, 16
      %v422 = vrot.slane %v420, 1
      %v423 = vor.u32 %v418, %v422
      %v425 = vshll.u32 %v412, 16
      %v427 = vrot.slane %v425, 1
      %v428 = vsel %vm416, %v423, %v427
      %v429 = vshrl.u32 %v412, 16
      %v431 = vor.u32 %v429, %v427
      %v433 = vshll.u32 %v413, 16
      %v435 = vrot.slane %v433, 1
      %v436 = vsel %vm416, %v431, %v435
      %v437 = vshrl.u32 %v413, 16
      %v439 = vor.u32 %v437, %v435
      %v441 = vshll.u32 %v414, 16
      %v443 = vrot.slane %v441, 1
      %v444 = vsel %vm416, %v439, %v443
      %v445 = vshrl.u32 %v414, 16
      %v447 = vor.u32 %v445, %v443
      %v449 = vshll.u32 %v415, 16
      %v451 = vrot.slane %v449, 1
      %v452 = vsel %vm416, %v447, %v451
      %v454 = vsel %vm292, %v428, 0
      %v457 = vsel %vm292, %v436, 0
      %v460 = vsel %vm292, %v444, 0
      %v463 = vsel %vm292, %v452, 0
      %v466 = vsel %vm305, %v392, 0
      %468 = vmatprep.subr.bf16.mxu0 0
      %469 = vmatpush1.bf16.msra.mxu0 0
      %470 = vmatprep.subr.bf16.mxu0 0
      %471 = vmatpush1.bf16.msra.mxu0 0
      %472 = vmatprep.subr.bf16.mxu0 0
      %473 = vmatpush1.bf16.msra.mxu0 0
      %474 = vmatprep.subr.bf16.mxu0 0
      %475 = vmatpush1.bf16.msra.mxu0 0
      %476 = vmatprep.subr.bf16.mxu0 0
      %477 = vmatpush1.bf16.msra.mxu0 0
      %478 = vmatprep.subr.bf16.mxu0 0
      %479 = vmatpush1.bf16.msra.mxu0 0
      %480 = vmatprep.subr.bf16.mxu0 0
      %481 = vmatpush1.bf16.msra.mxu0 0
      %482 = vmatprep.subr.bf16.mxu0 0
      %483 = vmatpush1.bf16.msra.mxu0 %v466
      %484 = vmatprep.subr.bf16.mxu0 0
      %485 = vmatpush2.bf16.msra.mxu0 0
      %486 = vmatprep.subr.bf16.mxu0 0
      %487 = vmatpush2.bf16.msra.mxu0 0
      %488 = vmatprep.subr.bf16.mxu0 0
      %489 = vmatpush2.bf16.msra.mxu0 0
      %490 = vmatprep.subr.bf16.mxu0 0
      %491 = vmatpush2.bf16.msra.mxu0 0
      %492 = vmatprep.subr.bf16.mxu0 0
      %493 = vmatpush2.bf16.msra.mxu0 0
      %494 = vmatprep.subr.bf16.mxu0 0
      %495 = vmatpush2.bf16.msra.mxu0 0
      %496 = vmatprep.subr.bf16.mxu0 0
      %497 = vmatpush2.bf16.msra.mxu0 0
      %498 = vmatprep.subr.bf16.mxu0 0
      %499 = vmatpush2.bf16.msra.mxu0 0
      %500 = vmatprep.mubr.bf16.mxu0 0
      %501 = vmatmul.mubr.bf16.gmra.mxu0 %v454
      %v502 = vpop.f32.mrf.mxu0
      %v503 = vadd.f32 0.0, %v502
      %v504 = vpop.f32.mrf.mxu0
      %v505 = vpop.f32.mrf.mxu0
      %v506 = vadd.f32 0.0, %v505
      %v507 = vpop.f32.mrf.mxu0
      %508 = vmatprep.mubr.bf16.mxu0 0
      %509 = vmatmul.mubr.bf16.gmra.mxu0 %v457
      %v510 = vpop.f32.mrf.mxu0
      %v511 = vadd.f32 0.0, %v510
      %v512 = vpop.f32.mrf.mxu0
      %v513 = vpop.f32.mrf.mxu0
      %v514 = vadd.f32 0.0, %v513
      %v515 = vpop.f32.mrf.mxu0
      %516 = vmatprep.mubr.bf16.mxu0 0
      %517 = vmatmul.mubr.bf16.gmra.mxu0 %v460
      %v518 = vpop.f32.mrf.mxu0
      %v519 = vadd.f32 0.0, %v518
      %v520 = vpop.f32.mrf.mxu0
      %v521 = vpop.f32.mrf.mxu0
      %v522 = vadd.f32 0.0, %v521
      %v523 = vpop.f32.mrf.mxu0
      %524 = vmatprep.mubr.bf16.mxu0 0
      %525 = vmatmul.mubr.bf16.gmra.mxu0 %v463
      %v526 = vpop.f32.mrf.mxu0
      %v527 = vadd.f32 0.0, %v526
      %v528 = vpop.f32.mrf.mxu0
      %v529 = vpop.f32.mrf.mxu0
      %v530 = vadd.f32 0.0, %v529
      %v531 = vpop.f32.mrf.mxu0
      %532 = vdwg.mxu0
      %v533 = vadd.f32 %v374, %v503
      %v534 = vadd.f32 %v375, %v506
      %v535 = vadd.f32 %v376, %v511
      %v536 = vadd.f32 %v377, %v514
      %v537 = vadd.f32 %v378, %v519
      %v538 = vadd.f32 %v379, %v522
      %v539 = vadd.f32 %v380, %v527
      %v540 = vadd.f32 %v381, %v530
      %v541 = vld [vmem:[%s225] sm:$0xe]
      %s542 = scalar_lea.vmem %s231, 4
      %v543 = vld [vmem:[%s542] sm:$0x3]
      %v545 = vunpack.c.l.b16 %v541
      %v546 = vpack.c.b16 %v403, %v545
      %vm547 = vcmask 1046528
      %v548 = vrot.slane %v546, 1
      %v549 = vrot.slane %v412, 1
      %v550 = vsel %vm547, %v548, %v549
      %v551 = vrot.slane %v413, 1
      %v552 = vsel %vm547, %v549, %v551
      %v553 = vrot.slane %v414, 1
      %v554 = vsel %vm547, %v551, %v553
      %v555 = vrot.slane %v415, 1
      %v556 = vsel %vm547, %v553, %v555
      %v558 = vsel %vm292, %v550, 0
      %v561 = vsel %vm292, %v552, 0
      %v564 = vsel %vm292, %v554, 0
      %v567 = vsel %vm292, %v556, 0
      %v570 = vsel %vm305, %v543, 0
      %572 = vmatprep.subr.bf16.mxu0 0
      %573 = vmatpush1.bf16.msra.mxu0 0
      %574 = vmatprep.subr.bf16.mxu0 0
      %575 = vmatpush1.bf16.msra.mxu0 0
      %576 = vmatprep.subr.bf16.mxu0 0
      %577 = vmatpush1.bf16.msra.mxu0 0
      %578 = vmatprep.subr.bf16.mxu0 0
      %579 = vmatpush1.bf16.msra.mxu0 0
      %580 = vmatprep.subr.bf16.mxu0 0
      %581 = vmatpush1.bf16.msra.mxu0 0
      %582 = vmatprep.subr.bf16.mxu0 0
      %583 = vmatpush1.bf16.msra.mxu0 0
      %584 = vmatprep.subr.bf16.mxu0 0
      %585 = vmatpush1.bf16.msra.mxu0 0
      %586 = vmatprep.subr.bf16.mxu0 0
      %587 = vmatpush1.bf16.msra.mxu0 %v570
      %588 = vmatprep.subr.bf16.mxu0 0
      %589 = vmatpush2.bf16.msra.mxu0 0
      %590 = vmatprep.subr.bf16.mxu0 0
      %591 = vmatpush2.bf16.msra.mxu0 0
      %592 = vmatprep.subr.bf16.mxu0 0
      %593 = vmatpush2.bf16.msra.mxu0 0
      %594 = vmatprep.subr.bf16.mxu0 0
      %595 = vmatpush2.bf16.msra.mxu0 0
      %596 = vmatprep.subr.bf16.mxu0 0
      %597 = vmatpush2.bf16.msra.mxu0 0
      %598 = vmatprep.subr.bf16.mxu0 0
      %599 = vmatpush2.bf16.msra.mxu0 0
      %600 = vmatprep.subr.bf16.mxu0 0
      %601 = vmatpush2.bf16.msra.mxu0 0
      %602 = vmatprep.subr.bf16.mxu0 0
      %603 = vmatpush2.bf16.msra.mxu0 0
      %604 = vmatprep.mubr.bf16.mxu0 0
      %605 = vmatmul.mubr.bf16.gmra.mxu0 %v558
      %v606 = vpop.f32.mrf.mxu0
      %v607 = vadd.f32 0.0, %v606
      %v608 = vpop.f32.mrf.mxu0
      %v609 = vpop.f32.mrf.mxu0
      %v610 = vadd.f32 0.0, %v609
      %v611 = vpop.f32.mrf.mxu0
      %612 = vmatprep.mubr.bf16.mxu0 0
      %613 = vmatmul.mubr.bf16.gmra.mxu0 %v561
      %v614 = vpop.f32.mrf.mxu0
      %v615 = vadd.f32 0.0, %v614
      %v616 = vpop.f32.mrf.mxu0
      %v617 = vpop.f32.mrf.mxu0
      %v618 = vadd.f32 0.0, %v617
      %v619 = vpop.f32.mrf.mxu0
      %620 = vmatprep.mubr.bf16.mxu0 0
      %621 = vmatmul.mubr.bf16.gmra.mxu0 %v564
      %v622 = vpop.f32.mrf.mxu0
      %v623 = vadd.f32 0.0, %v622
      %v624 = vpop.f32.mrf.mxu0
      %v625 = vpop.f32.mrf.mxu0
      %v626 = vadd.f32 0.0, %v625
      %v627 = vpop.f32.mrf.mxu0
      %628 = vmatprep.mubr.bf16.mxu0 0
      %629 = vmatmul.mubr.bf16.gmra.mxu0 %v567
      %v630 = vpop.f32.mrf.mxu0
      %v631 = vadd.f32 0.0, %v630
      %v632 = vpop.f32.mrf.mxu0
      %v633 = vpop.f32.mrf.mxu0
      %v634 = vadd.f32 0.0, %v633
      %v635 = vpop.f32.mrf.mxu0
      %636 = vdwg.mxu0
      %v637 = vadd.f32 %v533, %v607
      %v638 = vadd.f32 %v534, %v610
      %v639 = vadd.f32 %v535, %v615
      %v640 = vadd.f32 %v536, %v618
      %v641 = vadd.f32 %v537, %v623
      %v642 = vadd.f32 %v538, %v626
      %v643 = vadd.f32 %v539, %v631
      %v644 = vadd.f32 %v540, %v634
      %v645 = vld [vmem:[%s225 + $0x20] sm:$0x3]
      %s646 = scalar_lea.vmem %s231, 6
      %v647 = vld [vmem:[%s646] sm:$0x3]
      %v649 = vunpack.c.l.b16 %v645
      %v650 = vpack.c.b16 %v649, %v649
      %vm651 = vsmask.f32 6400
      %v653 = vshrl.u32 %v546, 16
      %v655 = vrot.slane %v653, 1
      %v656 = vshll.u32 %v546, 16
      %v658 = vrot.slane %v656, 2
      %v659 = vor.u32 %v655, %v658
      %v660 = vrot.slane %v429, 1
      %v661 = vrot.slane %v425, 2
      %v662 = vor.u32 %v660, %v661
      %v663 = vsel %vm651, %v659, %v662
      %v664 = vrot.slane %v437, 1
      %v665 = vrot.slane %v433, 2
      %v666 = vor.u32 %v664, %v665
      %v667 = vsel %vm651, %v662, %v666
      %v668 = vrot.slane %v445, 1
      %v669 = vrot.slane %v441, 2
      %v670 = vor.u32 %v668, %v669
      %v671 = vsel %vm651, %v666, %v670
      %v673 = vshrl.u32 %v650, 16
      %v675 = vrot.slane %v673, 1
      %v676 = vshll.u32 %v650, 16
      %v678 = vrot.slane %v676, 2
      %v679 = vor.u32 %v675, %v678
      %v680 = vsel %vm651, %v670, %v679
      %v682 = vsel %vm292, %v663, 0
      %v685 = vsel %vm292, %v667, 0
      %v688 = vsel %vm292, %v671, 0
      %v691 = vsel %vm292, %v680, 0
      %v694 = vsel %vm305, %v647, 0
      %696 = vmatprep.subr.bf16.mxu0 0
      %697 = vmatpush1.bf16.msra.mxu0 0
      %698 = vmatprep.subr.bf16.mxu0 0
      %699 = vmatpush1.bf16.msra.mxu0 0
      %700 = vmatprep.subr.bf16.mxu0 0
      %701 = vmatpush1.bf16.msra.mxu0 0
      %702 = vmatprep.subr.bf16.mxu0 0
      %703 = vmatpush1.bf16.msra.mxu0 0
      %704 = vmatprep.subr.bf16.mxu0 0
      %705 = vmatpush1.bf16.msra.mxu0 0
      %706 = vmatprep.subr.bf16.mxu0 0
      %707 = vmatpush1.bf16.msra.mxu0 0
      %708 = vmatprep.subr.bf16.mxu0 0
      %709 = vmatpush1.bf16.msra.mxu0 0
      %710 = vmatprep.subr.bf16.mxu0 0
      %711 = vmatpush1.bf16.msra.mxu0 %v694
      %712 = vmatprep.subr.bf16.mxu0 0
      %713 = vmatpush2.bf16.msra.mxu0 0
      %714 = vmatprep.subr.bf16.mxu0 0
      %715 = vmatpush2.bf16.msra.mxu0 0
      %716 = vmatprep.subr.bf16.mxu0 0
      %717 = vmatpush2.bf16.msra.mxu0 0
      %718 = vmatprep.subr.bf16.mxu0 0
      %719 = vmatpush2.bf16.msra.mxu0 0
      %720 = vmatprep.subr.bf16.mxu0 0
      %721 = vmatpush2.bf16.msra.mxu0 0
      %722 = vmatprep.subr.bf16.mxu0 0
      %723 = vmatpush2.bf16.msra.mxu0 0
      %724 = vmatprep.subr.bf16.mxu0 0
      %725 = vmatpush2.bf16.msra.mxu0 0
      %726 = vmatprep.subr.bf16.mxu0 0
      %727 = vmatpush2.bf16.msra.mxu0 0
      %728 = vmatprep.mubr.bf16.mxu0 0
      %729 = vmatmul.mubr.bf16.gmra.mxu0 %v682
      %v730 = vpop.f32.mrf.mxu0
      %v731 = vadd.f32 0.0, %v730
      %v732 = vpop.f32.mrf.mxu0
      %v733 = vpop.f32.mrf.mxu0
      %v734 = vadd.f32 0.0, %v733
      %v735 = vpop.f32.mrf.mxu0
      %736 = vmatprep.mubr.bf16.mxu0 0
      %737 = vmatmul.mubr.bf16.gmra.mxu0 %v685
      %v738 = vpop.f32.mrf.mxu0
      %v739 = vadd.f32 0.0, %v738
      %v740 = vpop.f32.mrf.mxu0
      %v741 = vpop.f32.mrf.mxu0
      %v742 = vadd.f32 0.0, %v741
      %v743 = vpop.f32.mrf.mxu0
      %744 = vmatprep.mubr.bf16.mxu0 0
      %745 = vmatmul.mubr.bf16.gmra.mxu0 %v688
      %v746 = vpop.f32.mrf.mxu0
      %v747 = vadd.f32 0.0, %v746
      %v748 = vpop.f32.mrf.mxu0
      %v749 = vpop.f32.mrf.mxu0
      %v750 = vadd.f32 0.0, %v749
      %v751 = vpop.f32.mrf.mxu0
      %752 = vmatprep.mubr.bf16.mxu0 0
      %753 = vmatmul.mubr.bf16.gmra.mxu0 %v691
      %v754 = vpop.f32.mrf.mxu0
      %v755 = vadd.f32 0.0, %v754
      %v756 = vpop.f32.mrf.mxu0
      %v757 = vpop.f32.mrf.mxu0
      %v758 = vadd.f32 0.0, %v757
      %v759 = vpop.f32.mrf.mxu0
      %760 = vdwg.mxu0
      %v761 = vadd.f32 %v637, %v731
      %v762 = vadd.f32 %v638, %v734
      %v763 = vadd.f32 %v639, %v739
      %v764 = vadd.f32 %v640, %v742
      %v765 = vadd.f32 %v641, %v747
      %v766 = vadd.f32 %v642, %v750
      %v767 = vadd.f32 %v643, %v755
      %v768 = vadd.f32 %v644, %v758
      %vm769 = vcmask 23552
      %770 = vst.msk [vmem:[#allocation2] sm:$0xff] %vm769, %v761
      %771 = vst.msk [vmem:[#allocation2 + $0x8] sm:$0xff] %vm769, %v762
      %772 = vst.msk [vmem:[#allocation2 + $0x10] sm:$0xff] %vm769, %v763
      %773 = vst.msk [vmem:[#allocation2 + $0x18] sm:$0xff] %vm769, %v764
      %774 = vst.msk [vmem:[#allocation2 + $0x20] sm:$0xff] %vm769, %v765
      %775 = vst.msk [vmem:[#allocation2 + $0x28] sm:$0xff] %vm769, %v766
      %776 = vst.msk [vmem:[#allocation2 + $0x30] sm:$0xff] %vm769, %v767
      %777 = vst.msk [vmem:[#allocation2 + $0x38] sm:$0xff] %vm769, %v768
      %p778 = scmp.eq.s32.totalorder %s21, 3
      // Predicated region
      $region37: #{generator_forward.25} parent=31 // pred_check
        %p779 = pneg %p778
      $region38: #{generator_forward.25} parent=31 // pred_check_branch
        %781 = sbr.rel (%p779) target = $region40
      $region39: #{generator_forward.25} parent=31 // pred_region
        %v782 = vld [vmem:[#allocation2] sm:$0xff]
        %v783 = vld [vmem:[#allocation2 + $0x8] sm:$0xff]
        %v784 = vld [vmem:[#allocation2 + $0x10] sm:$0xff]
        %v785 = vld [vmem:[#allocation2 + $0x18] sm:$0xff]
        %v786 = vld [vmem:[#allocation2 + $0x20] sm:$0xff]
        %v787 = vld [vmem:[#allocation2 + $0x28] sm:$0xff]
        %v788 = vld [vmem:[#allocation2 + $0x30] sm:$0xff]
        %v789 = vld [vmem:[#allocation2 + $0x38] sm:$0xff]
        %v790 = vld [vmem:[%s2] sm:$0x1]
        %v792 = vlaneseq
        %v793 = vshrl.u32 %v792, 7
        %v794 = vsub.s32 0, %v793
        %v795 = vrot.slane %v790, %v794
        %v797 = vadd.f32 %v782, %v795
        %v798 = vadd.f32 %v783, %v795
        %v799 = vadd.f32 %v784, %v795
        %v800 = vadd.f32 %v785, %v795
        %v801 = vadd.f32 %v786, %v795
        %v802 = vadd.f32 %v787, %v795
        %v803 = vadd.f32 %v788, %v795
        %v804 = vadd.f32 %v789, %v795
        %v805 = vtanh.pop %v797
        %v806 = vtanh.pop %v798
        %v807 = vtanh.pop %v799
        %v808 = vtanh.pop %v800
        %v809 = vtanh.pop %v801
        %v810 = vtanh.pop %v802
        %v811 = vtanh.pop %v803
        %v812 = vtanh.pop %v804
        %813 = vst.msk [vmem:[%s240] sm:$0xff] %vm769, %v805
        %814 = vst.msk [vmem:[%s240 + $0x8] sm:$0xff] %vm769, %v806
        %815 = vst.msk [vmem:[%s240 + $0x10] sm:$0xff] %vm769, %v807
        %816 = vst.msk [vmem:[%s240 + $0x18] sm:$0xff] %vm769, %v808
        %817 = vst.msk [vmem:[%s240 + $0x20] sm:$0xff] %vm769, %v809
        %818 = vst.msk [vmem:[%s240 + $0x28] sm:$0xff] %vm769, %v810
        %819 = vst.msk [vmem:[%s240 + $0x30] sm:$0xff] %vm769, %v811
        %820 = vst.msk [vmem:[%s240 + $0x38] sm:$0xff] %vm769, %v812
      $region40: #{generator_forward.25} parent=31 // pred_fallthru
        _
      %p821 = scmp.lt.s32.totalorder %s19, 1
      %s822 = scalar_select %p821, %s19, 1
      %p823 = scmp.lt.s32.totalorder %s20, 47
      %s824 = scalar_select %p823, %s20, 47
      %s825 = smul.addr %s824, 8
      %s826 = smul.addr %s822, 384
      %s827 = sadd.s32 %s825, %s826
      %s828 = smul.addr %s827, 8
      %s829 = scalar_lea.vmem %s3, %s828
      // Predicated region
      $region41: #{generator_forward.25} parent=31 // pred_check
        %p830 = pneg %p130
      $region42: #{generator_forward.25} parent=31 // pred_check_branch
        %832 = sbr.rel (%p830) target = $region44
      $region43: #{generator_forward.25} parent=31 // pred_region
        _
      $region44: #{generator_forward.25} parent=31 // pred_fallthru
        _
    $region32: #{generator_forward.25} parent=5 // pred_fallthru
      _
    %p833 = scmp.le.s32.totalorder 2, %s9
    // Predicated region
    $region45: #{generator_forward.25} parent=5 // pred_check
      %p834 = pneg %p833
    $region46: #{generator_forward.25} parent=5 // pred_check_branch
      %836 = sbr.rel (%p834) target = $region48
    $region47: #{generator_forward.25} parent=5 // pred_region
      %s837 = ssub.s32 %s9, 2
      // Predicated region
      $region49: #{generator_forward.25} parent=47 // pred_check
        %p838 = pneg %p136
      $region50: #{generator_forward.25} parent=47 // pred_check_branch
        %840 = sbr.rel (%p838) target = $region52
      $region51: #{generator_forward.25} parent=47 // pred_region
        %p841 = scmp.lt.s32.totalorder %s22, 1
        %s842 = scalar_select %p841, %s22, 1
        %p843 = scmp.lt.s32.totalorder %s23, 47
        %s844 = scalar_select %p843, %s23, 47
        %s845 = smul.addr %s844, 8
        %s846 = smul.addr %s842, 384
        %s847 = sadd.s32 %s845, %s846
        %s848 = smul.addr %s847, 8
        %s849 = scalar_lea.vmem %s3, %s848
      $region52: #{generator_forward.25} parent=47 // pred_fallthru
        _
    $region48: #{generator_forward.25} parent=5 // pred_fallthru
      _
  $region6: #{generator_forward.25} parent=0 // loop_footer
    %s13 = sadd.s32 1, %s9
  $region7: #{generator_forward.25} parent=0 // loop_footer_branch
    %8 = sbr.rel target = $region3
  $region8: #{generator_forward.25} parent=0 // loop_exit
    _

</llo_original>
